<compile_context>
chip_gen: v5e
topology: v5e:2x2
jax: 0.10.0
libtpu: 0.0.40
codegen_flags: <defaults>
</compile_context>

<pallas_src>
import jax
import jax.numpy as jnp
from jax import lax
from jax.experimental import pallas as pl
from jax.experimental.pallas import tpu as pltpu

EPS = 1e-5
C_IN = 1488
C_OUT = 248
H = W = 7
KH = KW = 5
PH = PW = 2

C_PAD = 1536          # 12 * 128 lanes
C_OUT_PAD = 256       # 2 * 128 lanes
NBLK = 2              # channel-block grid (keeps per-step overhead low)
C_BLK = C_PAD // NBLK # 768 = 6 * 128


def _fused_kernel(x_ref,       # [H, W, C_BLK]        input block (HWC)
                  g1_ref,      # [1, C_BLK]           BN1 gamma
                  b1_ref,      # [1, C_BLK]           BN1 beta
                  wdw_ref,     # [25, 1, C_BLK]       depthwise taps (leading axis)
                  g2_ref,      # [1, C_BLK]           BN2 gamma
                  b2_ref,      # [1, C_BLK]           BN2 beta
                  wpw_ref,     # [C_BLK, C_OUT_PAD]   1x1 conv weight block
                  o_ref,       # [H*W, C_OUT_PAD]     accumulated output
                  ypad_ref,    # scratch [H+4, W+4, C_BLK]  zero-halo activation
                  yshift_ref): # scratch [H+4, W,   C_BLK]  W-shifted slab
    i = pl.program_id(0)
    c = x_ref.shape[-1]
    inv_n = jnp.float32(1.0 / (H * W))   # batch == 1 -> stats over H*W

    # Zero the padded scratch once; only the interior is rewritten per step,
    # so the halo stays zero for every channel block.
    @pl.when(i == 0)
    def _():
        ypad_ref[...] = jnp.zeros_like(ypad_ref)

    x = x_ref[...]

    # ---------------- BatchNorm #1 (single pass) + ReLU, folded scale/shift --
    s1 = jnp.sum(x, axis=(0, 1), keepdims=True) * inv_n          # E[x]
    s2 = jnp.sum(x * x, axis=(0, 1), keepdims=True) * inv_n      # E[x^2]
    var1 = s2 - s1 * s1
    scale1 = g1_ref[...].reshape(1, 1, c) * lax.rsqrt(var1 + EPS)
    shift1 = b1_ref[...].reshape(1, 1, c) - s1 * scale1
    y = jnp.maximum(x * scale1 + shift1, 0.0)

    # single shifted store of the interior into the zero-halo scratch
    ypad_ref[pl.ds(PH, H), pl.ds(PW, W), :] = y

    # ---------------- Depthwise 5x5 conv, stride 1, pad 2 --------------------
    acc = jnp.zeros((H, W, c), jnp.float32)
    for kw in range(KW):                         # statically unrolled
        # hoisted (misaligned sublane) W shift: one relayout copy per kw
        yshift_ref[...] = ypad_ref[:, pl.ds(kw, W), :]
        for kh in range(KH):
            w_t = wdw_ref[kh * KW + kw].reshape(1, 1, c)   # leading-axis tap
            acc = acc + yshift_ref[pl.ds(kh, H), :, :] * w_t

    # ---------------- BatchNorm #2 (single pass) + ReLU ----------------------
    t1 = jnp.sum(acc, axis=(0, 1), keepdims=True) * inv_n
    t2 = jnp.sum(acc * acc, axis=(0, 1), keepdims=True) * inv_n
    var2 = t2 - t1 * t1
    scale2 = g2_ref[...].reshape(1, 1, c) * lax.rsqrt(var2 + EPS)
    shift2 = b2_ref[...].reshape(1, 1, c) - t1 * scale2
    z = jnp.maximum(acc * scale2 + shift2, 0.0)

    # ---------------- 1x1 pointwise conv: partial matmul on the MXU ----------
    part = jnp.dot(z.reshape(H * W, c), wpw_ref[...],
                   preferred_element_type=jnp.float32)     # [49, C_OUT_PAD]

    @pl.when(i == 0)
    def _():
        o_ref[...] = part

    @pl.when(i != 0)
    def _():
        o_ref[...] = o_ref[...] + part


def prepare_params(gamma1, beta1, w_dw, gamma2, beta2, w_pw):
    """One-time parameter layout transforms (hoisted out of the per-call path)."""
    def pad_c(v):
        return jnp.pad(v.astype(jnp.float32), (0, C_PAD - C_IN))

    g1 = pad_c(gamma1).reshape(1, C_PAD)
    b1 = pad_c(beta1).reshape(1, C_PAD)
    g2 = pad_c(gamma2).reshape(1, C_PAD)
    b2 = pad_c(beta2).reshape(1, C_PAD)

    # depthwise [Cin, 1, 5, 5] -> [25, 1, C_PAD] (per-tap weight on a leading axis)
    wdw = jnp.transpose(w_dw[:, 0].astype(jnp.float32), (1, 2, 0)).reshape(KH * KW, C_IN)
    wdw = jnp.pad(wdw, ((0, 0), (0, C_PAD - C_IN))).reshape(KH * KW, 1, C_PAD)

    # pointwise [Cout, Cin, 1, 1] -> [C_PAD, C_OUT_PAD]; padded rows/cols are zero
    wpw = jnp.transpose(w_pw[:, :, 0, 0].astype(jnp.float32), (1, 0))
    wpw = jnp.pad(wpw, ((0, C_PAD - C_IN), (0, C_OUT_PAD - C_OUT)))
    return g1, b1, wdw, g2, b2, wpw


@jax.jit
def m_forward(x_nchw, g1, b1, wdw, g2, b2, wpw):
    """x_nchw: [1, C_IN, H, W] -> [1, C_OUT, H, W] (matches PyTorch NCHW)."""
    n, c, h, w = x_nchw.shape
    # TODO(synk): only batch==1 is handled (the reference module input has N=1).
    x_hwc = jnp.transpose(x_nchw[0].astype(jnp.float32), (1, 2, 0))   # [H, W, Cin]
    x_hwc = jnp.pad(x_hwc, ((0, 0), (0, 0), (0, C_PAD - C_IN)))       # [H, W, C_PAD]

    out = pl.pallas_call(
        _fused_kernel,
        out_shape=jax.ShapeDtypeStruct((H * W, C_OUT_PAD), jnp.float32),
        grid=(NBLK,),
        in_specs=[
            pl.BlockSpec((H, W, C_BLK), lambda i: (0, 0, i)),          # x
            pl.BlockSpec((1, C_BLK), lambda i: (0, i)),                # gamma1
            pl.BlockSpec((1, C_BLK), lambda i: (0, i)),                # beta1
            pl.BlockSpec((KH * KW, 1, C_BLK), lambda i: (0, 0, i)),    # depthwise w
            pl.BlockSpec((1, C_BLK), lambda i: (0, i)),                # gamma2
            pl.BlockSpec((1, C_BLK), lambda i: (0, i)),                # beta2
            pl.BlockSpec((C_BLK, C_OUT_PAD), lambda i: (i, 0)),        # pointwise w
        ],
        out_specs=pl.BlockSpec((H * W, C_OUT_PAD), lambda i: (0, 0)),
        scratch_shapes=[
            pltpu.VMEM((H + 2 * PH, W + 2 * PW, C_BLK), jnp.float32),  # ypad
            pltpu.VMEM((H + 2 * PH, W, C_BLK), jnp.float32),           # yshift
        ],
        compiler_params=pltpu.CompilerParams(
            dimension_semantics=("arbitrary",)),                       # reduction axis
    )(x_hwc, g1, b1, wdw, g2, b2, wpw)

    out = out[:, :C_OUT].reshape(H, W, C_OUT)
    return jnp.transpose(out, (2, 0, 1))[None]                         # [1, Cout, H, W]


# --------------------------- pure-JAX reference -------------------------------
def _reference(x, gamma1, beta1, w_dw, gamma2, beta2, w_pw):
    def bn_relu(v, g, b):
        mean = jnp.mean(v, axis=(0, 2, 3), keepdims=True)
        var = jnp.mean((v - mean) ** 2, axis=(0, 2, 3), keepdims=True)
        out = (v - mean) * lax.rsqrt(var + EPS)
        out = out * g.reshape(1, -1, 1, 1) + b.reshape(1, -1, 1, 1)
        return jnp.maximum(out, 0.0)

    y = bn_relu(x, gamma1, beta1)
    y = lax.conv_general_dilated(
        y, w_dw, window_strides=(1, 1), padding=((2, 2), (2, 2)),
        feature_group_count=C_IN,
        dimension_numbers=("NCHW", "OIHW", "NCHW"))
    y = bn_relu(y, gamma2, beta2)
    y = lax.conv_general_dilated(
        y, w_pw, window_strides=(1, 1), padding=((0, 0), (0, 0)),
        dimension_numbers=("NCHW", "OIHW", "NCHW"))
    return y


if __name__ == "__main__":
    key = jax.random.PRNGKey(0)
    kx, k1, k2, k3, k4, k5, k6 = jax.random.split(key, 7)

    # deterministic synthetic parameters (module __init__ gives the shapes)
    x121 = jax.random.normal(kx, (1, C_IN, H, W), jnp.float32)
    gamma1 = 1.0 + 0.1 * jax.random.normal(k1, (C_IN,), jnp.float32)
    beta1 = 0.1 * jax.random.normal(k2, (C_IN,), jnp.float32)
    w_dw = 0.05 * jax.random.normal(k3, (C_IN, 1, KH, KW), jnp.float32)
    gamma2 = 1.0 + 0.1 * jax.random.normal(k4, (C_IN,), jnp.float32)
    beta2 = 0.1 * jax.random.normal(k5, (C_IN,), jnp.float32)
    w_pw = 0.05 * jax.random.normal(k6, (C_OUT, C_IN, 1, 1), jnp.float32)

    # one-time parameter layout prep (hoisted out of the per-call path)
    params = prepare_params(gamma1, beta1, w_dw, gamma2, beta2, w_pw)
    params = jax.tree_util.tree_map(jax.block_until_ready, params)

    out = jax.block_until_ready(m_forward(x121, *params))
    ref = jax.block_until_ready(
        _reference(x121, gamma1, beta1, w_dw, gamma2, beta2, w_pw))

    assert out.shape == (1, C_OUT, H, W), out.shape
    err = float(jnp.max(jnp.abs(out - ref)))
    assert jnp.allclose(out, ref, atol=2e-3, rtol=2e-3), err
    print("KERNEL_OK")
</pallas_src>

<mosaic_0001>
module attributes {stable_mosaic.version = 11 : i64} {
  func.func @_fused_kernel(%arg0: i32, %arg1: memref<7x7x768xf32, #tpu.memory_space<vmem>>, %arg2: memref<1x768xf32, #tpu.memory_space<vmem>>, %arg3: memref<1x768xf32, #tpu.memory_space<vmem>>, %arg4: memref<25x1x768xf32, #tpu.memory_space<vmem>>, %arg5: memref<1x768xf32, #tpu.memory_space<vmem>>, %arg6: memref<1x768xf32, #tpu.memory_space<vmem>>, %arg7: memref<768x256xf32, #tpu.memory_space<vmem>>, %arg8: memref<49x256xf32, #tpu.memory_space<vmem>>, %arg9: memref<11x11x768xf32, #tpu.memory_space<vmem>>, %arg10: memref<11x7x768xf32, #tpu.memory_space<vmem>>) attributes {dimension_semantics = [#tpu.dimension_semantics<arbitrary>], iteration_bounds = array<i64: 2>, scalar_prefetch = 0 : i64, scratch_operands = 2 : i64, tpu.core_type = #tpu.core_type<tc>, window_params = [{transform_indices = @transform_0, window_bounds = array<i64: 7, 7, 768>}, {transform_indices = @transform_1, window_bounds = array<i64: 1, 768>}, {transform_indices = @transform_2, window_bounds = array<i64: 1, 768>}, {transform_indices = @transform_3, window_bounds = array<i64: 25, 1, 768>}, {transform_indices = @transform_4, window_bounds = array<i64: 1, 768>}, {transform_indices = @transform_5, window_bounds = array<i64: 1, 768>}, {transform_indices = @transform_6, window_bounds = array<i64: 768, 256>}, {pipeline_mode = #tpu.pipeline_mode<synchronous>, transform_indices = @transform_7, window_bounds = array<i64: 49, 256>}]} {
    %c0_i32 = arith.constant 0 : i32
    %0 = arith.cmpi eq, %arg0, %c0_i32 : i32
    %1 = arith.extui %0 : i1 to i32
    %c0_i32_0 = arith.constant 0 : i32
    %2 = arith.cmpi ne, %1, %c0_i32_0 : i32
    scf.if %2 {
      %cst_189 = arith.constant 0.000000e+00 : f32
      %254 = vector.broadcast %cst_189 : f32 to vector<11x11x768xf32>
      %c0_190 = arith.constant 0 : index
      %c0_191 = arith.constant 0 : index
      %c0_192 = arith.constant 0 : index
      %255 = vector.load %arg9[%c0_190, %c0_191, %c0_192] : memref<11x11x768xf32, #tpu.memory_space<vmem>>, vector<11x11x768xf32>
      tpu.vector_store %arg9[%c0_190, %c0_191, %c0_192], %254 {strides = array<i32>} : memref<11x11x768xf32, #tpu.memory_space<vmem>>, vector<11x11x768xf32>,
    } else {
    }
    %c0 = arith.constant 0 : index
    %c0_1 = arith.constant 0 : index
    %c0_2 = arith.constant 0 : index
    %3 = vector.load %arg1[%c0, %c0_1, %c0_2] : memref<7x7x768xf32, #tpu.memory_space<vmem>>, vector<7x7x768xf32>
    %cst = arith.constant dense<0.000000e+00> : vector<768xf32>
    %4 = vector.multi_reduction <add>, %3, %cst [0, 1] : vector<7x7x768xf32> to vector<768xf32>
    %5 = vector.shape_cast %4 : vector<768xf32> to vector<1x1x768xf32>
    %cst_3 = arith.constant 0.0204081628 : f32
    %6 = vector.broadcast %cst_3 : f32 to vector<1x1x768xf32>
    %7 = arith.mulf %5, %6 : vector<1x1x768xf32>
    %8 = arith.mulf %3, %3 : vector<7x7x768xf32>
    %cst_4 = arith.constant dense<0.000000e+00> : vector<768xf32>
    %9 = vector.multi_reduction <add>, %8, %cst_4 [0, 1] : vector<7x7x768xf32> to vector<768xf32>
    %10 = vector.shape_cast %9 : vector<768xf32> to vector<1x1x768xf32>
    %cst_5 = arith.constant 0.0204081628 : f32
    %11 = vector.broadcast %cst_5 : f32 to vector<1x1x768xf32>
    %12 = arith.mulf %10, %11 : vector<1x1x768xf32>
    %13 = arith.mulf %7, %7 : vector<1x1x768xf32>
    %14 = arith.subf %12, %13 : vector<1x1x768xf32>
    %c0_6 = arith.constant 0 : index
    %c0_7 = arith.constant 0 : index
    %15 = vector.load %arg2[%c0_6, %c0_7] : memref<1x768xf32, #tpu.memory_space<vmem>>, vector<1x768xf32>
    %16 = vector.shape_cast %15 : vector<1x768xf32> to vector<1x1x768xf32>
    %cst_8 = arith.constant 9.99999974E-6 : f32
    %17 = vector.broadcast %cst_8 : f32 to vector<1x1x768xf32>
    %18 = arith.addf %14, %17 : vector<1x1x768xf32>
    %19 = math.rsqrt %18 : vector<1x1x768xf32>
    %20 = arith.mulf %16, %19 : vector<1x1x768xf32>
    %c0_9 = arith.constant 0 : index
    %c0_10 = arith.constant 0 : index
    %21 = vector.load %arg3[%c0_9, %c0_10] : memref<1x768xf32, #tpu.memory_space<vmem>>, vector<1x768xf32>
    %22 = vector.shape_cast %21 : vector<1x768xf32> to vector<1x1x768xf32>
    %23 = arith.mulf %7, %20 : vector<1x1x768xf32>
    %24 = arith.subf %22, %23 : vector<1x1x768xf32>
    %25 = vector.broadcast %20 : vector<1x1x768xf32> to vector<7x7x768xf32>
    %26 = arith.mulf %3, %25 : vector<7x7x768xf32>
    %27 = vector.broadcast %24 : vector<1x1x768xf32> to vector<7x7x768xf32>
    %28 = arith.addf %26, %27 : vector<7x7x768xf32>
    %cst_11 = arith.constant 0.000000e+00 : f32
    %29 = vector.broadcast %cst_11 : f32 to vector<7x7x768xf32>
    %30 = arith.maximumf %28, %29 : vector<7x7x768xf32>
    %c2 = arith.constant 2 : index
    %c2_12 = arith.constant 2 : index
    %c0_13 = arith.constant 0 : index
    %31 = vector.load %arg9[%c2, %c2_12, %c0_13] : memref<11x11x768xf32, #tpu.memory_space<vmem>>, vector<7x7x768xf32>
    tpu.vector_store %arg9[%c2, %c2_12, %c0_13], %30 {strides = array<i32>} : memref<11x11x768xf32, #tpu.memory_space<vmem>>, vector<7x7x768xf32>,
    %cst_14 = arith.constant 0.000000e+00 : f32
    %32 = vector.broadcast %cst_14 : f32 to vector<7x7x768xf32>
    %c0_15 = arith.constant 0 : index
    %c0_16 = arith.constant 0 : index
    %c0_17 = arith.constant 0 : index
    %33 = vector.load %arg9[%c0_15, %c0_16, %c0_17] : memref<11x11x768xf32, #tpu.memory_space<vmem>>, vector<11x7x768xf32>
    %c0_18 = arith.constant 0 : index
    %c0_19 = arith.constant 0 : index
    %c0_20 = arith.constant 0 : index
    %34 = vector.load %arg10[%c0_18, %c0_19, %c0_20] : memref<11x7x768xf32, #tpu.memory_space<vmem>>, vector<11x7x768xf32>
    tpu.vector_store %arg10[%c0_18, %c0_19, %c0_20], %33 {strides = array<i32>} : memref<11x7x768xf32, #tpu.memory_space<vmem>>, vector<11x7x768xf32>,
    %c0_21 = arith.constant 0 : index
    %c0_22 = arith.constant 0 : index
    %c0_23 = arith.constant 0 : index
    %35 = vector.load %arg4[%c0_21, %c0_22, %c0_23] : memref<25x1x768xf32, #tpu.memory_space<vmem>>, vector<1x1x768xf32>
    %36 = vector.shape_cast %35 : vector<1x1x768xf32> to vector<1x768xf32>
    %37 = vector.shape_cast %36 : vector<1x768xf32> to vector<1x1x768xf32>
    %c0_24 = arith.constant 0 : index
    %c0_25 = arith.constant 0 : index
    %c0_26 = arith.constant 0 : index
    %38 = vector.load %arg10[%c0_24, %c0_25, %c0_26] : memref<11x7x768xf32, #tpu.memory_space<vmem>>, vector<7x7x768xf32>
    %39 = vector.broadcast %37 : vector<1x1x768xf32> to vector<7x7x768xf32>
    %40 = arith.mulf %38, %39 : vector<7x7x768xf32>
    %41 = arith.addf %32, %40 : vector<7x7x768xf32>
    %c5 = arith.constant 5 : index
    %c0_27 = arith.constant 0 : index
    %c0_28 = arith.constant 0 : index
    %42 = vector.load %arg4[%c5, %c0_27, %c0_28] : memref<25x1x768xf32, #tpu.memory_space<vmem>>, vector<1x1x768xf32>
    %43 = vector.shape_cast %42 : vector<1x1x768xf32> to vector<1x768xf32>
    %44 = vector.shape_cast %43 : vector<1x768xf32> to vector<1x1x768xf32>
    %c1 = arith.constant 1 : index
    %c0_29 = arith.constant 0 : index
    %c0_30 = arith.constant 0 : index
    %45 = vector.load %arg10[%c1, %c0_29, %c0_30] : memref<11x7x768xf32, #tpu.memory_space<vmem>>, vector<7x7x768xf32>
    %46 = vector.broadcast %44 : vector<1x1x768xf32> to vector<7x7x768xf32>
    %47 = arith.mulf %45, %46 : vector<7x7x768xf32>
    %48 = arith.addf %41, %47 : vector<7x7x768xf32>
    %c10 = arith.constant 10 : index
    %c0_31 = arith.constant 0 : index
    %c0_32 = arith.constant 0 : index
    %49 = vector.load %arg4[%c10, %c0_31, %c0_32] : memref<25x1x768xf32, #tpu.memory_space<vmem>>, vector<1x1x768xf32>
    %50 = vector.shape_cast %49 : vector<1x1x768xf32> to vector<1x768xf32>
    %51 = vector.shape_cast %50 : vector<1x768xf32> to vector<1x1x768xf32>
    %c2_33 = arith.constant 2 : index
    %c0_34 = arith.constant 0 : index
    %c0_35 = arith.constant 0 : index
    %52 = vector.load %arg10[%c2_33, %c0_34, %c0_35] : memref<11x7x768xf32, #tpu.memory_space<vmem>>, vector<7x7x768xf32>
    %53 = vector.broadcast %51 : vector<1x1x768xf32> to vector<7x7x768xf32>
    %54 = arith.mulf %52, %53 : vector<7x7x768xf32>
    %55 = arith.addf %48, %54 : vector<7x7x768xf32>
    %c15 = arith.constant 15 : index
    %c0_36 = arith.constant 0 : index
    %c0_37 = arith.constant 0 : index
    %56 = vector.load %arg4[%c15, %c0_36, %c0_37] : memref<25x1x768xf32, #tpu.memory_space<vmem>>, vector<1x1x768xf32>
    %57 = vector.shape_cast %56 : vector<1x1x768xf32> to vector<1x768xf32>
    %58 = vector.shape_cast %57 : vector<1x768xf32> to vector<1x1x768xf32>
    %c3 = arith.constant 3 : index
    %c0_38 = arith.constant 0 : index
    %c0_39 = arith.constant 0 : index
    %59 = vector.load %arg10[%c3, %c0_38, %c0_39] : memref<11x7x768xf32, #tpu.memory_space<vmem>>, vector<7x7x768xf32>
    %60 = vector.broadcast %58 : vector<1x1x768xf32> to vector<7x7x768xf32>
    %61 = arith.mulf %59, %60 : vector<7x7x768xf32>
    %62 = arith.addf %55, %61 : vector<7x7x768xf32>
    %c20 = arith.constant 20 : index
    %c0_40 = arith.constant 0 : index
    %c0_41 = arith.constant 0 : index
    %63 = vector.load %arg4[%c20, %c0_40, %c0_41] : memref<25x1x768xf32, #tpu.memory_space<vmem>>, vector<1x1x768xf32>
    %64 = vector.shape_cast %63 : vector<1x1x768xf32> to vector<1x768xf32>
    %65 = vector.shape_cast %64 : vector<1x768xf32> to vector<1x1x768xf32>
    %c4 = arith.constant 4 : index
    %c0_42 = arith.constant 0 : index
    %c0_43 = arith.constant 0 : index
    %66 = vector.load %arg10[%c4, %c0_42, %c0_43] : memref<11x7x768xf32, #tpu.memory_space<vmem>>, vector<7x7x768xf32>
    %67 = vector.broadcast %65 : vector<1x1x768xf32> to vector<7x7x768xf32>
    %68 = arith.mulf %66, %67 : vector<7x7x768xf32>
    %69 = arith.addf %62, %68 : vector<7x7x768xf32>
    %c0_44 = arith.constant 0 : index
    %c1_45 = arith.constant 1 : index
    %c0_46 = arith.constant 0 : index
    %70 = vector.load %arg9[%c0_44, %c1_45, %c0_46] : memref<11x11x768xf32, #tpu.memory_space<vmem>>, vector<11x7x768xf32>
    %c0_47 = arith.constant 0 : index
    %c0_48 = arith.constant 0 : index
    %c0_49 = arith.constant 0 : index
    %71 = vector.load %arg10[%c0_47, %c0_48, %c0_49] : memref<11x7x768xf32, #tpu.memory_space<vmem>>, vector<11x7x768xf32>
    tpu.vector_store %arg10[%c0_47, %c0_48, %c0_49], %70 {strides = array<i32>} : memref<11x7x768xf32, #tpu.memory_space<vmem>>, vector<11x7x768xf32>,
    %c1_50 = arith.constant 1 : index
    %c0_51 = arith.constant 0 : index
    %c0_52 = arith.constant 0 : index
    %72 = vector.load %arg4[%c1_50, %c0_51, %c0_52] : memref<25x1x768xf32, #tpu.memory_space<vmem>>, vector<1x1x768xf32>
    %73 = vector.shape_cast %72 : vector<1x1x768xf32> to vector<1x768xf32>
    %74 = vector.shape_cast %73 : vector<1x768xf32> to vector<1x1x768xf32>
    %c0_53 = arith.constant 0 : index
    %c0_54 = arith.constant 0 : index
    %c0_55 = arith.constant 0 : index
    %75 = vector.load %arg10[%c0_53, %c0_54, %c0_55] : memref<11x7x768xf32, #tpu.memory_space<vmem>>, vector<7x7x768xf32>
    %76 = vector.broadcast %74 : vector<1x1x768xf32> to vector<7x7x768xf32>
    %77 = arith.mulf %75, %76 : vector<7x7x768xf32>
    %78 = arith.addf %69, %77 : vector<7x7x768xf32>
    %c6 = arith.constant 6 : index
    %c0_56 = arith.constant 0 : index
    %c0_57 = arith.constant 0 : index
    %79 = vector.load %arg4[%c6, %c0_56, %c0_57] : memref<25x1x768xf32, #tpu.memory_space<vmem>>, vector<1x1x768xf32>
    %80 = vector.shape_cast %79 : vector<1x1x768xf32> to vector<1x768xf32>
    %81 = vector.shape_cast %80 : vector<1x768xf32> to vector<1x1x768xf32>
    %c1_58 = arith.constant 1 : index
    %c0_59 = arith.constant 0 : index
    %c0_60 = arith.constant 0 : index
    %82 = vector.load %arg10[%c1_58, %c0_59, %c0_60] : memref<11x7x768xf32, #tpu.memory_space<vmem>>, vector<7x7x768xf32>
    %83 = vector.broadcast %81 : vector<1x1x768xf32> to vector<7x7x768xf32>
    %84 = arith.mulf %82, %83 : vector<7x7x768xf32>
    %85 = arith.addf %78, %84 : vector<7x7x768xf32>
    %c11 = arith.constant 11 : index
    %c0_61 = arith.constant 0 : index
    %c0_62 = arith.constant 0 : index
    %86 = vector.load %arg4[%c11, %c0_61, %c0_62] : memref<25x1x768xf32, #tpu.memory_space<vmem>>, vector<1x1x768xf32>
    %87 = vector.shape_cast %86 : vector<1x1x768xf32> to vector<1x768xf32>
    %88 = vector.shape_cast %87 : vector<1x768xf32> to vector<1x1x768xf32>
    %c2_63 = arith.constant 2 : index
    %c0_64 = arith.constant 0 : index
    %c0_65 = arith.constant 0 : index
    %89 = vector.load %arg10[%c2_63, %c0_64, %c0_65] : memref<11x7x768xf32, #tpu.memory_space<vmem>>, vector<7x7x768xf32>
    %90 = vector.broadcast %88 : vector<1x1x768xf32> to vector<7x7x768xf32>
    %91 = arith.mulf %89, %90 : vector<7x7x768xf32>
    %92 = arith.addf %85, %91 : vector<7x7x768xf32>
    %c16 = arith.constant 16 : index
    %c0_66 = arith.constant 0 : index
    %c0_67 = arith.constant 0 : index
    %93 = vector.load %arg4[%c16, %c0_66, %c0_67] : memref<25x1x768xf32, #tpu.memory_space<vmem>>, vector<1x1x768xf32>
    %94 = vector.shape_cast %93 : vector<1x1x768xf32> to vector<1x768xf32>
    %95 = vector.shape_cast %94 : vector<1x768xf32> to vector<1x1x768xf32>
    %c3_68 = arith.constant 3 : index
    %c0_69 = arith.constant 0 : index
    %c0_70 = arith.constant 0 : index
    %96 = vector.load %arg10[%c3_68, %c0_69, %c0_70] : memref<11x7x768xf32, #tpu.memory_space<vmem>>, vector<7x7x768xf32>
    %97 = vector.broadcast %95 : vector<1x1x768xf32> to vector<7x7x768xf32>
    %98 = arith.mulf %96, %97 : vector<7x7x768xf32>
    %99 = arith.addf %92, %98 : vector<7x7x768xf32>
    %c21 = arith.constant 21 : index
    %c0_71 = arith.constant 0 : index
    %c0_72 = arith.constant 0 : index
    %100 = vector.load %arg4[%c21, %c0_71, %c0_72] : memref<25x1x768xf32, #tpu.memory_space<vmem>>, vector<1x1x768xf32>
    %101 = vector.shape_cast %100 : vector<1x1x768xf32> to vector<1x768xf32>
    %102 = vector.shape_cast %101 : vector<1x768xf32> to vector<1x1x768xf32>
    %c4_73 = arith.constant 4 : index
    %c0_74 = arith.constant 0 : index
    %c0_75 = arith.constant 0 : index
    %103 = vector.load %arg10[%c4_73, %c0_74, %c0_75] : memref<11x7x768xf32, #tpu.memory_space<vmem>>, vector<7x7x768xf32>
    %104 = vector.broadcast %102 : vector<1x1x768xf32> to vector<7x7x768xf32>
    %105 = arith.mulf %103, %104 : vector<7x7x768xf32>
    %106 = arith.addf %99, %105 : vector<7x7x768xf32>
    %c0_76 = arith.constant 0 : index
    %c2_77 = arith.constant 2 : index
    %c0_78 = arith.constant 0 : index
    %107 = vector.load %arg9[%c0_76, %c2_77, %c0_78] : memref<11x11x768xf32, #tpu.memory_space<vmem>>, vector<11x7x768xf32>
    %c0_79 = arith.constant 0 : index
    %c0_80 = arith.constant 0 : index
    %c0_81 = arith.constant 0 : index
    %108 = vector.load %arg10[%c0_79, %c0_80, %c0_81] : memref<11x7x768xf32, #tpu.memory_space<vmem>>, vector<11x7x768xf32>
    tpu.vector_store %arg10[%c0_79, %c0_80, %c0_81], %107 {strides = array<i32>} : memref<11x7x768xf32, #tpu.memory_space<vmem>>, vector<11x7x768xf32>,
    %c2_82 = arith.constant 2 : index
    %c0_83 = arith.constant 0 : index
    %c0_84 = arith.constant 0 : index
    %109 = vector.load %arg4[%c2_82, %c0_83, %c0_84] : memref<25x1x768xf32, #tpu.memory_space<vmem>>, vector<1x1x768xf32>
    %110 = vector.shape_cast %109 : vector<1x1x768xf32> to vector<1x768xf32>
    %111 = vector.shape_cast %110 : vector<1x768xf32> to vector<1x1x768xf32>
    %c0_85 = arith.constant 0 : index
    %c0_86 = arith.constant 0 : index
    %c0_87 = arith.constant 0 : index
    %112 = vector.load %arg10[%c0_85, %c0_86, %c0_87] : memref<11x7x768xf32, #tpu.memory_space<vmem>>, vector<7x7x768xf32>
    %113 = vector.broadcast %111 : vector<1x1x768xf32> to vector<7x7x768xf32>
    %114 = arith.mulf %112, %113 : vector<7x7x768xf32>
    %115 = arith.addf %106, %114 : vector<7x7x768xf32>
    %c7 = arith.constant 7 : index
    %c0_88 = arith.constant 0 : index
    %c0_89 = arith.constant 0 : index
    %116 = vector.load %arg4[%c7, %c0_88, %c0_89] : memref<25x1x768xf32, #tpu.memory_space<vmem>>, vector<1x1x768xf32>
    %117 = vector.shape_cast %116 : vector<1x1x768xf32> to vector<1x768xf32>
    %118 = vector.shape_cast %117 : vector<1x768xf32> to vector<1x1x768xf32>
    %c1_90 = arith.constant 1 : index
    %c0_91 = arith.constant 0 : index
    %c0_92 = arith.constant 0 : index
    %119 = vector.load %arg10[%c1_90, %c0_91, %c0_92] : memref<11x7x768xf32, #tpu.memory_space<vmem>>, vector<7x7x768xf32>
    %120 = vector.broadcast %118 : vector<1x1x768xf32> to vector<7x7x768xf32>
    %121 = arith.mulf %119, %120 : vector<7x7x768xf32>
    %122 = arith.addf %115, %121 : vector<7x7x768xf32>
    %c12 = arith.constant 12 : index
    %c0_93 = arith.constant 0 : index
    %c0_94 = arith.constant 0 : index
    %123 = vector.load %arg4[%c12, %c0_93, %c0_94] : memref<25x1x768xf32, #tpu.memory_space<vmem>>, vector<1x1x768xf32>
    %124 = vector.shape_cast %123 : vector<1x1x768xf32> to vector<1x768xf32>
    %125 = vector.shape_cast %124 : vector<1x768xf32> to vector<1x1x768xf32>
    %c2_95 = arith.constant 2 : index
    %c0_96 = arith.constant 0 : index
    %c0_97 = arith.constant 0 : index
    %126 = vector.load %arg10[%c2_95, %c0_96, %c0_97] : memref<11x7x768xf32, #tpu.memory_space<vmem>>, vector<7x7x768xf32>
    %127 = vector.broadcast %125 : vector<1x1x768xf32> to vector<7x7x768xf32>
    %128 = arith.mulf %126, %127 : vector<7x7x768xf32>
    %129 = arith.addf %122, %128 : vector<7x7x768xf32>
    %c17 = arith.constant 17 : index
    %c0_98 = arith.constant 0 : index
    %c0_99 = arith.constant 0 : index
    %130 = vector.load %arg4[%c17, %c0_98, %c0_99] : memref<25x1x768xf32, #tpu.memory_space<vmem>>, vector<1x1x768xf32>
    %131 = vector.shape_cast %130 : vector<1x1x768xf32> to vector<1x768xf32>
    %132 = vector.shape_cast %131 : vector<1x768xf32> to vector<1x1x768xf32>
    %c3_100 = arith.constant 3 : index
    %c0_101 = arith.constant 0 : index
    %c0_102 = arith.constant 0 : index
    %133 = vector.load %arg10[%c3_100, %c0_101, %c0_102] : memref<11x7x768xf32, #tpu.memory_space<vmem>>, vector<7x7x768xf32>
    %134 = vector.broadcast %132 : vector<1x1x768xf32> to vector<7x7x768xf32>
    %135 = arith.mulf %133, %134 : vector<7x7x768xf32>
    %136 = arith.addf %129, %135 : vector<7x7x768xf32>
    %c22 = arith.constant 22 : index
    %c0_103 = arith.constant 0 : index
    %c0_104 = arith.constant 0 : index
    %137 = vector.load %arg4[%c22, %c0_103, %c0_104] : memref<25x1x768xf32, #tpu.memory_space<vmem>>, vector<1x1x768xf32>
    %138 = vector.shape_cast %137 : vector<1x1x768xf32> to vector<1x768xf32>
    %139 = vector.shape_cast %138 : vector<1x768xf32> to vector<1x1x768xf32>
    %c4_105 = arith.constant 4 : index
    %c0_106 = arith.constant 0 : index
    %c0_107 = arith.constant 0 : index
    %140 = vector.load %arg10[%c4_105, %c0_106, %c0_107] : memref<11x7x768xf32, #tpu.memory_space<vmem>>, vector<7x7x768xf32>
    %141 = vector.broadcast %139 : vector<1x1x768xf32> to vector<7x7x768xf32>
    %142 = arith.mulf %140, %141 : vector<7x7x768xf32>
    %143 = arith.addf %136, %142 : vector<7x7x768xf32>
    %c0_108 = arith.constant 0 : index
    %c3_109 = arith.constant 3 : index
    %c0_110 = arith.constant 0 : index
    %144 = vector.load %arg9[%c0_108, %c3_109, %c0_110] : memref<11x11x768xf32, #tpu.memory_space<vmem>>, vector<11x7x768xf32>
    %c0_111 = arith.constant 0 : index
    %c0_112 = arith.constant 0 : index
    %c0_113 = arith.constant 0 : index
    %145 = vector.load %arg10[%c0_111, %c0_112, %c0_113] : memref<11x7x768xf32, #tpu.memory_space<vmem>>, vector<11x7x768xf32>
    tpu.vector_store %arg10[%c0_111, %c0_112, %c0_113], %144 {strides = array<i32>} : memref<11x7x768xf32, #tpu.memory_space<vmem>>, vector<11x7x768xf32>,
    %c3_114 = arith.constant 3 : index
    %c0_115 = arith.constant 0 : index
    %c0_116 = arith.constant 0 : index
    %146 = vector.load %arg4[%c3_114, %c0_115, %c0_116] : memref<25x1x768xf32, #tpu.memory_space<vmem>>, vector<1x1x768xf32>
    %147 = vector.shape_cast %146 : vector<1x1x768xf32> to vector<1x768xf32>
    %148 = vector.shape_cast %147 : vector<1x768xf32> to vector<1x1x768xf32>
    %c0_117 = arith.constant 0 : index
    %c0_118 = arith.constant 0 : index
    %c0_119 = arith.constant 0 : index
    %149 = vector.load %arg10[%c0_117, %c0_118, %c0_119] : memref<11x7x768xf32, #tpu.memory_space<vmem>>, vector<7x7x768xf32>
    %150 = vector.broadcast %148 : vector<1x1x768xf32> to vector<7x7x768xf32>
    %151 = arith.mulf %149, %150 : vector<7x7x768xf32>
    %152 = arith.addf %143, %151 : vector<7x7x768xf32>
    %c8 = arith.constant 8 : index
    %c0_120 = arith.constant 0 : index
    %c0_121 = arith.constant 0 : index
    %153 = vector.load %arg4[%c8, %c0_120, %c0_121] : memref<25x1x768xf32, #tpu.memory_space<vmem>>, vector<1x1x768xf32>
    %154 = vector.shape_cast %153 : vector<1x1x768xf32> to vector<1x768xf32>
    %155 = vector.shape_cast %154 : vector<1x768xf32> to vector<1x1x768xf32>
    %c1_122 = arith.constant 1 : index
    %c0_123 = arith.constant 0 : index
    %c0_124 = arith.constant 0 : index
    %156 = vector.load %arg10[%c1_122, %c0_123, %c0_124] : memref<11x7x768xf32, #tpu.memory_space<vmem>>, vector<7x7x768xf32>
    %157 = vector.broadcast %155 : vector<1x1x768xf32> to vector<7x7x768xf32>
    %158 = arith.mulf %156, %157 : vector<7x7x768xf32>
    %159 = arith.addf %152, %158 : vector<7x7x768xf32>
    %c13 = arith.constant 13 : index
    %c0_125 = arith.constant 0 : index
    %c0_126 = arith.constant 0 : index
    %160 = vector.load %arg4[%c13, %c0_125, %c0_126] : memref<25x1x768xf32, #tpu.memory_space<vmem>>, vector<1x1x768xf32>
    %161 = vector.shape_cast %160 : vector<1x1x768xf32> to vector<1x768xf32>
    %162 = vector.shape_cast %161 : vector<1x768xf32> to vector<1x1x768xf32>
    %c2_127 = arith.constant 2 : index
    %c0_128 = arith.constant 0 : index
    %c0_129 = arith.constant 0 : index
    %163 = vector.load %arg10[%c2_127, %c0_128, %c0_129] : memref<11x7x768xf32, #tpu.memory_space<vmem>>, vector<7x7x768xf32>
    %164 = vector.broadcast %162 : vector<1x1x768xf32> to vector<7x7x768xf32>
    %165 = arith.mulf %163, %164 : vector<7x7x768xf32>
    %166 = arith.addf %159, %165 : vector<7x7x768xf32>
    %c18 = arith.constant 18 : index
    %c0_130 = arith.constant 0 : index
    %c0_131 = arith.constant 0 : index
    %167 = vector.load %arg4[%c18, %c0_130, %c0_131] : memref<25x1x768xf32, #tpu.memory_space<vmem>>, vector<1x1x768xf32>
    %168 = vector.shape_cast %167 : vector<1x1x768xf32> to vector<1x768xf32>
    %169 = vector.shape_cast %168 : vector<1x768xf32> to vector<1x1x768xf32>
    %c3_132 = arith.constant 3 : index
    %c0_133 = arith.constant 0 : index
    %c0_134 = arith.constant 0 : index
    %170 = vector.load %arg10[%c3_132, %c0_133, %c0_134] : memref<11x7x768xf32, #tpu.memory_space<vmem>>, vector<7x7x768xf32>
    %171 = vector.broadcast %169 : vector<1x1x768xf32> to vector<7x7x768xf32>
    %172 = arith.mulf %170, %171 : vector<7x7x768xf32>
    %173 = arith.addf %166, %172 : vector<7x7x768xf32>
    %c23 = arith.constant 23 : index
    %c0_135 = arith.constant 0 : index
    %c0_136 = arith.constant 0 : index
    %174 = vector.load %arg4[%c23, %c0_135, %c0_136] : memref<25x1x768xf32, #tpu.memory_space<vmem>>, vector<1x1x768xf32>
    %175 = vector.shape_cast %174 : vector<1x1x768xf32> to vector<1x768xf32>
    %176 = vector.shape_cast %175 : vector<1x768xf32> to vector<1x1x768xf32>
    %c4_137 = arith.constant 4 : index
    %c0_138 = arith.constant 0 : index
    %c0_139 = arith.constant 0 : index
    %177 = vector.load %arg10[%c4_137, %c0_138, %c0_139] : memref<11x7x768xf32, #tpu.memory_space<vmem>>, vector<7x7x768xf32>
    %178 = vector.broadcast %176 : vector<1x1x768xf32> to vector<7x7x768xf32>
    %179 = arith.mulf %177, %178 : vector<7x7x768xf32>
    %180 = arith.addf %173, %179 : vector<7x7x768xf32>
    %c0_140 = arith.constant 0 : index
    %c4_141 = arith.constant 4 : index
    %c0_142 = arith.constant 0 : index
    %181 = vector.load %arg9[%c0_140, %c4_141, %c0_142] : memref<11x11x768xf32, #tpu.memory_space<vmem>>, vector<11x7x768xf32>
    %c0_143 = arith.constant 0 : index
    %c0_144 = arith.constant 0 : index
    %c0_145 = arith.constant 0 : index
    %182 = vector.load %arg10[%c0_143, %c0_144, %c0_145] : memref<11x7x768xf32, #tpu.memory_space<vmem>>, vector<11x7x768xf32>
    tpu.vector_store %arg10[%c0_143, %c0_144, %c0_145], %181 {strides = array<i32>} : memref<11x7x768xf32, #tpu.memory_space<vmem>>, vector<11x7x768xf32>,
    %c4_146 = arith.constant 4 : index
    %c0_147 = arith.constant 0 : index
    %c0_148 = arith.constant 0 : index
    %183 = vector.load %arg4[%c4_146, %c0_147, %c0_148] : memref<25x1x768xf32, #tpu.memory_space<vmem>>, vector<1x1x768xf32>
    %184 = vector.shape_cast %183 : vector<1x1x768xf32> to vector<1x768xf32>
    %185 = vector.shape_cast %184 : vector<1x768xf32> to vector<1x1x768xf32>
    %c0_149 = arith.constant 0 : index
    %c0_150 = arith.constant 0 : index
    %c0_151 = arith.constant 0 : index
    %186 = vector.load %arg10[%c0_149, %c0_150, %c0_151] : memref<11x7x768xf32, #tpu.memory_space<vmem>>, vector<7x7x768xf32>
    %187 = vector.broadcast %185 : vector<1x1x768xf32> to vector<7x7x768xf32>
    %188 = arith.mulf %186, %187 : vector<7x7x768xf32>
    %189 = arith.addf %180, %188 : vector<7x7x768xf32>
    %c9 = arith.constant 9 : index
    %c0_152 = arith.constant 0 : index
    %c0_153 = arith.constant 0 : index
    %190 = vector.load %arg4[%c9, %c0_152, %c0_153] : memref<25x1x768xf32, #tpu.memory_space<vmem>>, vector<1x1x768xf32>
    %191 = vector.shape_cast %190 : vector<1x1x768xf32> to vector<1x768xf32>
    %192 = vector.shape_cast %191 : vector<1x768xf32> to vector<1x1x768xf32>
    %c1_154 = arith.constant 1 : index
    %c0_155 = arith.constant 0 : index
    %c0_156 = arith.constant 0 : index
    %193 = vector.load %arg10[%c1_154, %c0_155, %c0_156] : memref<11x7x768xf32, #tpu.memory_space<vmem>>, vector<7x7x768xf32>
    %194 = vector.broadcast %192 : vector<1x1x768xf32> to vector<7x7x768xf32>
    %195 = arith.mulf %193, %194 : vector<7x7x768xf32>
    %196 = arith.addf %189, %195 : vector<7x7x768xf32>
    %c14 = arith.constant 14 : index
    %c0_157 = arith.constant 0 : index
    %c0_158 = arith.constant 0 : index
    %197 = vector.load %arg4[%c14, %c0_157, %c0_158] : memref<25x1x768xf32, #tpu.memory_space<vmem>>, vector<1x1x768xf32>
    %198 = vector.shape_cast %197 : vector<1x1x768xf32> to vector<1x768xf32>
    %199 = vector.shape_cast %198 : vector<1x768xf32> to vector<1x1x768xf32>
    %c2_159 = arith.constant 2 : index
    %c0_160 = arith.constant 0 : index
    %c0_161 = arith.constant 0 : index
    %200 = vector.load %arg10[%c2_159, %c0_160, %c0_161] : memref<11x7x768xf32, #tpu.memory_space<vmem>>, vector<7x7x768xf32>
    %201 = vector.broadcast %199 : vector<1x1x768xf32> to vector<7x7x768xf32>
    %202 = arith.mulf %200, %201 : vector<7x7x768xf32>
    %203 = arith.addf %196, %202 : vector<7x7x768xf32>
    %c19 = arith.constant 19 : index
    %c0_162 = arith.constant 0 : index
    %c0_163 = arith.constant 0 : index
    %204 = vector.load %arg4[%c19, %c0_162, %c0_163] : memref<25x1x768xf32, #tpu.memory_space<vmem>>, vector<1x1x768xf32>
    %205 = vector.shape_cast %204 : vector<1x1x768xf32> to vector<1x768xf32>
    %206 = vector.shape_cast %205 : vector<1x768xf32> to vector<1x1x768xf32>
    %c3_164 = arith.constant 3 : index
    %c0_165 = arith.constant 0 : index
    %c0_166 = arith.constant 0 : index
    %207 = vector.load %arg10[%c3_164, %c0_165, %c0_166] : memref<11x7x768xf32, #tpu.memory_space<vmem>>, vector<7x7x768xf32>
    %208 = vector.broadcast %206 : vector<1x1x768xf32> to vector<7x7x768xf32>
    %209 = arith.mulf %207, %208 : vector<7x7x768xf32>
    %210 = arith.addf %203, %209 : vector<7x7x768xf32>
    %c24 = arith.constant 24 : index
    %c0_167 = arith.constant 0 : index
    %c0_168 = arith.constant 0 : index
    %211 = vector.load %arg4[%c24, %c0_167, %c0_168] : memref<25x1x768xf32, #tpu.memory_space<vmem>>, vector<1x1x768xf32>
    %212 = vector.shape_cast %211 : vector<1x1x768xf32> to vector<1x768xf32>
    %213 = vector.shape_cast %212 : vector<1x768xf32> to vector<1x1x768xf32>
    %c4_169 = arith.constant 4 : index
    %c0_170 = arith.constant 0 : index
    %c0_171 = arith.constant 0 : index
    %214 = vector.load %arg10[%c4_169, %c0_170, %c0_171] : memref<11x7x768xf32, #tpu.memory_space<vmem>>, vector<7x7x768xf32>
    %215 = vector.broadcast %213 : vector<1x1x768xf32> to vector<7x7x768xf32>
    %216 = arith.mulf %214, %215 : vector<7x7x768xf32>
    %217 = arith.addf %210, %216 : vector<7x7x768xf32>
    %cst_172 = arith.constant dense<0.000000e+00> : vector<768xf32>
    %218 = vector.multi_reduction <add>, %217, %cst_172 [0, 1] : vector<7x7x768xf32> to vector<768xf32>
    %219 = vector.shape_cast %218 : vector<768xf32> to vector<1x1x768xf32>
    %cst_173 = arith.constant 0.0204081628 : f32
    %220 = vector.broadcast %cst_173 : f32 to vector<1x1x768xf32>
    %221 = arith.mulf %219, %220 : vector<1x1x768xf32>
    %222 = arith.mulf %217, %217 : vector<7x7x768xf32>
    %cst_174 = arith.constant dense<0.000000e+00> : vector<768xf32>
    %223 = vector.multi_reduction <add>, %222, %cst_174 [0, 1] : vector<7x7x768xf32> to vector<768xf32>
    %224 = vector.shape_cast %223 : vector<768xf32> to vector<1x1x768xf32>
    %cst_175 = arith.constant 0.0204081628 : f32
    %225 = vector.broadcast %cst_175 : f32 to vector<1x1x768xf32>
    %226 = arith.mulf %224, %225 : vector<1x1x768xf32>
    %227 = arith.mulf %221, %221 : vector<1x1x768xf32>
    %228 = arith.subf %226, %227 : vector<1x1x768xf32>
    %c0_176 = arith.constant 0 : index
    %c0_177 = arith.constant 0 : index
    %229 = vector.load %arg5[%c0_176, %c0_177] : memref<1x768xf32, #tpu.memory_space<vmem>>, vector<1x768xf32>
    %230 = vector.shape_cast %229 : vector<1x768xf32> to vector<1x1x768xf32>
    %cst_178 = arith.constant 9.99999974E-6 : f32
    %231 = vector.broadcast %cst_178 : f32 to vector<1x1x768xf32>
    %232 = arith.addf %228, %231 : vector<1x1x768xf32>
    %233 = math.rsqrt %232 : vector<1x1x768xf32>
    %234 = arith.mulf %230, %233 : vector<1x1x768xf32>
    %c0_179 = arith.constant 0 : index
    %c0_180 = arith.constant 0 : index
    %235 = vector.load %arg6[%c0_179, %c0_180] : memref<1x768xf32, #tpu.memory_space<vmem>>, vector<1x768xf32>
    %236 = vector.shape_cast %235 : vector<1x768xf32> to vector<1x1x768xf32>
    %237 = arith.mulf %221, %234 : vector<1x1x768xf32>
    %238 = arith.subf %236, %237 : vector<1x1x768xf32>
    %239 = vector.broadcast %234 : vector<1x1x768xf32> to vector<7x7x768xf32>
    %240 = arith.mulf %217, %239 : vector<7x7x768xf32>
    %241 = vector.broadcast %238 : vector<1x1x768xf32> to vector<7x7x768xf32>
    %242 = arith.addf %240, %241 : vector<7x7x768xf32>
    %cst_181 = arith.constant 0.000000e+00 : f32
    %243 = vector.broadcast %cst_181 : f32 to vector<7x7x768xf32>
    %244 = arith.maximumf %242, %243 : vector<7x7x768xf32>
    %245 = vector.shape_cast %244 : vector<7x7x768xf32> to vector<49x768xf32>
    %c0_182 = arith.constant 0 : index
    %c0_183 = arith.constant 0 : index
    %246 = vector.load %arg7[%c0_182, %c0_183] : memref<768x256xf32, #tpu.memory_space<vmem>>, vector<768x256xf32>
    %cst_184 = arith.constant dense<0.000000e+00> : vector<49x256xf32>
    %247 = tpu.matmul %245, %246, %cst_184 {dimension_numbers = #tpu.dot_dimension_numbers<[1], [0], [0], [1], [0, 0, 1, 1], [], []>} : vector<49x768xf32>, vector<768x256xf32>, vector<49x256xf32> -> vector<49x256xf32>
    %c0_i32_185 = arith.constant 0 : i32
    %248 = arith.cmpi eq, %arg0, %c0_i32_185 : i32
    %249 = arith.extui %248 : i1 to i32
    %c0_i32_186 = arith.constant 0 : i32
    %250 = arith.cmpi ne, %249, %c0_i32_186 : i32
    scf.if %250 {
      %c0_189 = arith.constant 0 : index
      %c0_190 = arith.constant 0 : index
      %254 = vector.load %arg8[%c0_189, %c0_190] : memref<49x256xf32, #tpu.memory_space<vmem>>, vector<49x256xf32>
      tpu.vector_store %arg8[%c0_189, %c0_190], %247 {strides = array<i32>} : memref<49x256xf32, #tpu.memory_space<vmem>>, vector<49x256xf32>,
    } else {
    }
    %c0_i32_187 = arith.constant 0 : i32
    %251 = arith.cmpi ne, %arg0, %c0_i32_187 : i32
    %252 = arith.extui %251 : i1 to i32
    %c0_i32_188 = arith.constant 0 : i32
    %253 = arith.cmpi ne, %252, %c0_i32_188 : i32
    scf.if %253 {
      %c0_189 = arith.constant 0 : index
      %c0_190 = arith.constant 0 : index
      %254 = vector.load %arg8[%c0_189, %c0_190] : memref<49x256xf32, #tpu.memory_space<vmem>>, vector<49x256xf32>
      %255 = arith.addf %254, %247 : vector<49x256xf32>
      %c0_191 = arith.constant 0 : index
      %c0_192 = arith.constant 0 : index
      %256 = vector.load %arg8[%c0_191, %c0_192] : memref<49x256xf32, #tpu.memory_space<vmem>>, vector<49x256xf32>
      tpu.vector_store %arg8[%c0_191, %c0_192], %255 {strides = array<i32>} : memref<49x256xf32, #tpu.memory_space<vmem>>, vector<49x256xf32>,
    } else {
    }
    return
  }
  func.func @transform_0(%arg0: i32) -> (i32, i32, i32) {
    %c0_i32 = arith.constant 0 : i32
    %c0_i32_0 = arith.constant 0 : i32
    %c0_i32_1 = arith.constant 0 : i32
    return %c0_i32, %c0_i32_0, %arg0 : i32, i32, i32
  }
  func.func @transform_1(%arg0: i32) -> (i32, i32) {
    %c0_i32 = arith.constant 0 : i32
    %c0_i32_0 = arith.constant 0 : i32
    return %c0_i32, %arg0 : i32, i32
  }
  func.func @transform_2(%arg0: i32) -> (i32, i32) {
    %c0_i32 = arith.constant 0 : i32
    %c0_i32_0 = arith.constant 0 : i32
    return %c0_i32, %arg0 : i32, i32
  }
  func.func @transform_3(%arg0: i32) -> (i32, i32, i32) {
    %c0_i32 = arith.constant 0 : i32
    %c0_i32_0 = arith.constant 0 : i32
    %c0_i32_1 = arith.constant 0 : i32
    return %c0_i32, %c0_i32_0, %arg0 : i32, i32, i32
  }
  func.func @transform_4(%arg0: i32) -> (i32, i32) {
    %c0_i32 = arith.constant 0 : i32
    %c0_i32_0 = arith.constant 0 : i32
    return %c0_i32, %arg0 : i32, i32
  }
  func.func @transform_5(%arg0: i32) -> (i32, i32) {
    %c0_i32 = arith.constant 0 : i32
    %c0_i32_0 = arith.constant 0 : i32
    return %c0_i32, %arg0 : i32, i32
  }
  func.func @transform_6(%arg0: i32) -> (i32, i32) {
    %c0_i32 = arith.constant 0 : i32
    %c0_i32_0 = arith.constant 0 : i32
    return %arg0, %c0_i32 : i32, i32
  }
  func.func @transform_7(%arg0: i32) -> (i32, i32) {
    %c0_i32 = arith.constant 0 : i32
    %c0_i32_0 = arith.constant 0 : i32
    %c0_i32_1 = arith.constant 0 : i32
    return %c0_i32, %c0_i32_0 : i32, i32
  }
}

</mosaic_0001>

<llo_original>
// kernel: m_forward.1
$region0: #{m_forward.1}
  #allocation0 [shape = 'u32[]', space=smem, size = 0x4, offset = 0x4, fixed_abs, tag = 'smem constant byte address 0x4 - core index']
  #allocation1 [shape = 'u32[72,128]{1,0:T(1,128)}', space=vmem, size = 0x9000, scoped, tag = 'internal scratch']
  #allocation2 [shape = 'f32[11,11,768]{2,1,0:T(8,128)}', space=vmem, size = 0x84000, scoped, tag = 'scratch operand']
  #allocation3 [shape = 'f32[11,7,768]{2,1,0:T(8,128)}', space=vmem, size = 0x42000, scoped, tag = 'scratch operand']
  %s0 = inlined_call_operand.vmem [shape: f32[7,7,1536], index: 0, kind: input, shape index: {}]
  %s1 = inlined_call_operand.hbm [shape: f32[1,1536], index: 1, kind: input, shape index: {}]
  %s2 = inlined_call_operand.hbm [shape: f32[1,1536], index: 2, kind: input, shape index: {}]
  %s3 = inlined_call_operand.hbm [shape: f32[25,1,1536], index: 3, kind: input, shape index: {}]
  %s4 = inlined_call_operand.hbm [shape: f32[1,1536], index: 4, kind: input, shape index: {}]
  %s5 = inlined_call_operand.hbm [shape: f32[1,1536], index: 5, kind: input, shape index: {}]
  %s6 = inlined_call_operand.hbm [shape: f32[1536,256], index: 6, kind: input, shape index: {}]
  %s7 = inlined_call_operand.vmem [shape: f32[49,256], index: 7, kind: output, shape index: {}]
  %s8 = sld [smem:[#allocation0]]
  $region120: #{m_forward.1} parent=0
    _
  %s10 = ssub.s32 1, %s8
  %s11 = scalar_select 0, %s10, %s8
  $region1: #{m_forward.1} parent=0
    #allocation4 [shape = 'u8[344064]{0}', space=vmem, size = 0x54000, scoped, tag = 'input window, operand 0']
    #allocation5 [shape = 'u8[6144]{0}', space=vmem, size = 0x1800, scoped, tag = 'input window, operand 1']
    #allocation6 [shape = 's32[2]{0}', space=sflag, size = 0x8, scoped, tag = 'scoped memory for m_forward.1']
    #allocation7 [shape = 'u8[6144]{0}', space=vmem, size = 0x1800, scoped, tag = 'input window, operand 2']
    #allocation8 [shape = 's32[2]{0}', space=sflag, size = 0x8, scoped, tag = 'scoped memory for m_forward.1']
    #allocation9 [shape = 'u8[153600]{0}', space=vmem, size = 0x25800, scoped, tag = 'input window, operand 3']
    #allocation10 [shape = 'u8[6144]{0}', space=vmem, size = 0x1800, scoped, tag = 'input window, operand 4']
    #allocation11 [shape = 's32[2]{0}', space=sflag, size = 0x8, scoped, tag = 'scoped memory for m_forward.1']
    #allocation12 [shape = 'u8[6144]{0}', space=vmem, size = 0x1800, scoped, tag = 'input window, operand 5']
    #allocation13 [shape = 'u8[1572864]{0}', space=vmem, size = 0x180000, scoped, tag = 'input window, operand 6']
    #allocation14 [shape = 's32[2]{0}', space=sflag, size = 0x8, scoped, tag = 'scoped memory for m_forward.1']
    %12 = vsyncpa [#allocation6], 0
    %s13 = scalar_lea.sflag [#allocation6], 1
    %14 = vsyncpa %s13, 0
    %15 = vsyncpa [#allocation8], 0
    %s16 = scalar_lea.sflag [#allocation8], 1
    %17 = vsyncpa %s16, 0
    %18 = vsyncpa [#allocation11], 0
    %s19 = scalar_lea.sflag [#allocation11], 1
    %20 = vsyncpa %s19, 0
    %21 = vsyncpa [#allocation14], 0
    %s22 = scalar_lea.sflag [#allocation14], 1
    %23 = vsyncpa %s22, 0
    loop: start=0, step=1, limit=4
    $region2: #{m_forward.1} parent=1 // loop_pre_header
      _
    $region3: #{m_forward.1} parent=1 // loop_header
      %s25 = sphi 0, %s29
      %p26 = scmp.ge.s32.totalorder %s25, 4
      %s35 = sphi 0, %s37
      %s38 = sphi 0, %s35
      %s39 = sphi 0, %s38
      %s55 = sphi 0, %s39
      %s61 = sphi 0, %s63
      %s64 = sphi 0, %s61
      %s65 = sphi 0, %s64
      %s81 = sphi 0, %s65
      %s87 = sphi 0, %s89
      %s90 = sphi 0, %s87
      %s91 = sphi 0, %s90
      %s107 = sphi 0, %s91
      %s113 = sphi 0, %s115
      %s116 = sphi 0, %s113
      %s117 = sphi 0, %s116
      %s133 = sphi 0, %s117
      %s139 = sphi 0, %s141
      %s142 = sphi 0, %s139
      %s143 = sphi 0, %s142
      %s159 = sphi 0, %s143
      %s165 = sphi 0, %s167
      %s168 = sphi 0, %s165
      %s169 = sphi 0, %s168
      %s185 = sphi 0, %s169
      %s191 = sphi 0, %s193
      %s194 = sphi 0, %s191
      %s195 = sphi 0, %s194
      %s211 = sphi 0, %s195
      %s215 = sphi 0, %s215
      %s217 = sphi 0, %s215
      %s218 = sphi 0, %s217
      %s232 = sphi 0, %s218
    $region4: #{m_forward.1} parent=1 // loop_header_branch
      %28 = sbr.rel (%p26) target = $region8
    $region5: #{m_forward.1} parent=1 // loop_body
      %s30 = ssub.s32 %s25, 1
      %s31 = ssub.s32 %s25, 2
      %s32 = sadd.s32 %s25, 1
      %s33 = ssub.s32 %s25, %s32
      %p34 = scmp.eq.s32.totalorder %s33, 0
      %s36 = sadd.s32 %s35, 1
      %s37 = scalar_select %p34, %s35, %s36
      %p40 = pneg %p34
      %p41 = scmp.eq.s32.totalorder %s25, 1
      %p42 = por %p40, %p41
      %p43 = scmp.ne.s32.totalorder %s35, %s38
      %p44 = scmp.eq.s32.totalorder %s25, 0
      %p45 = por %p43, %p44
      %p46 = scmp.ne.s32.totalorder %s35, %s38
      %p47 = scmp.eq.s32.totalorder %s30, 1
      %p48 = por %p46, %p47
      %p49 = scmp.ne.s32.totalorder %s38, %s39
      %p50 = scmp.eq.s32.totalorder %s30, 0
      %p51 = por %p49, %p50
      %p52 = scmp.ne.s32.totalorder %s38, %s39
      %p53 = scmp.eq.s32.totalorder %s31, 1
      %p54 = por %p52, %p53
      %p56 = scmp.ne.s32.totalorder %s39, %s55
      %p57 = scmp.eq.s32.totalorder %s31, 0
      %p58 = por %p56, %p57
      %s59 = ssub.s32 %s25, %s32
      %p60 = scmp.eq.s32.totalorder %s59, 0
      %s62 = sadd.s32 %s61, 1
      %s63 = scalar_select %p60, %s61, %s62
      %p66 = pneg %p60
      %p67 = scmp.eq.s32.totalorder %s25, 1
      %p68 = por %p66, %p67
      %p69 = scmp.ne.s32.totalorder %s61, %s64
      %p70 = scmp.eq.s32.totalorder %s25, 0
      %p71 = por %p69, %p70
      %p72 = scmp.ne.s32.totalorder %s61, %s64
      %p73 = scmp.eq.s32.totalorder %s30, 1
      %p74 = por %p72, %p73
      %p75 = scmp.ne.s32.totalorder %s64, %s65
      %p76 = scmp.eq.s32.totalorder %s30, 0
      %p77 = por %p75, %p76
      %p78 = scmp.ne.s32.totalorder %s64, %s65
      %p79 = scmp.eq.s32.totalorder %s31, 1
      %p80 = por %p78, %p79
      %p82 = scmp.ne.s32.totalorder %s65, %s81
      %p83 = scmp.eq.s32.totalorder %s31, 0
      %p84 = por %p82, %p83
      %s85 = ssub.s32 %s25, %s32
      %p86 = scmp.eq.s32.totalorder %s85, 0
      %s88 = sadd.s32 %s87, 1
      %s89 = scalar_select %p86, %s87, %s88
      %p92 = pneg %p86
      %p93 = scmp.eq.s32.totalorder %s25, 1
      %p94 = por %p92, %p93
      %p95 = scmp.ne.s32.totalorder %s87, %s90
      %p96 = scmp.eq.s32.totalorder %s25, 0
      %p97 = por %p95, %p96
      %p98 = scmp.ne.s32.totalorder %s87, %s90
      %p99 = scmp.eq.s32.totalorder %s30, 1
      %p100 = por %p98, %p99
      %p101 = scmp.ne.s32.totalorder %s90, %s91
      %p102 = scmp.eq.s32.totalorder %s30, 0
      %p103 = por %p101, %p102
      %p104 = scmp.ne.s32.totalorder %s90, %s91
      %p105 = scmp.eq.s32.totalorder %s31, 1
      %p106 = por %p104, %p105
      %p108 = scmp.ne.s32.totalorder %s91, %s107
      %p109 = scmp.eq.s32.totalorder %s31, 0
      %p110 = por %p108, %p109
      %s111 = ssub.s32 %s25, %s32
      %p112 = scmp.eq.s32.totalorder %s111, 0
      %s114 = sadd.s32 %s113, 1
      %s115 = scalar_select %p112, %s113, %s114
      %p118 = pneg %p112
      %p119 = scmp.eq.s32.totalorder %s25, 1
      %p120 = por %p118, %p119
      %p121 = scmp.ne.s32.totalorder %s113, %s116
      %p122 = scmp.eq.s32.totalorder %s25, 0
      %p123 = por %p121, %p122
      %p124 = scmp.ne.s32.totalorder %s113, %s116
      %p125 = scmp.eq.s32.totalorder %s30, 1
      %p126 = por %p124, %p125
      %p127 = scmp.ne.s32.totalorder %s116, %s117
      %p128 = scmp.eq.s32.totalorder %s30, 0
      %p129 = por %p127, %p128
      %p130 = scmp.ne.s32.totalorder %s116, %s117
      %p131 = scmp.eq.s32.totalorder %s31, 1
      %p132 = por %p130, %p131
      %p134 = scmp.ne.s32.totalorder %s117, %s133
      %p135 = scmp.eq.s32.totalorder %s31, 0
      %p136 = por %p134, %p135
      %s137 = ssub.s32 %s25, %s32
      %p138 = scmp.eq.s32.totalorder %s137, 0
      %s140 = sadd.s32 %s139, 1
      %s141 = scalar_select %p138, %s139, %s140
      %p144 = pneg %p138
      %p145 = scmp.eq.s32.totalorder %s25, 1
      %p146 = por %p144, %p145
      %p147 = scmp.ne.s32.totalorder %s139, %s142
      %p148 = scmp.eq.s32.totalorder %s25, 0
      %p149 = por %p147, %p148
      %p150 = scmp.ne.s32.totalorder %s139, %s142
      %p151 = scmp.eq.s32.totalorder %s30, 1
      %p152 = por %p150, %p151
      %p153 = scmp.ne.s32.totalorder %s142, %s143
      %p154 = scmp.eq.s32.totalorder %s30, 0
      %p155 = por %p153, %p154
      %p156 = scmp.ne.s32.totalorder %s142, %s143
      %p157 = scmp.eq.s32.totalorder %s31, 1
      %p158 = por %p156, %p157
      %p160 = scmp.ne.s32.totalorder %s143, %s159
      %p161 = scmp.eq.s32.totalorder %s31, 0
      %p162 = por %p160, %p161
      %s163 = ssub.s32 %s25, %s32
      %p164 = scmp.eq.s32.totalorder %s163, 0
      %s166 = sadd.s32 %s165, 1
      %s167 = scalar_select %p164, %s165, %s166
      %p170 = pneg %p164
      %p171 = scmp.eq.s32.totalorder %s25, 1
      %p172 = por %p170, %p171
      %p173 = scmp.ne.s32.totalorder %s165, %s168
      %p174 = scmp.eq.s32.totalorder %s25, 0
      %p175 = por %p173, %p174
      %p176 = scmp.ne.s32.totalorder %s165, %s168
      %p177 = scmp.eq.s32.totalorder %s30, 1
      %p178 = por %p176, %p177
      %p179 = scmp.ne.s32.totalorder %s168, %s169
      %p180 = scmp.eq.s32.totalorder %s30, 0
      %p181 = por %p179, %p180
      %p182 = scmp.ne.s32.totalorder %s168, %s169
      %p183 = scmp.eq.s32.totalorder %s31, 1
      %p184 = por %p182, %p183
      %p186 = scmp.ne.s32.totalorder %s169, %s185
      %p187 = scmp.eq.s32.totalorder %s31, 0
      %p188 = por %p186, %p187
      %s189 = ssub.s32 %s25, %s32
      %p190 = scmp.eq.s32.totalorder %s189, 0
      %s192 = sadd.s32 %s191, 1
      %s193 = scalar_select %p190, %s191, %s192
      %p196 = pneg %p190
      %p197 = scmp.eq.s32.totalorder %s25, 1
      %p198 = por %p196, %p197
      %p199 = scmp.ne.s32.totalorder %s191, %s194
      %p200 = scmp.eq.s32.totalorder %s25, 0
      %p201 = por %p199, %p200
      %p202 = scmp.ne.s32.totalorder %s191, %s194
      %p203 = scmp.eq.s32.totalorder %s30, 1
      %p204 = por %p202, %p203
      %p205 = scmp.ne.s32.totalorder %s194, %s195
      %p206 = scmp.eq.s32.totalorder %s30, 0
      %p207 = por %p205, %p206
      %p208 = scmp.ne.s32.totalorder %s194, %s195
      %p209 = scmp.eq.s32.totalorder %s31, 1
      %p210 = por %p208, %p209
      %p212 = scmp.ne.s32.totalorder %s195, %s211
      %p213 = scmp.eq.s32.totalorder %s31, 0
      %p214 = por %p212, %p213
      %s216 = sadd.s32 %s215, 1
      %p219 = scmp.eq.s32.totalorder %s25, 1
      %p220 = scmp.ne.s32.totalorder %s215, %s217
      %p221 = scmp.eq.s32.totalorder %s25, 0
      %p222 = por %p220, %p221
      %p223 = scmp.ne.s32.totalorder %s215, %s217
      %p224 = scmp.eq.s32.totalorder %s30, 1
      %p225 = por %p223, %p224
      %p226 = scmp.ne.s32.totalorder %s217, %s218
      %p227 = scmp.eq.s32.totalorder %s30, 0
      %p228 = por %p226, %p227
      %p229 = scmp.ne.s32.totalorder %s217, %s218
      %p230 = scmp.eq.s32.totalorder %s31, 1
      %p231 = por %p229, %p230
      %p233 = scmp.ne.s32.totalorder %s218, %s232
      %p234 = scmp.eq.s32.totalorder %s31, 0
      %p235 = por %p233, %p234
      %p236 = scmp.le.s32.totalorder 1, %s25
      %p237 = scmp.lt.s32.totalorder %s25, 3
      %p238 = pnand %p236, %p237
      %p239 = pneg %p238
      // Predicated region
      $region9: #{m_forward.1} parent=5 // pred_check
        _
      $region10: #{m_forward.1} parent=5 // pred_check_branch
        %241 = sbr.rel (%p238) target = $region12
      $region11: #{m_forward.1} parent=5 // pred_region
        %s242 = ssub.s32 %s25, 1
      $region12: #{m_forward.1} parent=5 // pred_fallthru
        _
      %p243 = scmp.lt.s32.totalorder %s25, 2
      // Predicated region
      $region13: #{m_forward.1} parent=5 // pred_check
        %p244 = pneg %p243
      $region14: #{m_forward.1} parent=5 // pred_check_branch
        %246 = sbr.rel (%p244) target = $region16
      $region15: #{m_forward.1} parent=5 // pred_region
        // Predicated region
        $region17: #{m_forward.1} parent=15 // pred_check
          %p247 = pneg %p45
        $region18: #{m_forward.1} parent=15 // pred_check_branch
          %249 = sbr.rel (%p247) target = $region20
        $region19: #{m_forward.1} parent=15 // pred_region
          %s250 = sand.u32 %s35, 1
          %s251 = sand.u32 %s35, 1
          %s252 = smul.addr %s251, 336
          %s253 = scalar_lea.vmem [#allocation4], %s252
          %s254 = smul.u32 6, %s25
          %s255 = smul.addr %s254, 8
          %s256 = scalar_lea.vmem %s0, %s255
          // Predicated region
          $region21: #{m_forward.1} parent=19 // pred_check
            _
          $region22: #{m_forward.1} parent=19 // pred_check_branch
            %258 = sbr.rel (0) target = $region24
          $region23: #{m_forward.1} parent=19 // pred_region
            // Predicated region
            $region25: #{m_forward.1} parent=23 // pred_check
              _
            $region26: #{m_forward.1} parent=23 // pred_check_branch
              %260 = sbr.rel (0) target = $region28
            $region27: #{m_forward.1} parent=23 // pred_region
              loop: start=0, step=1, limit=1
              $region29: #{m_forward.1} parent=27 // loop_pre_header
                _
              $region30: #{m_forward.1} parent=27 // loop_header
                %s262 = sphi 0, %s266
                %p263 = scmp.ge.s32.totalorder %s262, 1
                %s267 = sphi %s256, %s256
                %s268 = sphi %s253, %s253
              $region31: #{m_forward.1} parent=27 // loop_header_branch
                %265 = sbr.rel (%p263) target = $region35
              $region32: #{m_forward.1} parent=27 // loop_body
                %v269 = vld [vmem:[%s267] sm:$0xff]
                %270 = vst [vmem:[%s268] sm:$0xff] %v269
                %v271 = vld [vmem:[%s267 + $0x8] sm:$0xff]
                %272 = vst [vmem:[%s268 + $0x8] sm:$0xff] %v271
                %v273 = vld [vmem:[%s267 + $0x10] sm:$0xff]
                %274 = vst [vmem:[%s268 + $0x10] sm:$0xff] %v273
                %v275 = vld [vmem:[%s267 + $0x18] sm:$0xff]
                %276 = vst [vmem:[%s268 + $0x18] sm:$0xff] %v275
                %v277 = vld [vmem:[%s267 + $0x20] sm:$0xff]
                %278 = vst [vmem:[%s268 + $0x20] sm:$0xff] %v277
                %v279 = vld [vmem:[%s267 + $0x28] sm:$0xff]
                %280 = vst [vmem:[%s268 + $0x28] sm:$0xff] %v279
                %v281 = vld [vmem:[%s267 + $0x60] sm:$0xff]
                %282 = vst [vmem:[%s268 + $0x30] sm:$0xff] %v281
                %v283 = vld [vmem:[%s267 + $0x68] sm:$0xff]
                %284 = vst [vmem:[%s268 + $0x38] sm:$0xff] %v283
                %v285 = vld [vmem:[%s267 + $0x70] sm:$0xff]
                %286 = vst [vmem:[%s268 + $0x40] sm:$0xff] %v285
                %v287 = vld [vmem:[%s267 + $0x78] sm:$0xff]
                %288 = vst [vmem:[%s268 + $0x48] sm:$0xff] %v287
                %v289 = vld [vmem:[%s267 + $0x80] sm:$0xff]
                %290 = vst [vmem:[%s268 + $0x50] sm:$0xff] %v289
                %v291 = vld [vmem:[%s267 + $0x88] sm:$0xff]
                %292 = vst [vmem:[%s268 + $0x58] sm:$0xff] %v291
                %v293 = vld [vmem:[%s267 + $0xc0] sm:$0xff]
                %294 = vst [vmem:[%s268 + $0x60] sm:$0xff] %v293
                %v295 = vld [vmem:[%s267 + $0xc8] sm:$0xff]
                %296 = vst [vmem:[%s268 + $0x68] sm:$0xff] %v295
                %v297 = vld [vmem:[%s267 + $0xd0] sm:$0xff]
                %298 = vst [vmem:[%s268 + $0x70] sm:$0xff] %v297
                %v299 = vld [vmem:[%s267 + $0xd8] sm:$0xff]
                %300 = vst [vmem:[%s268 + $0x78] sm:$0xff] %v299
                %v301 = vld [vmem:[%s267 + $0xe0] sm:$0xff]
                %302 = vst [vmem:[%s268 + $0x80] sm:$0xff] %v301
                %v303 = vld [vmem:[%s267 + $0xe8] sm:$0xff]
                %304 = vst [vmem:[%s268 + $0x88] sm:$0xff] %v303
                %v305 = vld [vmem:[%s267 + $0x120] sm:$0xff]
                %306 = vst [vmem:[%s268 + $0x90] sm:$0xff] %v305
                %v307 = vld [vmem:[%s267 + $0x128] sm:$0xff]
                %308 = vst [vmem:[%s268 + $0x98] sm:$0xff] %v307
                %v309 = vld [vmem:[%s267 + $0x130] sm:$0xff]
                %310 = vst [vmem:[%s268 + $0xa0] sm:$0xff] %v309
                %v311 = vld [vmem:[%s267 + $0x138] sm:$0xff]
                %312 = vst [vmem:[%s268 + $0xa8] sm:$0xff] %v311
                %v313 = vld [vmem:[%s267 + $0x140] sm:$0xff]
                %314 = vst [vmem:[%s268 + $0xb0] sm:$0xff] %v313
                %v315 = vld [vmem:[%s267 + $0x148] sm:$0xff]
                %316 = vst [vmem:[%s268 + $0xb8] sm:$0xff] %v315
                %v317 = vld [vmem:[%s267 + $0x180] sm:$0xff]
                %318 = vst [vmem:[%s268 + $0xc0] sm:$0xff] %v317
                %v319 = vld [vmem:[%s267 + $0x188] sm:$0xff]
                %320 = vst [vmem:[%s268 + $0xc8] sm:$0xff] %v319
                %v321 = vld [vmem:[%s267 + $0x190] sm:$0xff]
                %322 = vst [vmem:[%s268 + $0xd0] sm:$0xff] %v321
                %v323 = vld [vmem:[%s267 + $0x198] sm:$0xff]
                %324 = vst [vmem:[%s268 + $0xd8] sm:$0xff] %v323
                %v325 = vld [vmem:[%s267 + $0x1a0] sm:$0xff]
                %326 = vst [vmem:[%s268 + $0xe0] sm:$0xff] %v325
                %v327 = vld [vmem:[%s267 + $0x1a8] sm:$0xff]
                %328 = vst [vmem:[%s268 + $0xe8] sm:$0xff] %v327
                %v329 = vld [vmem:[%s267 + $0x1e0] sm:$0xff]
                %330 = vst [vmem:[%s268 + $0xf0] sm:$0xff] %v329
                %v331 = vld [vmem:[%s267 + $0x1e8] sm:$0xff]
                %332 = vst [vmem:[%s268 + $0xf8] sm:$0xff] %v331
                %v333 = vld [vmem:[%s267 + $0x1f0] sm:$0xff]
                %334 = vst [vmem:[%s268 + $0x100] sm:$0xff] %v333
                %v335 = vld [vmem:[%s267 + $0x1f8] sm:$0xff]
                %336 = vst [vmem:[%s268 + $0x108] sm:$0xff] %v335
                %v337 = vld [vmem:[%s267 + $0x200] sm:$0xff]
                %338 = vst [vmem:[%s268 + $0x110] sm:$0xff] %v337
                %v339 = vld [vmem:[%s267 + $0x208] sm:$0xff]
                %340 = vst [vmem:[%s268 + $0x118] sm:$0xff] %v339
                %v341 = vld [vmem:[%s267 + $0x240] sm:$0xff]
                %342 = vst [vmem:[%s268 + $0x120] sm:$0xff] %v341
                %v343 = vld [vmem:[%s267 + $0x248] sm:$0xff]
                %344 = vst [vmem:[%s268 + $0x128] sm:$0xff] %v343
                %v345 = vld [vmem:[%s267 + $0x250] sm:$0xff]
                %346 = vst [vmem:[%s268 + $0x130] sm:$0xff] %v345
                %v347 = vld [vmem:[%s267 + $0x258] sm:$0xff]
                %348 = vst [vmem:[%s268 + $0x138] sm:$0xff] %v347
                %v349 = vld [vmem:[%s267 + $0x260] sm:$0xff]
                %350 = vst [vmem:[%s268 + $0x140] sm:$0xff] %v349
                %v351 = vld [vmem:[%s267 + $0x268] sm:$0xff]
                %352 = vst [vmem:[%s268 + $0x148] sm:$0xff] %v351
              $region33: #{m_forward.1} parent=27 // loop_footer
                %s266 = sadd.s32 1, %s262
              $region34: #{m_forward.1} parent=27 // loop_footer_branch
                %261 = sbr.rel target = $region30
              $region35: #{m_forward.1} parent=27 // loop_exit
                _
            $region28: #{m_forward.1} parent=23 // pred_fallthru
              _
            // Predicated region
            $region36: #{m_forward.1} parent=23 // pred_check
              _
            $region37: #{m_forward.1} parent=23 // pred_check_branch
              %354 = sbr.rel target = $region39
            $region38: #{m_forward.1} parent=23 // pred_region
              _
            $region39: #{m_forward.1} parent=23 // pred_fallthru
              _
          $region24: #{m_forward.1} parent=19 // pred_fallthru
            _
          %355 = vnop
        $region20: #{m_forward.1} parent=15 // pred_fallthru
          _
        // Predicated region
        $region40: #{m_forward.1} parent=15 // pred_check
          %p356 = pneg %p71
        $region41: #{m_forward.1} parent=15 // pred_check_branch
          %358 = sbr.rel (%p356) target = $region43
        $region42: #{m_forward.1} parent=15 // pred_region
          %s359 = sand.u32 %s61, 1
          %s360 = scalar_lea.sflag [#allocation6], %s359
          %s361 = sand.u32 %s61, 1
          %s362 = smul.addr %s361, 6
          %s363 = scalar_lea.vmem [#allocation5], %s362
          %s364 = smul.u32 6, %s25
          %366 = vsyncadd %s360, 0
          %s367 = scalar_lea.hbm %s1, %s364
          %s369 = sshll.u32 %s367, 4
          %s370 = int_to_ptr.hbm [resolvable:$true] %s369
          %s371 = sshll.u32 %s363, 4
          %s372 = int_to_ptr.vmem [resolvable:$true] %s371
          %374 = dma.hbm_to_vmem [thread:$0]  %s370, 96, %s372, %s360
        $region43: #{m_forward.1} parent=15 // pred_fallthru
          _
        // Predicated region
        $region44: #{m_forward.1} parent=15 // pred_check
          %p375 = pneg %p97
        $region45: #{m_forward.1} parent=15 // pred_check_branch
          %377 = sbr.rel (%p375) target = $region47
        $region46: #{m_forward.1} parent=15 // pred_region
          %s378 = sand.u32 %s25, 1
          %s379 = scalar_lea.sflag [#allocation8], %s378
          %s380 = sand.u32 %s87, 1
          %s381 = smul.addr %s380, 6
          %s382 = scalar_lea.vmem [#allocation7], %s381
          %s383 = smul.u32 6, %s25
          %385 = vsyncadd %s379, 0
          %s386 = scalar_lea.hbm %s2, %s383
          %s388 = sshll.u32 %s386, 4
          %s389 = int_to_ptr.hbm [resolvable:$true] %s388
          %s390 = sshll.u32 %s382, 4
          %s391 = int_to_ptr.vmem [resolvable:$true] %s390
          %393 = dma.hbm_to_vmem [thread:$0]  %s389, 96, %s391, %s379
        $region47: #{m_forward.1} parent=15 // pred_fallthru
          _
        // Predicated region
        $region48: #{m_forward.1} parent=15 // pred_check
          %p394 = pneg %p123
        $region49: #{m_forward.1} parent=15 // pred_check_branch
          %396 = sbr.rel (%p394) target = $region51
        $region50: #{m_forward.1} parent=15 // pred_region
          %s397 = sand.u32 %s25, 1
          %s398 = scalar_lea.sflag [#allocation8], %s397
          %s399 = sand.u32 %s113, 1
          %s400 = smul.addr %s399, 150
          %s401 = scalar_lea.vmem [#allocation9], %s400
          %s402 = smul.u32 6, %s25
          %404 = vsyncadd %s398, 0
          %s405 = scalar_lea.hbm %s3, %s402
          %s406 = sshll.u32 %s405, 4
          %s407 = int_to_ptr.hbm [resolvable:$true] %s406
          %s408 = sshll.u32 %s401, 4
          %s409 = int_to_ptr.vmem [resolvable:$true] %s408
          %414 = dma.hbm_to_vmem [thread:$0]  %s407, 2400, %s409, %s398, 192, 96, 6
        $region51: #{m_forward.1} parent=15 // pred_fallthru
          _
        // Predicated region
        $region52: #{m_forward.1} parent=15 // pred_check
          %p415 = pneg %p149
        $region53: #{m_forward.1} parent=15 // pred_check_branch
          %417 = sbr.rel (%p415) target = $region55
        $region54: #{m_forward.1} parent=15 // pred_region
          %s418 = sand.u32 %s25, 1
          %s419 = scalar_lea.sflag [#allocation11], %s418
          %s420 = sand.u32 %s139, 1
          %s421 = smul.addr %s420, 6
          %s422 = scalar_lea.vmem [#allocation10], %s421
          %s423 = smul.u32 6, %s25
          %425 = vsyncadd %s419, 0
          %s426 = scalar_lea.hbm %s4, %s423
          %s428 = sshll.u32 %s426, 4
          %s429 = int_to_ptr.hbm [resolvable:$true] %s428
          %s430 = sshll.u32 %s422, 4
          %s431 = int_to_ptr.vmem [resolvable:$true] %s430
          %433 = dma.hbm_to_vmem [thread:$0]  %s429, 96, %s431, %s419
        $region55: #{m_forward.1} parent=15 // pred_fallthru
          _
        // Predicated region
        $region56: #{m_forward.1} parent=15 // pred_check
          %p434 = pneg %p175
        $region57: #{m_forward.1} parent=15 // pred_check_branch
          %436 = sbr.rel (%p434) target = $region59
        $region58: #{m_forward.1} parent=15 // pred_region
          %s437 = sand.u32 %s25, 1
          %s438 = scalar_lea.sflag [#allocation11], %s437
          %s439 = sand.u32 %s165, 1
          %s440 = smul.addr %s439, 6
          %s441 = scalar_lea.vmem [#allocation12], %s440
          %s442 = smul.u32 6, %s25
          %444 = vsyncadd %s438, 0
          %s445 = scalar_lea.hbm %s5, %s442
          %s447 = sshll.u32 %s445, 4
          %s448 = int_to_ptr.hbm [resolvable:$true] %s447
          %s449 = sshll.u32 %s441, 4
          %s450 = int_to_ptr.vmem [resolvable:$true] %s449
          %452 = dma.hbm_to_vmem [thread:$0]  %s448, 96, %s450, %s438
        $region59: #{m_forward.1} parent=15 // pred_fallthru
          _
        // Predicated region
        $region60: #{m_forward.1} parent=15 // pred_check
          %p453 = pneg %p201
        $region61: #{m_forward.1} parent=15 // pred_check_branch
          %455 = sbr.rel (%p453) target = $region63
        $region62: #{m_forward.1} parent=15 // pred_region
          %s456 = sand.u32 %s191, 1
          %s457 = scalar_lea.sflag [#allocation14], %s456
          %s458 = sand.u32 %s191, 1
          %s459 = smul.addr %s458, 1536
          %s460 = scalar_lea.vmem [#allocation13], %s459
          %s461 = smul.u32 96, %s25
          %463 = vsyncadd %s457, 0
          %s464 = smul.addr %s461, 2
          %s465 = smul.addr %s464, 8
          %s466 = scalar_lea.hbm %s6, %s465
          %s467 = sshll.u32 %s466, 4
          %s468 = int_to_ptr.hbm [resolvable:$true] %s467
          %s469 = sshll.u32 %s460, 4
          %s470 = int_to_ptr.vmem [resolvable:$true] %s469
          %475 = dma.hbm_to_vmem [thread:$0]  %s468, 24576, %s470, %s457, 256, 256, 16
        $region63: #{m_forward.1} parent=15 // pred_fallthru
          _
      $region16: #{m_forward.1} parent=5 // pred_fallthru
        _
      %p476 = scmp.le.s32.totalorder 1, %s25
      %p477 = scmp.lt.s32.totalorder %s25, 3
      %p478 = pnand %p476, %p477
      %p479 = pneg %p478
      // Predicated region
      $region64: #{m_forward.1} parent=5 // pred_check
        _
      $region65: #{m_forward.1} parent=5 // pred_check_branch
        %481 = sbr.rel (%p478) target = $region67
      $region66: #{m_forward.1} parent=5 // pred_region
        %s482 = ssub.s32 %s25, 1
        %s483 = sand.u32 %s38, 1
        %s484 = sand.u32 %s38, 1
        %s485 = smul.addr %s484, 336
        %s486 = scalar_lea.vmem [#allocation4], %s485
        // Predicated region
        $region68: #{m_forward.1} parent=66 // pred_check
          %p487 = pneg %p51
        $region69: #{m_forward.1} parent=66 // pred_check_branch
          %489 = sbr.rel (%p487) target = $region71
        $region70: #{m_forward.1} parent=66 // pred_region
          _
        $region71: #{m_forward.1} parent=66 // pred_fallthru
          _
        %s490 = sand.u32 %s64, 1
        %s491 = scalar_lea.sflag [#allocation6], %s490
        %s492 = sand.u32 %s64, 1
        %s493 = smul.addr %s492, 6
        %s494 = scalar_lea.vmem [#allocation5], %s493
        // Predicated region
        $region72: #{m_forward.1} parent=66 // pred_check
          %p495 = pneg %p77
        $region73: #{m_forward.1} parent=66 // pred_check_branch
          %497 = sbr.rel (%p495) target = $region75
        $region74: #{m_forward.1} parent=66 // pred_region
          %499 = dma.done %s491, 96
        $region75: #{m_forward.1} parent=66 // pred_fallthru
          _
        %s500 = sand.u32 %s30, 1
        %s501 = scalar_lea.sflag [#allocation8], %s500
        %s502 = sand.u32 %s90, 1
        %s503 = smul.addr %s502, 6
        %s504 = scalar_lea.vmem [#allocation7], %s503
        // Predicated region
        $region76: #{m_forward.1} parent=66 // pred_check
          %p505 = pneg %p103
        $region77: #{m_forward.1} parent=66 // pred_check_branch
          %507 = sbr.rel (%p505) target = $region79
        $region78: #{m_forward.1} parent=66 // pred_region
          %509 = dma.done %s501, 96
        $region79: #{m_forward.1} parent=66 // pred_fallthru
          _
        %s510 = sand.u32 %s30, 1
        %s511 = scalar_lea.sflag [#allocation8], %s510
        %s512 = sand.u32 %s116, 1
        %s513 = smul.addr %s512, 150
        %s514 = scalar_lea.vmem [#allocation9], %s513
        // Predicated region
        $region80: #{m_forward.1} parent=66 // pred_check
          %p515 = pneg %p129
        $region81: #{m_forward.1} parent=66 // pred_check_branch
          %517 = sbr.rel (%p515) target = $region83
        $region82: #{m_forward.1} parent=66 // pred_region
          %519 = dma.done %s511, 2400
        $region83: #{m_forward.1} parent=66 // pred_fallthru
          _
        %s520 = sand.u32 %s30, 1
        %s521 = scalar_lea.sflag [#allocation11], %s520
        %s522 = sand.u32 %s142, 1
        %s523 = smul.addr %s522, 6
        %s524 = scalar_lea.vmem [#allocation10], %s523
        // Predicated region
        $region84: #{m_forward.1} parent=66 // pred_check
          %p525 = pneg %p155
        $region85: #{m_forward.1} parent=66 // pred_check_branch
          %527 = sbr.rel (%p525) target = $region87
        $region86: #{m_forward.1} parent=66 // pred_region
          %529 = dma.done %s521, 96
        $region87: #{m_forward.1} parent=66 // pred_fallthru
          _
        %s530 = sand.u32 %s30, 1
        %s531 = scalar_lea.sflag [#allocation11], %s530
        %s532 = sand.u32 %s168, 1
        %s533 = smul.addr %s532, 6
        %s534 = scalar_lea.vmem [#allocation12], %s533
        // Predicated region
        $region88: #{m_forward.1} parent=66 // pred_check
          %p535 = pneg %p181
        $region89: #{m_forward.1} parent=66 // pred_check_branch
          %537 = sbr.rel (%p535) target = $region91
        $region90: #{m_forward.1} parent=66 // pred_region
          %539 = dma.done %s531, 96
        $region91: #{m_forward.1} parent=66 // pred_fallthru
          _
        %s540 = sand.u32 %s194, 1
        %s541 = scalar_lea.sflag [#allocation14], %s540
        %s542 = sand.u32 %s194, 1
        %s543 = smul.addr %s542, 1536
        %s544 = scalar_lea.vmem [#allocation13], %s543
        // Predicated region
        $region92: #{m_forward.1} parent=66 // pred_check
          %p545 = pneg %p207
        $region93: #{m_forward.1} parent=66 // pred_check_branch
          %547 = sbr.rel (%p545) target = $region95
        $region94: #{m_forward.1} parent=66 // pred_region
          %549 = dma.done %s541, 24576
        $region95: #{m_forward.1} parent=66 // pred_fallthru
          _
        %s550 = sand.u32 %s38, 1
        %s551 = sand.u32 %s38, 1
        %s552 = smul.addr %s551, 336
        %s553 = scalar_lea.vmem [#allocation4], %s552
        %p554 = pneg %p51
        %p555 = pneg %p48
        %s556 = sand.u32 %s64, 1
        %s557 = scalar_lea.sflag [#allocation6], %s556
        %s558 = sand.u32 %s64, 1
        %s559 = smul.addr %s558, 6
        %s560 = scalar_lea.vmem [#allocation5], %s559
        %p561 = pneg %p77
        %p562 = pneg %p74
        %s563 = sand.u32 %s30, 1
        %s564 = scalar_lea.sflag [#allocation8], %s563
        %s565 = sand.u32 %s90, 1
        %s566 = smul.addr %s565, 6
        %s567 = scalar_lea.vmem [#allocation7], %s566
        %p568 = pneg %p103
        %p569 = pneg %p100
        %s570 = sand.u32 %s30, 1
        %s571 = scalar_lea.sflag [#allocation8], %s570
        %s572 = sand.u32 %s116, 1
        %s573 = smul.addr %s572, 150
        %s574 = scalar_lea.vmem [#allocation9], %s573
        %p575 = pneg %p129
        %p576 = pneg %p126
        %s577 = sand.u32 %s30, 1
        %s578 = scalar_lea.sflag [#allocation11], %s577
        %s579 = sand.u32 %s142, 1
        %s580 = smul.addr %s579, 6
        %s581 = scalar_lea.vmem [#allocation10], %s580
        %p582 = pneg %p155
        %p583 = pneg %p152
        %s584 = sand.u32 %s30, 1
        %s585 = scalar_lea.sflag [#allocation11], %s584
        %s586 = sand.u32 %s168, 1
        %s587 = smul.addr %s586, 6
        %s588 = scalar_lea.vmem [#allocation12], %s587
        %p589 = pneg %p181
        %p590 = pneg %p178
        %s591 = sand.u32 %s194, 1
        %s592 = scalar_lea.sflag [#allocation14], %s591
        %s593 = sand.u32 %s194, 1
        %s594 = smul.addr %s593, 1536
        %s595 = scalar_lea.vmem [#allocation13], %s594
        %p596 = pneg %p207
        %p597 = pneg %p204
        %p598 = pneg %p228
        %p599 = pneg %p225
        %s600 = smul.u32 6, %s30
        %s601 = smul.u32 6, %s30
        %s602 = smul.u32 6, %s30
        %s603 = smul.u32 6, %s30
        %s604 = smul.u32 6, %s30
        %s605 = smul.u32 6, %s30
        %s606 = smul.u32 96, %s30
        %p607 = scmp.eq.s32.totalorder %s30, 0
        // Predicated region
        $region96: #{m_forward.1} parent=66 // pred_check
          %p608 = pneg %p607
        $region97: #{m_forward.1} parent=66 // pred_check_branch
          %610 = sbr.rel (%p608) target = $region99
        $region98: #{m_forward.1} parent=66 // pred_region
          %611 = vst [vmem:[#allocation2] sm:$0xff] 0.0
          %612 = vst [vmem:[#allocation2 + $0x8] sm:$0xff] 0.0
          %613 = vst [vmem:[#allocation2 + $0x10] sm:$0xff] 0.0
          %614 = vst [vmem:[#allocation2 + $0x18] sm:$0xff] 0.0
          %615 = vst [vmem:[#allocation2 + $0x20] sm:$0xff] 0.0
          %616 = vst [vmem:[#allocation2 + $0x28] sm:$0xff] 0.0
          %617 = vst [vmem:[#allocation2 + $0x30] sm:$0x7] 0.0
          %618 = vst [vmem:[#allocation2 + $0x38] sm:$0x7] 0.0
          %619 = vst [vmem:[#allocation2 + $0x40] sm:$0x7] 0.0
          %620 = vst [vmem:[#allocation2 + $0x48] sm:$0x7] 0.0
          %621 = vst [vmem:[#allocation2 + $0x50] sm:$0x7] 0.0
          %622 = vst [vmem:[#allocation2 + $0x58] sm:$0x7] 0.0
          %623 = vst [vmem:[#allocation2 + $0x60] sm:$0xff] 0.0
          %624 = vst [vmem:[#allocation2 + $0x68] sm:$0xff] 0.0
          %625 = vst [vmem:[#allocation2 + $0x70] sm:$0xff] 0.0
          %626 = vst [vmem:[#allocation2 + $0x78] sm:$0xff] 0.0
          %627 = vst [vmem:[#allocation2 + $0x80] sm:$0xff] 0.0
          %628 = vst [vmem:[#allocation2 + $0x88] sm:$0xff] 0.0
          %629 = vst [vmem:[#allocation2 + $0x90] sm:$0x7] 0.0
          %630 = vst [vmem:[#allocation2 + $0x98] sm:$0x7] 0.0
          %631 = vst [vmem:[#allocation2 + $0xa0] sm:$0x7] 0.0
          %632 = vst [vmem:[#allocation2 + $0xa8] sm:$0x7] 0.0
          %633 = vst [vmem:[#allocation2 + $0xb0] sm:$0x7] 0.0
          %634 = vst [vmem:[#allocation2 + $0xb8] sm:$0x7] 0.0
          %635 = vst [vmem:[#allocation2 + $0xc0] sm:$0xff] 0.0
          %636 = vst [vmem:[#allocation2 + $0xc8] sm:$0xff] 0.0
          %637 = vst [vmem:[#allocation2 + $0xd0] sm:$0xff] 0.0
          %638 = vst [vmem:[#allocation2 + $0xd8] sm:$0xff] 0.0
          %639 = vst [vmem:[#allocation2 + $0xe0] sm:$0xff] 0.0
          %640 = vst [vmem:[#allocation2 + $0xe8] sm:$0xff] 0.0
          %641 = vst [vmem:[#allocation2 + $0xf0] sm:$0x7] 0.0
          %642 = vst [vmem:[#allocation2 + $0xf8] sm:$0x7] 0.0
          %643 = vst [vmem:[#allocation2 + $0x100] sm:$0x7] 0.0
          %644 = vst [vmem:[#allocation2 + $0x108] sm:$0x7] 0.0
          %645 = vst [vmem:[#allocation2 + $0x110] sm:$0x7] 0.0
          %646 = vst [vmem:[#allocation2 + $0x118] sm:$0x7] 0.0
          %647 = vst [vmem:[#allocation2 + $0x120] sm:$0xff] 0.0
          %648 = vst [vmem:[#allocation2 + $0x128] sm:$0xff] 0.0
          %649 = vst [vmem:[#allocation2 + $0x130] sm:$0xff] 0.0
          %650 = vst [vmem:[#allocation2 + $0x138] sm:$0xff] 0.0
          %651 = vst [vmem:[#allocation2 + $0x140] sm:$0xff] 0.0
          %652 = vst [vmem:[#allocation2 + $0x148] sm:$0xff] 0.0
          %653 = vst [vmem:[#allocation2 + $0x150] sm:$0x7] 0.0
          %654 = vst [vmem:[#allocation2 + $0x158] sm:$0x7] 0.0
          %655 = vst [vmem:[#allocation2 + $0x160] sm:$0x7] 0.0
          %656 = vst [vmem:[#allocation2 + $0x168] sm:$0x7] 0.0
          %657 = vst [vmem:[#allocation2 + $0x170] sm:$0x7] 0.0
          %658 = vst [vmem:[#allocation2 + $0x178] sm:$0x7] 0.0
          %659 = vst [vmem:[#allocation2 + $0x180] sm:$0xff] 0.0
          %660 = vst [vmem:[#allocation2 + $0x188] sm:$0xff] 0.0
          %661 = vst [vmem:[#allocation2 + $0x190] sm:$0xff] 0.0
          %662 = vst [vmem:[#allocation2 + $0x198] sm:$0xff] 0.0
          %663 = vst [vmem:[#allocation2 + $0x1a0] sm:$0xff] 0.0
          %664 = vst [vmem:[#allocation2 + $0x1a8] sm:$0xff] 0.0
          %665 = vst [vmem:[#allocation2 + $0x1b0] sm:$0x7] 0.0
          %666 = vst [vmem:[#allocation2 + $0x1b8] sm:$0x7] 0.0
          %667 = vst [vmem:[#allocation2 + $0x1c0] sm:$0x7] 0.0
          %668 = vst [vmem:[#allocation2 + $0x1c8] sm:$0x7] 0.0
          %669 = vst [vmem:[#allocation2 + $0x1d0] sm:$0x7] 0.0
          %670 = vst [vmem:[#allocation2 + $0x1d8] sm:$0x7] 0.0
          %671 = vst [vmem:[#allocation2 + $0x1e0] sm:$0xff] 0.0
          %672 = vst [vmem:[#allocation2 + $0x1e8] sm:$0xff] 0.0
          %673 = vst [vmem:[#allocation2 + $0x1f0] sm:$0xff] 0.0
          %674 = vst [vmem:[#allocation2 + $0x1f8] sm:$0xff] 0.0
          %675 = vst [vmem:[#allocation2 + $0x200] sm:$0xff] 0.0
          %676 = vst [vmem:[#allocation2 + $0x208] sm:$0xff] 0.0
          %677 = vst [vmem:[#allocation2 + $0x210] sm:$0x7] 0.0
          %678 = vst [vmem:[#allocation2 + $0x218] sm:$0x7] 0.0
          %679 = vst [vmem:[#allocation2 + $0x220] sm:$0x7] 0.0
          %680 = vst [vmem:[#allocation2 + $0x228] sm:$0x7] 0.0
          %681 = vst [vmem:[#allocation2 + $0x230] sm:$0x7] 0.0
          %682 = vst [vmem:[#allocation2 + $0x238] sm:$0x7] 0.0
          %683 = vst [vmem:[#allocation2 + $0x240] sm:$0xff] 0.0
          %684 = vst [vmem:[#allocation2 + $0x248] sm:$0xff] 0.0
          %685 = vst [vmem:[#allocation2 + $0x250] sm:$0xff] 0.0
          %686 = vst [vmem:[#allocation2 + $0x258] sm:$0xff] 0.0
          %687 = vst [vmem:[#allocation2 + $0x260] sm:$0xff] 0.0
          %688 = vst [vmem:[#allocation2 + $0x268] sm:$0xff] 0.0
          %689 = vst [vmem:[#allocation2 + $0x270] sm:$0x7] 0.0
          %690 = vst [vmem:[#allocation2 + $0x278] sm:$0x7] 0.0
          %691 = vst [vmem:[#allocation2 + $0x280] sm:$0x7] 0.0
          %692 = vst [vmem:[#allocation2 + $0x288] sm:$0x7] 0.0
          %693 = vst [vmem:[#allocation2 + $0x290] sm:$0x7] 0.0
          %694 = vst [vmem:[#allocation2 + $0x298] sm:$0x7] 0.0
          %695 = vst [vmem:[#allocation2 + $0x2a0] sm:$0xff] 0.0
          %696 = vst [vmem:[#allocation2 + $0x2a8] sm:$0xff] 0.0
          %697 = vst [vmem:[#allocation2 + $0x2b0] sm:$0xff] 0.0
          %698 = vst [vmem:[#allocation2 + $0x2b8] sm:$0xff] 0.0
          %699 = vst [vmem:[#allocation2 + $0x2c0] sm:$0xff] 0.0
          %700 = vst [vmem:[#allocation2 + $0x2c8] sm:$0xff] 0.0
          %701 = vst [vmem:[#allocation2 + $0x2d0] sm:$0x7] 0.0
          %702 = vst [vmem:[#allocation2 + $0x2d8] sm:$0x7] 0.0
          %703 = vst [vmem:[#allocation2 + $0x2e0] sm:$0x7] 0.0
          %704 = vst [vmem:[#allocation2 + $0x2e8] sm:$0x7] 0.0
          %705 = vst [vmem:[#allocation2 + $0x2f0] sm:$0x7] 0.0
          %706 = vst [vmem:[#allocation2 + $0x2f8] sm:$0x7] 0.0
          %707 = vst [vmem:[#allocation2 + $0x300] sm:$0xff] 0.0
          %708 = vst [vmem:[#allocation2 + $0x308] sm:$0xff] 0.0
          %709 = vst [vmem:[#allocation2 + $0x310] sm:$0xff] 0.0
          %710 = vst [vmem:[#allocation2 + $0x318] sm:$0xff] 0.0
          %711 = vst [vmem:[#allocation2 + $0x320] sm:$0xff] 0.0
          %712 = vst [vmem:[#allocation2 + $0x328] sm:$0xff] 0.0
          %713 = vst [vmem:[#allocation2 + $0x330] sm:$0x7] 0.0
          %714 = vst [vmem:[#allocation2 + $0x338] sm:$0x7] 0.0
          %715 = vst [vmem:[#allocation2 + $0x340] sm:$0x7] 0.0
          %716 = vst [vmem:[#allocation2 + $0x348] sm:$0x7] 0.0
          %717 = vst [vmem:[#allocation2 + $0x350] sm:$0x7] 0.0
          %718 = vst [vmem:[#allocation2 + $0x358] sm:$0x7] 0.0
          %719 = vst [vmem:[#allocation2 + $0x360] sm:$0xff] 0.0
          %720 = vst [vmem:[#allocation2 + $0x368] sm:$0xff] 0.0
          %721 = vst [vmem:[#allocation2 + $0x370] sm:$0xff] 0.0
          %722 = vst [vmem:[#allocation2 + $0x378] sm:$0xff] 0.0
          %723 = vst [vmem:[#allocation2 + $0x380] sm:$0xff] 0.0
          %724 = vst [vmem:[#allocation2 + $0x388] sm:$0xff] 0.0
          %725 = vst [vmem:[#allocation2 + $0x390] sm:$0x7] 0.0
          %726 = vst [vmem:[#allocation2 + $0x398] sm:$0x7] 0.0
          %727 = vst [vmem:[#allocation2 + $0x3a0] sm:$0x7] 0.0
          %728 = vst [vmem:[#allocation2 + $0x3a8] sm:$0x7] 0.0
          %729 = vst [vmem:[#allocation2 + $0x3b0] sm:$0x7] 0.0
          %730 = vst [vmem:[#allocation2 + $0x3b8] sm:$0x7] 0.0
          %731 = vst [vmem:[#allocation2 + $0x3c0] sm:$0xff] 0.0
          %732 = vst [vmem:[#allocation2 + $0x3c8] sm:$0xff] 0.0
          %733 = vst [vmem:[#allocation2 + $0x3d0] sm:$0xff] 0.0
          %734 = vst [vmem:[#allocation2 + $0x3d8] sm:$0xff] 0.0
          %735 = vst [vmem:[#allocation2 + $0x3e0] sm:$0xff] 0.0
          %736 = vst [vmem:[#allocation2 + $0x3e8] sm:$0xff] 0.0
          %737 = vst [vmem:[#allocation2 + $0x3f0] sm:$0x7] 0.0
          %738 = vst [vmem:[#allocation2 + $0x3f8] sm:$0x7] 0.0
          %739 = vst [vmem:[#allocation2 + $0x400] sm:$0x7] 0.0
          %740 = vst [vmem:[#allocation2 + $0x408] sm:$0x7] 0.0
          %741 = vst [vmem:[#allocation2 + $0x410] sm:$0x7] 0.0
          %742 = vst [vmem:[#allocation2 + $0x418] sm:$0x7] 0.0
        $region99: #{m_forward.1} parent=66 // pred_fallthru
          _
        %v743 = vld [vmem:[%s486] sm:$0x7f]
        %v744 = vld [vmem:[%s486 + $0x8] sm:$0x7f]
        %v745 = vld [vmem:[%s486 + $0x10] sm:$0x7f]
        %v746 = vld [vmem:[%s486 + $0x18] sm:$0x7f]
        %v747 = vld [vmem:[%s486 + $0x20] sm:$0x7f]
        %v748 = vld [vmem:[%s486 + $0x28] sm:$0x7f]
        %v749 = vld [vmem:[%s486 + $0x30] sm:$0x7f]
        %v750 = vld [vmem:[%s486 + $0x38] sm:$0x7f]
        %v751 = vld [vmem:[%s486 + $0x40] sm:$0x7f]
        %v752 = vld [vmem:[%s486 + $0x48] sm:$0x7f]
        %v753 = vld [vmem:[%s486 + $0x50] sm:$0x7f]
        %v754 = vld [vmem:[%s486 + $0x58] sm:$0x7f]
        %v755 = vld [vmem:[%s486 + $0x60] sm:$0x7f]
        %v756 = vld [vmem:[%s486 + $0x68] sm:$0x7f]
        %v757 = vld [vmem:[%s486 + $0x70] sm:$0x7f]
        %v758 = vld [vmem:[%s486 + $0x78] sm:$0x7f]
        %v759 = vld [vmem:[%s486 + $0x80] sm:$0x7f]
        %v760 = vld [vmem:[%s486 + $0x88] sm:$0x7f]
        %v761 = vld [vmem:[%s486 + $0x90] sm:$0x7f]
        %v762 = vld [vmem:[%s486 + $0x98] sm:$0x7f]
        %v763 = vld [vmem:[%s486 + $0xa0] sm:$0x7f]
        %v764 = vld [vmem:[%s486 + $0xa8] sm:$0x7f]
        %v765 = vld [vmem:[%s486 + $0xb0] sm:$0x7f]
        %v766 = vld [vmem:[%s486 + $0xb8] sm:$0x7f]
        %v767 = vld [vmem:[%s486 + $0xc0] sm:$0x7f]
        %v768 = vld [vmem:[%s486 + $0xc8] sm:$0x7f]
        %v769 = vld [vmem:[%s486 + $0xd0] sm:$0x7f]
        %v770 = vld [vmem:[%s486 + $0xd8] sm:$0x7f]
        %v771 = vld [vmem:[%s486 + $0xe0] sm:$0x7f]
        %v772 = vld [vmem:[%s486 + $0xe8] sm:$0x7f]
        %v773 = vld [vmem:[%s486 + $0xf0] sm:$0x7f]
        %v774 = vld [vmem:[%s486 + $0xf8] sm:$0x7f]
        %v775 = vld [vmem:[%s486 + $0x100] sm:$0x7f]
        %v776 = vld [vmem:[%s486 + $0x108] sm:$0x7f]
        %v777 = vld [vmem:[%s486 + $0x110] sm:$0x7f]
        %v778 = vld [vmem:[%s486 + $0x118] sm:$0x7f]
        %v779 = vld [vmem:[%s486 + $0x120] sm:$0x7f]
        %v780 = vld [vmem:[%s486 + $0x128] sm:$0x7f]
        %v781 = vld [vmem:[%s486 + $0x130] sm:$0x7f]
        %v782 = vld [vmem:[%s486 + $0x138] sm:$0x7f]
        %v783 = vld [vmem:[%s486 + $0x140] sm:$0x7f]
        %v784 = vld [vmem:[%s486 + $0x148] sm:$0x7f]
        %vm785 = vcmask 1046528
        %v786 = vsel %vm785, %v743, 0.0
        %v787 = vsel %vm785, %v749, 0.0
        %v788 = vadd.f32 %v786, %v787
        %v789 = vsel %vm785, %v755, 0.0
        %v790 = vadd.f32 %v788, %v789
        %v791 = vsel %vm785, %v761, 0.0
        %v792 = vadd.f32 %v790, %v791
        %v793 = vsel %vm785, %v767, 0.0
        %v794 = vadd.f32 %v792, %v793
        %v795 = vsel %vm785, %v773, 0.0
        %v796 = vadd.f32 %v794, %v795
        %v797 = vsel %vm785, %v779, 0.0
        %v798 = vadd.f32 %v796, %v797
        %v799 = vrot.slane %v798, 4
        %v800 = vadd.f32 %v798, %v799
        %v801 = vrot.slane %v800, 2
        %v802 = vadd.f32 %v800, %v801
        %v803 = vrot.slane %v802, 1
        %v804 = vadd.f32 %v802, %v803
        %v805 = vsel %vm785, %v744, 0.0
        %v806 = vsel %vm785, %v750, 0.0
        %v807 = vadd.f32 %v805, %v806
        %v808 = vsel %vm785, %v756, 0.0
        %v809 = vadd.f32 %v807, %v808
        %v810 = vsel %vm785, %v762, 0.0
        %v811 = vadd.f32 %v809, %v810
        %v812 = vsel %vm785, %v768, 0.0
        %v813 = vadd.f32 %v811, %v812
        %v814 = vsel %vm785, %v774, 0.0
        %v815 = vadd.f32 %v813, %v814
        %v816 = vsel %vm785, %v780, 0.0
        %v817 = vadd.f32 %v815, %v816
        %v818 = vrot.slane %v817, 4
        %v819 = vadd.f32 %v817, %v818
        %v820 = vrot.slane %v819, 2
        %v821 = vadd.f32 %v819, %v820
        %v822 = vrot.slane %v821, 1
        %v823 = vadd.f32 %v821, %v822
        %v824 = vsel %vm785, %v745, 0.0
        %v825 = vsel %vm785, %v751, 0.0
        %v826 = vadd.f32 %v824, %v825
        %v827 = vsel %vm785, %v757, 0.0
        %v828 = vadd.f32 %v826, %v827
        %v829 = vsel %vm785, %v763, 0.0
        %v830 = vadd.f32 %v828, %v829
        %v831 = vsel %vm785, %v769, 0.0
        %v832 = vadd.f32 %v830, %v831
        %v833 = vsel %vm785, %v775, 0.0
        %v834 = vadd.f32 %v832, %v833
        %v835 = vsel %vm785, %v781, 0.0
        %v836 = vadd.f32 %v834, %v835
        %v837 = vrot.slane %v836, 4
        %v838 = vadd.f32 %v836, %v837
        %v839 = vrot.slane %v838, 2
        %v840 = vadd.f32 %v838, %v839
        %v841 = vrot.slane %v840, 1
        %v842 = vadd.f32 %v840, %v841
        %v843 = vsel %vm785, %v746, 0.0
        %v844 = vsel %vm785, %v752, 0.0
        %v845 = vadd.f32 %v843, %v844
        %v846 = vsel %vm785, %v758, 0.0
        %v847 = vadd.f32 %v845, %v846
        %v848 = vsel %vm785, %v764, 0.0
        %v849 = vadd.f32 %v847, %v848
        %v850 = vsel %vm785, %v770, 0.0
        %v851 = vadd.f32 %v849, %v850
        %v852 = vsel %vm785, %v776, 0.0
        %v853 = vadd.f32 %v851, %v852
        %v854 = vsel %vm785, %v782, 0.0
        %v855 = vadd.f32 %v853, %v854
        %v856 = vrot.slane %v855, 4
        %v857 = vadd.f32 %v855, %v856
        %v858 = vrot.slane %v857, 2
        %v859 = vadd.f32 %v857, %v858
        %v860 = vrot.slane %v859, 1
        %v861 = vadd.f32 %v859, %v860
        %v862 = vsel %vm785, %v747, 0.0
        %v863 = vsel %vm785, %v753, 0.0
        %v864 = vadd.f32 %v862, %v863
        %v865 = vsel %vm785, %v759, 0.0
        %v866 = vadd.f32 %v864, %v865
        %v867 = vsel %vm785, %v765, 0.0
        %v868 = vadd.f32 %v866, %v867
        %v869 = vsel %vm785, %v771, 0.0
        %v870 = vadd.f32 %v868, %v869
        %v871 = vsel %vm785, %v777, 0.0
        %v872 = vadd.f32 %v870, %v871
        %v873 = vsel %vm785, %v783, 0.0
        %v874 = vadd.f32 %v872, %v873
        %v875 = vrot.slane %v874, 4
        %v876 = vadd.f32 %v874, %v875
        %v877 = vrot.slane %v876, 2
        %v878 = vadd.f32 %v876, %v877
        %v879 = vrot.slane %v878, 1
        %v880 = vadd.f32 %v878, %v879
        %v881 = vsel %vm785, %v748, 0.0
        %v882 = vsel %vm785, %v754, 0.0
        %v883 = vadd.f32 %v881, %v882
        %v884 = vsel %vm785, %v760, 0.0
        %v885 = vadd.f32 %v883, %v884
        %v886 = vsel %vm785, %v766, 0.0
        %v887 = vadd.f32 %v885, %v886
        %v888 = vsel %vm785, %v772, 0.0
        %v889 = vadd.f32 %v887, %v888
        %v890 = vsel %vm785, %v778, 0.0
        %v891 = vadd.f32 %v889, %v890
        %v892 = vsel %vm785, %v784, 0.0
        %v893 = vadd.f32 %v891, %v892
        %v894 = vrot.slane %v893, 4
        %v895 = vadd.f32 %v893, %v894
        %v896 = vrot.slane %v895, 2
        %v897 = vadd.f32 %v895, %v896
        %v898 = vrot.slane %v897, 1
        %v899 = vadd.f32 %v897, %v898
        %v900 = vmul.f32 %v804, 0.020408163
        %v901 = vmul.f32 %v823, 0.020408163
        %v902 = vmul.f32 %v842, 0.020408163
        %v903 = vmul.f32 %v861, 0.020408163
        %v904 = vmul.f32 %v880, 0.020408163
        %v905 = vmul.f32 %v899, 0.020408163
        %v906 = vmul.f32 %v743, %v743
        %v907 = vmul.f32 %v744, %v744
        %v908 = vmul.f32 %v745, %v745
        %v909 = vmul.f32 %v746, %v746
        %v910 = vmul.f32 %v747, %v747
        %v911 = vmul.f32 %v748, %v748
        %v912 = vmul.f32 %v749, %v749
        %v913 = vmul.f32 %v750, %v750
        %v914 = vmul.f32 %v751, %v751
        %v915 = vmul.f32 %v752, %v752
        %v916 = vmul.f32 %v753, %v753
        %v917 = vmul.f32 %v754, %v754
        %v918 = vmul.f32 %v755, %v755
        %v919 = vmul.f32 %v756, %v756
        %v920 = vmul.f32 %v757, %v757
        %v921 = vmul.f32 %v758, %v758
        %v922 = vmul.f32 %v759, %v759
        %v923 = vmul.f32 %v760, %v760
        %v924 = vmul.f32 %v761, %v761
        %v925 = vmul.f32 %v762, %v762
        %v926 = vmul.f32 %v763, %v763
        %v927 = vmul.f32 %v764, %v764
        %v928 = vmul.f32 %v765, %v765
        %v929 = vmul.f32 %v766, %v766
        %v930 = vmul.f32 %v767, %v767
        %v931 = vmul.f32 %v768, %v768
        %v932 = vmul.f32 %v769, %v769
        %v933 = vmul.f32 %v770, %v770
        %v934 = vmul.f32 %v771, %v771
        %v935 = vmul.f32 %v772, %v772
        %v936 = vmul.f32 %v773, %v773
        %v937 = vmul.f32 %v774, %v774
        %v938 = vmul.f32 %v775, %v775
        %v939 = vmul.f32 %v776, %v776
        %v940 = vmul.f32 %v777, %v777
        %v941 = vmul.f32 %v778, %v778
        %v942 = vmul.f32 %v779, %v779
        %v943 = vmul.f32 %v780, %v780
        %v944 = vmul.f32 %v781, %v781
        %v945 = vmul.f32 %v782, %v782
        %v946 = vmul.f32 %v783, %v783
        %v947 = vmul.f32 %v784, %v784
        %v948 = vsel %vm785, %v906, 0.0
        %v949 = vsel %vm785, %v912, 0.0
        %v950 = vadd.f32 %v948, %v949
        %v951 = vsel %vm785, %v918, 0.0
        %v952 = vadd.f32 %v950, %v951
        %v953 = vsel %vm785, %v924, 0.0
        %v954 = vadd.f32 %v952, %v953
        %v955 = vsel %vm785, %v930, 0.0
        %v956 = vadd.f32 %v954, %v955
        %v957 = vsel %vm785, %v936, 0.0
        %v958 = vadd.f32 %v956, %v957
        %v959 = vsel %vm785, %v942, 0.0
        %v960 = vadd.f32 %v958, %v959
        %v961 = vrot.slane %v960, 4
        %v962 = vadd.f32 %v960, %v961
        %v963 = vrot.slane %v962, 2
        %v964 = vadd.f32 %v962, %v963
        %v965 = vrot.slane %v964, 1
        %v966 = vadd.f32 %v964, %v965
        %v967 = vsel %vm785, %v907, 0.0
        %v968 = vsel %vm785, %v913, 0.0
        %v969 = vadd.f32 %v967, %v968
        %v970 = vsel %vm785, %v919, 0.0
        %v971 = vadd.f32 %v969, %v970
        %v972 = vsel %vm785, %v925, 0.0
        %v973 = vadd.f32 %v971, %v972
        %v974 = vsel %vm785, %v931, 0.0
        %v975 = vadd.f32 %v973, %v974
        %v976 = vsel %vm785, %v937, 0.0
        %v977 = vadd.f32 %v975, %v976
        %v978 = vsel %vm785, %v943, 0.0
        %v979 = vadd.f32 %v977, %v978
        %v980 = vrot.slane %v979, 4
        %v981 = vadd.f32 %v979, %v980
        %v982 = vrot.slane %v981, 2
        %v983 = vadd.f32 %v981, %v982
        %v984 = vrot.slane %v983, 1
        %v985 = vadd.f32 %v983, %v984
        %v986 = vsel %vm785, %v908, 0.0
        %v987 = vsel %vm785, %v914, 0.0
        %v988 = vadd.f32 %v986, %v987
        %v989 = vsel %vm785, %v920, 0.0
        %v990 = vadd.f32 %v988, %v989
        %v991 = vsel %vm785, %v926, 0.0
        %v992 = vadd.f32 %v990, %v991
        %v993 = vsel %vm785, %v932, 0.0
        %v994 = vadd.f32 %v992, %v993
        %v995 = vsel %vm785, %v938, 0.0
        %v996 = vadd.f32 %v994, %v995
        %v997 = vsel %vm785, %v944, 0.0
        %v998 = vadd.f32 %v996, %v997
        %v999 = vrot.slane %v998, 4
        %v1000 = vadd.f32 %v998, %v999
        %v1001 = vrot.slane %v1000, 2
        %v1002 = vadd.f32 %v1000, %v1001
        %v1003 = vrot.slane %v1002, 1
        %v1004 = vadd.f32 %v1002, %v1003
        %v1005 = vsel %vm785, %v909, 0.0
        %v1006 = vsel %vm785, %v915, 0.0
        %v1007 = vadd.f32 %v1005, %v1006
        %v1008 = vsel %vm785, %v921, 0.0
        %v1009 = vadd.f32 %v1007, %v1008
        %v1010 = vsel %vm785, %v927, 0.0
        %v1011 = vadd.f32 %v1009, %v1010
        %v1012 = vsel %vm785, %v933, 0.0
        %v1013 = vadd.f32 %v1011, %v1012
        %v1014 = vsel %vm785, %v939, 0.0
        %v1015 = vadd.f32 %v1013, %v1014
        %v1016 = vsel %vm785, %v945, 0.0
        %v1017 = vadd.f32 %v1015, %v1016
        %v1018 = vrot.slane %v1017, 4
        %v1019 = vadd.f32 %v1017, %v1018
        %v1020 = vrot.slane %v1019, 2
        %v1021 = vadd.f32 %v1019, %v1020
        %v1022 = vrot.slane %v1021, 1
        %v1023 = vadd.f32 %v1021, %v1022
        %v1024 = vsel %vm785, %v910, 0.0
        %v1025 = vsel %vm785, %v916, 0.0
        %v1026 = vadd.f32 %v1024, %v1025
        %v1027 = vsel %vm785, %v922, 0.0
        %v1028 = vadd.f32 %v1026, %v1027
        %v1029 = vsel %vm785, %v928, 0.0
        %v1030 = vadd.f32 %v1028, %v1029
        %v1031 = vsel %vm785, %v934, 0.0
        %v1032 = vadd.f32 %v1030, %v1031
        %v1033 = vsel %vm785, %v940, 0.0
        %v1034 = vadd.f32 %v1032, %v1033
        %v1035 = vsel %vm785, %v946, 0.0
        %v1036 = vadd.f32 %v1034, %v1035
        %v1037 = vrot.slane %v1036, 4
        %v1038 = vadd.f32 %v1036, %v1037
        %v1039 = vrot.slane %v1038, 2
        %v1040 = vadd.f32 %v1038, %v1039
        %v1041 = vrot.slane %v1040, 1
        %v1042 = vadd.f32 %v1040, %v1041
        %v1043 = vsel %vm785, %v911, 0.0
        %v1044 = vsel %vm785, %v917, 0.0
        %v1045 = vadd.f32 %v1043, %v1044
        %v1046 = vsel %vm785, %v923, 0.0
        %v1047 = vadd.f32 %v1045, %v1046
        %v1048 = vsel %vm785, %v929, 0.0
        %v1049 = vadd.f32 %v1047, %v1048
        %v1050 = vsel %vm785, %v935, 0.0
        %v1051 = vadd.f32 %v1049, %v1050
        %v1052 = vsel %vm785, %v941, 0.0
        %v1053 = vadd.f32 %v1051, %v1052
        %v1054 = vsel %vm785, %v947, 0.0
        %v1055 = vadd.f32 %v1053, %v1054
        %v1056 = vrot.slane %v1055, 4
        %v1057 = vadd.f32 %v1055, %v1056
        %v1058 = vrot.slane %v1057, 2
        %v1059 = vadd.f32 %v1057, %v1058
        %v1060 = vrot.slane %v1059, 1
        %v1061 = vadd.f32 %v1059, %v1060
        %v1062 = vmul.f32 %v966, 0.020408163
        %v1063 = vmul.f32 %v985, 0.020408163
        %v1064 = vmul.f32 %v1004, 0.020408163
        %v1065 = vmul.f32 %v1023, 0.020408163
        %v1066 = vmul.f32 %v1042, 0.020408163
        %v1067 = vmul.f32 %v1061, 0.020408163
        %v1068 = vmul.f32 %v900, %v900
        %v1069 = vmul.f32 %v901, %v901
        %v1070 = vmul.f32 %v902, %v902
        %v1071 = vmul.f32 %v903, %v903
        %v1072 = vmul.f32 %v904, %v904
        %v1073 = vmul.f32 %v905, %v905
        %v1074 = vsub.f32 %v1062, %v1068
        %v1075 = vsub.f32 %v1063, %v1069
        %v1076 = vsub.f32 %v1064, %v1070
        %v1077 = vsub.f32 %v1065, %v1071
        %v1078 = vsub.f32 %v1066, %v1072
        %v1079 = vsub.f32 %v1067, %v1073
        %v1080 = vld [vmem:[%s494] sm:$0x3f]
        %v1081 = vadd.f32 %v1074, 1e-05
        %v1082 = vadd.f32 %v1075, 1e-05
        %v1083 = vadd.f32 %v1076, 1e-05
        %v1084 = vadd.f32 %v1077, 1e-05
        %v1085 = vadd.f32 %v1078, 1e-05
        %v1086 = vadd.f32 %v1079, 1e-05
        %v1087 = vrsqrt.pop %v1081
        %v1088 = vmul.f32 %v1087, %v1081
        %v1089 = vmul.f32 %v1088, %v1087
        %v1090 = vmul.f32 0.5, %v1089
        %v1091 = vsub.f32 1.5, %v1090
        %v1092 = vmul.f32 %v1087, %v1091
        %vm1093 = vweird.f32 %v1081
        %vm1094 = vweird.f32 %v1087
        %vm1095 = vmor %vm1093, %vm1094
        %v1096 = vsel %vm1095, %v1087, %v1092
        %v1097 = vrsqrt.pop %v1082
        %v1098 = vmul.f32 %v1097, %v1082
        %v1099 = vmul.f32 %v1098, %v1097
        %v1100 = vmul.f32 0.5, %v1099
        %v1101 = vsub.f32 1.5, %v1100
        %v1102 = vmul.f32 %v1097, %v1101
        %vm1103 = vweird.f32 %v1082
        %vm1104 = vweird.f32 %v1097
        %vm1105 = vmor %vm1103, %vm1104
        %v1106 = vsel %vm1105, %v1097, %v1102
        %v1107 = vrsqrt.pop %v1083
        %v1108 = vmul.f32 %v1107, %v1083
        %v1109 = vmul.f32 %v1108, %v1107
        %v1110 = vmul.f32 0.5, %v1109
        %v1111 = vsub.f32 1.5, %v1110
        %v1112 = vmul.f32 %v1107, %v1111
        %vm1113 = vweird.f32 %v1083
        %vm1114 = vweird.f32 %v1107
        %vm1115 = vmor %vm1113, %vm1114
        %v1116 = vsel %vm1115, %v1107, %v1112
        %v1117 = vrsqrt.pop %v1084
        %v1118 = vmul.f32 %v1117, %v1084
        %v1119 = vmul.f32 %v1118, %v1117
        %v1120 = vmul.f32 0.5, %v1119
        %v1121 = vsub.f32 1.5, %v1120
        %v1122 = vmul.f32 %v1117, %v1121
        %vm1123 = vweird.f32 %v1084
        %vm1124 = vweird.f32 %v1117
        %vm1125 = vmor %vm1123, %vm1124
        %v1126 = vsel %vm1125, %v1117, %v1122
        %v1127 = vrsqrt.pop %v1085
        %v1128 = vmul.f32 %v1127, %v1085
        %v1129 = vmul.f32 %v1128, %v1127
        %v1130 = vmul.f32 0.5, %v1129
        %v1131 = vsub.f32 1.5, %v1130
        %v1132 = vmul.f32 %v1127, %v1131
        %vm1133 = vweird.f32 %v1085
        %vm1134 = vweird.f32 %v1127
        %vm1135 = vmor %vm1133, %vm1134
        %v1136 = vsel %vm1135, %v1127, %v1132
        %v1137 = vrsqrt.pop %v1086
        %v1138 = vmul.f32 %v1137, %v1086
        %v1139 = vmul.f32 %v1138, %v1137
        %v1140 = vmul.f32 0.5, %v1139
        %v1141 = vsub.f32 1.5, %v1140
        %v1142 = vmul.f32 %v1137, %v1141
        %vm1143 = vweird.f32 %v1086
        %vm1144 = vweird.f32 %v1137
        %vm1145 = vmor %vm1143, %vm1144
        %v1146 = vsel %vm1145, %v1137, %v1142
        %v1153 = vrot.slane %v1106, 7
        %v1154 = vrot.slane %v1116, 6
        %v1155 = vrot.slane %v1126, 5
        %v1156 = vrot.slane %v1136, 4
        %v1157 = vrot.slane %v1146, 3
        %vm1158 = vcmask 1040384
        %v1159 = vsel %vm1158, %v1096, %v1153
        %vm1160 = vcmask 1041408
        %v1161 = vsel %vm1160, %v1159, %v1154
        %vm1162 = vcmask 1043459
        %v1163 = vsel %vm1162, %v1155, %v1156
        %vm1164 = vcmask 1044483
        %v1165 = vsel %vm1164, %v1163, %v1157
        %vm1166 = vcmask 1042432
        %v1167 = vsel %vm1166, %v1161, %v1165
        %v1169 = vmul.f32 %v1080, %v1167
        %v1170 = vld [vmem:[%s504] sm:$0x3f]
        %v1172 = vperm.slane %v1169, 0
        %v1173 = vperm.slane %v1169, 1
        %v1174 = vperm.slane %v1169, 2
        %v1175 = vperm.slane %v1169, 3
        %v1176 = vperm.slane %v1169, 4
        %v1177 = vperm.slane %v1169, 5
        %v1184 = vmul.f32 %v900, %v1172
        %v1185 = vmul.f32 %v901, %v1173
        %v1186 = vmul.f32 %v902, %v1174
        %v1187 = vmul.f32 %v903, %v1175
        %v1188 = vmul.f32 %v904, %v1176
        %v1189 = vmul.f32 %v905, %v1177
        %v1196 = vrot.slane %v1185, 7
        %v1197 = vrot.slane %v1186, 6
        %v1198 = vrot.slane %v1187, 5
        %v1199 = vrot.slane %v1188, 4
        %v1200 = vrot.slane %v1189, 3
        %v1201 = vsel %vm1158, %v1184, %v1196
        %v1202 = vsel %vm1160, %v1201, %v1197
        %v1203 = vsel %vm1162, %v1198, %v1199
        %v1204 = vsel %vm1164, %v1203, %v1200
        %v1205 = vsel %vm1166, %v1202, %v1204
        %v1207 = vsub.f32 %v1170, %v1205
        %v1208 = vmul.f32 %v743, %v1172
        %v1209 = vmul.f32 %v744, %v1173
        %v1210 = vmul.f32 %v745, %v1174
        %v1211 = vmul.f32 %v746, %v1175
        %v1212 = vmul.f32 %v747, %v1176
        %v1213 = vmul.f32 %v748, %v1177
        %v1214 = vmul.f32 %v749, %v1172
        %v1215 = vmul.f32 %v750, %v1173
        %v1216 = vmul.f32 %v751, %v1174
        %v1217 = vmul.f32 %v752, %v1175
        %v1218 = vmul.f32 %v753, %v1176
        %v1219 = vmul.f32 %v754, %v1177
        %v1220 = vmul.f32 %v755, %v1172
        %v1221 = vmul.f32 %v756, %v1173
        %v1222 = vmul.f32 %v757, %v1174
        %v1223 = vmul.f32 %v758, %v1175
        %v1224 = vmul.f32 %v759, %v1176
        %v1225 = vmul.f32 %v760, %v1177
        %v1226 = vmul.f32 %v761, %v1172
        %v1227 = vmul.f32 %v762, %v1173
        %v1228 = vmul.f32 %v763, %v1174
        %v1229 = vmul.f32 %v764, %v1175
        %v1230 = vmul.f32 %v765, %v1176
        %v1231 = vmul.f32 %v766, %v1177
        %v1232 = vmul.f32 %v767, %v1172
        %v1233 = vmul.f32 %v768, %v1173
        %v1234 = vmul.f32 %v769, %v1174
        %v1235 = vmul.f32 %v770, %v1175
        %v1236 = vmul.f32 %v771, %v1176
        %v1237 = vmul.f32 %v772, %v1177
        %v1238 = vmul.f32 %v773, %v1172
        %v1239 = vmul.f32 %v774, %v1173
        %v1240 = vmul.f32 %v775, %v1174
        %v1241 = vmul.f32 %v776, %v1175
        %v1242 = vmul.f32 %v777, %v1176
        %v1243 = vmul.f32 %v778, %v1177
        %v1244 = vmul.f32 %v779, %v1172
        %v1245 = vmul.f32 %v780, %v1173
        %v1246 = vmul.f32 %v781, %v1174
        %v1247 = vmul.f32 %v782, %v1175
        %v1248 = vmul.f32 %v783, %v1176
        %v1249 = vmul.f32 %v784, %v1177
        %v1251 = vperm.slane %v1207, 0
        %v1252 = vperm.slane %v1207, 1
        %v1253 = vperm.slane %v1207, 2
        %v1254 = vperm.slane %v1207, 3
        %v1255 = vperm.slane %v1207, 4
        %v1256 = vperm.slane %v1207, 5
        %v1263 = vadd.f32 %v1208, %v1251
        %v1264 = vadd.f32 %v1209, %v1252
        %v1265 = vadd.f32 %v1210, %v1253
        %v1266 = vadd.f32 %v1211, %v1254
        %v1267 = vadd.f32 %v1212, %v1255
        %v1268 = vadd.f32 %v1213, %v1256
        %v1269 = vadd.f32 %v1214, %v1251
        %v1270 = vadd.f32 %v1215, %v1252
        %v1271 = vadd.f32 %v1216, %v1253
        %v1272 = vadd.f32 %v1217, %v1254
        %v1273 = vadd.f32 %v1218, %v1255
        %v1274 = vadd.f32 %v1219, %v1256
        %v1275 = vadd.f32 %v1220, %v1251
        %v1276 = vadd.f32 %v1221, %v1252
        %v1277 = vadd.f32 %v1222, %v1253
        %v1278 = vadd.f32 %v1223, %v1254
        %v1279 = vadd.f32 %v1224, %v1255
        %v1280 = vadd.f32 %v1225, %v1256
        %v1281 = vadd.f32 %v1226, %v1251
        %v1282 = vadd.f32 %v1227, %v1252
        %v1283 = vadd.f32 %v1228, %v1253
        %v1284 = vadd.f32 %v1229, %v1254
        %v1285 = vadd.f32 %v1230, %v1255
        %v1286 = vadd.f32 %v1231, %v1256
        %v1287 = vadd.f32 %v1232, %v1251
        %v1288 = vadd.f32 %v1233, %v1252
        %v1289 = vadd.f32 %v1234, %v1253
        %v1290 = vadd.f32 %v1235, %v1254
        %v1291 = vadd.f32 %v1236, %v1255
        %v1292 = vadd.f32 %v1237, %v1256
        %v1293 = vadd.f32 %v1238, %v1251
        %v1294 = vadd.f32 %v1239, %v1252
        %v1295 = vadd.f32 %v1240, %v1253
        %v1296 = vadd.f32 %v1241, %v1254
        %v1297 = vadd.f32 %v1242, %v1255
        %v1298 = vadd.f32 %v1243, %v1256
        %v1299 = vadd.f32 %v1244, %v1251
        %v1300 = vadd.f32 %v1245, %v1252
        %v1301 = vadd.f32 %v1246, %v1253
        %v1302 = vadd.f32 %v1247, %v1254
        %v1303 = vadd.f32 %v1248, %v1255
        %v1304 = vadd.f32 %v1249, %v1256
        %v1305 = vmax.f32 %v1263, 0.0
        %v1306 = vmax.f32 %v1264, 0.0
        %v1307 = vmax.f32 %v1265, 0.0
        %v1308 = vmax.f32 %v1266, 0.0
        %v1309 = vmax.f32 %v1267, 0.0
        %v1310 = vmax.f32 %v1268, 0.0
        %v1311 = vmax.f32 %v1269, 0.0
        %v1312 = vmax.f32 %v1270, 0.0
        %v1313 = vmax.f32 %v1271, 0.0
        %v1314 = vmax.f32 %v1272, 0.0
        %v1315 = vmax.f32 %v1273, 0.0
        %v1316 = vmax.f32 %v1274, 0.0
        %v1317 = vmax.f32 %v1275, 0.0
        %v1318 = vmax.f32 %v1276, 0.0
        %v1319 = vmax.f32 %v1277, 0.0
        %v1320 = vmax.f32 %v1278, 0.0
        %v1321 = vmax.f32 %v1279, 0.0
        %v1322 = vmax.f32 %v1280, 0.0
        %v1323 = vmax.f32 %v1281, 0.0
        %v1324 = vmax.f32 %v1282, 0.0
        %v1325 = vmax.f32 %v1283, 0.0
        %v1326 = vmax.f32 %v1284, 0.0
        %v1327 = vmax.f32 %v1285, 0.0
        %v1328 = vmax.f32 %v1286, 0.0
        %v1329 = vmax.f32 %v1287, 0.0
        %v1330 = vmax.f32 %v1288, 0.0
        %v1331 = vmax.f32 %v1289, 0.0
        %v1332 = vmax.f32 %v1290, 0.0
        %v1333 = vmax.f32 %v1291, 0.0
        %v1334 = vmax.f32 %v1292, 0.0
        %v1335 = vmax.f32 %v1293, 0.0
        %v1336 = vmax.f32 %v1294, 0.0
        %v1337 = vmax.f32 %v1295, 0.0
        %v1338 = vmax.f32 %v1296, 0.0
        %v1339 = vmax.f32 %v1297, 0.0
        %v1340 = vmax.f32 %v1298, 0.0
        %v1341 = vmax.f32 %v1299, 0.0
        %v1342 = vmax.f32 %v1300, 0.0
        %v1343 = vmax.f32 %v1301, 0.0
        %v1344 = vmax.f32 %v1302, 0.0
        %v1345 = vmax.f32 %v1303, 0.0
        %v1346 = vmax.f32 %v1304, 0.0
        %v1389 = vrot.slane %v1305, 6
        %v1390 = vrot.slane %v1306, 6
        %v1391 = vrot.slane %v1307, 6
        %v1392 = vrot.slane %v1308, 6
        %v1393 = vrot.slane %v1309, 6
        %v1394 = vrot.slane %v1310, 6
        %v1395 = vrot.slane %v1311, 6
        %v1396 = vrot.slane %v1312, 6
        %v1397 = vrot.slane %v1313, 6
        %v1398 = vrot.slane %v1314, 6
        %v1399 = vrot.slane %v1315, 6
        %v1400 = vrot.slane %v1316, 6
        %v1401 = vrot.slane %v1317, 6
        %v1402 = vrot.slane %v1318, 6
        %v1403 = vrot.slane %v1319, 6
        %v1404 = vrot.slane %v1320, 6
        %v1405 = vrot.slane %v1321, 6
        %v1406 = vrot.slane %v1322, 6
        %v1407 = vrot.slane %v1323, 6
        %v1408 = vrot.slane %v1324, 6
        %v1409 = vrot.slane %v1325, 6
        %v1410 = vrot.slane %v1326, 6
        %v1411 = vrot.slane %v1327, 6
        %v1412 = vrot.slane %v1328, 6
        %v1413 = vrot.slane %v1329, 6
        %v1414 = vrot.slane %v1330, 6
        %v1415 = vrot.slane %v1331, 6
        %v1416 = vrot.slane %v1332, 6
        %v1417 = vrot.slane %v1333, 6
        %v1418 = vrot.slane %v1334, 6
        %v1419 = vrot.slane %v1335, 6
        %v1420 = vrot.slane %v1336, 6
        %v1421 = vrot.slane %v1337, 6
        %v1422 = vrot.slane %v1338, 6
        %v1423 = vrot.slane %v1339, 6
        %v1424 = vrot.slane %v1340, 6
        %v1425 = vrot.slane %v1341, 6
        %v1426 = vrot.slane %v1342, 6
        %v1427 = vrot.slane %v1343, 6
        %v1428 = vrot.slane %v1344, 6
        %v1429 = vrot.slane %v1345, 6
        %v1430 = vrot.slane %v1346, 6
        %s1473 = scalar_lea.vmem [#allocation2], 192
        %1474 = vst [vmem:[%s1473] sm:$0xfc] %v1389
        %1475 = vst [vmem:[%s1473 + $0x8] sm:$0xfc] %v1390
        %1476 = vst [vmem:[%s1473 + $0x10] sm:$0xfc] %v1391
        %1477 = vst [vmem:[%s1473 + $0x18] sm:$0xfc] %v1392
        %1478 = vst [vmem:[%s1473 + $0x20] sm:$0xfc] %v1393
        %1479 = vst [vmem:[%s1473 + $0x28] sm:$0xfc] %v1394
        %1480 = vst [vmem:[%s1473 + $0x30] sm:$0x1] %v1389
        %1481 = vst [vmem:[%s1473 + $0x38] sm:$0x1] %v1390
        %1482 = vst [vmem:[%s1473 + $0x40] sm:$0x1] %v1391
        %1483 = vst [vmem:[%s1473 + $0x48] sm:$0x1] %v1392
        %1484 = vst [vmem:[%s1473 + $0x50] sm:$0x1] %v1393
        %1485 = vst [vmem:[%s1473 + $0x58] sm:$0x1] %v1394
        %1486 = vst [vmem:[%s1473 + $0x60] sm:$0xfc] %v1395
        %1487 = vst [vmem:[%s1473 + $0x68] sm:$0xfc] %v1396
        %1488 = vst [vmem:[%s1473 + $0x70] sm:$0xfc] %v1397
        %1489 = vst [vmem:[%s1473 + $0x78] sm:$0xfc] %v1398
        %1490 = vst [vmem:[%s1473 + $0x80] sm:$0xfc] %v1399
        %1491 = vst [vmem:[%s1473 + $0x88] sm:$0xfc] %v1400
        %1492 = vst [vmem:[%s1473 + $0x90] sm:$0x1] %v1395
        %1493 = vst [vmem:[%s1473 + $0x98] sm:$0x1] %v1396
        %1494 = vst [vmem:[%s1473 + $0xa0] sm:$0x1] %v1397
        %1495 = vst [vmem:[%s1473 + $0xa8] sm:$0x1] %v1398
        %1496 = vst [vmem:[%s1473 + $0xb0] sm:$0x1] %v1399
        %1497 = vst [vmem:[%s1473 + $0xb8] sm:$0x1] %v1400
        %1498 = vst [vmem:[%s1473 + $0xc0] sm:$0xfc] %v1401
        %1499 = vst [vmem:[%s1473 + $0xc8] sm:$0xfc] %v1402
        %1500 = vst [vmem:[%s1473 + $0xd0] sm:$0xfc] %v1403
        %1501 = vst [vmem:[%s1473 + $0xd8] sm:$0xfc] %v1404
        %1502 = vst [vmem:[%s1473 + $0xe0] sm:$0xfc] %v1405
        %1503 = vst [vmem:[%s1473 + $0xe8] sm:$0xfc] %v1406
        %1504 = vst [vmem:[%s1473 + $0xf0] sm:$0x1] %v1401
        %1505 = vst [vmem:[%s1473 + $0xf8] sm:$0x1] %v1402
        %1506 = vst [vmem:[%s1473 + $0x100] sm:$0x1] %v1403
        %1507 = vst [vmem:[%s1473 + $0x108] sm:$0x1] %v1404
        %1508 = vst [vmem:[%s1473 + $0x110] sm:$0x1] %v1405
        %1509 = vst [vmem:[%s1473 + $0x118] sm:$0x1] %v1406
        %1510 = vst [vmem:[%s1473 + $0x120] sm:$0xfc] %v1407
        %1511 = vst [vmem:[%s1473 + $0x128] sm:$0xfc] %v1408
        %1512 = vst [vmem:[%s1473 + $0x130] sm:$0xfc] %v1409
        %1513 = vst [vmem:[%s1473 + $0x138] sm:$0xfc] %v1410
        %1514 = vst [vmem:[%s1473 + $0x140] sm:$0xfc] %v1411
        %1515 = vst [vmem:[%s1473 + $0x148] sm:$0xfc] %v1412
        %1516 = vst [vmem:[%s1473 + $0x150] sm:$0x1] %v1407
        %1517 = vst [vmem:[%s1473 + $0x158] sm:$0x1] %v1408
        %1518 = vst [vmem:[%s1473 + $0x160] sm:$0x1] %v1409
        %1519 = vst [vmem:[%s1473 + $0x168] sm:$0x1] %v1410
        %1520 = vst [vmem:[%s1473 + $0x170] sm:$0x1] %v1411
        %1521 = vst [vmem:[%s1473 + $0x178] sm:$0x1] %v1412
        %1522 = vst [vmem:[%s1473 + $0x180] sm:$0xfc] %v1413
        %1523 = vst [vmem:[%s1473 + $0x188] sm:$0xfc] %v1414
        %1524 = vst [vmem:[%s1473 + $0x190] sm:$0xfc] %v1415
        %1525 = vst [vmem:[%s1473 + $0x198] sm:$0xfc] %v1416
        %1526 = vst [vmem:[%s1473 + $0x1a0] sm:$0xfc] %v1417
        %1527 = vst [vmem:[%s1473 + $0x1a8] sm:$0xfc] %v1418
        %1528 = vst [vmem:[%s1473 + $0x1b0] sm:$0x1] %v1413
        %1529 = vst [vmem:[%s1473 + $0x1b8] sm:$0x1] %v1414
        %1530 = vst [vmem:[%s1473 + $0x1c0] sm:$0x1] %v1415
        %1531 = vst [vmem:[%s1473 + $0x1c8] sm:$0x1] %v1416
        %1532 = vst [vmem:[%s1473 + $0x1d0] sm:$0x1] %v1417
        %1533 = vst [vmem:[%s1473 + $0x1d8] sm:$0x1] %v1418
        %1534 = vst [vmem:[%s1473 + $0x1e0] sm:$0xfc] %v1419
        %1535 = vst [vmem:[%s1473 + $0x1e8] sm:$0xfc] %v1420
        %1536 = vst [vmem:[%s1473 + $0x1f0] sm:$0xfc] %v1421
        %1537 = vst [vmem:[%s1473 + $0x1f8] sm:$0xfc] %v1422
        %1538 = vst [vmem:[%s1473 + $0x200] sm:$0xfc] %v1423
        %1539 = vst [vmem:[%s1473 + $0x208] sm:$0xfc] %v1424
        %1540 = vst [vmem:[%s1473 + $0x210] sm:$0x1] %v1419
        %1541 = vst [vmem:[%s1473 + $0x218] sm:$0x1] %v1420
        %1542 = vst [vmem:[%s1473 + $0x220] sm:$0x1] %v1421
        %1543 = vst [vmem:[%s1473 + $0x228] sm:$0x1] %v1422
        %1544 = vst [vmem:[%s1473 + $0x230] sm:$0x1] %v1423
        %1545 = vst [vmem:[%s1473 + $0x238] sm:$0x1] %v1424
        %1546 = vst [vmem:[%s1473 + $0x240] sm:$0xfc] %v1425
        %1547 = vst [vmem:[%s1473 + $0x248] sm:$0xfc] %v1426
        %1548 = vst [vmem:[%s1473 + $0x250] sm:$0xfc] %v1427
        %1549 = vst [vmem:[%s1473 + $0x258] sm:$0xfc] %v1428
        %1550 = vst [vmem:[%s1473 + $0x260] sm:$0xfc] %v1429
        %1551 = vst [vmem:[%s1473 + $0x268] sm:$0xfc] %v1430
        %1552 = vst [vmem:[%s1473 + $0x270] sm:$0x1] %v1425
        %1553 = vst [vmem:[%s1473 + $0x278] sm:$0x1] %v1426
        %1554 = vst [vmem:[%s1473 + $0x280] sm:$0x1] %v1427
        %1555 = vst [vmem:[%s1473 + $0x288] sm:$0x1] %v1428
        %1556 = vst [vmem:[%s1473 + $0x290] sm:$0x1] %v1429
        %1557 = vst [vmem:[%s1473 + $0x298] sm:$0x1] %v1430
        %v1558 = vld [vmem:[#allocation2] sm:$0x7f]
        %v1559 = vld [vmem:[#allocation2 + $0x8] sm:$0x7f]
        %v1560 = vld [vmem:[#allocation2 + $0x10] sm:$0x7f]
        %v1561 = vld [vmem:[#allocation2 + $0x18] sm:$0x7f]
        %v1562 = vld [vmem:[#allocation2 + $0x20] sm:$0x7f]
        %v1563 = vld [vmem:[#allocation2 + $0x28] sm:$0x7f]
        %v1564 = vld [vmem:[#allocation2 + $0x60] sm:$0x7f]
        %v1565 = vld [vmem:[#allocation2 + $0x68] sm:$0x7f]
        %v1566 = vld [vmem:[#allocation2 + $0x70] sm:$0x7f]
        %v1567 = vld [vmem:[#allocation2 + $0x78] sm:$0x7f]
        %v1568 = vld [vmem:[#allocation2 + $0x80] sm:$0x7f]
        %v1569 = vld [vmem:[#allocation2 + $0x88] sm:$0x7f]
        %v1570 = vld [vmem:[#allocation2 + $0xc0] sm:$0x7f]
        %v1571 = vld [vmem:[#allocation2 + $0xc8] sm:$0x7f]
        %v1572 = vld [vmem:[#allocation2 + $0xd0] sm:$0x7f]
        %v1573 = vld [vmem:[#allocation2 + $0xd8] sm:$0x7f]
        %v1574 = vld [vmem:[#allocation2 + $0xe0] sm:$0x7f]
        %v1575 = vld [vmem:[#allocation2 + $0xe8] sm:$0x7f]
        %v1576 = vld [vmem:[#allocation2 + $0x120] sm:$0x7f]
        %v1577 = vld [vmem:[#allocation2 + $0x128] sm:$0x7f]
        %v1578 = vld [vmem:[#allocation2 + $0x130] sm:$0x7f]
        %v1579 = vld [vmem:[#allocation2 + $0x138] sm:$0x7f]
        %v1580 = vld [vmem:[#allocation2 + $0x140] sm:$0x7f]
        %v1581 = vld [vmem:[#allocation2 + $0x148] sm:$0x7f]
        %v1582 = vld [vmem:[#allocation2 + $0x180] sm:$0x7f]
        %v1583 = vld [vmem:[#allocation2 + $0x188] sm:$0x7f]
        %v1584 = vld [vmem:[#allocation2 + $0x190] sm:$0x7f]
        %v1585 = vld [vmem:[#allocation2 + $0x198] sm:$0x7f]
        %v1586 = vld [vmem:[#allocation2 + $0x1a0] sm:$0x7f]
        %v1587 = vld [vmem:[#allocation2 + $0x1a8] sm:$0x7f]
        %v1588 = vld [vmem:[#allocation2 + $0x1e0] sm:$0x7f]
        %v1589 = vld [vmem:[#allocation2 + $0x1e8] sm:$0x7f]
        %v1590 = vld [vmem:[#allocation2 + $0x1f0] sm:$0x7f]
        %v1591 = vld [vmem:[#allocation2 + $0x1f8] sm:$0x7f]
        %v1592 = vld [vmem:[#allocation2 + $0x200] sm:$0x7f]
        %v1593 = vld [vmem:[#allocation2 + $0x208] sm:$0x7f]
        %v1594 = vld [vmem:[#allocation2 + $0x240] sm:$0x7f]
        %v1595 = vld [vmem:[#allocation2 + $0x248] sm:$0x7f]
        %v1596 = vld [vmem:[#allocation2 + $0x250] sm:$0x7f]
        %v1597 = vld [vmem:[#allocation2 + $0x258] sm:$0x7f]
        %v1598 = vld [vmem:[#allocation2 + $0x260] sm:$0x7f]
        %v1599 = vld [vmem:[#allocation2 + $0x268] sm:$0x7f]
        %v1600 = vld [vmem:[#allocation2 + $0x2a0] sm:$0x7f]
        %v1601 = vld [vmem:[#allocation2 + $0x2a8] sm:$0x7f]
        %v1602 = vld [vmem:[#allocation2 + $0x2b0] sm:$0x7f]
        %v1603 = vld [vmem:[#allocation2 + $0x2b8] sm:$0x7f]
        %v1604 = vld [vmem:[#allocation2 + $0x2c0] sm:$0x7f]
        %v1605 = vld [vmem:[#allocation2 + $0x2c8] sm:$0x7f]
        %v1606 = vld [vmem:[#allocation2 + $0x300] sm:$0x7f]
        %v1607 = vld [vmem:[#allocation2 + $0x308] sm:$0x7f]
        %v1608 = vld [vmem:[#allocation2 + $0x310] sm:$0x7f]
        %v1609 = vld [vmem:[#allocation2 + $0x318] sm:$0x7f]
        %v1610 = vld [vmem:[#allocation2 + $0x320] sm:$0x7f]
        %v1611 = vld [vmem:[#allocation2 + $0x328] sm:$0x7f]
        %v1612 = vld [vmem:[#allocation2 + $0x360] sm:$0x7f]
        %v1613 = vld [vmem:[#allocation2 + $0x368] sm:$0x7f]
        %v1614 = vld [vmem:[#allocation2 + $0x370] sm:$0x7f]
        %v1615 = vld [vmem:[#allocation2 + $0x378] sm:$0x7f]
        %v1616 = vld [vmem:[#allocation2 + $0x380] sm:$0x7f]
        %v1617 = vld [vmem:[#allocation2 + $0x388] sm:$0x7f]
        %v1618 = vld [vmem:[#allocation2 + $0x3c0] sm:$0x7f]
        %v1619 = vld [vmem:[#allocation2 + $0x3c8] sm:$0x7f]
        %v1620 = vld [vmem:[#allocation2 + $0x3d0] sm:$0x7f]
        %v1621 = vld [vmem:[#allocation2 + $0x3d8] sm:$0x7f]
        %v1622 = vld [vmem:[#allocation2 + $0x3e0] sm:$0x7f]
        %v1623 = vld [vmem:[#allocation2 + $0x3e8] sm:$0x7f]
        %1624 = vst [vmem:[#allocation3] sm:$0x7f] %v1558
        %1625 = vst [vmem:[#allocation3 + $0x8] sm:$0x7f] %v1559
        %1626 = vst [vmem:[#allocation3 + $0x10] sm:$0x7f] %v1560
        %1627 = vst [vmem:[#allocation3 + $0x18] sm:$0x7f] %v1561
        %1628 = vst [vmem:[#allocation3 + $0x20] sm:$0x7f] %v1562
        %1629 = vst [vmem:[#allocation3 + $0x28] sm:$0x7f] %v1563
        %1630 = vst [vmem:[#allocation3 + $0x30] sm:$0x7f] %v1564
        %1631 = vst [vmem:[#allocation3 + $0x38] sm:$0x7f] %v1565
        %1632 = vst [vmem:[#allocation3 + $0x40] sm:$0x7f] %v1566
        %1633 = vst [vmem:[#allocation3 + $0x48] sm:$0x7f] %v1567
        %1634 = vst [vmem:[#allocation3 + $0x50] sm:$0x7f] %v1568
        %1635 = vst [vmem:[#allocation3 + $0x58] sm:$0x7f] %v1569
        %1636 = vst [vmem:[#allocation3 + $0x60] sm:$0x7f] %v1570
        %1637 = vst [vmem:[#allocation3 + $0x68] sm:$0x7f] %v1571
        %1638 = vst [vmem:[#allocation3 + $0x70] sm:$0x7f] %v1572
        %1639 = vst [vmem:[#allocation3 + $0x78] sm:$0x7f] %v1573
        %1640 = vst [vmem:[#allocation3 + $0x80] sm:$0x7f] %v1574
        %1641 = vst [vmem:[#allocation3 + $0x88] sm:$0x7f] %v1575
        %1642 = vst [vmem:[#allocation3 + $0x90] sm:$0x7f] %v1576
        %1643 = vst [vmem:[#allocation3 + $0x98] sm:$0x7f] %v1577
        %1644 = vst [vmem:[#allocation3 + $0xa0] sm:$0x7f] %v1578
        %1645 = vst [vmem:[#allocation3 + $0xa8] sm:$0x7f] %v1579
        %1646 = vst [vmem:[#allocation3 + $0xb0] sm:$0x7f] %v1580
        %1647 = vst [vmem:[#allocation3 + $0xb8] sm:$0x7f] %v1581
        %1648 = vst [vmem:[#allocation3 + $0xc0] sm:$0x7f] %v1582
        %1649 = vst [vmem:[#allocation3 + $0xc8] sm:$0x7f] %v1583
        %1650 = vst [vmem:[#allocation3 + $0xd0] sm:$0x7f] %v1584
        %1651 = vst [vmem:[#allocation3 + $0xd8] sm:$0x7f] %v1585
        %1652 = vst [vmem:[#allocation3 + $0xe0] sm:$0x7f] %v1586
        %1653 = vst [vmem:[#allocation3 + $0xe8] sm:$0x7f] %v1587
        %1654 = vst [vmem:[#allocation3 + $0xf0] sm:$0x7f] %v1588
        %1655 = vst [vmem:[#allocation3 + $0xf8] sm:$0x7f] %v1589
        %1656 = vst [vmem:[#allocation3 + $0x100] sm:$0x7f] %v1590
        %1657 = vst [vmem:[#allocation3 + $0x108] sm:$0x7f] %v1591
        %1658 = vst [vmem:[#allocation3 + $0x110] sm:$0x7f] %v1592
        %1659 = vst [vmem:[#allocation3 + $0x118] sm:$0x7f] %v1593
        %1660 = vst [vmem:[#allocation3 + $0x120] sm:$0x7f] %v1594
        %1661 = vst [vmem:[#allocation3 + $0x128] sm:$0x7f] %v1595
        %1662 = vst [vmem:[#allocation3 + $0x130] sm:$0x7f] %v1596
        %1663 = vst [vmem:[#allocation3 + $0x138] sm:$0x7f] %v1597
        %1664 = vst [vmem:[#allocation3 + $0x140] sm:$0x7f] %v1598
        %1665 = vst [vmem:[#allocation3 + $0x148] sm:$0x7f] %v1599
        %1666 = vst [vmem:[#allocation3 + $0x150] sm:$0x7f] %v1600
        %1667 = vst [vmem:[#allocation3 + $0x158] sm:$0x7f] %v1601
        %1668 = vst [vmem:[#allocation3 + $0x160] sm:$0x7f] %v1602
        %1669 = vst [vmem:[#allocation3 + $0x168] sm:$0x7f] %v1603
        %1670 = vst [vmem:[#allocation3 + $0x170] sm:$0x7f] %v1604
        %1671 = vst [vmem:[#allocation3 + $0x178] sm:$0x7f] %v1605
        %1672 = vst [vmem:[#allocation3 + $0x180] sm:$0x7f] %v1606
        %1673 = vst [vmem:[#allocation3 + $0x188] sm:$0x7f] %v1607
        %1674 = vst [vmem:[#allocation3 + $0x190] sm:$0x7f] %v1608
        %1675 = vst [vmem:[#allocation3 + $0x198] sm:$0x7f] %v1609
        %1676 = vst [vmem:[#allocation3 + $0x1a0] sm:$0x7f] %v1610
        %1677 = vst [vmem:[#allocation3 + $0x1a8] sm:$0x7f] %v1611
        %1678 = vst [vmem:[#allocation3 + $0x1b0] sm:$0x7f] %v1612
        %1679 = vst [vmem:[#allocation3 + $0x1b8] sm:$0x7f] %v1613
        %1680 = vst [vmem:[#allocation3 + $0x1c0] sm:$0x7f] %v1614
        %1681 = vst [vmem:[#allocation3 + $0x1c8] sm:$0x7f] %v1615
        %1682 = vst [vmem:[#allocation3 + $0x1d0] sm:$0x7f] %v1616
        %1683 = vst [vmem:[#allocation3 + $0x1d8] sm:$0x7f] %v1617
        %1684 = vst [vmem:[#allocation3 + $0x1e0] sm:$0x7f] %v1618
        %1685 = vst [vmem:[#allocation3 + $0x1e8] sm:$0x7f] %v1619
        %1686 = vst [vmem:[#allocation3 + $0x1f0] sm:$0x7f] %v1620
        %1687 = vst [vmem:[#allocation3 + $0x1f8] sm:$0x7f] %v1621
        %1688 = vst [vmem:[#allocation3 + $0x200] sm:$0x7f] %v1622
        %1689 = vst [vmem:[#allocation3 + $0x208] sm:$0x7f] %v1623
        %v1690 = vld [vmem:[%s514] sm:$0x3f]
        %v1691 = vld [vmem:[#allocation3] sm:$0x7f]
        %v1692 = vld [vmem:[#allocation3 + $0x8] sm:$0x7f]
        %v1693 = vld [vmem:[#allocation3 + $0x10] sm:$0x7f]
        %v1694 = vld [vmem:[#allocation3 + $0x18] sm:$0x7f]
        %v1695 = vld [vmem:[#allocation3 + $0x20] sm:$0x7f]
        %v1696 = vld [vmem:[#allocation3 + $0x28] sm:$0x7f]
        %v1697 = vld [vmem:[#allocation3 + $0x30] sm:$0x7f]
        %v1698 = vld [vmem:[#allocation3 + $0x38] sm:$0x7f]
        %v1699 = vld [vmem:[#allocation3 + $0x40] sm:$0x7f]
        %v1700 = vld [vmem:[#allocation3 + $0x48] sm:$0x7f]
        %v1701 = vld [vmem:[#allocation3 + $0x50] sm:$0x7f]
        %v1702 = vld [vmem:[#allocation3 + $0x58] sm:$0x7f]
        %v1703 = vld [vmem:[#allocation3 + $0x60] sm:$0x7f]
        %v1704 = vld [vmem:[#allocation3 + $0x68] sm:$0x7f]
        %v1705 = vld [vmem:[#allocation3 + $0x70] sm:$0x7f]
        %v1706 = vld [vmem:[#allocation3 + $0x78] sm:$0x7f]
        %v1707 = vld [vmem:[#allocation3 + $0x80] sm:$0x7f]
        %v1708 = vld [vmem:[#allocation3 + $0x88] sm:$0x7f]
        %v1709 = vld [vmem:[#allocation3 + $0x90] sm:$0x7f]
        %v1710 = vld [vmem:[#allocation3 + $0x98] sm:$0x7f]
        %v1711 = vld [vmem:[#allocation3 + $0xa0] sm:$0x7f]
        %v1712 = vld [vmem:[#allocation3 + $0xa8] sm:$0x7f]
        %v1713 = vld [vmem:[#allocation3 + $0xb0] sm:$0x7f]
        %v1714 = vld [vmem:[#allocation3 + $0xb8] sm:$0x7f]
        %v1715 = vld [vmem:[#allocation3 + $0xc0] sm:$0x7f]
        %v1716 = vld [vmem:[#allocation3 + $0xc8] sm:$0x7f]
        %v1717 = vld [vmem:[#allocation3 + $0xd0] sm:$0x7f]
        %v1718 = vld [vmem:[#allocation3 + $0xd8] sm:$0x7f]
        %v1719 = vld [vmem:[#allocation3 + $0xe0] sm:$0x7f]
        %v1720 = vld [vmem:[#allocation3 + $0xe8] sm:$0x7f]
        %v1721 = vld [vmem:[#allocation3 + $0xf0] sm:$0x7f]
        %v1722 = vld [vmem:[#allocation3 + $0xf8] sm:$0x7f]
        %v1723 = vld [vmem:[#allocation3 + $0x100] sm:$0x7f]
        %v1724 = vld [vmem:[#allocation3 + $0x108] sm:$0x7f]
        %v1725 = vld [vmem:[#allocation3 + $0x110] sm:$0x7f]
        %v1726 = vld [vmem:[#allocation3 + $0x118] sm:$0x7f]
        %v1727 = vld [vmem:[#allocation3 + $0x120] sm:$0x7f]
        %v1728 = vld [vmem:[#allocation3 + $0x128] sm:$0x7f]
        %v1729 = vld [vmem:[#allocation3 + $0x130] sm:$0x7f]
        %v1730 = vld [vmem:[#allocation3 + $0x138] sm:$0x7f]
        %v1731 = vld [vmem:[#allocation3 + $0x140] sm:$0x7f]
        %v1732 = vld [vmem:[#allocation3 + $0x148] sm:$0x7f]
        %v1734 = vperm.slane %v1690, 0
        %v1735 = vperm.slane %v1690, 1
        %v1736 = vperm.slane %v1690, 2
        %v1737 = vperm.slane %v1690, 3
        %v1738 = vperm.slane %v1690, 4
        %v1739 = vperm.slane %v1690, 5
        %v1746 = vmul.f32 %v1691, %v1734
        %v1747 = vmul.f32 %v1692, %v1735
        %v1748 = vmul.f32 %v1693, %v1736
        %v1749 = vmul.f32 %v1694, %v1737
        %v1750 = vmul.f32 %v1695, %v1738
        %v1751 = vmul.f32 %v1696, %v1739
        %v1752 = vmul.f32 %v1697, %v1734
        %v1753 = vmul.f32 %v1698, %v1735
        %v1754 = vmul.f32 %v1699, %v1736
        %v1755 = vmul.f32 %v1700, %v1737
        %v1756 = vmul.f32 %v1701, %v1738
        %v1757 = vmul.f32 %v1702, %v1739
        %v1758 = vmul.f32 %v1703, %v1734
        %v1759 = vmul.f32 %v1704, %v1735
        %v1760 = vmul.f32 %v1705, %v1736
        %v1761 = vmul.f32 %v1706, %v1737
        %v1762 = vmul.f32 %v1707, %v1738
        %v1763 = vmul.f32 %v1708, %v1739
        %v1764 = vmul.f32 %v1709, %v1734
        %v1765 = vmul.f32 %v1710, %v1735
        %v1766 = vmul.f32 %v1711, %v1736
        %v1767 = vmul.f32 %v1712, %v1737
        %v1768 = vmul.f32 %v1713, %v1738
        %v1769 = vmul.f32 %v1714, %v1739
        %v1770 = vmul.f32 %v1715, %v1734
        %v1771 = vmul.f32 %v1716, %v1735
        %v1772 = vmul.f32 %v1717, %v1736
        %v1773 = vmul.f32 %v1718, %v1737
        %v1774 = vmul.f32 %v1719, %v1738
        %v1775 = vmul.f32 %v1720, %v1739
        %v1776 = vmul.f32 %v1721, %v1734
        %v1777 = vmul.f32 %v1722, %v1735
        %v1778 = vmul.f32 %v1723, %v1736
        %v1779 = vmul.f32 %v1724, %v1737
        %v1780 = vmul.f32 %v1725, %v1738
        %v1781 = vmul.f32 %v1726, %v1739
        %v1782 = vmul.f32 %v1727, %v1734
        %v1783 = vmul.f32 %v1728, %v1735
        %v1784 = vmul.f32 %v1729, %v1736
        %v1785 = vmul.f32 %v1730, %v1737
        %v1786 = vmul.f32 %v1731, %v1738
        %v1787 = vmul.f32 %v1732, %v1739
        %v1788 = vadd.f32 %v1746, 0.0
        %v1789 = vadd.f32 %v1747, 0.0
        %v1790 = vadd.f32 %v1748, 0.0
        %v1791 = vadd.f32 %v1749, 0.0
        %v1792 = vadd.f32 %v1750, 0.0
        %v1793 = vadd.f32 %v1751, 0.0
        %v1794 = vadd.f32 %v1752, 0.0
        %v1795 = vadd.f32 %v1753, 0.0
        %v1796 = vadd.f32 %v1754, 0.0
        %v1797 = vadd.f32 %v1755, 0.0
        %v1798 = vadd.f32 %v1756, 0.0
        %v1799 = vadd.f32 %v1757, 0.0
        %v1800 = vadd.f32 %v1758, 0.0
        %v1801 = vadd.f32 %v1759, 0.0
        %v1802 = vadd.f32 %v1760, 0.0
        %v1803 = vadd.f32 %v1761, 0.0
        %v1804 = vadd.f32 %v1762, 0.0
        %v1805 = vadd.f32 %v1763, 0.0
        %v1806 = vadd.f32 %v1764, 0.0
        %v1807 = vadd.f32 %v1765, 0.0
        %v1808 = vadd.f32 %v1766, 0.0
        %v1809 = vadd.f32 %v1767, 0.0
        %v1810 = vadd.f32 %v1768, 0.0
        %v1811 = vadd.f32 %v1769, 0.0
        %v1812 = vadd.f32 %v1770, 0.0
        %v1813 = vadd.f32 %v1771, 0.0
        %v1814 = vadd.f32 %v1772, 0.0
        %v1815 = vadd.f32 %v1773, 0.0
        %v1816 = vadd.f32 %v1774, 0.0
        %v1817 = vadd.f32 %v1775, 0.0
        %v1818 = vadd.f32 %v1776, 0.0
        %v1819 = vadd.f32 %v1777, 0.0
        %v1820 = vadd.f32 %v1778, 0.0
        %v1821 = vadd.f32 %v1779, 0.0
        %v1822 = vadd.f32 %v1780, 0.0
        %v1823 = vadd.f32 %v1781, 0.0
        %v1824 = vadd.f32 %v1782, 0.0
        %v1825 = vadd.f32 %v1783, 0.0
        %v1826 = vadd.f32 %v1784, 0.0
        %v1827 = vadd.f32 %v1785, 0.0
        %v1828 = vadd.f32 %v1786, 0.0
        %v1829 = vadd.f32 %v1787, 0.0
        %s1830 = scalar_lea.vmem %s514, 30 [#allocation9]
        %v1831 = vld [vmem:[%s1830] sm:$0x3f]
        %s1832 = scalar_lea.vmem [#allocation3], 48
        %v1833 = vld [vmem:[%s1832] sm:$0x7f]
        %v1834 = vld [vmem:[%s1832 + $0x8] sm:$0x7f]
        %v1835 = vld [vmem:[%s1832 + $0x10] sm:$0x7f]
        %v1836 = vld [vmem:[%s1832 + $0x18] sm:$0x7f]
        %v1837 = vld [vmem:[%s1832 + $0x20] sm:$0x7f]
        %v1838 = vld [vmem:[%s1832 + $0x28] sm:$0x7f]
        %v1839 = vld [vmem:[%s1832 + $0x30] sm:$0x7f]
        %v1840 = vld [vmem:[%s1832 + $0x38] sm:$0x7f]
        %v1841 = vld [vmem:[%s1832 + $0x40] sm:$0x7f]
        %v1842 = vld [vmem:[%s1832 + $0x48] sm:$0x7f]
        %v1843 = vld [vmem:[%s1832 + $0x50] sm:$0x7f]
        %v1844 = vld [vmem:[%s1832 + $0x58] sm:$0x7f]
        %v1845 = vld [vmem:[%s1832 + $0x60] sm:$0x7f]
        %v1846 = vld [vmem:[%s1832 + $0x68] sm:$0x7f]
        %v1847 = vld [vmem:[%s1832 + $0x70] sm:$0x7f]
        %v1848 = vld [vmem:[%s1832 + $0x78] sm:$0x7f]
        %v1849 = vld [vmem:[%s1832 + $0x80] sm:$0x7f]
        %v1850 = vld [vmem:[%s1832 + $0x88] sm:$0x7f]
        %v1851 = vld [vmem:[%s1832 + $0x90] sm:$0x7f]
        %v1852 = vld [vmem:[%s1832 + $0x98] sm:$0x7f]
        %v1853 = vld [vmem:[%s1832 + $0xa0] sm:$0x7f]
        %v1854 = vld [vmem:[%s1832 + $0xa8] sm:$0x7f]
        %v1855 = vld [vmem:[%s1832 + $0xb0] sm:$0x7f]
        %v1856 = vld [vmem:[%s1832 + $0xb8] sm:$0x7f]
        %v1857 = vld [vmem:[%s1832 + $0xc0] sm:$0x7f]
        %v1858 = vld [vmem:[%s1832 + $0xc8] sm:$0x7f]
        %v1859 = vld [vmem:[%s1832 + $0xd0] sm:$0x7f]
        %v1860 = vld [vmem:[%s1832 + $0xd8] sm:$0x7f]
        %v1861 = vld [vmem:[%s1832 + $0xe0] sm:$0x7f]
        %v1862 = vld [vmem:[%s1832 + $0xe8] sm:$0x7f]
        %v1863 = vld [vmem:[%s1832 + $0xf0] sm:$0x7f]
        %v1864 = vld [vmem:[%s1832 + $0xf8] sm:$0x7f]
        %v1865 = vld [vmem:[%s1832 + $0x100] sm:$0x7f]
        %v1866 = vld [vmem:[%s1832 + $0x108] sm:$0x7f]
        %v1867 = vld [vmem:[%s1832 + $0x110] sm:$0x7f]
        %v1868 = vld [vmem:[%s1832 + $0x118] sm:$0x7f]
        %v1869 = vld [vmem:[%s1832 + $0x120] sm:$0x7f]
        %v1870 = vld [vmem:[%s1832 + $0x128] sm:$0x7f]
        %v1871 = vld [vmem:[%s1832 + $0x130] sm:$0x7f]
        %v1872 = vld [vmem:[%s1832 + $0x138] sm:$0x7f]
        %v1873 = vld [vmem:[%s1832 + $0x140] sm:$0x7f]
        %v1874 = vld [vmem:[%s1832 + $0x148] sm:$0x7f]
        %v1876 = vperm.slane %v1831, 0
        %v1877 = vperm.slane %v1831, 1
        %v1878 = vperm.slane %v1831, 2
        %v1879 = vperm.slane %v1831, 3
        %v1880 = vperm.slane %v1831, 4
        %v1881 = vperm.slane %v1831, 5
        %v1888 = vmul.f32 %v1833, %v1876
        %v1889 = vmul.f32 %v1834, %v1877
        %v1890 = vmul.f32 %v1835, %v1878
        %v1891 = vmul.f32 %v1836, %v1879
        %v1892 = vmul.f32 %v1837, %v1880
        %v1893 = vmul.f32 %v1838, %v1881
        %v1894 = vmul.f32 %v1839, %v1876
        %v1895 = vmul.f32 %v1840, %v1877
        %v1896 = vmul.f32 %v1841, %v1878
        %v1897 = vmul.f32 %v1842, %v1879
        %v1898 = vmul.f32 %v1843, %v1880
        %v1899 = vmul.f32 %v1844, %v1881
        %v1900 = vmul.f32 %v1845, %v1876
        %v1901 = vmul.f32 %v1846, %v1877
        %v1902 = vmul.f32 %v1847, %v1878
        %v1903 = vmul.f32 %v1848, %v1879
        %v1904 = vmul.f32 %v1849, %v1880
        %v1905 = vmul.f32 %v1850, %v1881
        %v1906 = vmul.f32 %v1851, %v1876
        %v1907 = vmul.f32 %v1852, %v1877
        %v1908 = vmul.f32 %v1853, %v1878
        %v1909 = vmul.f32 %v1854, %v1879
        %v1910 = vmul.f32 %v1855, %v1880
        %v1911 = vmul.f32 %v1856, %v1881
        %v1912 = vmul.f32 %v1857, %v1876
        %v1913 = vmul.f32 %v1858, %v1877
        %v1914 = vmul.f32 %v1859, %v1878
        %v1915 = vmul.f32 %v1860, %v1879
        %v1916 = vmul.f32 %v1861, %v1880
        %v1917 = vmul.f32 %v1862, %v1881
        %v1918 = vmul.f32 %v1863, %v1876
        %v1919 = vmul.f32 %v1864, %v1877
        %v1920 = vmul.f32 %v1865, %v1878
        %v1921 = vmul.f32 %v1866, %v1879
        %v1922 = vmul.f32 %v1867, %v1880
        %v1923 = vmul.f32 %v1868, %v1881
        %v1924 = vmul.f32 %v1869, %v1876
        %v1925 = vmul.f32 %v1870, %v1877
        %v1926 = vmul.f32 %v1871, %v1878
        %v1927 = vmul.f32 %v1872, %v1879
        %v1928 = vmul.f32 %v1873, %v1880
        %v1929 = vmul.f32 %v1874, %v1881
        %v1930 = vadd.f32 %v1788, %v1888
        %v1931 = vadd.f32 %v1789, %v1889
        %v1932 = vadd.f32 %v1790, %v1890
        %v1933 = vadd.f32 %v1791, %v1891
        %v1934 = vadd.f32 %v1792, %v1892
        %v1935 = vadd.f32 %v1793, %v1893
        %v1936 = vadd.f32 %v1794, %v1894
        %v1937 = vadd.f32 %v1795, %v1895
        %v1938 = vadd.f32 %v1796, %v1896
        %v1939 = vadd.f32 %v1797, %v1897
        %v1940 = vadd.f32 %v1798, %v1898
        %v1941 = vadd.f32 %v1799, %v1899
        %v1942 = vadd.f32 %v1800, %v1900
        %v1943 = vadd.f32 %v1801, %v1901
        %v1944 = vadd.f32 %v1802, %v1902
        %v1945 = vadd.f32 %v1803, %v1903
        %v1946 = vadd.f32 %v1804, %v1904
        %v1947 = vadd.f32 %v1805, %v1905
        %v1948 = vadd.f32 %v1806, %v1906
        %v1949 = vadd.f32 %v1807, %v1907
        %v1950 = vadd.f32 %v1808, %v1908
        %v1951 = vadd.f32 %v1809, %v1909
        %v1952 = vadd.f32 %v1810, %v1910
        %v1953 = vadd.f32 %v1811, %v1911
        %v1954 = vadd.f32 %v1812, %v1912
        %v1955 = vadd.f32 %v1813, %v1913
        %v1956 = vadd.f32 %v1814, %v1914
        %v1957 = vadd.f32 %v1815, %v1915
        %v1958 = vadd.f32 %v1816, %v1916
        %v1959 = vadd.f32 %v1817, %v1917
        %v1960 = vadd.f32 %v1818, %v1918
        %v1961 = vadd.f32 %v1819, %v1919
        %v1962 = vadd.f32 %v1820, %v1920
        %v1963 = vadd.f32 %v1821, %v1921
        %v1964 = vadd.f32 %v1822, %v1922
        %v1965 = vadd.f32 %v1823, %v1923
        %v1966 = vadd.f32 %v1824, %v1924
        %v1967 = vadd.f32 %v1825, %v1925
        %v1968 = vadd.f32 %v1826, %v1926
        %v1969 = vadd.f32 %v1827, %v1927
        %v1970 = vadd.f32 %v1828, %v1928
        %v1971 = vadd.f32 %v1829, %v1929
        %s1972 = scalar_lea.vmem %s514, 60 [#allocation9]
        %v1973 = vld [vmem:[%s1972] sm:$0x3f]
        %s1974 = scalar_lea.vmem [#allocation3], 96
        %v1975 = vld [vmem:[%s1974] sm:$0x7f]
        %v1976 = vld [vmem:[%s1974 + $0x8] sm:$0x7f]
        %v1977 = vld [vmem:[%s1974 + $0x10] sm:$0x7f]
        %v1978 = vld [vmem:[%s1974 + $0x18] sm:$0x7f]
        %v1979 = vld [vmem:[%s1974 + $0x20] sm:$0x7f]
        %v1980 = vld [vmem:[%s1974 + $0x28] sm:$0x7f]
        %v1981 = vld [vmem:[%s1974 + $0x30] sm:$0x7f]
        %v1982 = vld [vmem:[%s1974 + $0x38] sm:$0x7f]
        %v1983 = vld [vmem:[%s1974 + $0x40] sm:$0x7f]
        %v1984 = vld [vmem:[%s1974 + $0x48] sm:$0x7f]
        %v1985 = vld [vmem:[%s1974 + $0x50] sm:$0x7f]
        %v1986 = vld [vmem:[%s1974 + $0x58] sm:$0x7f]
        %v1987 = vld [vmem:[%s1974 + $0x60] sm:$0x7f]
        %v1988 = vld [vmem:[%s1974 + $0x68] sm:$0x7f]
        %v1989 = vld [vmem:[%s1974 + $0x70] sm:$0x7f]
        %v1990 = vld [vmem:[%s1974 + $0x78] sm:$0x7f]
        %v1991 = vld [vmem:[%s1974 + $0x80] sm:$0x7f]
        %v1992 = vld [vmem:[%s1974 + $0x88] sm:$0x7f]
        %v1993 = vld [vmem:[%s1974 + $0x90] sm:$0x7f]
        %v1994 = vld [vmem:[%s1974 + $0x98] sm:$0x7f]
        %v1995 = vld [vmem:[%s1974 + $0xa0] sm:$0x7f]
        %v1996 = vld [vmem:[%s1974 + $0xa8] sm:$0x7f]
        %v1997 = vld [vmem:[%s1974 + $0xb0] sm:$0x7f]
        %v1998 = vld [vmem:[%s1974 + $0xb8] sm:$0x7f]
        %v1999 = vld [vmem:[%s1974 + $0xc0] sm:$0x7f]
        %v2000 = vld [vmem:[%s1974 + $0xc8] sm:$0x7f]
        %v2001 = vld [vmem:[%s1974 + $0xd0] sm:$0x7f]
        %v2002 = vld [vmem:[%s1974 + $0xd8] sm:$0x7f]
        %v2003 = vld [vmem:[%s1974 + $0xe0] sm:$0x7f]
        %v2004 = vld [vmem:[%s1974 + $0xe8] sm:$0x7f]
        %v2005 = vld [vmem:[%s1974 + $0xf0] sm:$0x7f]
        %v2006 = vld [vmem:[%s1974 + $0xf8] sm:$0x7f]
        %v2007 = vld [vmem:[%s1974 + $0x100] sm:$0x7f]
        %v2008 = vld [vmem:[%s1974 + $0x108] sm:$0x7f]
        %v2009 = vld [vmem:[%s1974 + $0x110] sm:$0x7f]
        %v2010 = vld [vmem:[%s1974 + $0x118] sm:$0x7f]
        %v2011 = vld [vmem:[%s1974 + $0x120] sm:$0x7f]
        %v2012 = vld [vmem:[%s1974 + $0x128] sm:$0x7f]
        %v2013 = vld [vmem:[%s1974 + $0x130] sm:$0x7f]
        %v2014 = vld [vmem:[%s1974 + $0x138] sm:$0x7f]
        %v2015 = vld [vmem:[%s1974 + $0x140] sm:$0x7f]
        %v2016 = vld [vmem:[%s1974 + $0x148] sm:$0x7f]
        %v2018 = vperm.slane %v1973, 0
        %v2019 = vperm.slane %v1973, 1
        %v2020 = vperm.slane %v1973, 2
        %v2021 = vperm.slane %v1973, 3
        %v2022 = vperm.slane %v1973, 4
        %v2023 = vperm.slane %v1973, 5
        %v2030 = vmul.f32 %v1975, %v2018
        %v2031 = vmul.f32 %v1976, %v2019
        %v2032 = vmul.f32 %v1977, %v2020
        %v2033 = vmul.f32 %v1978, %v2021
        %v2034 = vmul.f32 %v1979, %v2022
        %v2035 = vmul.f32 %v1980, %v2023
        %v2036 = vmul.f32 %v1981, %v2018
        %v2037 = vmul.f32 %v1982, %v2019
        %v2038 = vmul.f32 %v1983, %v2020
        %v2039 = vmul.f32 %v1984, %v2021
        %v2040 = vmul.f32 %v1985, %v2022
        %v2041 = vmul.f32 %v1986, %v2023
        %v2042 = vmul.f32 %v1987, %v2018
        %v2043 = vmul.f32 %v1988, %v2019
        %v2044 = vmul.f32 %v1989, %v2020
        %v2045 = vmul.f32 %v1990, %v2021
        %v2046 = vmul.f32 %v1991, %v2022
        %v2047 = vmul.f32 %v1992, %v2023
        %v2048 = vmul.f32 %v1993, %v2018
        %v2049 = vmul.f32 %v1994, %v2019
        %v2050 = vmul.f32 %v1995, %v2020
        %v2051 = vmul.f32 %v1996, %v2021
        %v2052 = vmul.f32 %v1997, %v2022
        %v2053 = vmul.f32 %v1998, %v2023
        %v2054 = vmul.f32 %v1999, %v2018
        %v2055 = vmul.f32 %v2000, %v2019
        %v2056 = vmul.f32 %v2001, %v2020
        %v2057 = vmul.f32 %v2002, %v2021
        %v2058 = vmul.f32 %v2003, %v2022
        %v2059 = vmul.f32 %v2004, %v2023
        %v2060 = vmul.f32 %v2005, %v2018
        %v2061 = vmul.f32 %v2006, %v2019
        %v2062 = vmul.f32 %v2007, %v2020
        %v2063 = vmul.f32 %v2008, %v2021
        %v2064 = vmul.f32 %v2009, %v2022
        %v2065 = vmul.f32 %v2010, %v2023
        %v2066 = vmul.f32 %v2011, %v2018
        %v2067 = vmul.f32 %v2012, %v2019
        %v2068 = vmul.f32 %v2013, %v2020
        %v2069 = vmul.f32 %v2014, %v2021
        %v2070 = vmul.f32 %v2015, %v2022
        %v2071 = vmul.f32 %v2016, %v2023
        %v2072 = vadd.f32 %v1930, %v2030
        %v2073 = vadd.f32 %v1931, %v2031
        %v2074 = vadd.f32 %v1932, %v2032
        %v2075 = vadd.f32 %v1933, %v2033
        %v2076 = vadd.f32 %v1934, %v2034
        %v2077 = vadd.f32 %v1935, %v2035
        %v2078 = vadd.f32 %v1936, %v2036
        %v2079 = vadd.f32 %v1937, %v2037
        %v2080 = vadd.f32 %v1938, %v2038
        %v2081 = vadd.f32 %v1939, %v2039
        %v2082 = vadd.f32 %v1940, %v2040
        %v2083 = vadd.f32 %v1941, %v2041
        %v2084 = vadd.f32 %v1942, %v2042
        %v2085 = vadd.f32 %v1943, %v2043
        %v2086 = vadd.f32 %v1944, %v2044
        %v2087 = vadd.f32 %v1945, %v2045
        %v2088 = vadd.f32 %v1946, %v2046
        %v2089 = vadd.f32 %v1947, %v2047
        %v2090 = vadd.f32 %v1948, %v2048
        %v2091 = vadd.f32 %v1949, %v2049
        %v2092 = vadd.f32 %v1950, %v2050
        %v2093 = vadd.f32 %v1951, %v2051
        %v2094 = vadd.f32 %v1952, %v2052
        %v2095 = vadd.f32 %v1953, %v2053
        %v2096 = vadd.f32 %v1954, %v2054
        %v2097 = vadd.f32 %v1955, %v2055
        %v2098 = vadd.f32 %v1956, %v2056
        %v2099 = vadd.f32 %v1957, %v2057
        %v2100 = vadd.f32 %v1958, %v2058
        %v2101 = vadd.f32 %v1959, %v2059
        %v2102 = vadd.f32 %v1960, %v2060
        %v2103 = vadd.f32 %v1961, %v2061
        %v2104 = vadd.f32 %v1962, %v2062
        %v2105 = vadd.f32 %v1963, %v2063
        %v2106 = vadd.f32 %v1964, %v2064
        %v2107 = vadd.f32 %v1965, %v2065
        %v2108 = vadd.f32 %v1966, %v2066
        %v2109 = vadd.f32 %v1967, %v2067
        %v2110 = vadd.f32 %v1968, %v2068
        %v2111 = vadd.f32 %v1969, %v2069
        %v2112 = vadd.f32 %v1970, %v2070
        %v2113 = vadd.f32 %v1971, %v2071
        %s2114 = scalar_lea.vmem %s514, 90 [#allocation9]
        %v2115 = vld [vmem:[%s2114] sm:$0x3f]
        %s2116 = scalar_lea.vmem [#allocation3], 144
        %v2117 = vld [vmem:[%s2116] sm:$0x7f]
        %v2118 = vld [vmem:[%s2116 + $0x8] sm:$0x7f]
        %v2119 = vld [vmem:[%s2116 + $0x10] sm:$0x7f]
        %v2120 = vld [vmem:[%s2116 + $0x18] sm:$0x7f]
        %v2121 = vld [vmem:[%s2116 + $0x20] sm:$0x7f]
        %v2122 = vld [vmem:[%s2116 + $0x28] sm:$0x7f]
        %v2123 = vld [vmem:[%s2116 + $0x30] sm:$0x7f]
        %v2124 = vld [vmem:[%s2116 + $0x38] sm:$0x7f]
        %v2125 = vld [vmem:[%s2116 + $0x40] sm:$0x7f]
        %v2126 = vld [vmem:[%s2116 + $0x48] sm:$0x7f]
        %v2127 = vld [vmem:[%s2116 + $0x50] sm:$0x7f]
        %v2128 = vld [vmem:[%s2116 + $0x58] sm:$0x7f]
        %v2129 = vld [vmem:[%s2116 + $0x60] sm:$0x7f]
        %v2130 = vld [vmem:[%s2116 + $0x68] sm:$0x7f]
        %v2131 = vld [vmem:[%s2116 + $0x70] sm:$0x7f]
        %v2132 = vld [vmem:[%s2116 + $0x78] sm:$0x7f]
        %v2133 = vld [vmem:[%s2116 + $0x80] sm:$0x7f]
        %v2134 = vld [vmem:[%s2116 + $0x88] sm:$0x7f]
        %v2135 = vld [vmem:[%s2116 + $0x90] sm:$0x7f]
        %v2136 = vld [vmem:[%s2116 + $0x98] sm:$0x7f]
        %v2137 = vld [vmem:[%s2116 + $0xa0] sm:$0x7f]
        %v2138 = vld [vmem:[%s2116 + $0xa8] sm:$0x7f]
        %v2139 = vld [vmem:[%s2116 + $0xb0] sm:$0x7f]
        %v2140 = vld [vmem:[%s2116 + $0xb8] sm:$0x7f]
        %v2141 = vld [vmem:[%s2116 + $0xc0] sm:$0x7f]
        %v2142 = vld [vmem:[%s2116 + $0xc8] sm:$0x7f]
        %v2143 = vld [vmem:[%s2116 + $0xd0] sm:$0x7f]
        %v2144 = vld [vmem:[%s2116 + $0xd8] sm:$0x7f]
        %v2145 = vld [vmem:[%s2116 + $0xe0] sm:$0x7f]
        %v2146 = vld [vmem:[%s2116 + $0xe8] sm:$0x7f]
        %v2147 = vld [vmem:[%s2116 + $0xf0] sm:$0x7f]
        %v2148 = vld [vmem:[%s2116 + $0xf8] sm:$0x7f]
        %v2149 = vld [vmem:[%s2116 + $0x100] sm:$0x7f]
        %v2150 = vld [vmem:[%s2116 + $0x108] sm:$0x7f]
        %v2151 = vld [vmem:[%s2116 + $0x110] sm:$0x7f]
        %v2152 = vld [vmem:[%s2116 + $0x118] sm:$0x7f]
        %v2153 = vld [vmem:[%s2116 + $0x120] sm:$0x7f]
        %v2154 = vld [vmem:[%s2116 + $0x128] sm:$0x7f]
        %v2155 = vld [vmem:[%s2116 + $0x130] sm:$0x7f]
        %v2156 = vld [vmem:[%s2116 + $0x138] sm:$0x7f]
        %v2157 = vld [vmem:[%s2116 + $0x140] sm:$0x7f]
        %v2158 = vld [vmem:[%s2116 + $0x148] sm:$0x7f]
        %v2160 = vperm.slane %v2115, 0
        %v2161 = vperm.slane %v2115, 1
        %v2162 = vperm.slane %v2115, 2
        %v2163 = vperm.slane %v2115, 3
        %v2164 = vperm.slane %v2115, 4
        %v2165 = vperm.slane %v2115, 5
        %v2172 = vmul.f32 %v2117, %v2160
        %v2173 = vmul.f32 %v2118, %v2161
        %v2174 = vmul.f32 %v2119, %v2162
        %v2175 = vmul.f32 %v2120, %v2163
        %v2176 = vmul.f32 %v2121, %v2164
        %v2177 = vmul.f32 %v2122, %v2165
        %v2178 = vmul.f32 %v2123, %v2160
        %v2179 = vmul.f32 %v2124, %v2161
        %v2180 = vmul.f32 %v2125, %v2162
        %v2181 = vmul.f32 %v2126, %v2163
        %v2182 = vmul.f32 %v2127, %v2164
        %v2183 = vmul.f32 %v2128, %v2165
        %v2184 = vmul.f32 %v2129, %v2160
        %v2185 = vmul.f32 %v2130, %v2161
        %v2186 = vmul.f32 %v2131, %v2162
        %v2187 = vmul.f32 %v2132, %v2163
        %v2188 = vmul.f32 %v2133, %v2164
        %v2189 = vmul.f32 %v2134, %v2165
        %v2190 = vmul.f32 %v2135, %v2160
        %v2191 = vmul.f32 %v2136, %v2161
        %v2192 = vmul.f32 %v2137, %v2162
        %v2193 = vmul.f32 %v2138, %v2163
        %v2194 = vmul.f32 %v2139, %v2164
        %v2195 = vmul.f32 %v2140, %v2165
        %v2196 = vmul.f32 %v2141, %v2160
        %v2197 = vmul.f32 %v2142, %v2161
        %v2198 = vmul.f32 %v2143, %v2162
        %v2199 = vmul.f32 %v2144, %v2163
        %v2200 = vmul.f32 %v2145, %v2164
        %v2201 = vmul.f32 %v2146, %v2165
        %v2202 = vmul.f32 %v2147, %v2160
        %v2203 = vmul.f32 %v2148, %v2161
        %v2204 = vmul.f32 %v2149, %v2162
        %v2205 = vmul.f32 %v2150, %v2163
        %v2206 = vmul.f32 %v2151, %v2164
        %v2207 = vmul.f32 %v2152, %v2165
        %v2208 = vmul.f32 %v2153, %v2160
        %v2209 = vmul.f32 %v2154, %v2161
        %v2210 = vmul.f32 %v2155, %v2162
        %v2211 = vmul.f32 %v2156, %v2163
        %v2212 = vmul.f32 %v2157, %v2164
        %v2213 = vmul.f32 %v2158, %v2165
        %v2214 = vadd.f32 %v2072, %v2172
        %v2215 = vadd.f32 %v2073, %v2173
        %v2216 = vadd.f32 %v2074, %v2174
        %v2217 = vadd.f32 %v2075, %v2175
        %v2218 = vadd.f32 %v2076, %v2176
        %v2219 = vadd.f32 %v2077, %v2177
        %v2220 = vadd.f32 %v2078, %v2178
        %v2221 = vadd.f32 %v2079, %v2179
        %v2222 = vadd.f32 %v2080, %v2180
        %v2223 = vadd.f32 %v2081, %v2181
        %v2224 = vadd.f32 %v2082, %v2182
        %v2225 = vadd.f32 %v2083, %v2183
        %v2226 = vadd.f32 %v2084, %v2184
        %v2227 = vadd.f32 %v2085, %v2185
        %v2228 = vadd.f32 %v2086, %v2186
        %v2229 = vadd.f32 %v2087, %v2187
        %v2230 = vadd.f32 %v2088, %v2188
        %v2231 = vadd.f32 %v2089, %v2189
        %v2232 = vadd.f32 %v2090, %v2190
        %v2233 = vadd.f32 %v2091, %v2191
        %v2234 = vadd.f32 %v2092, %v2192
        %v2235 = vadd.f32 %v2093, %v2193
        %v2236 = vadd.f32 %v2094, %v2194
        %v2237 = vadd.f32 %v2095, %v2195
        %v2238 = vadd.f32 %v2096, %v2196
        %v2239 = vadd.f32 %v2097, %v2197
        %v2240 = vadd.f32 %v2098, %v2198
        %v2241 = vadd.f32 %v2099, %v2199
        %v2242 = vadd.f32 %v2100, %v2200
        %v2243 = vadd.f32 %v2101, %v2201
        %v2244 = vadd.f32 %v2102, %v2202
        %v2245 = vadd.f32 %v2103, %v2203
        %v2246 = vadd.f32 %v2104, %v2204
        %v2247 = vadd.f32 %v2105, %v2205
        %v2248 = vadd.f32 %v2106, %v2206
        %v2249 = vadd.f32 %v2107, %v2207
        %v2250 = vadd.f32 %v2108, %v2208
        %v2251 = vadd.f32 %v2109, %v2209
        %v2252 = vadd.f32 %v2110, %v2210
        %v2253 = vadd.f32 %v2111, %v2211
        %v2254 = vadd.f32 %v2112, %v2212
        %v2255 = vadd.f32 %v2113, %v2213
        %s2256 = scalar_lea.vmem %s514, 120 [#allocation9]
        %v2257 = vld [vmem:[%s2256] sm:$0x3f]
        %s2258 = scalar_lea.vmem [#allocation3], 192
        %v2259 = vld [vmem:[%s2258] sm:$0x7f]
        %v2260 = vld [vmem:[%s2258 + $0x8] sm:$0x7f]
        %v2261 = vld [vmem:[%s2258 + $0x10] sm:$0x7f]
        %v2262 = vld [vmem:[%s2258 + $0x18] sm:$0x7f]
        %v2263 = vld [vmem:[%s2258 + $0x20] sm:$0x7f]
        %v2264 = vld [vmem:[%s2258 + $0x28] sm:$0x7f]
        %v2265 = vld [vmem:[%s2258 + $0x30] sm:$0x7f]
        %v2266 = vld [vmem:[%s2258 + $0x38] sm:$0x7f]
        %v2267 = vld [vmem:[%s2258 + $0x40] sm:$0x7f]
        %v2268 = vld [vmem:[%s2258 + $0x48] sm:$0x7f]
        %v2269 = vld [vmem:[%s2258 + $0x50] sm:$0x7f]
        %v2270 = vld [vmem:[%s2258 + $0x58] sm:$0x7f]
        %v2271 = vld [vmem:[%s2258 + $0x60] sm:$0x7f]
        %v2272 = vld [vmem:[%s2258 + $0x68] sm:$0x7f]
        %v2273 = vld [vmem:[%s2258 + $0x70] sm:$0x7f]
        %v2274 = vld [vmem:[%s2258 + $0x78] sm:$0x7f]
        %v2275 = vld [vmem:[%s2258 + $0x80] sm:$0x7f]
        %v2276 = vld [vmem:[%s2258 + $0x88] sm:$0x7f]
        %v2277 = vld [vmem:[%s2258 + $0x90] sm:$0x7f]
        %v2278 = vld [vmem:[%s2258 + $0x98] sm:$0x7f]
        %v2279 = vld [vmem:[%s2258 + $0xa0] sm:$0x7f]
        %v2280 = vld [vmem:[%s2258 + $0xa8] sm:$0x7f]
        %v2281 = vld [vmem:[%s2258 + $0xb0] sm:$0x7f]
        %v2282 = vld [vmem:[%s2258 + $0xb8] sm:$0x7f]
        %v2283 = vld [vmem:[%s2258 + $0xc0] sm:$0x7f]
        %v2284 = vld [vmem:[%s2258 + $0xc8] sm:$0x7f]
        %v2285 = vld [vmem:[%s2258 + $0xd0] sm:$0x7f]
        %v2286 = vld [vmem:[%s2258 + $0xd8] sm:$0x7f]
        %v2287 = vld [vmem:[%s2258 + $0xe0] sm:$0x7f]
        %v2288 = vld [vmem:[%s2258 + $0xe8] sm:$0x7f]
        %v2289 = vld [vmem:[%s2258 + $0xf0] sm:$0x7f]
        %v2290 = vld [vmem:[%s2258 + $0xf8] sm:$0x7f]
        %v2291 = vld [vmem:[%s2258 + $0x100] sm:$0x7f]
        %v2292 = vld [vmem:[%s2258 + $0x108] sm:$0x7f]
        %v2293 = vld [vmem:[%s2258 + $0x110] sm:$0x7f]
        %v2294 = vld [vmem:[%s2258 + $0x118] sm:$0x7f]
        %v2295 = vld [vmem:[%s2258 + $0x120] sm:$0x7f]
        %v2296 = vld [vmem:[%s2258 + $0x128] sm:$0x7f]
        %v2297 = vld [vmem:[%s2258 + $0x130] sm:$0x7f]
        %v2298 = vld [vmem:[%s2258 + $0x138] sm:$0x7f]
        %v2299 = vld [vmem:[%s2258 + $0x140] sm:$0x7f]
        %v2300 = vld [vmem:[%s2258 + $0x148] sm:$0x7f]
        %v2302 = vperm.slane %v2257, 0
        %v2303 = vperm.slane %v2257, 1
        %v2304 = vperm.slane %v2257, 2
        %v2305 = vperm.slane %v2257, 3
        %v2306 = vperm.slane %v2257, 4
        %v2307 = vperm.slane %v2257, 5
        %v2314 = vmul.f32 %v2259, %v2302
        %v2315 = vmul.f32 %v2260, %v2303
        %v2316 = vmul.f32 %v2261, %v2304
        %v2317 = vmul.f32 %v2262, %v2305
        %v2318 = vmul.f32 %v2263, %v2306
        %v2319 = vmul.f32 %v2264, %v2307
        %v2320 = vmul.f32 %v2265, %v2302
        %v2321 = vmul.f32 %v2266, %v2303
        %v2322 = vmul.f32 %v2267, %v2304
        %v2323 = vmul.f32 %v2268, %v2305
        %v2324 = vmul.f32 %v2269, %v2306
        %v2325 = vmul.f32 %v2270, %v2307
        %v2326 = vmul.f32 %v2271, %v2302
        %v2327 = vmul.f32 %v2272, %v2303
        %v2328 = vmul.f32 %v2273, %v2304
        %v2329 = vmul.f32 %v2274, %v2305
        %v2330 = vmul.f32 %v2275, %v2306
        %v2331 = vmul.f32 %v2276, %v2307
        %v2332 = vmul.f32 %v2277, %v2302
        %v2333 = vmul.f32 %v2278, %v2303
        %v2334 = vmul.f32 %v2279, %v2304
        %v2335 = vmul.f32 %v2280, %v2305
        %v2336 = vmul.f32 %v2281, %v2306
        %v2337 = vmul.f32 %v2282, %v2307
        %v2338 = vmul.f32 %v2283, %v2302
        %v2339 = vmul.f32 %v2284, %v2303
        %v2340 = vmul.f32 %v2285, %v2304
        %v2341 = vmul.f32 %v2286, %v2305
        %v2342 = vmul.f32 %v2287, %v2306
        %v2343 = vmul.f32 %v2288, %v2307
        %v2344 = vmul.f32 %v2289, %v2302
        %v2345 = vmul.f32 %v2290, %v2303
        %v2346 = vmul.f32 %v2291, %v2304
        %v2347 = vmul.f32 %v2292, %v2305
        %v2348 = vmul.f32 %v2293, %v2306
        %v2349 = vmul.f32 %v2294, %v2307
        %v2350 = vmul.f32 %v2295, %v2302
        %v2351 = vmul.f32 %v2296, %v2303
        %v2352 = vmul.f32 %v2297, %v2304
        %v2353 = vmul.f32 %v2298, %v2305
        %v2354 = vmul.f32 %v2299, %v2306
        %v2355 = vmul.f32 %v2300, %v2307
        %v2356 = vadd.f32 %v2214, %v2314
        %v2357 = vadd.f32 %v2215, %v2315
        %v2358 = vadd.f32 %v2216, %v2316
        %v2359 = vadd.f32 %v2217, %v2317
        %v2360 = vadd.f32 %v2218, %v2318
        %v2361 = vadd.f32 %v2219, %v2319
        %v2362 = vadd.f32 %v2220, %v2320
        %v2363 = vadd.f32 %v2221, %v2321
        %v2364 = vadd.f32 %v2222, %v2322
        %v2365 = vadd.f32 %v2223, %v2323
        %v2366 = vadd.f32 %v2224, %v2324
        %v2367 = vadd.f32 %v2225, %v2325
        %v2368 = vadd.f32 %v2226, %v2326
        %v2369 = vadd.f32 %v2227, %v2327
        %v2370 = vadd.f32 %v2228, %v2328
        %v2371 = vadd.f32 %v2229, %v2329
        %v2372 = vadd.f32 %v2230, %v2330
        %v2373 = vadd.f32 %v2231, %v2331
        %v2374 = vadd.f32 %v2232, %v2332
        %v2375 = vadd.f32 %v2233, %v2333
        %v2376 = vadd.f32 %v2234, %v2334
        %v2377 = vadd.f32 %v2235, %v2335
        %v2378 = vadd.f32 %v2236, %v2336
        %v2379 = vadd.f32 %v2237, %v2337
        %v2380 = vadd.f32 %v2238, %v2338
        %v2381 = vadd.f32 %v2239, %v2339
        %v2382 = vadd.f32 %v2240, %v2340
        %v2383 = vadd.f32 %v2241, %v2341
        %v2384 = vadd.f32 %v2242, %v2342
        %v2385 = vadd.f32 %v2243, %v2343
        %v2386 = vadd.f32 %v2244, %v2344
        %v2387 = vadd.f32 %v2245, %v2345
        %v2388 = vadd.f32 %v2246, %v2346
        %v2389 = vadd.f32 %v2247, %v2347
        %v2390 = vadd.f32 %v2248, %v2348
        %v2391 = vadd.f32 %v2249, %v2349
        %v2392 = vadd.f32 %v2250, %v2350
        %v2393 = vadd.f32 %v2251, %v2351
        %v2394 = vadd.f32 %v2252, %v2352
        %v2395 = vadd.f32 %v2253, %v2353
        %v2396 = vadd.f32 %v2254, %v2354
        %v2397 = vadd.f32 %v2255, %v2355
        %v2398 = vld [vmem:[#allocation2] sm:$0xfe]
        %v2399 = vld [vmem:[#allocation2 + $0x8] sm:$0xfe]
        %v2400 = vld [vmem:[#allocation2 + $0x10] sm:$0xfe]
        %v2401 = vld [vmem:[#allocation2 + $0x18] sm:$0xfe]
        %v2402 = vld [vmem:[#allocation2 + $0x20] sm:$0xfe]
        %v2403 = vld [vmem:[#allocation2 + $0x28] sm:$0xfe]
        %v2404 = vld [vmem:[#allocation2 + $0x60] sm:$0xfe]
        %v2405 = vld [vmem:[#allocation2 + $0x68] sm:$0xfe]
        %v2406 = vld [vmem:[#allocation2 + $0x70] sm:$0xfe]
        %v2407 = vld [vmem:[#allocation2 + $0x78] sm:$0xfe]
        %v2408 = vld [vmem:[#allocation2 + $0x80] sm:$0xfe]
        %v2409 = vld [vmem:[#allocation2 + $0x88] sm:$0xfe]
        %v2410 = vld [vmem:[#allocation2 + $0xc0] sm:$0xfe]
        %v2411 = vld [vmem:[#allocation2 + $0xc8] sm:$0xfe]
        %v2412 = vld [vmem:[#allocation2 + $0xd0] sm:$0xfe]
        %v2413 = vld [vmem:[#allocation2 + $0xd8] sm:$0xfe]
        %v2414 = vld [vmem:[#allocation2 + $0xe0] sm:$0xfe]
        %v2415 = vld [vmem:[#allocation2 + $0xe8] sm:$0xfe]
        %v2416 = vld [vmem:[#allocation2 + $0x120] sm:$0xfe]
        %v2417 = vld [vmem:[#allocation2 + $0x128] sm:$0xfe]
        %v2418 = vld [vmem:[#allocation2 + $0x130] sm:$0xfe]
        %v2419 = vld [vmem:[#allocation2 + $0x138] sm:$0xfe]
        %v2420 = vld [vmem:[#allocation2 + $0x140] sm:$0xfe]
        %v2421 = vld [vmem:[#allocation2 + $0x148] sm:$0xfe]
        %v2422 = vld [vmem:[#allocation2 + $0x180] sm:$0xfe]
        %v2423 = vld [vmem:[#allocation2 + $0x188] sm:$0xfe]
        %v2424 = vld [vmem:[#allocation2 + $0x190] sm:$0xfe]
        %v2425 = vld [vmem:[#allocation2 + $0x198] sm:$0xfe]
        %v2426 = vld [vmem:[#allocation2 + $0x1a0] sm:$0xfe]
        %v2427 = vld [vmem:[#allocation2 + $0x1a8] sm:$0xfe]
        %v2428 = vld [vmem:[#allocation2 + $0x1e0] sm:$0xfe]
        %v2429 = vld [vmem:[#allocation2 + $0x1e8] sm:$0xfe]
        %v2430 = vld [vmem:[#allocation2 + $0x1f0] sm:$0xfe]
        %v2431 = vld [vmem:[#allocation2 + $0x1f8] sm:$0xfe]
        %v2432 = vld [vmem:[#allocation2 + $0x200] sm:$0xfe]
        %v2433 = vld [vmem:[#allocation2 + $0x208] sm:$0xfe]
        %v2434 = vld [vmem:[#allocation2 + $0x240] sm:$0xfe]
        %v2435 = vld [vmem:[#allocation2 + $0x248] sm:$0xfe]
        %v2436 = vld [vmem:[#allocation2 + $0x250] sm:$0xfe]
        %v2437 = vld [vmem:[#allocation2 + $0x258] sm:$0xfe]
        %v2438 = vld [vmem:[#allocation2 + $0x260] sm:$0xfe]
        %v2439 = vld [vmem:[#allocation2 + $0x268] sm:$0xfe]
        %v2440 = vld [vmem:[#allocation2 + $0x2a0] sm:$0xfe]
        %v2441 = vld [vmem:[#allocation2 + $0x2a8] sm:$0xfe]
        %v2442 = vld [vmem:[#allocation2 + $0x2b0] sm:$0xfe]
        %v2443 = vld [vmem:[#allocation2 + $0x2b8] sm:$0xfe]
        %v2444 = vld [vmem:[#allocation2 + $0x2c0] sm:$0xfe]
        %v2445 = vld [vmem:[#allocation2 + $0x2c8] sm:$0xfe]
        %v2446 = vld [vmem:[#allocation2 + $0x300] sm:$0xfe]
        %v2447 = vld [vmem:[#allocation2 + $0x308] sm:$0xfe]
        %v2448 = vld [vmem:[#allocation2 + $0x310] sm:$0xfe]
        %v2449 = vld [vmem:[#allocation2 + $0x318] sm:$0xfe]
        %v2450 = vld [vmem:[#allocation2 + $0x320] sm:$0xfe]
        %v2451 = vld [vmem:[#allocation2 + $0x328] sm:$0xfe]
        %v2452 = vld [vmem:[#allocation2 + $0x360] sm:$0xfe]
        %v2453 = vld [vmem:[#allocation2 + $0x368] sm:$0xfe]
        %v2454 = vld [vmem:[#allocation2 + $0x370] sm:$0xfe]
        %v2455 = vld [vmem:[#allocation2 + $0x378] sm:$0xfe]
        %v2456 = vld [vmem:[#allocation2 + $0x380] sm:$0xfe]
        %v2457 = vld [vmem:[#allocation2 + $0x388] sm:$0xfe]
        %v2458 = vld [vmem:[#allocation2 + $0x3c0] sm:$0xfe]
        %v2459 = vld [vmem:[#allocation2 + $0x3c8] sm:$0xfe]
        %v2460 = vld [vmem:[#allocation2 + $0x3d0] sm:$0xfe]
        %v2461 = vld [vmem:[#allocation2 + $0x3d8] sm:$0xfe]
        %v2462 = vld [vmem:[#allocation2 + $0x3e0] sm:$0xfe]
        %v2463 = vld [vmem:[#allocation2 + $0x3e8] sm:$0xfe]
        %v2530 = vrot.slane %v2398, 1
        %v2531 = vrot.slane %v2399, 1
        %v2532 = vrot.slane %v2400, 1
        %v2533 = vrot.slane %v2401, 1
        %v2534 = vrot.slane %v2402, 1
        %v2535 = vrot.slane %v2403, 1
        %v2536 = vrot.slane %v2404, 1
        %v2537 = vrot.slane %v2405, 1
        %v2538 = vrot.slane %v2406, 1
        %v2539 = vrot.slane %v2407, 1
        %v2540 = vrot.slane %v2408, 1
        %v2541 = vrot.slane %v2409, 1
        %v2542 = vrot.slane %v2410, 1
        %v2543 = vrot.slane %v2411, 1
        %v2544 = vrot.slane %v2412, 1
        %v2545 = vrot.slane %v2413, 1
        %v2546 = vrot.slane %v2414, 1
        %v2547 = vrot.slane %v2415, 1
        %v2548 = vrot.slane %v2416, 1
        %v2549 = vrot.slane %v2417, 1
        %v2550 = vrot.slane %v2418, 1
        %v2551 = vrot.slane %v2419, 1
        %v2552 = vrot.slane %v2420, 1
        %v2553 = vrot.slane %v2421, 1
        %v2554 = vrot.slane %v2422, 1
        %v2555 = vrot.slane %v2423, 1
        %v2556 = vrot.slane %v2424, 1
        %v2557 = vrot.slane %v2425, 1
        %v2558 = vrot.slane %v2426, 1
        %v2559 = vrot.slane %v2427, 1
        %v2560 = vrot.slane %v2428, 1
        %v2561 = vrot.slane %v2429, 1
        %v2562 = vrot.slane %v2430, 1
        %v2563 = vrot.slane %v2431, 1
        %v2564 = vrot.slane %v2432, 1
        %v2565 = vrot.slane %v2433, 1
        %v2566 = vrot.slane %v2434, 1
        %v2567 = vrot.slane %v2435, 1
        %v2568 = vrot.slane %v2436, 1
        %v2569 = vrot.slane %v2437, 1
        %v2570 = vrot.slane %v2438, 1
        %v2571 = vrot.slane %v2439, 1
        %v2572 = vrot.slane %v2440, 1
        %v2573 = vrot.slane %v2441, 1
        %v2574 = vrot.slane %v2442, 1
        %v2575 = vrot.slane %v2443, 1
        %v2576 = vrot.slane %v2444, 1
        %v2577 = vrot.slane %v2445, 1
        %v2578 = vrot.slane %v2446, 1
        %v2579 = vrot.slane %v2447, 1
        %v2580 = vrot.slane %v2448, 1
        %v2581 = vrot.slane %v2449, 1
        %v2582 = vrot.slane %v2450, 1
        %v2583 = vrot.slane %v2451, 1
        %v2584 = vrot.slane %v2452, 1
        %v2585 = vrot.slane %v2453, 1
        %v2586 = vrot.slane %v2454, 1
        %v2587 = vrot.slane %v2455, 1
        %v2588 = vrot.slane %v2456, 1
        %v2589 = vrot.slane %v2457, 1
        %v2590 = vrot.slane %v2458, 1
        %v2591 = vrot.slane %v2459, 1
        %v2592 = vrot.slane %v2460, 1
        %v2593 = vrot.slane %v2461, 1
        %v2594 = vrot.slane %v2462, 1
        %v2595 = vrot.slane %v2463, 1
        %2662 = vst [vmem:[#allocation3] sm:$0x7f] %v2530
        %2663 = vst [vmem:[#allocation3 + $0x8] sm:$0x7f] %v2531
        %2664 = vst [vmem:[#allocation3 + $0x10] sm:$0x7f] %v2532
        %2665 = vst [vmem:[#allocation3 + $0x18] sm:$0x7f] %v2533
        %2666 = vst [vmem:[#allocation3 + $0x20] sm:$0x7f] %v2534
        %2667 = vst [vmem:[#allocation3 + $0x28] sm:$0x7f] %v2535
        %2668 = vst [vmem:[#allocation3 + $0x30] sm:$0x7f] %v2536
        %2669 = vst [vmem:[#allocation3 + $0x38] sm:$0x7f] %v2537
        %2670 = vst [vmem:[#allocation3 + $0x40] sm:$0x7f] %v2538
        %2671 = vst [vmem:[#allocation3 + $0x48] sm:$0x7f] %v2539
        %2672 = vst [vmem:[#allocation3 + $0x50] sm:$0x7f] %v2540
        %2673 = vst [vmem:[#allocation3 + $0x58] sm:$0x7f] %v2541
        %2674 = vst [vmem:[#allocation3 + $0x60] sm:$0x7f] %v2542
        %2675 = vst [vmem:[#allocation3 + $0x68] sm:$0x7f] %v2543
        %2676 = vst [vmem:[#allocation3 + $0x70] sm:$0x7f] %v2544
        %2677 = vst [vmem:[#allocation3 + $0x78] sm:$0x7f] %v2545
        %2678 = vst [vmem:[#allocation3 + $0x80] sm:$0x7f] %v2546
        %2679 = vst [vmem:[#allocation3 + $0x88] sm:$0x7f] %v2547
        %2680 = vst [vmem:[#allocation3 + $0x90] sm:$0x7f] %v2548
        %2681 = vst [vmem:[#allocation3 + $0x98] sm:$0x7f] %v2549
        %2682 = vst [vmem:[#allocation3 + $0xa0] sm:$0x7f] %v2550
        %2683 = vst [vmem:[#allocation3 + $0xa8] sm:$0x7f] %v2551
        %2684 = vst [vmem:[#allocation3 + $0xb0] sm:$0x7f] %v2552
        %2685 = vst [vmem:[#allocation3 + $0xb8] sm:$0x7f] %v2553
        %2686 = vst [vmem:[#allocation3 + $0xc0] sm:$0x7f] %v2554
        %2687 = vst [vmem:[#allocation3 + $0xc8] sm:$0x7f] %v2555
        %2688 = vst [vmem:[#allocation3 + $0xd0] sm:$0x7f] %v2556
        %2689 = vst [vmem:[#allocation3 + $0xd8] sm:$0x7f] %v2557
        %2690 = vst [vmem:[#allocation3 + $0xe0] sm:$0x7f] %v2558
        %2691 = vst [vmem:[#allocation3 + $0xe8] sm:$0x7f] %v2559
        %2692 = vst [vmem:[#allocation3 + $0xf0] sm:$0x7f] %v2560
        %2693 = vst [vmem:[#allocation3 + $0xf8] sm:$0x7f] %v2561
        %2694 = vst [vmem:[#allocation3 + $0x100] sm:$0x7f] %v2562
        %2695 = vst [vmem:[#allocation3 + $0x108] sm:$0x7f] %v2563
        %2696 = vst [vmem:[#allocation3 + $0x110] sm:$0x7f] %v2564
        %2697 = vst [vmem:[#allocation3 + $0x118] sm:$0x7f] %v2565
        %2698 = vst [vmem:[#allocation3 + $0x120] sm:$0x7f] %v2566
        %2699 = vst [vmem:[#allocation3 + $0x128] sm:$0x7f] %v2567
        %2700 = vst [vmem:[#allocation3 + $0x130] sm:$0x7f] %v2568
        %2701 = vst [vmem:[#allocation3 + $0x138] sm:$0x7f] %v2569
        %2702 = vst [vmem:[#allocation3 + $0x140] sm:$0x7f] %v2570
        %2703 = vst [vmem:[#allocation3 + $0x148] sm:$0x7f] %v2571
        %2704 = vst [vmem:[#allocation3 + $0x150] sm:$0x7f] %v2572
        %2705 = vst [vmem:[#allocation3 + $0x158] sm:$0x7f] %v2573
        %2706 = vst [vmem:[#allocation3 + $0x160] sm:$0x7f] %v2574
        %2707 = vst [vmem:[#allocation3 + $0x168] sm:$0x7f] %v2575
        %2708 = vst [vmem:[#allocation3 + $0x170] sm:$0x7f] %v2576
        %2709 = vst [vmem:[#allocation3 + $0x178] sm:$0x7f] %v2577
        %2710 = vst [vmem:[#allocation3 + $0x180] sm:$0x7f] %v2578
        %2711 = vst [vmem:[#allocation3 + $0x188] sm:$0x7f] %v2579
        %2712 = vst [vmem:[#allocation3 + $0x190] sm:$0x7f] %v2580
        %2713 = vst [vmem:[#allocation3 + $0x198] sm:$0x7f] %v2581
        %2714 = vst [vmem:[#allocation3 + $0x1a0] sm:$0x7f] %v2582
        %2715 = vst [vmem:[#allocation3 + $0x1a8] sm:$0x7f] %v2583
        %2716 = vst [vmem:[#allocation3 + $0x1b0] sm:$0x7f] %v2584
        %2717 = vst [vmem:[#allocation3 + $0x1b8] sm:$0x7f] %v2585
        %2718 = vst [vmem:[#allocation3 + $0x1c0] sm:$0x7f] %v2586
        %2719 = vst [vmem:[#allocation3 + $0x1c8] sm:$0x7f] %v2587
        %2720 = vst [vmem:[#allocation3 + $0x1d0] sm:$0x7f] %v2588
        %2721 = vst [vmem:[#allocation3 + $0x1d8] sm:$0x7f] %v2589
        %2722 = vst [vmem:[#allocation3 + $0x1e0] sm:$0x7f] %v2590
        %2723 = vst [vmem:[#allocation3 + $0x1e8] sm:$0x7f] %v2591
        %2724 = vst [vmem:[#allocation3 + $0x1f0] sm:$0x7f] %v2592
        %2725 = vst [vmem:[#allocation3 + $0x1f8] sm:$0x7f] %v2593
        %2726 = vst [vmem:[#allocation3 + $0x200] sm:$0x7f] %v2594
        %2727 = vst [vmem:[#allocation3 + $0x208] sm:$0x7f] %v2595
        %s2728 = scalar_lea.vmem %s514, 6 [#allocation9]
        %v2729 = vld [vmem:[%s2728] sm:$0x3f]
        %v2730 = vld [vmem:[#allocation3] sm:$0x7f]
        %v2731 = vld [vmem:[#allocation3 + $0x8] sm:$0x7f]
        %v2732 = vld [vmem:[#allocation3 + $0x10] sm:$0x7f]
        %v2733 = vld [vmem:[#allocation3 + $0x18] sm:$0x7f]
        %v2734 = vld [vmem:[#allocation3 + $0x20] sm:$0x7f]
        %v2735 = vld [vmem:[#allocation3 + $0x28] sm:$0x7f]
        %v2736 = vld [vmem:[#allocation3 + $0x30] sm:$0x7f]
        %v2737 = vld [vmem:[#allocation3 + $0x38] sm:$0x7f]
        %v2738 = vld [vmem:[#allocation3 + $0x40] sm:$0x7f]
        %v2739 = vld [vmem:[#allocation3 + $0x48] sm:$0x7f]
        %v2740 = vld [vmem:[#allocation3 + $0x50] sm:$0x7f]
        %v2741 = vld [vmem:[#allocation3 + $0x58] sm:$0x7f]
        %v2742 = vld [vmem:[#allocation3 + $0x60] sm:$0x7f]
        %v2743 = vld [vmem:[#allocation3 + $0x68] sm:$0x7f]
        %v2744 = vld [vmem:[#allocation3 + $0x70] sm:$0x7f]
        %v2745 = vld [vmem:[#allocation3 + $0x78] sm:$0x7f]
        %v2746 = vld [vmem:[#allocation3 + $0x80] sm:$0x7f]
        %v2747 = vld [vmem:[#allocation3 + $0x88] sm:$0x7f]
        %v2748 = vld [vmem:[#allocation3 + $0x90] sm:$0x7f]
        %v2749 = vld [vmem:[#allocation3 + $0x98] sm:$0x7f]
        %v2750 = vld [vmem:[#allocation3 + $0xa0] sm:$0x7f]
        %v2751 = vld [vmem:[#allocation3 + $0xa8] sm:$0x7f]
        %v2752 = vld [vmem:[#allocation3 + $0xb0] sm:$0x7f]
        %v2753 = vld [vmem:[#allocation3 + $0xb8] sm:$0x7f]
        %v2754 = vld [vmem:[#allocation3 + $0xc0] sm:$0x7f]
        %v2755 = vld [vmem:[#allocation3 + $0xc8] sm:$0x7f]
        %v2756 = vld [vmem:[#allocation3 + $0xd0] sm:$0x7f]
        %v2757 = vld [vmem:[#allocation3 + $0xd8] sm:$0x7f]
        %v2758 = vld [vmem:[#allocation3 + $0xe0] sm:$0x7f]
        %v2759 = vld [vmem:[#allocation3 + $0xe8] sm:$0x7f]
        %v2760 = vld [vmem:[#allocation3 + $0xf0] sm:$0x7f]
        %v2761 = vld [vmem:[#allocation3 + $0xf8] sm:$0x7f]
        %v2762 = vld [vmem:[#allocation3 + $0x100] sm:$0x7f]
        %v2763 = vld [vmem:[#allocation3 + $0x108] sm:$0x7f]
        %v2764 = vld [vmem:[#allocation3 + $0x110] sm:$0x7f]
        %v2765 = vld [vmem:[#allocation3 + $0x118] sm:$0x7f]
        %v2766 = vld [vmem:[#allocation3 + $0x120] sm:$0x7f]
        %v2767 = vld [vmem:[#allocation3 + $0x128] sm:$0x7f]
        %v2768 = vld [vmem:[#allocation3 + $0x130] sm:$0x7f]
        %v2769 = vld [vmem:[#allocation3 + $0x138] sm:$0x7f]
        %v2770 = vld [vmem:[#allocation3 + $0x140] sm:$0x7f]
        %v2771 = vld [vmem:[#allocation3 + $0x148] sm:$0x7f]
        %v2773 = vperm.slane %v2729, 0
        %v2774 = vperm.slane %v2729, 1
        %v2775 = vperm.slane %v2729, 2
        %v2776 = vperm.slane %v2729, 3
        %v2777 = vperm.slane %v2729, 4
        %v2778 = vperm.slane %v2729, 5
        %v2785 = vmul.f32 %v2730, %v2773
        %v2786 = vmul.f32 %v2731, %v2774
        %v2787 = vmul.f32 %v2732, %v2775
        %v2788 = vmul.f32 %v2733, %v2776
        %v2789 = vmul.f32 %v2734, %v2777
        %v2790 = vmul.f32 %v2735, %v2778
        %v2791 = vmul.f32 %v2736, %v2773
        %v2792 = vmul.f32 %v2737, %v2774
        %v2793 = vmul.f32 %v2738, %v2775
        %v2794 = vmul.f32 %v2739, %v2776
        %v2795 = vmul.f32 %v2740, %v2777
        %v2796 = vmul.f32 %v2741, %v2778
        %v2797 = vmul.f32 %v2742, %v2773
        %v2798 = vmul.f32 %v2743, %v2774
        %v2799 = vmul.f32 %v2744, %v2775
        %v2800 = vmul.f32 %v2745, %v2776
        %v2801 = vmul.f32 %v2746, %v2777
        %v2802 = vmul.f32 %v2747, %v2778
        %v2803 = vmul.f32 %v2748, %v2773
        %v2804 = vmul.f32 %v2749, %v2774
        %v2805 = vmul.f32 %v2750, %v2775
        %v2806 = vmul.f32 %v2751, %v2776
        %v2807 = vmul.f32 %v2752, %v2777
        %v2808 = vmul.f32 %v2753, %v2778
        %v2809 = vmul.f32 %v2754, %v2773
        %v2810 = vmul.f32 %v2755, %v2774
        %v2811 = vmul.f32 %v2756, %v2775
        %v2812 = vmul.f32 %v2757, %v2776
        %v2813 = vmul.f32 %v2758, %v2777
        %v2814 = vmul.f32 %v2759, %v2778
        %v2815 = vmul.f32 %v2760, %v2773
        %v2816 = vmul.f32 %v2761, %v2774
        %v2817 = vmul.f32 %v2762, %v2775
        %v2818 = vmul.f32 %v2763, %v2776
        %v2819 = vmul.f32 %v2764, %v2777
        %v2820 = vmul.f32 %v2765, %v2778
        %v2821 = vmul.f32 %v2766, %v2773
        %v2822 = vmul.f32 %v2767, %v2774
        %v2823 = vmul.f32 %v2768, %v2775
        %v2824 = vmul.f32 %v2769, %v2776
        %v2825 = vmul.f32 %v2770, %v2777
        %v2826 = vmul.f32 %v2771, %v2778
        %v2827 = vadd.f32 %v2356, %v2785
        %v2828 = vadd.f32 %v2357, %v2786
        %v2829 = vadd.f32 %v2358, %v2787
        %v2830 = vadd.f32 %v2359, %v2788
        %v2831 = vadd.f32 %v2360, %v2789
        %v2832 = vadd.f32 %v2361, %v2790
        %v2833 = vadd.f32 %v2362, %v2791
        %v2834 = vadd.f32 %v2363, %v2792
        %v2835 = vadd.f32 %v2364, %v2793
        %v2836 = vadd.f32 %v2365, %v2794
        %v2837 = vadd.f32 %v2366, %v2795
        %v2838 = vadd.f32 %v2367, %v2796
        %v2839 = vadd.f32 %v2368, %v2797
        %v2840 = vadd.f32 %v2369, %v2798
        %v2841 = vadd.f32 %v2370, %v2799
        %v2842 = vadd.f32 %v2371, %v2800
        %v2843 = vadd.f32 %v2372, %v2801
        %v2844 = vadd.f32 %v2373, %v2802
        %v2845 = vadd.f32 %v2374, %v2803
        %v2846 = vadd.f32 %v2375, %v2804
        %v2847 = vadd.f32 %v2376, %v2805
        %v2848 = vadd.f32 %v2377, %v2806
        %v2849 = vadd.f32 %v2378, %v2807
        %v2850 = vadd.f32 %v2379, %v2808
        %v2851 = vadd.f32 %v2380, %v2809
        %v2852 = vadd.f32 %v2381, %v2810
        %v2853 = vadd.f32 %v2382, %v2811
        %v2854 = vadd.f32 %v2383, %v2812
        %v2855 = vadd.f32 %v2384, %v2813
        %v2856 = vadd.f32 %v2385, %v2814
        %v2857 = vadd.f32 %v2386, %v2815
        %v2858 = vadd.f32 %v2387, %v2816
        %v2859 = vadd.f32 %v2388, %v2817
        %v2860 = vadd.f32 %v2389, %v2818
        %v2861 = vadd.f32 %v2390, %v2819
        %v2862 = vadd.f32 %v2391, %v2820
        %v2863 = vadd.f32 %v2392, %v2821
        %v2864 = vadd.f32 %v2393, %v2822
        %v2865 = vadd.f32 %v2394, %v2823
        %v2866 = vadd.f32 %v2395, %v2824
        %v2867 = vadd.f32 %v2396, %v2825
        %v2868 = vadd.f32 %v2397, %v2826
        %s2869 = scalar_lea.vmem %s514, 36 [#allocation9]
        %v2870 = vld [vmem:[%s2869] sm:$0x3f]
        %v2871 = vld [vmem:[%s1832] sm:$0x7f]
        %v2872 = vld [vmem:[%s1832 + $0x8] sm:$0x7f]
        %v2873 = vld [vmem:[%s1832 + $0x10] sm:$0x7f]
        %v2874 = vld [vmem:[%s1832 + $0x18] sm:$0x7f]
        %v2875 = vld [vmem:[%s1832 + $0x20] sm:$0x7f]
        %v2876 = vld [vmem:[%s1832 + $0x28] sm:$0x7f]
        %v2877 = vld [vmem:[%s1832 + $0x30] sm:$0x7f]
        %v2878 = vld [vmem:[%s1832 + $0x38] sm:$0x7f]
        %v2879 = vld [vmem:[%s1832 + $0x40] sm:$0x7f]
        %v2880 = vld [vmem:[%s1832 + $0x48] sm:$0x7f]
        %v2881 = vld [vmem:[%s1832 + $0x50] sm:$0x7f]
        %v2882 = vld [vmem:[%s1832 + $0x58] sm:$0x7f]
        %v2883 = vld [vmem:[%s1832 + $0x60] sm:$0x7f]
        %v2884 = vld [vmem:[%s1832 + $0x68] sm:$0x7f]
        %v2885 = vld [vmem:[%s1832 + $0x70] sm:$0x7f]
        %v2886 = vld [vmem:[%s1832 + $0x78] sm:$0x7f]
        %v2887 = vld [vmem:[%s1832 + $0x80] sm:$0x7f]
        %v2888 = vld [vmem:[%s1832 + $0x88] sm:$0x7f]
        %v2889 = vld [vmem:[%s1832 + $0x90] sm:$0x7f]
        %v2890 = vld [vmem:[%s1832 + $0x98] sm:$0x7f]
        %v2891 = vld [vmem:[%s1832 + $0xa0] sm:$0x7f]
        %v2892 = vld [vmem:[%s1832 + $0xa8] sm:$0x7f]
        %v2893 = vld [vmem:[%s1832 + $0xb0] sm:$0x7f]
        %v2894 = vld [vmem:[%s1832 + $0xb8] sm:$0x7f]
        %v2895 = vld [vmem:[%s1832 + $0xc0] sm:$0x7f]
        %v2896 = vld [vmem:[%s1832 + $0xc8] sm:$0x7f]
        %v2897 = vld [vmem:[%s1832 + $0xd0] sm:$0x7f]
        %v2898 = vld [vmem:[%s1832 + $0xd8] sm:$0x7f]
        %v2899 = vld [vmem:[%s1832 + $0xe0] sm:$0x7f]
        %v2900 = vld [vmem:[%s1832 + $0xe8] sm:$0x7f]
        %v2901 = vld [vmem:[%s1832 + $0xf0] sm:$0x7f]
        %v2902 = vld [vmem:[%s1832 + $0xf8] sm:$0x7f]
        %v2903 = vld [vmem:[%s1832 + $0x100] sm:$0x7f]
        %v2904 = vld [vmem:[%s1832 + $0x108] sm:$0x7f]
        %v2905 = vld [vmem:[%s1832 + $0x110] sm:$0x7f]
        %v2906 = vld [vmem:[%s1832 + $0x118] sm:$0x7f]
        %v2907 = vld [vmem:[%s1832 + $0x120] sm:$0x7f]
        %v2908 = vld [vmem:[%s1832 + $0x128] sm:$0x7f]
        %v2909 = vld [vmem:[%s1832 + $0x130] sm:$0x7f]
        %v2910 = vld [vmem:[%s1832 + $0x138] sm:$0x7f]
        %v2911 = vld [vmem:[%s1832 + $0x140] sm:$0x7f]
        %v2912 = vld [vmem:[%s1832 + $0x148] sm:$0x7f]
        %v2914 = vperm.slane %v2870, 0
        %v2915 = vperm.slane %v2870, 1
        %v2916 = vperm.slane %v2870, 2
        %v2917 = vperm.slane %v2870, 3
        %v2918 = vperm.slane %v2870, 4
        %v2919 = vperm.slane %v2870, 5
        %v2926 = vmul.f32 %v2871, %v2914
        %v2927 = vmul.f32 %v2872, %v2915
        %v2928 = vmul.f32 %v2873, %v2916
        %v2929 = vmul.f32 %v2874, %v2917
        %v2930 = vmul.f32 %v2875, %v2918
        %v2931 = vmul.f32 %v2876, %v2919
        %v2932 = vmul.f32 %v2877, %v2914
        %v2933 = vmul.f32 %v2878, %v2915
        %v2934 = vmul.f32 %v2879, %v2916
        %v2935 = vmul.f32 %v2880, %v2917
        %v2936 = vmul.f32 %v2881, %v2918
        %v2937 = vmul.f32 %v2882, %v2919
        %v2938 = vmul.f32 %v2883, %v2914
        %v2939 = vmul.f32 %v2884, %v2915
        %v2940 = vmul.f32 %v2885, %v2916
        %v2941 = vmul.f32 %v2886, %v2917
        %v2942 = vmul.f32 %v2887, %v2918
        %v2943 = vmul.f32 %v2888, %v2919
        %v2944 = vmul.f32 %v2889, %v2914
        %v2945 = vmul.f32 %v2890, %v2915
        %v2946 = vmul.f32 %v2891, %v2916
        %v2947 = vmul.f32 %v2892, %v2917
        %v2948 = vmul.f32 %v2893, %v2918
        %v2949 = vmul.f32 %v2894, %v2919
        %v2950 = vmul.f32 %v2895, %v2914
        %v2951 = vmul.f32 %v2896, %v2915
        %v2952 = vmul.f32 %v2897, %v2916
        %v2953 = vmul.f32 %v2898, %v2917
        %v2954 = vmul.f32 %v2899, %v2918
        %v2955 = vmul.f32 %v2900, %v2919
        %v2956 = vmul.f32 %v2901, %v2914
        %v2957 = vmul.f32 %v2902, %v2915
        %v2958 = vmul.f32 %v2903, %v2916
        %v2959 = vmul.f32 %v2904, %v2917
        %v2960 = vmul.f32 %v2905, %v2918
        %v2961 = vmul.f32 %v2906, %v2919
        %v2962 = vmul.f32 %v2907, %v2914
        %v2963 = vmul.f32 %v2908, %v2915
        %v2964 = vmul.f32 %v2909, %v2916
        %v2965 = vmul.f32 %v2910, %v2917
        %v2966 = vmul.f32 %v2911, %v2918
        %v2967 = vmul.f32 %v2912, %v2919
        %v2968 = vadd.f32 %v2827, %v2926
        %v2969 = vadd.f32 %v2828, %v2927
        %v2970 = vadd.f32 %v2829, %v2928
        %v2971 = vadd.f32 %v2830, %v2929
        %v2972 = vadd.f32 %v2831, %v2930
        %v2973 = vadd.f32 %v2832, %v2931
        %v2974 = vadd.f32 %v2833, %v2932
        %v2975 = vadd.f32 %v2834, %v2933
        %v2976 = vadd.f32 %v2835, %v2934
        %v2977 = vadd.f32 %v2836, %v2935
        %v2978 = vadd.f32 %v2837, %v2936
        %v2979 = vadd.f32 %v2838, %v2937
        %v2980 = vadd.f32 %v2839, %v2938
        %v2981 = vadd.f32 %v2840, %v2939
        %v2982 = vadd.f32 %v2841, %v2940
        %v2983 = vadd.f32 %v2842, %v2941
        %v2984 = vadd.f32 %v2843, %v2942
        %v2985 = vadd.f32 %v2844, %v2943
        %v2986 = vadd.f32 %v2845, %v2944
        %v2987 = vadd.f32 %v2846, %v2945
        %v2988 = vadd.f32 %v2847, %v2946
        %v2989 = vadd.f32 %v2848, %v2947
        %v2990 = vadd.f32 %v2849, %v2948
        %v2991 = vadd.f32 %v2850, %v2949
        %v2992 = vadd.f32 %v2851, %v2950
        %v2993 = vadd.f32 %v2852, %v2951
        %v2994 = vadd.f32 %v2853, %v2952
        %v2995 = vadd.f32 %v2854, %v2953
        %v2996 = vadd.f32 %v2855, %v2954
        %v2997 = vadd.f32 %v2856, %v2955
        %v2998 = vadd.f32 %v2857, %v2956
        %v2999 = vadd.f32 %v2858, %v2957
        %v3000 = vadd.f32 %v2859, %v2958
        %v3001 = vadd.f32 %v2860, %v2959
        %v3002 = vadd.f32 %v2861, %v2960
        %v3003 = vadd.f32 %v2862, %v2961
        %v3004 = vadd.f32 %v2863, %v2962
        %v3005 = vadd.f32 %v2864, %v2963
        %v3006 = vadd.f32 %v2865, %v2964
        %v3007 = vadd.f32 %v2866, %v2965
        %v3008 = vadd.f32 %v2867, %v2966
        %v3009 = vadd.f32 %v2868, %v2967
        %s3010 = scalar_lea.vmem %s514, 66 [#allocation9]
        %v3011 = vld [vmem:[%s3010] sm:$0x3f]
        %v3012 = vld [vmem:[%s1974] sm:$0x7f]
        %v3013 = vld [vmem:[%s1974 + $0x8] sm:$0x7f]
        %v3014 = vld [vmem:[%s1974 + $0x10] sm:$0x7f]
        %v3015 = vld [vmem:[%s1974 + $0x18] sm:$0x7f]
        %v3016 = vld [vmem:[%s1974 + $0x20] sm:$0x7f]
        %v3017 = vld [vmem:[%s1974 + $0x28] sm:$0x7f]
        %v3018 = vld [vmem:[%s1974 + $0x30] sm:$0x7f]
        %v3019 = vld [vmem:[%s1974 + $0x38] sm:$0x7f]
        %v3020 = vld [vmem:[%s1974 + $0x40] sm:$0x7f]
        %v3021 = vld [vmem:[%s1974 + $0x48] sm:$0x7f]
        %v3022 = vld [vmem:[%s1974 + $0x50] sm:$0x7f]
        %v3023 = vld [vmem:[%s1974 + $0x58] sm:$0x7f]
        %v3024 = vld [vmem:[%s1974 + $0x60] sm:$0x7f]
        %v3025 = vld [vmem:[%s1974 + $0x68] sm:$0x7f]
        %v3026 = vld [vmem:[%s1974 + $0x70] sm:$0x7f]
        %v3027 = vld [vmem:[%s1974 + $0x78] sm:$0x7f]
        %v3028 = vld [vmem:[%s1974 + $0x80] sm:$0x7f]
        %v3029 = vld [vmem:[%s1974 + $0x88] sm:$0x7f]
        %v3030 = vld [vmem:[%s1974 + $0x90] sm:$0x7f]
        %v3031 = vld [vmem:[%s1974 + $0x98] sm:$0x7f]
        %v3032 = vld [vmem:[%s1974 + $0xa0] sm:$0x7f]
        %v3033 = vld [vmem:[%s1974 + $0xa8] sm:$0x7f]
        %v3034 = vld [vmem:[%s1974 + $0xb0] sm:$0x7f]
        %v3035 = vld [vmem:[%s1974 + $0xb8] sm:$0x7f]
        %v3036 = vld [vmem:[%s1974 + $0xc0] sm:$0x7f]
        %v3037 = vld [vmem:[%s1974 + $0xc8] sm:$0x7f]
        %v3038 = vld [vmem:[%s1974 + $0xd0] sm:$0x7f]
        %v3039 = vld [vmem:[%s1974 + $0xd8] sm:$0x7f]
        %v3040 = vld [vmem:[%s1974 + $0xe0] sm:$0x7f]
        %v3041 = vld [vmem:[%s1974 + $0xe8] sm:$0x7f]
        %v3042 = vld [vmem:[%s1974 + $0xf0] sm:$0x7f]
        %v3043 = vld [vmem:[%s1974 + $0xf8] sm:$0x7f]
        %v3044 = vld [vmem:[%s1974 + $0x100] sm:$0x7f]
        %v3045 = vld [vmem:[%s1974 + $0x108] sm:$0x7f]
        %v3046 = vld [vmem:[%s1974 + $0x110] sm:$0x7f]
        %v3047 = vld [vmem:[%s1974 + $0x118] sm:$0x7f]
        %v3048 = vld [vmem:[%s1974 + $0x120] sm:$0x7f]
        %v3049 = vld [vmem:[%s1974 + $0x128] sm:$0x7f]
        %v3050 = vld [vmem:[%s1974 + $0x130] sm:$0x7f]
        %v3051 = vld [vmem:[%s1974 + $0x138] sm:$0x7f]
        %v3052 = vld [vmem:[%s1974 + $0x140] sm:$0x7f]
        %v3053 = vld [vmem:[%s1974 + $0x148] sm:$0x7f]
        %v3055 = vperm.slane %v3011, 0
        %v3056 = vperm.slane %v3011, 1
        %v3057 = vperm.slane %v3011, 2
        %v3058 = vperm.slane %v3011, 3
        %v3059 = vperm.slane %v3011, 4
        %v3060 = vperm.slane %v3011, 5
        %v3067 = vmul.f32 %v3012, %v3055
        %v3068 = vmul.f32 %v3013, %v3056
        %v3069 = vmul.f32 %v3014, %v3057
        %v3070 = vmul.f32 %v3015, %v3058
        %v3071 = vmul.f32 %v3016, %v3059
        %v3072 = vmul.f32 %v3017, %v3060
        %v3073 = vmul.f32 %v3018, %v3055
        %v3074 = vmul.f32 %v3019, %v3056
        %v3075 = vmul.f32 %v3020, %v3057
        %v3076 = vmul.f32 %v3021, %v3058
        %v3077 = vmul.f32 %v3022, %v3059
        %v3078 = vmul.f32 %v3023, %v3060
        %v3079 = vmul.f32 %v3024, %v3055
        %v3080 = vmul.f32 %v3025, %v3056
        %v3081 = vmul.f32 %v3026, %v3057
        %v3082 = vmul.f32 %v3027, %v3058
        %v3083 = vmul.f32 %v3028, %v3059
        %v3084 = vmul.f32 %v3029, %v3060
        %v3085 = vmul.f32 %v3030, %v3055
        %v3086 = vmul.f32 %v3031, %v3056
        %v3087 = vmul.f32 %v3032, %v3057
        %v3088 = vmul.f32 %v3033, %v3058
        %v3089 = vmul.f32 %v3034, %v3059
        %v3090 = vmul.f32 %v3035, %v3060
        %v3091 = vmul.f32 %v3036, %v3055
        %v3092 = vmul.f32 %v3037, %v3056
        %v3093 = vmul.f32 %v3038, %v3057
        %v3094 = vmul.f32 %v3039, %v3058
        %v3095 = vmul.f32 %v3040, %v3059
        %v3096 = vmul.f32 %v3041, %v3060
        %v3097 = vmul.f32 %v3042, %v3055
        %v3098 = vmul.f32 %v3043, %v3056
        %v3099 = vmul.f32 %v3044, %v3057
        %v3100 = vmul.f32 %v3045, %v3058
        %v3101 = vmul.f32 %v3046, %v3059
        %v3102 = vmul.f32 %v3047, %v3060
        %v3103 = vmul.f32 %v3048, %v3055
        %v3104 = vmul.f32 %v3049, %v3056
        %v3105 = vmul.f32 %v3050, %v3057
        %v3106 = vmul.f32 %v3051, %v3058
        %v3107 = vmul.f32 %v3052, %v3059
        %v3108 = vmul.f32 %v3053, %v3060
        %v3109 = vadd.f32 %v2968, %v3067
        %v3110 = vadd.f32 %v2969, %v3068
        %v3111 = vadd.f32 %v2970, %v3069
        %v3112 = vadd.f32 %v2971, %v3070
        %v3113 = vadd.f32 %v2972, %v3071
        %v3114 = vadd.f32 %v2973, %v3072
        %v3115 = vadd.f32 %v2974, %v3073
        %v3116 = vadd.f32 %v2975, %v3074
        %v3117 = vadd.f32 %v2976, %v3075
        %v3118 = vadd.f32 %v2977, %v3076
        %v3119 = vadd.f32 %v2978, %v3077
        %v3120 = vadd.f32 %v2979, %v3078
        %v3121 = vadd.f32 %v2980, %v3079
        %v3122 = vadd.f32 %v2981, %v3080
        %v3123 = vadd.f32 %v2982, %v3081
        %v3124 = vadd.f32 %v2983, %v3082
        %v3125 = vadd.f32 %v2984, %v3083
        %v3126 = vadd.f32 %v2985, %v3084
        %v3127 = vadd.f32 %v2986, %v3085
        %v3128 = vadd.f32 %v2987, %v3086
        %v3129 = vadd.f32 %v2988, %v3087
        %v3130 = vadd.f32 %v2989, %v3088
        %v3131 = vadd.f32 %v2990, %v3089
        %v3132 = vadd.f32 %v2991, %v3090
        %v3133 = vadd.f32 %v2992, %v3091
        %v3134 = vadd.f32 %v2993, %v3092
        %v3135 = vadd.f32 %v2994, %v3093
        %v3136 = vadd.f32 %v2995, %v3094
        %v3137 = vadd.f32 %v2996, %v3095
        %v3138 = vadd.f32 %v2997, %v3096
        %v3139 = vadd.f32 %v2998, %v3097
        %v3140 = vadd.f32 %v2999, %v3098
        %v3141 = vadd.f32 %v3000, %v3099
        %v3142 = vadd.f32 %v3001, %v3100
        %v3143 = vadd.f32 %v3002, %v3101
        %v3144 = vadd.f32 %v3003, %v3102
        %v3145 = vadd.f32 %v3004, %v3103
        %v3146 = vadd.f32 %v3005, %v3104
        %v3147 = vadd.f32 %v3006, %v3105
        %v3148 = vadd.f32 %v3007, %v3106
        %v3149 = vadd.f32 %v3008, %v3107
        %v3150 = vadd.f32 %v3009, %v3108
        %s3151 = scalar_lea.vmem %s514, 96 [#allocation9]
        %v3152 = vld [vmem:[%s3151] sm:$0x3f]
        %v3153 = vld [vmem:[%s2116] sm:$0x7f]
        %v3154 = vld [vmem:[%s2116 + $0x8] sm:$0x7f]
        %v3155 = vld [vmem:[%s2116 + $0x10] sm:$0x7f]
        %v3156 = vld [vmem:[%s2116 + $0x18] sm:$0x7f]
        %v3157 = vld [vmem:[%s2116 + $0x20] sm:$0x7f]
        %v3158 = vld [vmem:[%s2116 + $0x28] sm:$0x7f]
        %v3159 = vld [vmem:[%s2116 + $0x30] sm:$0x7f]
        %v3160 = vld [vmem:[%s2116 + $0x38] sm:$0x7f]
        %v3161 = vld [vmem:[%s2116 + $0x40] sm:$0x7f]
        %v3162 = vld [vmem:[%s2116 + $0x48] sm:$0x7f]
        %v3163 = vld [vmem:[%s2116 + $0x50] sm:$0x7f]
        %v3164 = vld [vmem:[%s2116 + $0x58] sm:$0x7f]
        %v3165 = vld [vmem:[%s2116 + $0x60] sm:$0x7f]
        %v3166 = vld [vmem:[%s2116 + $0x68] sm:$0x7f]
        %v3167 = vld [vmem:[%s2116 + $0x70] sm:$0x7f]
        %v3168 = vld [vmem:[%s2116 + $0x78] sm:$0x7f]
        %v3169 = vld [vmem:[%s2116 + $0x80] sm:$0x7f]
        %v3170 = vld [vmem:[%s2116 + $0x88] sm:$0x7f]
        %v3171 = vld [vmem:[%s2116 + $0x90] sm:$0x7f]
        %v3172 = vld [vmem:[%s2116 + $0x98] sm:$0x7f]
        %v3173 = vld [vmem:[%s2116 + $0xa0] sm:$0x7f]
        %v3174 = vld [vmem:[%s2116 + $0xa8] sm:$0x7f]
        %v3175 = vld [vmem:[%s2116 + $0xb0] sm:$0x7f]
        %v3176 = vld [vmem:[%s2116 + $0xb8] sm:$0x7f]
        %v3177 = vld [vmem:[%s2116 + $0xc0] sm:$0x7f]
        %v3178 = vld [vmem:[%s2116 + $0xc8] sm:$0x7f]
        %v3179 = vld [vmem:[%s2116 + $0xd0] sm:$0x7f]
        %v3180 = vld [vmem:[%s2116 + $0xd8] sm:$0x7f]
        %v3181 = vld [vmem:[%s2116 + $0xe0] sm:$0x7f]
        %v3182 = vld [vmem:[%s2116 + $0xe8] sm:$0x7f]
        %v3183 = vld [vmem:[%s2116 + $0xf0] sm:$0x7f]
        %v3184 = vld [vmem:[%s2116 + $0xf8] sm:$0x7f]
        %v3185 = vld [vmem:[%s2116 + $0x100] sm:$0x7f]
        %v3186 = vld [vmem:[%s2116 + $0x108] sm:$0x7f]
        %v3187 = vld [vmem:[%s2116 + $0x110] sm:$0x7f]
        %v3188 = vld [vmem:[%s2116 + $0x118] sm:$0x7f]
        %v3189 = vld [vmem:[%s2116 + $0x120] sm:$0x7f]
        %v3190 = vld [vmem:[%s2116 + $0x128] sm:$0x7f]
        %v3191 = vld [vmem:[%s2116 + $0x130] sm:$0x7f]
        %v3192 = vld [vmem:[%s2116 + $0x138] sm:$0x7f]
        %v3193 = vld [vmem:[%s2116 + $0x140] sm:$0x7f]
        %v3194 = vld [vmem:[%s2116 + $0x148] sm:$0x7f]
        %v3196 = vperm.slane %v3152, 0
        %v3197 = vperm.slane %v3152, 1
        %v3198 = vperm.slane %v3152, 2
        %v3199 = vperm.slane %v3152, 3
        %v3200 = vperm.slane %v3152, 4
        %v3201 = vperm.slane %v3152, 5
        %v3208 = vmul.f32 %v3153, %v3196
        %v3209 = vmul.f32 %v3154, %v3197
        %v3210 = vmul.f32 %v3155, %v3198
        %v3211 = vmul.f32 %v3156, %v3199
        %v3212 = vmul.f32 %v3157, %v3200
        %v3213 = vmul.f32 %v3158, %v3201
        %v3214 = vmul.f32 %v3159, %v3196
        %v3215 = vmul.f32 %v3160, %v3197
        %v3216 = vmul.f32 %v3161, %v3198
        %v3217 = vmul.f32 %v3162, %v3199
        %v3218 = vmul.f32 %v3163, %v3200
        %v3219 = vmul.f32 %v3164, %v3201
        %v3220 = vmul.f32 %v3165, %v3196
        %v3221 = vmul.f32 %v3166, %v3197
        %v3222 = vmul.f32 %v3167, %v3198
        %v3223 = vmul.f32 %v3168, %v3199
        %v3224 = vmul.f32 %v3169, %v3200
        %v3225 = vmul.f32 %v3170, %v3201
        %v3226 = vmul.f32 %v3171, %v3196
        %v3227 = vmul.f32 %v3172, %v3197
        %v3228 = vmul.f32 %v3173, %v3198
        %v3229 = vmul.f32 %v3174, %v3199
        %v3230 = vmul.f32 %v3175, %v3200
        %v3231 = vmul.f32 %v3176, %v3201
        %v3232 = vmul.f32 %v3177, %v3196
        %v3233 = vmul.f32 %v3178, %v3197
        %v3234 = vmul.f32 %v3179, %v3198
        %v3235 = vmul.f32 %v3180, %v3199
        %v3236 = vmul.f32 %v3181, %v3200
        %v3237 = vmul.f32 %v3182, %v3201
        %v3238 = vmul.f32 %v3183, %v3196
        %v3239 = vmul.f32 %v3184, %v3197
        %v3240 = vmul.f32 %v3185, %v3198
        %v3241 = vmul.f32 %v3186, %v3199
        %v3242 = vmul.f32 %v3187, %v3200
        %v3243 = vmul.f32 %v3188, %v3201
        %v3244 = vmul.f32 %v3189, %v3196
        %v3245 = vmul.f32 %v3190, %v3197
        %v3246 = vmul.f32 %v3191, %v3198
        %v3247 = vmul.f32 %v3192, %v3199
        %v3248 = vmul.f32 %v3193, %v3200
        %v3249 = vmul.f32 %v3194, %v3201
        %v3250 = vadd.f32 %v3109, %v3208
        %v3251 = vadd.f32 %v3110, %v3209
        %v3252 = vadd.f32 %v3111, %v3210
        %v3253 = vadd.f32 %v3112, %v3211
        %v3254 = vadd.f32 %v3113, %v3212
        %v3255 = vadd.f32 %v3114, %v3213
        %v3256 = vadd.f32 %v3115, %v3214
        %v3257 = vadd.f32 %v3116, %v3215
        %v3258 = vadd.f32 %v3117, %v3216
        %v3259 = vadd.f32 %v3118, %v3217
        %v3260 = vadd.f32 %v3119, %v3218
        %v3261 = vadd.f32 %v3120, %v3219
        %v3262 = vadd.f32 %v3121, %v3220
        %v3263 = vadd.f32 %v3122, %v3221
        %v3264 = vadd.f32 %v3123, %v3222
        %v3265 = vadd.f32 %v3124, %v3223
        %v3266 = vadd.f32 %v3125, %v3224
        %v3267 = vadd.f32 %v3126, %v3225
        %v3268 = vadd.f32 %v3127, %v3226
        %v3269 = vadd.f32 %v3128, %v3227
        %v3270 = vadd.f32 %v3129, %v3228
        %v3271 = vadd.f32 %v3130, %v3229
        %v3272 = vadd.f32 %v3131, %v3230
        %v3273 = vadd.f32 %v3132, %v3231
        %v3274 = vadd.f32 %v3133, %v3232
        %v3275 = vadd.f32 %v3134, %v3233
        %v3276 = vadd.f32 %v3135, %v3234
        %v3277 = vadd.f32 %v3136, %v3235
        %v3278 = vadd.f32 %v3137, %v3236
        %v3279 = vadd.f32 %v3138, %v3237
        %v3280 = vadd.f32 %v3139, %v3238
        %v3281 = vadd.f32 %v3140, %v3239
        %v3282 = vadd.f32 %v3141, %v3240
        %v3283 = vadd.f32 %v3142, %v3241
        %v3284 = vadd.f32 %v3143, %v3242
        %v3285 = vadd.f32 %v3144, %v3243
        %v3286 = vadd.f32 %v3145, %v3244
        %v3287 = vadd.f32 %v3146, %v3245
        %v3288 = vadd.f32 %v3147, %v3246
        %v3289 = vadd.f32 %v3148, %v3247
        %v3290 = vadd.f32 %v3149, %v3248
        %v3291 = vadd.f32 %v3150, %v3249
        %s3292 = scalar_lea.vmem %s514, 126 [#allocation9]
        %v3293 = vld [vmem:[%s3292] sm:$0x3f]
        %v3294 = vld [vmem:[%s2258] sm:$0x7f]
        %v3295 = vld [vmem:[%s2258 + $0x8] sm:$0x7f]
        %v3296 = vld [vmem:[%s2258 + $0x10] sm:$0x7f]
        %v3297 = vld [vmem:[%s2258 + $0x18] sm:$0x7f]
        %v3298 = vld [vmem:[%s2258 + $0x20] sm:$0x7f]
        %v3299 = vld [vmem:[%s2258 + $0x28] sm:$0x7f]
        %v3300 = vld [vmem:[%s2258 + $0x30] sm:$0x7f]
        %v3301 = vld [vmem:[%s2258 + $0x38] sm:$0x7f]
        %v3302 = vld [vmem:[%s2258 + $0x40] sm:$0x7f]
        %v3303 = vld [vmem:[%s2258 + $0x48] sm:$0x7f]
        %v3304 = vld [vmem:[%s2258 + $0x50] sm:$0x7f]
        %v3305 = vld [vmem:[%s2258 + $0x58] sm:$0x7f]
        %v3306 = vld [vmem:[%s2258 + $0x60] sm:$0x7f]
        %v3307 = vld [vmem:[%s2258 + $0x68] sm:$0x7f]
        %v3308 = vld [vmem:[%s2258 + $0x70] sm:$0x7f]
        %v3309 = vld [vmem:[%s2258 + $0x78] sm:$0x7f]
        %v3310 = vld [vmem:[%s2258 + $0x80] sm:$0x7f]
        %v3311 = vld [vmem:[%s2258 + $0x88] sm:$0x7f]
        %v3312 = vld [vmem:[%s2258 + $0x90] sm:$0x7f]
        %v3313 = vld [vmem:[%s2258 + $0x98] sm:$0x7f]
        %v3314 = vld [vmem:[%s2258 + $0xa0] sm:$0x7f]
        %v3315 = vld [vmem:[%s2258 + $0xa8] sm:$0x7f]
        %v3316 = vld [vmem:[%s2258 + $0xb0] sm:$0x7f]
        %v3317 = vld [vmem:[%s2258 + $0xb8] sm:$0x7f]
        %v3318 = vld [vmem:[%s2258 + $0xc0] sm:$0x7f]
        %v3319 = vld [vmem:[%s2258 + $0xc8] sm:$0x7f]
        %v3320 = vld [vmem:[%s2258 + $0xd0] sm:$0x7f]
        %v3321 = vld [vmem:[%s2258 + $0xd8] sm:$0x7f]
        %v3322 = vld [vmem:[%s2258 + $0xe0] sm:$0x7f]
        %v3323 = vld [vmem:[%s2258 + $0xe8] sm:$0x7f]
        %v3324 = vld [vmem:[%s2258 + $0xf0] sm:$0x7f]
        %v3325 = vld [vmem:[%s2258 + $0xf8] sm:$0x7f]
        %v3326 = vld [vmem:[%s2258 + $0x100] sm:$0x7f]
        %v3327 = vld [vmem:[%s2258 + $0x108] sm:$0x7f]
        %v3328 = vld [vmem:[%s2258 + $0x110] sm:$0x7f]
        %v3329 = vld [vmem:[%s2258 + $0x118] sm:$0x7f]
        %v3330 = vld [vmem:[%s2258 + $0x120] sm:$0x7f]
        %v3331 = vld [vmem:[%s2258 + $0x128] sm:$0x7f]
        %v3332 = vld [vmem:[%s2258 + $0x130] sm:$0x7f]
        %v3333 = vld [vmem:[%s2258 + $0x138] sm:$0x7f]
        %v3334 = vld [vmem:[%s2258 + $0x140] sm:$0x7f]
        %v3335 = vld [vmem:[%s2258 + $0x148] sm:$0x7f]
        %v3337 = vperm.slane %v3293, 0
        %v3338 = vperm.slane %v3293, 1
        %v3339 = vperm.slane %v3293, 2
        %v3340 = vperm.slane %v3293, 3
        %v3341 = vperm.slane %v3293, 4
        %v3342 = vperm.slane %v3293, 5
        %v3349 = vmul.f32 %v3294, %v3337
        %v3350 = vmul.f32 %v3295, %v3338
        %v3351 = vmul.f32 %v3296, %v3339
        %v3352 = vmul.f32 %v3297, %v3340
        %v3353 = vmul.f32 %v3298, %v3341
        %v3354 = vmul.f32 %v3299, %v3342
        %v3355 = vmul.f32 %v3300, %v3337
        %v3356 = vmul.f32 %v3301, %v3338
        %v3357 = vmul.f32 %v3302, %v3339
        %v3358 = vmul.f32 %v3303, %v3340
        %v3359 = vmul.f32 %v3304, %v3341
        %v3360 = vmul.f32 %v3305, %v3342
        %v3361 = vmul.f32 %v3306, %v3337
        %v3362 = vmul.f32 %v3307, %v3338
        %v3363 = vmul.f32 %v3308, %v3339
        %v3364 = vmul.f32 %v3309, %v3340
        %v3365 = vmul.f32 %v3310, %v3341
        %v3366 = vmul.f32 %v3311, %v3342
        %v3367 = vmul.f32 %v3312, %v3337
        %v3368 = vmul.f32 %v3313, %v3338
        %v3369 = vmul.f32 %v3314, %v3339
        %v3370 = vmul.f32 %v3315, %v3340
        %v3371 = vmul.f32 %v3316, %v3341
        %v3372 = vmul.f32 %v3317, %v3342
        %v3373 = vmul.f32 %v3318, %v3337
        %v3374 = vmul.f32 %v3319, %v3338
        %v3375 = vmul.f32 %v3320, %v3339
        %v3376 = vmul.f32 %v3321, %v3340
        %v3377 = vmul.f32 %v3322, %v3341
        %v3378 = vmul.f32 %v3323, %v3342
        %v3379 = vmul.f32 %v3324, %v3337
        %v3380 = vmul.f32 %v3325, %v3338
        %v3381 = vmul.f32 %v3326, %v3339
        %v3382 = vmul.f32 %v3327, %v3340
        %v3383 = vmul.f32 %v3328, %v3341
        %v3384 = vmul.f32 %v3329, %v3342
        %v3385 = vmul.f32 %v3330, %v3337
        %v3386 = vmul.f32 %v3331, %v3338
        %v3387 = vmul.f32 %v3332, %v3339
        %v3388 = vmul.f32 %v3333, %v3340
        %v3389 = vmul.f32 %v3334, %v3341
        %v3390 = vmul.f32 %v3335, %v3342
        %v3391 = vadd.f32 %v3250, %v3349
        %v3392 = vadd.f32 %v3251, %v3350
        %v3393 = vadd.f32 %v3252, %v3351
        %v3394 = vadd.f32 %v3253, %v3352
        %v3395 = vadd.f32 %v3254, %v3353
        %v3396 = vadd.f32 %v3255, %v3354
        %v3397 = vadd.f32 %v3256, %v3355
        %v3398 = vadd.f32 %v3257, %v3356
        %v3399 = vadd.f32 %v3258, %v3357
        %v3400 = vadd.f32 %v3259, %v3358
        %v3401 = vadd.f32 %v3260, %v3359
        %v3402 = vadd.f32 %v3261, %v3360
        %v3403 = vadd.f32 %v3262, %v3361
        %v3404 = vadd.f32 %v3263, %v3362
        %v3405 = vadd.f32 %v3264, %v3363
        %v3406 = vadd.f32 %v3265, %v3364
        %v3407 = vadd.f32 %v3266, %v3365
        %v3408 = vadd.f32 %v3267, %v3366
        %v3409 = vadd.f32 %v3268, %v3367
        %v3410 = vadd.f32 %v3269, %v3368
        %v3411 = vadd.f32 %v3270, %v3369
        %v3412 = vadd.f32 %v3271, %v3370
        %v3413 = vadd.f32 %v3272, %v3371
        %v3414 = vadd.f32 %v3273, %v3372
        %v3415 = vadd.f32 %v3274, %v3373
        %v3416 = vadd.f32 %v3275, %v3374
        %v3417 = vadd.f32 %v3276, %v3375
        %v3418 = vadd.f32 %v3277, %v3376
        %v3419 = vadd.f32 %v3278, %v3377
        %v3420 = vadd.f32 %v3279, %v3378
        %v3421 = vadd.f32 %v3280, %v3379
        %v3422 = vadd.f32 %v3281, %v3380
        %v3423 = vadd.f32 %v3282, %v3381
        %v3424 = vadd.f32 %v3283, %v3382
        %v3425 = vadd.f32 %v3284, %v3383
        %v3426 = vadd.f32 %v3285, %v3384
        %v3427 = vadd.f32 %v3286, %v3385
        %v3428 = vadd.f32 %v3287, %v3386
        %v3429 = vadd.f32 %v3288, %v3387
        %v3430 = vadd.f32 %v3289, %v3388
        %v3431 = vadd.f32 %v3290, %v3389
        %v3432 = vadd.f32 %v3291, %v3390
        %v3433 = vld [vmem:[#allocation2] sm:$0xfc]
        %v3434 = vld [vmem:[#allocation2 + $0x8] sm:$0xfc]
        %v3435 = vld [vmem:[#allocation2 + $0x10] sm:$0xfc]
        %v3436 = vld [vmem:[#allocation2 + $0x18] sm:$0xfc]
        %v3437 = vld [vmem:[#allocation2 + $0x20] sm:$0xfc]
        %v3438 = vld [vmem:[#allocation2 + $0x28] sm:$0xfc]
        %v3439 = vld [vmem:[#allocation2 + $0x30] sm:$0x1]
        %v3440 = vld [vmem:[#allocation2 + $0x38] sm:$0x1]
        %v3441 = vld [vmem:[#allocation2 + $0x40] sm:$0x1]
        %v3442 = vld [vmem:[#allocation2 + $0x48] sm:$0x1]
        %v3443 = vld [vmem:[#allocation2 + $0x50] sm:$0x1]
        %v3444 = vld [vmem:[#allocation2 + $0x58] sm:$0x1]
        %v3445 = vld [vmem:[#allocation2 + $0x60] sm:$0xfc]
        %v3446 = vld [vmem:[#allocation2 + $0x68] sm:$0xfc]
        %v3447 = vld [vmem:[#allocation2 + $0x70] sm:$0xfc]
        %v3448 = vld [vmem:[#allocation2 + $0x78] sm:$0xfc]
        %v3449 = vld [vmem:[#allocation2 + $0x80] sm:$0xfc]
        %v3450 = vld [vmem:[#allocation2 + $0x88] sm:$0xfc]
        %v3451 = vld [vmem:[#allocation2 + $0x90] sm:$0x1]
        %v3452 = vld [vmem:[#allocation2 + $0x98] sm:$0x1]
        %v3453 = vld [vmem:[#allocation2 + $0xa0] sm:$0x1]
        %v3454 = vld [vmem:[#allocation2 + $0xa8] sm:$0x1]
        %v3455 = vld [vmem:[#allocation2 + $0xb0] sm:$0x1]
        %v3456 = vld [vmem:[#allocation2 + $0xb8] sm:$0x1]
        %v3457 = vld [vmem:[#allocation2 + $0xc0] sm:$0xfc]
        %v3458 = vld [vmem:[#allocation2 + $0xc8] sm:$0xfc]
        %v3459 = vld [vmem:[#allocation2 + $0xd0] sm:$0xfc]
        %v3460 = vld [vmem:[#allocation2 + $0xd8] sm:$0xfc]
        %v3461 = vld [vmem:[#allocation2 + $0xe0] sm:$0xfc]
        %v3462 = vld [vmem:[#allocation2 + $0xe8] sm:$0xfc]
        %v3463 = vld [vmem:[#allocation2 + $0xf0] sm:$0x1]
        %v3464 = vld [vmem:[#allocation2 + $0xf8] sm:$0x1]
        %v3465 = vld [vmem:[#allocation2 + $0x100] sm:$0x1]
        %v3466 = vld [vmem:[#allocation2 + $0x108] sm:$0x1]
        %v3467 = vld [vmem:[#allocation2 + $0x110] sm:$0x1]
        %v3468 = vld [vmem:[#allocation2 + $0x118] sm:$0x1]
        %v3469 = vld [vmem:[#allocation2 + $0x120] sm:$0xfc]
        %v3470 = vld [vmem:[#allocation2 + $0x128] sm:$0xfc]
        %v3471 = vld [vmem:[#allocation2 + $0x130] sm:$0xfc]
        %v3472 = vld [vmem:[#allocation2 + $0x138] sm:$0xfc]
        %v3473 = vld [vmem:[#allocation2 + $0x140] sm:$0xfc]
        %v3474 = vld [vmem:[#allocation2 + $0x148] sm:$0xfc]
        %v3475 = vld [vmem:[#allocation2 + $0x150] sm:$0x1]
        %v3476 = vld [vmem:[#allocation2 + $0x158] sm:$0x1]
        %v3477 = vld [vmem:[#allocation2 + $0x160] sm:$0x1]
        %v3478 = vld [vmem:[#allocation2 + $0x168] sm:$0x1]
        %v3479 = vld [vmem:[#allocation2 + $0x170] sm:$0x1]
        %v3480 = vld [vmem:[#allocation2 + $0x178] sm:$0x1]
        %v3481 = vld [vmem:[#allocation2 + $0x180] sm:$0xfc]
        %v3482 = vld [vmem:[#allocation2 + $0x188] sm:$0xfc]
        %v3483 = vld [vmem:[#allocation2 + $0x190] sm:$0xfc]
        %v3484 = vld [vmem:[#allocation2 + $0x198] sm:$0xfc]
        %v3485 = vld [vmem:[#allocation2 + $0x1a0] sm:$0xfc]
        %v3486 = vld [vmem:[#allocation2 + $0x1a8] sm:$0xfc]
        %v3487 = vld [vmem:[#allocation2 + $0x1b0] sm:$0x1]
        %v3488 = vld [vmem:[#allocation2 + $0x1b8] sm:$0x1]
        %v3489 = vld [vmem:[#allocation2 + $0x1c0] sm:$0x1]
        %v3490 = vld [vmem:[#allocation2 + $0x1c8] sm:$0x1]
        %v3491 = vld [vmem:[#allocation2 + $0x1d0] sm:$0x1]
        %v3492 = vld [vmem:[#allocation2 + $0x1d8] sm:$0x1]
        %v3493 = vld [vmem:[#allocation2 + $0x1e0] sm:$0xfc]
        %v3494 = vld [vmem:[#allocation2 + $0x1e8] sm:$0xfc]
        %v3495 = vld [vmem:[#allocation2 + $0x1f0] sm:$0xfc]
        %v3496 = vld [vmem:[#allocation2 + $0x1f8] sm:$0xfc]
        %v3497 = vld [vmem:[#allocation2 + $0x200] sm:$0xfc]
        %v3498 = vld [vmem:[#allocation2 + $0x208] sm:$0xfc]
        %v3499 = vld [vmem:[#allocation2 + $0x210] sm:$0x1]
        %v3500 = vld [vmem:[#allocation2 + $0x218] sm:$0x1]
        %v3501 = vld [vmem:[#allocation2 + $0x220] sm:$0x1]
        %v3502 = vld [vmem:[#allocation2 + $0x228] sm:$0x1]
        %v3503 = vld [vmem:[#allocation2 + $0x230] sm:$0x1]
        %v3504 = vld [vmem:[#allocation2 + $0x238] sm:$0x1]
        %v3505 = vld [vmem:[#allocation2 + $0x240] sm:$0xfc]
        %v3506 = vld [vmem:[#allocation2 + $0x248] sm:$0xfc]
        %v3507 = vld [vmem:[#allocation2 + $0x250] sm:$0xfc]
        %v3508 = vld [vmem:[#allocation2 + $0x258] sm:$0xfc]
        %v3509 = vld [vmem:[#allocation2 + $0x260] sm:$0xfc]
        %v3510 = vld [vmem:[#allocation2 + $0x268] sm:$0xfc]
        %v3511 = vld [vmem:[#allocation2 + $0x270] sm:$0x1]
        %v3512 = vld [vmem:[#allocation2 + $0x278] sm:$0x1]
        %v3513 = vld [vmem:[#allocation2 + $0x280] sm:$0x1]
        %v3514 = vld [vmem:[#allocation2 + $0x288] sm:$0x1]
        %v3515 = vld [vmem:[#allocation2 + $0x290] sm:$0x1]
        %v3516 = vld [vmem:[#allocation2 + $0x298] sm:$0x1]
        %v3517 = vld [vmem:[#allocation2 + $0x2a0] sm:$0xfc]
        %v3518 = vld [vmem:[#allocation2 + $0x2a8] sm:$0xfc]
        %v3519 = vld [vmem:[#allocation2 + $0x2b0] sm:$0xfc]
        %v3520 = vld [vmem:[#allocation2 + $0x2b8] sm:$0xfc]
        %v3521 = vld [vmem:[#allocation2 + $0x2c0] sm:$0xfc]
        %v3522 = vld [vmem:[#allocation2 + $0x2c8] sm:$0xfc]
        %v3523 = vld [vmem:[#allocation2 + $0x2d0] sm:$0x1]
        %v3524 = vld [vmem:[#allocation2 + $0x2d8] sm:$0x1]
        %v3525 = vld [vmem:[#allocation2 + $0x2e0] sm:$0x1]
        %v3526 = vld [vmem:[#allocation2 + $0x2e8] sm:$0x1]
        %v3527 = vld [vmem:[#allocation2 + $0x2f0] sm:$0x1]
        %v3528 = vld [vmem:[#allocation2 + $0x2f8] sm:$0x1]
        %v3529 = vld [vmem:[#allocation2 + $0x300] sm:$0xfc]
        %v3530 = vld [vmem:[#allocation2 + $0x308] sm:$0xfc]
        %v3531 = vld [vmem:[#allocation2 + $0x310] sm:$0xfc]
        %v3532 = vld [vmem:[#allocation2 + $0x318] sm:$0xfc]
        %v3533 = vld [vmem:[#allocation2 + $0x320] sm:$0xfc]
        %v3534 = vld [vmem:[#allocation2 + $0x328] sm:$0xfc]
        %v3535 = vld [vmem:[#allocation2 + $0x330] sm:$0x1]
        %v3536 = vld [vmem:[#allocation2 + $0x338] sm:$0x1]
        %v3537 = vld [vmem:[#allocation2 + $0x340] sm:$0x1]
        %v3538 = vld [vmem:[#allocation2 + $0x348] sm:$0x1]
        %v3539 = vld [vmem:[#allocation2 + $0x350] sm:$0x1]
        %v3540 = vld [vmem:[#allocation2 + $0x358] sm:$0x1]
        %v3541 = vld [vmem:[#allocation2 + $0x360] sm:$0xfc]
        %v3542 = vld [vmem:[#allocation2 + $0x368] sm:$0xfc]
        %v3543 = vld [vmem:[#allocation2 + $0x370] sm:$0xfc]
        %v3544 = vld [vmem:[#allocation2 + $0x378] sm:$0xfc]
        %v3545 = vld [vmem:[#allocation2 + $0x380] sm:$0xfc]
        %v3546 = vld [vmem:[#allocation2 + $0x388] sm:$0xfc]
        %v3547 = vld [vmem:[#allocation2 + $0x390] sm:$0x1]
        %v3548 = vld [vmem:[#allocation2 + $0x398] sm:$0x1]
        %v3549 = vld [vmem:[#allocation2 + $0x3a0] sm:$0x1]
        %v3550 = vld [vmem:[#allocation2 + $0x3a8] sm:$0x1]
        %v3551 = vld [vmem:[#allocation2 + $0x3b0] sm:$0x1]
        %v3552 = vld [vmem:[#allocation2 + $0x3b8] sm:$0x1]
        %v3553 = vld [vmem:[#allocation2 + $0x3c0] sm:$0xfc]
        %v3554 = vld [vmem:[#allocation2 + $0x3c8] sm:$0xfc]
        %v3555 = vld [vmem:[#allocation2 + $0x3d0] sm:$0xfc]
        %v3556 = vld [vmem:[#allocation2 + $0x3d8] sm:$0xfc]
        %v3557 = vld [vmem:[#allocation2 + $0x3e0] sm:$0xfc]
        %v3558 = vld [vmem:[#allocation2 + $0x3e8] sm:$0xfc]
        %v3559 = vld [vmem:[#allocation2 + $0x3f0] sm:$0x1]
        %v3560 = vld [vmem:[#allocation2 + $0x3f8] sm:$0x1]
        %v3561 = vld [vmem:[#allocation2 + $0x400] sm:$0x1]
        %v3562 = vld [vmem:[#allocation2 + $0x408] sm:$0x1]
        %v3563 = vld [vmem:[#allocation2 + $0x410] sm:$0x1]
        %v3564 = vld [vmem:[#allocation2 + $0x418] sm:$0x1]
        %vm3697 = vcmask 1045504
        %v3698 = vrot.slane %v3433, 2
        %v3699 = vrot.slane %v3439, 2
        %v3700 = vsel %vm3697, %v3698, %v3699
        %v3701 = vrot.slane %v3434, 2
        %v3702 = vrot.slane %v3440, 2
        %v3703 = vsel %vm3697, %v3701, %v3702
        %v3704 = vrot.slane %v3435, 2
        %v3705 = vrot.slane %v3441, 2
        %v3706 = vsel %vm3697, %v3704, %v3705
        %v3707 = vrot.slane %v3436, 2
        %v3708 = vrot.slane %v3442, 2
        %v3709 = vsel %vm3697, %v3707, %v3708
        %v3710 = vrot.slane %v3437, 2
        %v3711 = vrot.slane %v3443, 2
        %v3712 = vsel %vm3697, %v3710, %v3711
        %v3713 = vrot.slane %v3438, 2
        %v3714 = vrot.slane %v3444, 2
        %v3715 = vsel %vm3697, %v3713, %v3714
        %v3716 = vrot.slane %v3445, 2
        %v3717 = vrot.slane %v3451, 2
        %v3718 = vsel %vm3697, %v3716, %v3717
        %v3719 = vrot.slane %v3446, 2
        %v3720 = vrot.slane %v3452, 2
        %v3721 = vsel %vm3697, %v3719, %v3720
        %v3722 = vrot.slane %v3447, 2
        %v3723 = vrot.slane %v3453, 2
        %v3724 = vsel %vm3697, %v3722, %v3723
        %v3725 = vrot.slane %v3448, 2
        %v3726 = vrot.slane %v3454, 2
        %v3727 = vsel %vm3697, %v3725, %v3726
        %v3728 = vrot.slane %v3449, 2
        %v3729 = vrot.slane %v3455, 2
        %v3730 = vsel %vm3697, %v3728, %v3729
        %v3731 = vrot.slane %v3450, 2
        %v3732 = vrot.slane %v3456, 2
        %v3733 = vsel %vm3697, %v3731, %v3732
        %v3734 = vrot.slane %v3457, 2
        %v3735 = vrot.slane %v3463, 2
        %v3736 = vsel %vm3697, %v3734, %v3735
        %v3737 = vrot.slane %v3458, 2
        %v3738 = vrot.slane %v3464, 2
        %v3739 = vsel %vm3697, %v3737, %v3738
        %v3740 = vrot.slane %v3459, 2
        %v3741 = vrot.slane %v3465, 2
        %v3742 = vsel %vm3697, %v3740, %v3741
        %v3743 = vrot.slane %v3460, 2
        %v3744 = vrot.slane %v3466, 2
        %v3745 = vsel %vm3697, %v3743, %v3744
        %v3746 = vrot.slane %v3461, 2
        %v3747 = vrot.slane %v3467, 2
        %v3748 = vsel %vm3697, %v3746, %v3747
        %v3749 = vrot.slane %v3462, 2
        %v3750 = vrot.slane %v3468, 2
        %v3751 = vsel %vm3697, %v3749, %v3750
        %v3752 = vrot.slane %v3469, 2
        %v3753 = vrot.slane %v3475, 2
        %v3754 = vsel %vm3697, %v3752, %v3753
        %v3755 = vrot.slane %v3470, 2
        %v3756 = vrot.slane %v3476, 2
        %v3757 = vsel %vm3697, %v3755, %v3756
        %v3758 = vrot.slane %v3471, 2
        %v3759 = vrot.slane %v3477, 2
        %v3760 = vsel %vm3697, %v3758, %v3759
        %v3761 = vrot.slane %v3472, 2
        %v3762 = vrot.slane %v3478, 2
        %v3763 = vsel %vm3697, %v3761, %v3762
        %v3764 = vrot.slane %v3473, 2
        %v3765 = vrot.slane %v3479, 2
        %v3766 = vsel %vm3697, %v3764, %v3765
        %v3767 = vrot.slane %v3474, 2
        %v3768 = vrot.slane %v3480, 2
        %v3769 = vsel %vm3697, %v3767, %v3768
        %v3770 = vrot.slane %v3481, 2
        %v3771 = vrot.slane %v3487, 2
        %v3772 = vsel %vm3697, %v3770, %v3771
        %v3773 = vrot.slane %v3482, 2
        %v3774 = vrot.slane %v3488, 2
        %v3775 = vsel %vm3697, %v3773, %v3774
        %v3776 = vrot.slane %v3483, 2
        %v3777 = vrot.slane %v3489, 2
        %v3778 = vsel %vm3697, %v3776, %v3777
        %v3779 = vrot.slane %v3484, 2
        %v3780 = vrot.slane %v3490, 2
        %v3781 = vsel %vm3697, %v3779, %v3780
        %v3782 = vrot.slane %v3485, 2
        %v3783 = vrot.slane %v3491, 2
        %v3784 = vsel %vm3697, %v3782, %v3783
        %v3785 = vrot.slane %v3486, 2
        %v3786 = vrot.slane %v3492, 2
        %v3787 = vsel %vm3697, %v3785, %v3786
        %v3788 = vrot.slane %v3493, 2
        %v3789 = vrot.slane %v3499, 2
        %v3790 = vsel %vm3697, %v3788, %v3789
        %v3791 = vrot.slane %v3494, 2
        %v3792 = vrot.slane %v3500, 2
        %v3793 = vsel %vm3697, %v3791, %v3792
        %v3794 = vrot.slane %v3495, 2
        %v3795 = vrot.slane %v3501, 2
        %v3796 = vsel %vm3697, %v3794, %v3795
        %v3797 = vrot.slane %v3496, 2
        %v3798 = vrot.slane %v3502, 2
        %v3799 = vsel %vm3697, %v3797, %v3798
        %v3800 = vrot.slane %v3497, 2
        %v3801 = vrot.slane %v3503, 2
        %v3802 = vsel %vm3697, %v3800, %v3801
        %v3803 = vrot.slane %v3498, 2
        %v3804 = vrot.slane %v3504, 2
        %v3805 = vsel %vm3697, %v3803, %v3804
        %v3806 = vrot.slane %v3505, 2
        %v3807 = vrot.slane %v3511, 2
        %v3808 = vsel %vm3697, %v3806, %v3807
        %v3809 = vrot.slane %v3506, 2
        %v3810 = vrot.slane %v3512, 2
        %v3811 = vsel %vm3697, %v3809, %v3810
        %v3812 = vrot.slane %v3507, 2
        %v3813 = vrot.slane %v3513, 2
        %v3814 = vsel %vm3697, %v3812, %v3813
        %v3815 = vrot.slane %v3508, 2
        %v3816 = vrot.slane %v3514, 2
        %v3817 = vsel %vm3697, %v3815, %v3816
        %v3818 = vrot.slane %v3509, 2
        %v3819 = vrot.slane %v3515, 2
        %v3820 = vsel %vm3697, %v3818, %v3819
        %v3821 = vrot.slane %v3510, 2
        %v3822 = vrot.slane %v3516, 2
        %v3823 = vsel %vm3697, %v3821, %v3822
        %v3824 = vrot.slane %v3517, 2
        %v3825 = vrot.slane %v3523, 2
        %v3826 = vsel %vm3697, %v3824, %v3825
        %v3827 = vrot.slane %v3518, 2
        %v3828 = vrot.slane %v3524, 2
        %v3829 = vsel %vm3697, %v3827, %v3828
        %v3830 = vrot.slane %v3519, 2
        %v3831 = vrot.slane %v3525, 2
        %v3832 = vsel %vm3697, %v3830, %v3831
        %v3833 = vrot.slane %v3520, 2
        %v3834 = vrot.slane %v3526, 2
        %v3835 = vsel %vm3697, %v3833, %v3834
        %v3836 = vrot.slane %v3521, 2
        %v3837 = vrot.slane %v3527, 2
        %v3838 = vsel %vm3697, %v3836, %v3837
        %v3839 = vrot.slane %v3522, 2
        %v3840 = vrot.slane %v3528, 2
        %v3841 = vsel %vm3697, %v3839, %v3840
        %v3842 = vrot.slane %v3529, 2
        %v3843 = vrot.slane %v3535, 2
        %v3844 = vsel %vm3697, %v3842, %v3843
        %v3845 = vrot.slane %v3530, 2
        %v3846 = vrot.slane %v3536, 2
        %v3847 = vsel %vm3697, %v3845, %v3846
        %v3848 = vrot.slane %v3531, 2
        %v3849 = vrot.slane %v3537, 2
        %v3850 = vsel %vm3697, %v3848, %v3849
        %v3851 = vrot.slane %v3532, 2
        %v3852 = vrot.slane %v3538, 2
        %v3853 = vsel %vm3697, %v3851, %v3852
        %v3854 = vrot.slane %v3533, 2
        %v3855 = vrot.slane %v3539, 2
        %v3856 = vsel %vm3697, %v3854, %v3855
        %v3857 = vrot.slane %v3534, 2
        %v3858 = vrot.slane %v3540, 2
        %v3859 = vsel %vm3697, %v3857, %v3858
        %v3860 = vrot.slane %v3541, 2
        %v3861 = vrot.slane %v3547, 2
        %v3862 = vsel %vm3697, %v3860, %v3861
        %v3863 = vrot.slane %v3542, 2
        %v3864 = vrot.slane %v3548, 2
        %v3865 = vsel %vm3697, %v3863, %v3864
        %v3866 = vrot.slane %v3543, 2
        %v3867 = vrot.slane %v3549, 2
        %v3868 = vsel %vm3697, %v3866, %v3867
        %v3869 = vrot.slane %v3544, 2
        %v3870 = vrot.slane %v3550, 2
        %v3871 = vsel %vm3697, %v3869, %v3870
        %v3872 = vrot.slane %v3545, 2
        %v3873 = vrot.slane %v3551, 2
        %v3874 = vsel %vm3697, %v3872, %v3873
        %v3875 = vrot.slane %v3546, 2
        %v3876 = vrot.slane %v3552, 2
        %v3877 = vsel %vm3697, %v3875, %v3876
        %v3878 = vrot.slane %v3553, 2
        %v3879 = vrot.slane %v3559, 2
        %v3880 = vsel %vm3697, %v3878, %v3879
        %v3881 = vrot.slane %v3554, 2
        %v3882 = vrot.slane %v3560, 2
        %v3883 = vsel %vm3697, %v3881, %v3882
        %v3884 = vrot.slane %v3555, 2
        %v3885 = vrot.slane %v3561, 2
        %v3886 = vsel %vm3697, %v3884, %v3885
        %v3887 = vrot.slane %v3556, 2
        %v3888 = vrot.slane %v3562, 2
        %v3889 = vsel %vm3697, %v3887, %v3888
        %v3890 = vrot.slane %v3557, 2
        %v3891 = vrot.slane %v3563, 2
        %v3892 = vsel %vm3697, %v3890, %v3891
        %v3893 = vrot.slane %v3558, 2
        %v3894 = vrot.slane %v3564, 2
        %v3895 = vsel %vm3697, %v3893, %v3894
        %3962 = vst [vmem:[#allocation3] sm:$0x7f] %v3700
        %3963 = vst [vmem:[#allocation3 + $0x8] sm:$0x7f] %v3703
        %3964 = vst [vmem:[#allocation3 + $0x10] sm:$0x7f] %v3706
        %3965 = vst [vmem:[#allocation3 + $0x18] sm:$0x7f] %v3709
        %3966 = vst [vmem:[#allocation3 + $0x20] sm:$0x7f] %v3712
        %3967 = vst [vmem:[#allocation3 + $0x28] sm:$0x7f] %v3715
        %3968 = vst [vmem:[#allocation3 + $0x30] sm:$0x7f] %v3718
        %3969 = vst [vmem:[#allocation3 + $0x38] sm:$0x7f] %v3721
        %3970 = vst [vmem:[#allocation3 + $0x40] sm:$0x7f] %v3724
        %3971 = vst [vmem:[#allocation3 + $0x48] sm:$0x7f] %v3727
        %3972 = vst [vmem:[#allocation3 + $0x50] sm:$0x7f] %v3730
        %3973 = vst [vmem:[#allocation3 + $0x58] sm:$0x7f] %v3733
        %3974 = vst [vmem:[#allocation3 + $0x60] sm:$0x7f] %v3736
        %3975 = vst [vmem:[#allocation3 + $0x68] sm:$0x7f] %v3739
        %3976 = vst [vmem:[#allocation3 + $0x70] sm:$0x7f] %v3742
        %3977 = vst [vmem:[#allocation3 + $0x78] sm:$0x7f] %v3745
        %3978 = vst [vmem:[#allocation3 + $0x80] sm:$0x7f] %v3748
        %3979 = vst [vmem:[#allocation3 + $0x88] sm:$0x7f] %v3751
        %3980 = vst [vmem:[#allocation3 + $0x90] sm:$0x7f] %v3754
        %3981 = vst [vmem:[#allocation3 + $0x98] sm:$0x7f] %v3757
        %3982 = vst [vmem:[#allocation3 + $0xa0] sm:$0x7f] %v3760
        %3983 = vst [vmem:[#allocation3 + $0xa8] sm:$0x7f] %v3763
        %3984 = vst [vmem:[#allocation3 + $0xb0] sm:$0x7f] %v3766
        %3985 = vst [vmem:[#allocation3 + $0xb8] sm:$0x7f] %v3769
        %3986 = vst [vmem:[#allocation3 + $0xc0] sm:$0x7f] %v3772
        %3987 = vst [vmem:[#allocation3 + $0xc8] sm:$0x7f] %v3775
        %3988 = vst [vmem:[#allocation3 + $0xd0] sm:$0x7f] %v3778
        %3989 = vst [vmem:[#allocation3 + $0xd8] sm:$0x7f] %v3781
        %3990 = vst [vmem:[#allocation3 + $0xe0] sm:$0x7f] %v3784
        %3991 = vst [vmem:[#allocation3 + $0xe8] sm:$0x7f] %v3787
        %3992 = vst [vmem:[#allocation3 + $0xf0] sm:$0x7f] %v3790
        %3993 = vst [vmem:[#allocation3 + $0xf8] sm:$0x7f] %v3793
        %3994 = vst [vmem:[#allocation3 + $0x100] sm:$0x7f] %v3796
        %3995 = vst [vmem:[#allocation3 + $0x108] sm:$0x7f] %v3799
        %3996 = vst [vmem:[#allocation3 + $0x110] sm:$0x7f] %v3802
        %3997 = vst [vmem:[#allocation3 + $0x118] sm:$0x7f] %v3805
        %3998 = vst [vmem:[#allocation3 + $0x120] sm:$0x7f] %v3808
        %3999 = vst [vmem:[#allocation3 + $0x128] sm:$0x7f] %v3811
        %4000 = vst [vmem:[#allocation3 + $0x130] sm:$0x7f] %v3814
        %4001 = vst [vmem:[#allocation3 + $0x138] sm:$0x7f] %v3817
        %4002 = vst [vmem:[#allocation3 + $0x140] sm:$0x7f] %v3820
        %4003 = vst [vmem:[#allocation3 + $0x148] sm:$0x7f] %v3823
        %4004 = vst [vmem:[#allocation3 + $0x150] sm:$0x7f] %v3826
        %4005 = vst [vmem:[#allocation3 + $0x158] sm:$0x7f] %v3829
        %4006 = vst [vmem:[#allocation3 + $0x160] sm:$0x7f] %v3832
        %4007 = vst [vmem:[#allocation3 + $0x168] sm:$0x7f] %v3835
        %4008 = vst [vmem:[#allocation3 + $0x170] sm:$0x7f] %v3838
        %4009 = vst [vmem:[#allocation3 + $0x178] sm:$0x7f] %v3841
        %4010 = vst [vmem:[#allocation3 + $0x180] sm:$0x7f] %v3844
        %4011 = vst [vmem:[#allocation3 + $0x188] sm:$0x7f] %v3847
        %4012 = vst [vmem:[#allocation3 + $0x190] sm:$0x7f] %v3850
        %4013 = vst [vmem:[#allocation3 + $0x198] sm:$0x7f] %v3853
        %4014 = vst [vmem:[#allocation3 + $0x1a0] sm:$0x7f] %v3856
        %4015 = vst [vmem:[#allocation3 + $0x1a8] sm:$0x7f] %v3859
        %4016 = vst [vmem:[#allocation3 + $0x1b0] sm:$0x7f] %v3862
        %4017 = vst [vmem:[#allocation3 + $0x1b8] sm:$0x7f] %v3865
        %4018 = vst [vmem:[#allocation3 + $0x1c0] sm:$0x7f] %v3868
        %4019 = vst [vmem:[#allocation3 + $0x1c8] sm:$0x7f] %v3871
        %4020 = vst [vmem:[#allocation3 + $0x1d0] sm:$0x7f] %v3874
        %4021 = vst [vmem:[#allocation3 + $0x1d8] sm:$0x7f] %v3877
        %4022 = vst [vmem:[#allocation3 + $0x1e0] sm:$0x7f] %v3880
        %4023 = vst [vmem:[#allocation3 + $0x1e8] sm:$0x7f] %v3883
        %4024 = vst [vmem:[#allocation3 + $0x1f0] sm:$0x7f] %v3886
        %4025 = vst [vmem:[#allocation3 + $0x1f8] sm:$0x7f] %v3889
        %4026 = vst [vmem:[#allocation3 + $0x200] sm:$0x7f] %v3892
        %4027 = vst [vmem:[#allocation3 + $0x208] sm:$0x7f] %v3895
        %s4028 = scalar_lea.vmem %s514, 12 [#allocation9]
        %v4029 = vld [vmem:[%s4028] sm:$0x3f]
        %v4030 = vld [vmem:[#allocation3] sm:$0x7f]
        %v4031 = vld [vmem:[#allocation3 + $0x8] sm:$0x7f]
        %v4032 = vld [vmem:[#allocation3 + $0x10] sm:$0x7f]
        %v4033 = vld [vmem:[#allocation3 + $0x18] sm:$0x7f]
        %v4034 = vld [vmem:[#allocation3 + $0x20] sm:$0x7f]
        %v4035 = vld [vmem:[#allocation3 + $0x28] sm:$0x7f]
        %v4036 = vld [vmem:[#allocation3 + $0x30] sm:$0x7f]
        %v4037 = vld [vmem:[#allocation3 + $0x38] sm:$0x7f]
        %v4038 = vld [vmem:[#allocation3 + $0x40] sm:$0x7f]
        %v4039 = vld [vmem:[#allocation3 + $0x48] sm:$0x7f]
        %v4040 = vld [vmem:[#allocation3 + $0x50] sm:$0x7f]
        %v4041 = vld [vmem:[#allocation3 + $0x58] sm:$0x7f]
        %v4042 = vld [vmem:[#allocation3 + $0x60] sm:$0x7f]
        %v4043 = vld [vmem:[#allocation3 + $0x68] sm:$0x7f]
        %v4044 = vld [vmem:[#allocation3 + $0x70] sm:$0x7f]
        %v4045 = vld [vmem:[#allocation3 + $0x78] sm:$0x7f]
        %v4046 = vld [vmem:[#allocation3 + $0x80] sm:$0x7f]
        %v4047 = vld [vmem:[#allocation3 + $0x88] sm:$0x7f]
        %v4048 = vld [vmem:[#allocation3 + $0x90] sm:$0x7f]
        %v4049 = vld [vmem:[#allocation3 + $0x98] sm:$0x7f]
        %v4050 = vld [vmem:[#allocation3 + $0xa0] sm:$0x7f]
        %v4051 = vld [vmem:[#allocation3 + $0xa8] sm:$0x7f]
        %v4052 = vld [vmem:[#allocation3 + $0xb0] sm:$0x7f]
        %v4053 = vld [vmem:[#allocation3 + $0xb8] sm:$0x7f]
        %v4054 = vld [vmem:[#allocation3 + $0xc0] sm:$0x7f]
        %v4055 = vld [vmem:[#allocation3 + $0xc8] sm:$0x7f]
        %v4056 = vld [vmem:[#allocation3 + $0xd0] sm:$0x7f]
        %v4057 = vld [vmem:[#allocation3 + $0xd8] sm:$0x7f]
        %v4058 = vld [vmem:[#allocation3 + $0xe0] sm:$0x7f]
        %v4059 = vld [vmem:[#allocation3 + $0xe8] sm:$0x7f]
        %v4060 = vld [vmem:[#allocation3 + $0xf0] sm:$0x7f]
        %v4061 = vld [vmem:[#allocation3 + $0xf8] sm:$0x7f]
        %v4062 = vld [vmem:[#allocation3 + $0x100] sm:$0x7f]
        %v4063 = vld [vmem:[#allocation3 + $0x108] sm:$0x7f]
        %v4064 = vld [vmem:[#allocation3 + $0x110] sm:$0x7f]
        %v4065 = vld [vmem:[#allocation3 + $0x118] sm:$0x7f]
        %v4066 = vld [vmem:[#allocation3 + $0x120] sm:$0x7f]
        %v4067 = vld [vmem:[#allocation3 + $0x128] sm:$0x7f]
        %v4068 = vld [vmem:[#allocation3 + $0x130] sm:$0x7f]
        %v4069 = vld [vmem:[#allocation3 + $0x138] sm:$0x7f]
        %v4070 = vld [vmem:[#allocation3 + $0x140] sm:$0x7f]
        %v4071 = vld [vmem:[#allocation3 + $0x148] sm:$0x7f]
        %v4073 = vperm.slane %v4029, 0
        %v4074 = vperm.slane %v4029, 1
        %v4075 = vperm.slane %v4029, 2
        %v4076 = vperm.slane %v4029, 3
        %v4077 = vperm.slane %v4029, 4
        %v4078 = vperm.slane %v4029, 5
        %v4085 = vmul.f32 %v4030, %v4073
        %v4086 = vmul.f32 %v4031, %v4074
        %v4087 = vmul.f32 %v4032, %v4075
        %v4088 = vmul.f32 %v4033, %v4076
        %v4089 = vmul.f32 %v4034, %v4077
        %v4090 = vmul.f32 %v4035, %v4078
        %v4091 = vmul.f32 %v4036, %v4073
        %v4092 = vmul.f32 %v4037, %v4074
        %v4093 = vmul.f32 %v4038, %v4075
        %v4094 = vmul.f32 %v4039, %v4076
        %v4095 = vmul.f32 %v4040, %v4077
        %v4096 = vmul.f32 %v4041, %v4078
        %v4097 = vmul.f32 %v4042, %v4073
        %v4098 = vmul.f32 %v4043, %v4074
        %v4099 = vmul.f32 %v4044, %v4075
        %v4100 = vmul.f32 %v4045, %v4076
        %v4101 = vmul.f32 %v4046, %v4077
        %v4102 = vmul.f32 %v4047, %v4078
        %v4103 = vmul.f32 %v4048, %v4073
        %v4104 = vmul.f32 %v4049, %v4074
        %v4105 = vmul.f32 %v4050, %v4075
        %v4106 = vmul.f32 %v4051, %v4076
        %v4107 = vmul.f32 %v4052, %v4077
        %v4108 = vmul.f32 %v4053, %v4078
        %v4109 = vmul.f32 %v4054, %v4073
        %v4110 = vmul.f32 %v4055, %v4074
        %v4111 = vmul.f32 %v4056, %v4075
        %v4112 = vmul.f32 %v4057, %v4076
        %v4113 = vmul.f32 %v4058, %v4077
        %v4114 = vmul.f32 %v4059, %v4078
        %v4115 = vmul.f32 %v4060, %v4073
        %v4116 = vmul.f32 %v4061, %v4074
        %v4117 = vmul.f32 %v4062, %v4075
        %v4118 = vmul.f32 %v4063, %v4076
        %v4119 = vmul.f32 %v4064, %v4077
        %v4120 = vmul.f32 %v4065, %v4078
        %v4121 = vmul.f32 %v4066, %v4073
        %v4122 = vmul.f32 %v4067, %v4074
        %v4123 = vmul.f32 %v4068, %v4075
        %v4124 = vmul.f32 %v4069, %v4076
        %v4125 = vmul.f32 %v4070, %v4077
        %v4126 = vmul.f32 %v4071, %v4078
        %v4127 = vadd.f32 %v3391, %v4085
        %v4128 = vadd.f32 %v3392, %v4086
        %v4129 = vadd.f32 %v3393, %v4087
        %v4130 = vadd.f32 %v3394, %v4088
        %v4131 = vadd.f32 %v3395, %v4089
        %v4132 = vadd.f32 %v3396, %v4090
        %v4133 = vadd.f32 %v3397, %v4091
        %v4134 = vadd.f32 %v3398, %v4092
        %v4135 = vadd.f32 %v3399, %v4093
        %v4136 = vadd.f32 %v3400, %v4094
        %v4137 = vadd.f32 %v3401, %v4095
        %v4138 = vadd.f32 %v3402, %v4096
        %v4139 = vadd.f32 %v3403, %v4097
        %v4140 = vadd.f32 %v3404, %v4098
        %v4141 = vadd.f32 %v3405, %v4099
        %v4142 = vadd.f32 %v3406, %v4100
        %v4143 = vadd.f32 %v3407, %v4101
        %v4144 = vadd.f32 %v3408, %v4102
        %v4145 = vadd.f32 %v3409, %v4103
        %v4146 = vadd.f32 %v3410, %v4104
        %v4147 = vadd.f32 %v3411, %v4105
        %v4148 = vadd.f32 %v3412, %v4106
        %v4149 = vadd.f32 %v3413, %v4107
        %v4150 = vadd.f32 %v3414, %v4108
        %v4151 = vadd.f32 %v3415, %v4109
        %v4152 = vadd.f32 %v3416, %v4110
        %v4153 = vadd.f32 %v3417, %v4111
        %v4154 = vadd.f32 %v3418, %v4112
        %v4155 = vadd.f32 %v3419, %v4113
        %v4156 = vadd.f32 %v3420, %v4114
        %v4157 = vadd.f32 %v3421, %v4115
        %v4158 = vadd.f32 %v3422, %v4116
        %v4159 = vadd.f32 %v3423, %v4117
        %v4160 = vadd.f32 %v3424, %v4118
        %v4161 = vadd.f32 %v3425, %v4119
        %v4162 = vadd.f32 %v3426, %v4120
        %v4163 = vadd.f32 %v3427, %v4121
        %v4164 = vadd.f32 %v3428, %v4122
        %v4165 = vadd.f32 %v3429, %v4123
        %v4166 = vadd.f32 %v3430, %v4124
        %v4167 = vadd.f32 %v3431, %v4125
        %v4168 = vadd.f32 %v3432, %v4126
        %s4169 = scalar_lea.vmem %s514, 42 [#allocation9]
        %v4170 = vld [vmem:[%s4169] sm:$0x3f]
        %v4171 = vld [vmem:[%s1832] sm:$0x7f]
        %v4172 = vld [vmem:[%s1832 + $0x8] sm:$0x7f]
        %v4173 = vld [vmem:[%s1832 + $0x10] sm:$0x7f]
        %v4174 = vld [vmem:[%s1832 + $0x18] sm:$0x7f]
        %v4175 = vld [vmem:[%s1832 + $0x20] sm:$0x7f]
        %v4176 = vld [vmem:[%s1832 + $0x28] sm:$0x7f]
        %v4177 = vld [vmem:[%s1832 + $0x30] sm:$0x7f]
        %v4178 = vld [vmem:[%s1832 + $0x38] sm:$0x7f]
        %v4179 = vld [vmem:[%s1832 + $0x40] sm:$0x7f]
        %v4180 = vld [vmem:[%s1832 + $0x48] sm:$0x7f]
        %v4181 = vld [vmem:[%s1832 + $0x50] sm:$0x7f]
        %v4182 = vld [vmem:[%s1832 + $0x58] sm:$0x7f]
        %v4183 = vld [vmem:[%s1832 + $0x60] sm:$0x7f]
        %v4184 = vld [vmem:[%s1832 + $0x68] sm:$0x7f]
        %v4185 = vld [vmem:[%s1832 + $0x70] sm:$0x7f]
        %v4186 = vld [vmem:[%s1832 + $0x78] sm:$0x7f]
        %v4187 = vld [vmem:[%s1832 + $0x80] sm:$0x7f]
        %v4188 = vld [vmem:[%s1832 + $0x88] sm:$0x7f]
        %v4189 = vld [vmem:[%s1832 + $0x90] sm:$0x7f]
        %v4190 = vld [vmem:[%s1832 + $0x98] sm:$0x7f]
        %v4191 = vld [vmem:[%s1832 + $0xa0] sm:$0x7f]
        %v4192 = vld [vmem:[%s1832 + $0xa8] sm:$0x7f]
        %v4193 = vld [vmem:[%s1832 + $0xb0] sm:$0x7f]
        %v4194 = vld [vmem:[%s1832 + $0xb8] sm:$0x7f]
        %v4195 = vld [vmem:[%s1832 + $0xc0] sm:$0x7f]
        %v4196 = vld [vmem:[%s1832 + $0xc8] sm:$0x7f]
        %v4197 = vld [vmem:[%s1832 + $0xd0] sm:$0x7f]
        %v4198 = vld [vmem:[%s1832 + $0xd8] sm:$0x7f]
        %v4199 = vld [vmem:[%s1832 + $0xe0] sm:$0x7f]
        %v4200 = vld [vmem:[%s1832 + $0xe8] sm:$0x7f]
        %v4201 = vld [vmem:[%s1832 + $0xf0] sm:$0x7f]
        %v4202 = vld [vmem:[%s1832 + $0xf8] sm:$0x7f]
        %v4203 = vld [vmem:[%s1832 + $0x100] sm:$0x7f]
        %v4204 = vld [vmem:[%s1832 + $0x108] sm:$0x7f]
        %v4205 = vld [vmem:[%s1832 + $0x110] sm:$0x7f]
        %v4206 = vld [vmem:[%s1832 + $0x118] sm:$0x7f]
        %v4207 = vld [vmem:[%s1832 + $0x120] sm:$0x7f]
        %v4208 = vld [vmem:[%s1832 + $0x128] sm:$0x7f]
        %v4209 = vld [vmem:[%s1832 + $0x130] sm:$0x7f]
        %v4210 = vld [vmem:[%s1832 + $0x138] sm:$0x7f]
        %v4211 = vld [vmem:[%s1832 + $0x140] sm:$0x7f]
        %v4212 = vld [vmem:[%s1832 + $0x148] sm:$0x7f]
        %v4214 = vperm.slane %v4170, 0
        %v4215 = vperm.slane %v4170, 1
        %v4216 = vperm.slane %v4170, 2
        %v4217 = vperm.slane %v4170, 3
        %v4218 = vperm.slane %v4170, 4
        %v4219 = vperm.slane %v4170, 5
        %v4226 = vmul.f32 %v4171, %v4214
        %v4227 = vmul.f32 %v4172, %v4215
        %v4228 = vmul.f32 %v4173, %v4216
        %v4229 = vmul.f32 %v4174, %v4217
        %v4230 = vmul.f32 %v4175, %v4218
        %v4231 = vmul.f32 %v4176, %v4219
        %v4232 = vmul.f32 %v4177, %v4214
        %v4233 = vmul.f32 %v4178, %v4215
        %v4234 = vmul.f32 %v4179, %v4216
        %v4235 = vmul.f32 %v4180, %v4217
        %v4236 = vmul.f32 %v4181, %v4218
        %v4237 = vmul.f32 %v4182, %v4219
        %v4238 = vmul.f32 %v4183, %v4214
        %v4239 = vmul.f32 %v4184, %v4215
        %v4240 = vmul.f32 %v4185, %v4216
        %v4241 = vmul.f32 %v4186, %v4217
        %v4242 = vmul.f32 %v4187, %v4218
        %v4243 = vmul.f32 %v4188, %v4219
        %v4244 = vmul.f32 %v4189, %v4214
        %v4245 = vmul.f32 %v4190, %v4215
        %v4246 = vmul.f32 %v4191, %v4216
        %v4247 = vmul.f32 %v4192, %v4217
        %v4248 = vmul.f32 %v4193, %v4218
        %v4249 = vmul.f32 %v4194, %v4219
        %v4250 = vmul.f32 %v4195, %v4214
        %v4251 = vmul.f32 %v4196, %v4215
        %v4252 = vmul.f32 %v4197, %v4216
        %v4253 = vmul.f32 %v4198, %v4217
        %v4254 = vmul.f32 %v4199, %v4218
        %v4255 = vmul.f32 %v4200, %v4219
        %v4256 = vmul.f32 %v4201, %v4214
        %v4257 = vmul.f32 %v4202, %v4215
        %v4258 = vmul.f32 %v4203, %v4216
        %v4259 = vmul.f32 %v4204, %v4217
        %v4260 = vmul.f32 %v4205, %v4218
        %v4261 = vmul.f32 %v4206, %v4219
        %v4262 = vmul.f32 %v4207, %v4214
        %v4263 = vmul.f32 %v4208, %v4215
        %v4264 = vmul.f32 %v4209, %v4216
        %v4265 = vmul.f32 %v4210, %v4217
        %v4266 = vmul.f32 %v4211, %v4218
        %v4267 = vmul.f32 %v4212, %v4219
        %v4268 = vadd.f32 %v4127, %v4226
        %v4269 = vadd.f32 %v4128, %v4227
        %v4270 = vadd.f32 %v4129, %v4228
        %v4271 = vadd.f32 %v4130, %v4229
        %v4272 = vadd.f32 %v4131, %v4230
        %v4273 = vadd.f32 %v4132, %v4231
        %v4274 = vadd.f32 %v4133, %v4232
        %v4275 = vadd.f32 %v4134, %v4233
        %v4276 = vadd.f32 %v4135, %v4234
        %v4277 = vadd.f32 %v4136, %v4235
        %v4278 = vadd.f32 %v4137, %v4236
        %v4279 = vadd.f32 %v4138, %v4237
        %v4280 = vadd.f32 %v4139, %v4238
        %v4281 = vadd.f32 %v4140, %v4239
        %v4282 = vadd.f32 %v4141, %v4240
        %v4283 = vadd.f32 %v4142, %v4241
        %v4284 = vadd.f32 %v4143, %v4242
        %v4285 = vadd.f32 %v4144, %v4243
        %v4286 = vadd.f32 %v4145, %v4244
        %v4287 = vadd.f32 %v4146, %v4245
        %v4288 = vadd.f32 %v4147, %v4246
        %v4289 = vadd.f32 %v4148, %v4247
        %v4290 = vadd.f32 %v4149, %v4248
        %v4291 = vadd.f32 %v4150, %v4249
        %v4292 = vadd.f32 %v4151, %v4250
        %v4293 = vadd.f32 %v4152, %v4251
        %v4294 = vadd.f32 %v4153, %v4252
        %v4295 = vadd.f32 %v4154, %v4253
        %v4296 = vadd.f32 %v4155, %v4254
        %v4297 = vadd.f32 %v4156, %v4255
        %v4298 = vadd.f32 %v4157, %v4256
        %v4299 = vadd.f32 %v4158, %v4257
        %v4300 = vadd.f32 %v4159, %v4258
        %v4301 = vadd.f32 %v4160, %v4259
        %v4302 = vadd.f32 %v4161, %v4260
        %v4303 = vadd.f32 %v4162, %v4261
        %v4304 = vadd.f32 %v4163, %v4262
        %v4305 = vadd.f32 %v4164, %v4263
        %v4306 = vadd.f32 %v4165, %v4264
        %v4307 = vadd.f32 %v4166, %v4265
        %v4308 = vadd.f32 %v4167, %v4266
        %v4309 = vadd.f32 %v4168, %v4267
        %s4310 = scalar_lea.vmem %s514, 72 [#allocation9]
        %v4311 = vld [vmem:[%s4310] sm:$0x3f]
        %v4312 = vld [vmem:[%s1974] sm:$0x7f]
        %v4313 = vld [vmem:[%s1974 + $0x8] sm:$0x7f]
        %v4314 = vld [vmem:[%s1974 + $0x10] sm:$0x7f]
        %v4315 = vld [vmem:[%s1974 + $0x18] sm:$0x7f]
        %v4316 = vld [vmem:[%s1974 + $0x20] sm:$0x7f]
        %v4317 = vld [vmem:[%s1974 + $0x28] sm:$0x7f]
        %v4318 = vld [vmem:[%s1974 + $0x30] sm:$0x7f]
        %v4319 = vld [vmem:[%s1974 + $0x38] sm:$0x7f]
        %v4320 = vld [vmem:[%s1974 + $0x40] sm:$0x7f]
        %v4321 = vld [vmem:[%s1974 + $0x48] sm:$0x7f]
        %v4322 = vld [vmem:[%s1974 + $0x50] sm:$0x7f]
        %v4323 = vld [vmem:[%s1974 + $0x58] sm:$0x7f]
        %v4324 = vld [vmem:[%s1974 + $0x60] sm:$0x7f]
        %v4325 = vld [vmem:[%s1974 + $0x68] sm:$0x7f]
        %v4326 = vld [vmem:[%s1974 + $0x70] sm:$0x7f]
        %v4327 = vld [vmem:[%s1974 + $0x78] sm:$0x7f]
        %v4328 = vld [vmem:[%s1974 + $0x80] sm:$0x7f]
        %v4329 = vld [vmem:[%s1974 + $0x88] sm:$0x7f]
        %v4330 = vld [vmem:[%s1974 + $0x90] sm:$0x7f]
        %v4331 = vld [vmem:[%s1974 + $0x98] sm:$0x7f]
        %v4332 = vld [vmem:[%s1974 + $0xa0] sm:$0x7f]
        %v4333 = vld [vmem:[%s1974 + $0xa8] sm:$0x7f]
        %v4334 = vld [vmem:[%s1974 + $0xb0] sm:$0x7f]
        %v4335 = vld [vmem:[%s1974 + $0xb8] sm:$0x7f]
        %v4336 = vld [vmem:[%s1974 + $0xc0] sm:$0x7f]
        %v4337 = vld [vmem:[%s1974 + $0xc8] sm:$0x7f]
        %v4338 = vld [vmem:[%s1974 + $0xd0] sm:$0x7f]
        %v4339 = vld [vmem:[%s1974 + $0xd8] sm:$0x7f]
        %v4340 = vld [vmem:[%s1974 + $0xe0] sm:$0x7f]
        %v4341 = vld [vmem:[%s1974 + $0xe8] sm:$0x7f]
        %v4342 = vld [vmem:[%s1974 + $0xf0] sm:$0x7f]
        %v4343 = vld [vmem:[%s1974 + $0xf8] sm:$0x7f]
        %v4344 = vld [vmem:[%s1974 + $0x100] sm:$0x7f]
        %v4345 = vld [vmem:[%s1974 + $0x108] sm:$0x7f]
        %v4346 = vld [vmem:[%s1974 + $0x110] sm:$0x7f]
        %v4347 = vld [vmem:[%s1974 + $0x118] sm:$0x7f]
        %v4348 = vld [vmem:[%s1974 + $0x120] sm:$0x7f]
        %v4349 = vld [vmem:[%s1974 + $0x128] sm:$0x7f]
        %v4350 = vld [vmem:[%s1974 + $0x130] sm:$0x7f]
        %v4351 = vld [vmem:[%s1974 + $0x138] sm:$0x7f]
        %v4352 = vld [vmem:[%s1974 + $0x140] sm:$0x7f]
        %v4353 = vld [vmem:[%s1974 + $0x148] sm:$0x7f]
        %v4355 = vperm.slane %v4311, 0
        %v4356 = vperm.slane %v4311, 1
        %v4357 = vperm.slane %v4311, 2
        %v4358 = vperm.slane %v4311, 3
        %v4359 = vperm.slane %v4311, 4
        %v4360 = vperm.slane %v4311, 5
        %v4367 = vmul.f32 %v4312, %v4355
        %v4368 = vmul.f32 %v4313, %v4356
        %v4369 = vmul.f32 %v4314, %v4357
        %v4370 = vmul.f32 %v4315, %v4358
        %v4371 = vmul.f32 %v4316, %v4359
        %v4372 = vmul.f32 %v4317, %v4360
        %v4373 = vmul.f32 %v4318, %v4355
        %v4374 = vmul.f32 %v4319, %v4356
        %v4375 = vmul.f32 %v4320, %v4357
        %v4376 = vmul.f32 %v4321, %v4358
        %v4377 = vmul.f32 %v4322, %v4359
        %v4378 = vmul.f32 %v4323, %v4360
        %v4379 = vmul.f32 %v4324, %v4355
        %v4380 = vmul.f32 %v4325, %v4356
        %v4381 = vmul.f32 %v4326, %v4357
        %v4382 = vmul.f32 %v4327, %v4358
        %v4383 = vmul.f32 %v4328, %v4359
        %v4384 = vmul.f32 %v4329, %v4360
        %v4385 = vmul.f32 %v4330, %v4355
        %v4386 = vmul.f32 %v4331, %v4356
        %v4387 = vmul.f32 %v4332, %v4357
        %v4388 = vmul.f32 %v4333, %v4358
        %v4389 = vmul.f32 %v4334, %v4359
        %v4390 = vmul.f32 %v4335, %v4360
        %v4391 = vmul.f32 %v4336, %v4355
        %v4392 = vmul.f32 %v4337, %v4356
        %v4393 = vmul.f32 %v4338, %v4357
        %v4394 = vmul.f32 %v4339, %v4358
        %v4395 = vmul.f32 %v4340, %v4359
        %v4396 = vmul.f32 %v4341, %v4360
        %v4397 = vmul.f32 %v4342, %v4355
        %v4398 = vmul.f32 %v4343, %v4356
        %v4399 = vmul.f32 %v4344, %v4357
        %v4400 = vmul.f32 %v4345, %v4358
        %v4401 = vmul.f32 %v4346, %v4359
        %v4402 = vmul.f32 %v4347, %v4360
        %v4403 = vmul.f32 %v4348, %v4355
        %v4404 = vmul.f32 %v4349, %v4356
        %v4405 = vmul.f32 %v4350, %v4357
        %v4406 = vmul.f32 %v4351, %v4358
        %v4407 = vmul.f32 %v4352, %v4359
        %v4408 = vmul.f32 %v4353, %v4360
        %v4409 = vadd.f32 %v4268, %v4367
        %v4410 = vadd.f32 %v4269, %v4368
        %v4411 = vadd.f32 %v4270, %v4369
        %v4412 = vadd.f32 %v4271, %v4370
        %v4413 = vadd.f32 %v4272, %v4371
        %v4414 = vadd.f32 %v4273, %v4372
        %v4415 = vadd.f32 %v4274, %v4373
        %v4416 = vadd.f32 %v4275, %v4374
        %v4417 = vadd.f32 %v4276, %v4375
        %v4418 = vadd.f32 %v4277, %v4376
        %v4419 = vadd.f32 %v4278, %v4377
        %v4420 = vadd.f32 %v4279, %v4378
        %v4421 = vadd.f32 %v4280, %v4379
        %v4422 = vadd.f32 %v4281, %v4380
        %v4423 = vadd.f32 %v4282, %v4381
        %v4424 = vadd.f32 %v4283, %v4382
        %v4425 = vadd.f32 %v4284, %v4383
        %v4426 = vadd.f32 %v4285, %v4384
        %v4427 = vadd.f32 %v4286, %v4385
        %v4428 = vadd.f32 %v4287, %v4386
        %v4429 = vadd.f32 %v4288, %v4387
        %v4430 = vadd.f32 %v4289, %v4388
        %v4431 = vadd.f32 %v4290, %v4389
        %v4432 = vadd.f32 %v4291, %v4390
        %v4433 = vadd.f32 %v4292, %v4391
        %v4434 = vadd.f32 %v4293, %v4392
        %v4435 = vadd.f32 %v4294, %v4393
        %v4436 = vadd.f32 %v4295, %v4394
        %v4437 = vadd.f32 %v4296, %v4395
        %v4438 = vadd.f32 %v4297, %v4396
        %v4439 = vadd.f32 %v4298, %v4397
        %v4440 = vadd.f32 %v4299, %v4398
        %v4441 = vadd.f32 %v4300, %v4399
        %v4442 = vadd.f32 %v4301, %v4400
        %v4443 = vadd.f32 %v4302, %v4401
        %v4444 = vadd.f32 %v4303, %v4402
        %v4445 = vadd.f32 %v4304, %v4403
        %v4446 = vadd.f32 %v4305, %v4404
        %v4447 = vadd.f32 %v4306, %v4405
        %v4448 = vadd.f32 %v4307, %v4406
        %v4449 = vadd.f32 %v4308, %v4407
        %v4450 = vadd.f32 %v4309, %v4408
        %s4451 = scalar_lea.vmem %s514, 102 [#allocation9]
        %v4452 = vld [vmem:[%s4451] sm:$0x3f]
        %v4453 = vld [vmem:[%s2116] sm:$0x7f]
        %v4454 = vld [vmem:[%s2116 + $0x8] sm:$0x7f]
        %v4455 = vld [vmem:[%s2116 + $0x10] sm:$0x7f]
        %v4456 = vld [vmem:[%s2116 + $0x18] sm:$0x7f]
        %v4457 = vld [vmem:[%s2116 + $0x20] sm:$0x7f]
        %v4458 = vld [vmem:[%s2116 + $0x28] sm:$0x7f]
        %v4459 = vld [vmem:[%s2116 + $0x30] sm:$0x7f]
        %v4460 = vld [vmem:[%s2116 + $0x38] sm:$0x7f]
        %v4461 = vld [vmem:[%s2116 + $0x40] sm:$0x7f]
        %v4462 = vld [vmem:[%s2116 + $0x48] sm:$0x7f]
        %v4463 = vld [vmem:[%s2116 + $0x50] sm:$0x7f]
        %v4464 = vld [vmem:[%s2116 + $0x58] sm:$0x7f]
        %v4465 = vld [vmem:[%s2116 + $0x60] sm:$0x7f]
        %v4466 = vld [vmem:[%s2116 + $0x68] sm:$0x7f]
        %v4467 = vld [vmem:[%s2116 + $0x70] sm:$0x7f]
        %v4468 = vld [vmem:[%s2116 + $0x78] sm:$0x7f]
        %v4469 = vld [vmem:[%s2116 + $0x80] sm:$0x7f]
        %v4470 = vld [vmem:[%s2116 + $0x88] sm:$0x7f]
        %v4471 = vld [vmem:[%s2116 + $0x90] sm:$0x7f]
        %v4472 = vld [vmem:[%s2116 + $0x98] sm:$0x7f]
        %v4473 = vld [vmem:[%s2116 + $0xa0] sm:$0x7f]
        %v4474 = vld [vmem:[%s2116 + $0xa8] sm:$0x7f]
        %v4475 = vld [vmem:[%s2116 + $0xb0] sm:$0x7f]
        %v4476 = vld [vmem:[%s2116 + $0xb8] sm:$0x7f]
        %v4477 = vld [vmem:[%s2116 + $0xc0] sm:$0x7f]
        %v4478 = vld [vmem:[%s2116 + $0xc8] sm:$0x7f]
        %v4479 = vld [vmem:[%s2116 + $0xd0] sm:$0x7f]
        %v4480 = vld [vmem:[%s2116 + $0xd8] sm:$0x7f]
        %v4481 = vld [vmem:[%s2116 + $0xe0] sm:$0x7f]
        %v4482 = vld [vmem:[%s2116 + $0xe8] sm:$0x7f]
        %v4483 = vld [vmem:[%s2116 + $0xf0] sm:$0x7f]
        %v4484 = vld [vmem:[%s2116 + $0xf8] sm:$0x7f]
        %v4485 = vld [vmem:[%s2116 + $0x100] sm:$0x7f]
        %v4486 = vld [vmem:[%s2116 + $0x108] sm:$0x7f]
        %v4487 = vld [vmem:[%s2116 + $0x110] sm:$0x7f]
        %v4488 = vld [vmem:[%s2116 + $0x118] sm:$0x7f]
        %v4489 = vld [vmem:[%s2116 + $0x120] sm:$0x7f]
        %v4490 = vld [vmem:[%s2116 + $0x128] sm:$0x7f]
        %v4491 = vld [vmem:[%s2116 + $0x130] sm:$0x7f]
        %v4492 = vld [vmem:[%s2116 + $0x138] sm:$0x7f]
        %v4493 = vld [vmem:[%s2116 + $0x140] sm:$0x7f]
        %v4494 = vld [vmem:[%s2116 + $0x148] sm:$0x7f]
        %v4496 = vperm.slane %v4452, 0
        %v4497 = vperm.slane %v4452, 1
        %v4498 = vperm.slane %v4452, 2
        %v4499 = vperm.slane %v4452, 3
        %v4500 = vperm.slane %v4452, 4
        %v4501 = vperm.slane %v4452, 5
        %v4508 = vmul.f32 %v4453, %v4496
        %v4509 = vmul.f32 %v4454, %v4497
        %v4510 = vmul.f32 %v4455, %v4498
        %v4511 = vmul.f32 %v4456, %v4499
        %v4512 = vmul.f32 %v4457, %v4500
        %v4513 = vmul.f32 %v4458, %v4501
        %v4514 = vmul.f32 %v4459, %v4496
        %v4515 = vmul.f32 %v4460, %v4497
        %v4516 = vmul.f32 %v4461, %v4498
        %v4517 = vmul.f32 %v4462, %v4499
        %v4518 = vmul.f32 %v4463, %v4500
        %v4519 = vmul.f32 %v4464, %v4501
        %v4520 = vmul.f32 %v4465, %v4496
        %v4521 = vmul.f32 %v4466, %v4497
        %v4522 = vmul.f32 %v4467, %v4498
        %v4523 = vmul.f32 %v4468, %v4499
        %v4524 = vmul.f32 %v4469, %v4500
        %v4525 = vmul.f32 %v4470, %v4501
        %v4526 = vmul.f32 %v4471, %v4496
        %v4527 = vmul.f32 %v4472, %v4497
        %v4528 = vmul.f32 %v4473, %v4498
        %v4529 = vmul.f32 %v4474, %v4499
        %v4530 = vmul.f32 %v4475, %v4500
        %v4531 = vmul.f32 %v4476, %v4501
        %v4532 = vmul.f32 %v4477, %v4496
        %v4533 = vmul.f32 %v4478, %v4497
        %v4534 = vmul.f32 %v4479, %v4498
        %v4535 = vmul.f32 %v4480, %v4499
        %v4536 = vmul.f32 %v4481, %v4500
        %v4537 = vmul.f32 %v4482, %v4501
        %v4538 = vmul.f32 %v4483, %v4496
        %v4539 = vmul.f32 %v4484, %v4497
        %v4540 = vmul.f32 %v4485, %v4498
        %v4541 = vmul.f32 %v4486, %v4499
        %v4542 = vmul.f32 %v4487, %v4500
        %v4543 = vmul.f32 %v4488, %v4501
        %v4544 = vmul.f32 %v4489, %v4496
        %v4545 = vmul.f32 %v4490, %v4497
        %v4546 = vmul.f32 %v4491, %v4498
        %v4547 = vmul.f32 %v4492, %v4499
        %v4548 = vmul.f32 %v4493, %v4500
        %v4549 = vmul.f32 %v4494, %v4501
        %v4550 = vadd.f32 %v4409, %v4508
        %v4551 = vadd.f32 %v4410, %v4509
        %v4552 = vadd.f32 %v4411, %v4510
        %v4553 = vadd.f32 %v4412, %v4511
        %v4554 = vadd.f32 %v4413, %v4512
        %v4555 = vadd.f32 %v4414, %v4513
        %v4556 = vadd.f32 %v4415, %v4514
        %v4557 = vadd.f32 %v4416, %v4515
        %v4558 = vadd.f32 %v4417, %v4516
        %v4559 = vadd.f32 %v4418, %v4517
        %v4560 = vadd.f32 %v4419, %v4518
        %v4561 = vadd.f32 %v4420, %v4519
        %v4562 = vadd.f32 %v4421, %v4520
        %v4563 = vadd.f32 %v4422, %v4521
        %v4564 = vadd.f32 %v4423, %v4522
        %v4565 = vadd.f32 %v4424, %v4523
        %v4566 = vadd.f32 %v4425, %v4524
        %v4567 = vadd.f32 %v4426, %v4525
        %v4568 = vadd.f32 %v4427, %v4526
        %v4569 = vadd.f32 %v4428, %v4527
        %v4570 = vadd.f32 %v4429, %v4528
        %v4571 = vadd.f32 %v4430, %v4529
        %v4572 = vadd.f32 %v4431, %v4530
        %v4573 = vadd.f32 %v4432, %v4531
        %v4574 = vadd.f32 %v4433, %v4532
        %v4575 = vadd.f32 %v4434, %v4533
        %v4576 = vadd.f32 %v4435, %v4534
        %v4577 = vadd.f32 %v4436, %v4535
        %v4578 = vadd.f32 %v4437, %v4536
        %v4579 = vadd.f32 %v4438, %v4537
        %v4580 = vadd.f32 %v4439, %v4538
        %v4581 = vadd.f32 %v4440, %v4539
        %v4582 = vadd.f32 %v4441, %v4540
        %v4583 = vadd.f32 %v4442, %v4541
        %v4584 = vadd.f32 %v4443, %v4542
        %v4585 = vadd.f32 %v4444, %v4543
        %v4586 = vadd.f32 %v4445, %v4544
        %v4587 = vadd.f32 %v4446, %v4545
        %v4588 = vadd.f32 %v4447, %v4546
        %v4589 = vadd.f32 %v4448, %v4547
        %v4590 = vadd.f32 %v4449, %v4548
        %v4591 = vadd.f32 %v4450, %v4549
        %s4592 = scalar_lea.vmem %s514, 132 [#allocation9]
        %v4593 = vld [vmem:[%s4592] sm:$0x3f]
        %v4594 = vld [vmem:[%s2258] sm:$0x7f]
        %v4595 = vld [vmem:[%s2258 + $0x8] sm:$0x7f]
        %v4596 = vld [vmem:[%s2258 + $0x10] sm:$0x7f]
        %v4597 = vld [vmem:[%s2258 + $0x18] sm:$0x7f]
        %v4598 = vld [vmem:[%s2258 + $0x20] sm:$0x7f]
        %v4599 = vld [vmem:[%s2258 + $0x28] sm:$0x7f]
        %v4600 = vld [vmem:[%s2258 + $0x30] sm:$0x7f]
        %v4601 = vld [vmem:[%s2258 + $0x38] sm:$0x7f]
        %v4602 = vld [vmem:[%s2258 + $0x40] sm:$0x7f]
        %v4603 = vld [vmem:[%s2258 + $0x48] sm:$0x7f]
        %v4604 = vld [vmem:[%s2258 + $0x50] sm:$0x7f]
        %v4605 = vld [vmem:[%s2258 + $0x58] sm:$0x7f]
        %v4606 = vld [vmem:[%s2258 + $0x60] sm:$0x7f]
        %v4607 = vld [vmem:[%s2258 + $0x68] sm:$0x7f]
        %v4608 = vld [vmem:[%s2258 + $0x70] sm:$0x7f]
        %v4609 = vld [vmem:[%s2258 + $0x78] sm:$0x7f]
        %v4610 = vld [vmem:[%s2258 + $0x80] sm:$0x7f]
        %v4611 = vld [vmem:[%s2258 + $0x88] sm:$0x7f]
        %v4612 = vld [vmem:[%s2258 + $0x90] sm:$0x7f]
        %v4613 = vld [vmem:[%s2258 + $0x98] sm:$0x7f]
        %v4614 = vld [vmem:[%s2258 + $0xa0] sm:$0x7f]
        %v4615 = vld [vmem:[%s2258 + $0xa8] sm:$0x7f]
        %v4616 = vld [vmem:[%s2258 + $0xb0] sm:$0x7f]
        %v4617 = vld [vmem:[%s2258 + $0xb8] sm:$0x7f]
        %v4618 = vld [vmem:[%s2258 + $0xc0] sm:$0x7f]
        %v4619 = vld [vmem:[%s2258 + $0xc8] sm:$0x7f]
        %v4620 = vld [vmem:[%s2258 + $0xd0] sm:$0x7f]
        %v4621 = vld [vmem:[%s2258 + $0xd8] sm:$0x7f]
        %v4622 = vld [vmem:[%s2258 + $0xe0] sm:$0x7f]
        %v4623 = vld [vmem:[%s2258 + $0xe8] sm:$0x7f]
        %v4624 = vld [vmem:[%s2258 + $0xf0] sm:$0x7f]
        %v4625 = vld [vmem:[%s2258 + $0xf8] sm:$0x7f]
        %v4626 = vld [vmem:[%s2258 + $0x100] sm:$0x7f]
        %v4627 = vld [vmem:[%s2258 + $0x108] sm:$0x7f]
        %v4628 = vld [vmem:[%s2258 + $0x110] sm:$0x7f]
        %v4629 = vld [vmem:[%s2258 + $0x118] sm:$0x7f]
        %v4630 = vld [vmem:[%s2258 + $0x120] sm:$0x7f]
        %v4631 = vld [vmem:[%s2258 + $0x128] sm:$0x7f]
        %v4632 = vld [vmem:[%s2258 + $0x130] sm:$0x7f]
        %v4633 = vld [vmem:[%s2258 + $0x138] sm:$0x7f]
        %v4634 = vld [vmem:[%s2258 + $0x140] sm:$0x7f]
        %v4635 = vld [vmem:[%s2258 + $0x148] sm:$0x7f]
        %v4637 = vperm.slane %v4593, 0
        %v4638 = vperm.slane %v4593, 1
        %v4639 = vperm.slane %v4593, 2
        %v4640 = vperm.slane %v4593, 3
        %v4641 = vperm.slane %v4593, 4
        %v4642 = vperm.slane %v4593, 5
        %v4649 = vmul.f32 %v4594, %v4637
        %v4650 = vmul.f32 %v4595, %v4638
        %v4651 = vmul.f32 %v4596, %v4639
        %v4652 = vmul.f32 %v4597, %v4640
        %v4653 = vmul.f32 %v4598, %v4641
        %v4654 = vmul.f32 %v4599, %v4642
        %v4655 = vmul.f32 %v4600, %v4637
        %v4656 = vmul.f32 %v4601, %v4638
        %v4657 = vmul.f32 %v4602, %v4639
        %v4658 = vmul.f32 %v4603, %v4640
        %v4659 = vmul.f32 %v4604, %v4641
        %v4660 = vmul.f32 %v4605, %v4642
        %v4661 = vmul.f32 %v4606, %v4637
        %v4662 = vmul.f32 %v4607, %v4638
        %v4663 = vmul.f32 %v4608, %v4639
        %v4664 = vmul.f32 %v4609, %v4640
        %v4665 = vmul.f32 %v4610, %v4641
        %v4666 = vmul.f32 %v4611, %v4642
        %v4667 = vmul.f32 %v4612, %v4637
        %v4668 = vmul.f32 %v4613, %v4638
        %v4669 = vmul.f32 %v4614, %v4639
        %v4670 = vmul.f32 %v4615, %v4640
        %v4671 = vmul.f32 %v4616, %v4641
        %v4672 = vmul.f32 %v4617, %v4642
        %v4673 = vmul.f32 %v4618, %v4637
        %v4674 = vmul.f32 %v4619, %v4638
        %v4675 = vmul.f32 %v4620, %v4639
        %v4676 = vmul.f32 %v4621, %v4640
        %v4677 = vmul.f32 %v4622, %v4641
        %v4678 = vmul.f32 %v4623, %v4642
        %v4679 = vmul.f32 %v4624, %v4637
        %v4680 = vmul.f32 %v4625, %v4638
        %v4681 = vmul.f32 %v4626, %v4639
        %v4682 = vmul.f32 %v4627, %v4640
        %v4683 = vmul.f32 %v4628, %v4641
        %v4684 = vmul.f32 %v4629, %v4642
        %v4685 = vmul.f32 %v4630, %v4637
        %v4686 = vmul.f32 %v4631, %v4638
        %v4687 = vmul.f32 %v4632, %v4639
        %v4688 = vmul.f32 %v4633, %v4640
        %v4689 = vmul.f32 %v4634, %v4641
        %v4690 = vmul.f32 %v4635, %v4642
        %v4691 = vadd.f32 %v4550, %v4649
        %v4692 = vadd.f32 %v4551, %v4650
        %v4693 = vadd.f32 %v4552, %v4651
        %v4694 = vadd.f32 %v4553, %v4652
        %v4695 = vadd.f32 %v4554, %v4653
        %v4696 = vadd.f32 %v4555, %v4654
        %v4697 = vadd.f32 %v4556, %v4655
        %v4698 = vadd.f32 %v4557, %v4656
        %v4699 = vadd.f32 %v4558, %v4657
        %v4700 = vadd.f32 %v4559, %v4658
        %v4701 = vadd.f32 %v4560, %v4659
        %v4702 = vadd.f32 %v4561, %v4660
        %v4703 = vadd.f32 %v4562, %v4661
        %v4704 = vadd.f32 %v4563, %v4662
        %v4705 = vadd.f32 %v4564, %v4663
        %v4706 = vadd.f32 %v4565, %v4664
        %v4707 = vadd.f32 %v4566, %v4665
        %v4708 = vadd.f32 %v4567, %v4666
        %v4709 = vadd.f32 %v4568, %v4667
        %v4710 = vadd.f32 %v4569, %v4668
        %v4711 = vadd.f32 %v4570, %v4669
        %v4712 = vadd.f32 %v4571, %v4670
        %v4713 = vadd.f32 %v4572, %v4671
        %v4714 = vadd.f32 %v4573, %v4672
        %v4715 = vadd.f32 %v4574, %v4673
        %v4716 = vadd.f32 %v4575, %v4674
        %v4717 = vadd.f32 %v4576, %v4675
        %v4718 = vadd.f32 %v4577, %v4676
        %v4719 = vadd.f32 %v4578, %v4677
        %v4720 = vadd.f32 %v4579, %v4678
        %v4721 = vadd.f32 %v4580, %v4679
        %v4722 = vadd.f32 %v4581, %v4680
        %v4723 = vadd.f32 %v4582, %v4681
        %v4724 = vadd.f32 %v4583, %v4682
        %v4725 = vadd.f32 %v4584, %v4683
        %v4726 = vadd.f32 %v4585, %v4684
        %v4727 = vadd.f32 %v4586, %v4685
        %v4728 = vadd.f32 %v4587, %v4686
        %v4729 = vadd.f32 %v4588, %v4687
        %v4730 = vadd.f32 %v4589, %v4688
        %v4731 = vadd.f32 %v4590, %v4689
        %v4732 = vadd.f32 %v4591, %v4690
        %v4733 = vld [vmem:[#allocation2] sm:$0xf8]
        %v4734 = vld [vmem:[#allocation2 + $0x8] sm:$0xf8]
        %v4735 = vld [vmem:[#allocation2 + $0x10] sm:$0xf8]
        %v4736 = vld [vmem:[#allocation2 + $0x18] sm:$0xf8]
        %v4737 = vld [vmem:[#allocation2 + $0x20] sm:$0xf8]
        %v4738 = vld [vmem:[#allocation2 + $0x28] sm:$0xf8]
        %v4739 = vld [vmem:[#allocation2 + $0x30] sm:$0x3]
        %v4740 = vld [vmem:[#allocation2 + $0x38] sm:$0x3]
        %v4741 = vld [vmem:[#allocation2 + $0x40] sm:$0x3]
        %v4742 = vld [vmem:[#allocation2 + $0x48] sm:$0x3]
        %v4743 = vld [vmem:[#allocation2 + $0x50] sm:$0x3]
        %v4744 = vld [vmem:[#allocation2 + $0x58] sm:$0x3]
        %v4745 = vld [vmem:[#allocation2 + $0x60] sm:$0xf8]
        %v4746 = vld [vmem:[#allocation2 + $0x68] sm:$0xf8]
        %v4747 = vld [vmem:[#allocation2 + $0x70] sm:$0xf8]
        %v4748 = vld [vmem:[#allocation2 + $0x78] sm:$0xf8]
        %v4749 = vld [vmem:[#allocation2 + $0x80] sm:$0xf8]
        %v4750 = vld [vmem:[#allocation2 + $0x88] sm:$0xf8]
        %v4751 = vld [vmem:[#allocation2 + $0x90] sm:$0x3]
        %v4752 = vld [vmem:[#allocation2 + $0x98] sm:$0x3]
        %v4753 = vld [vmem:[#allocation2 + $0xa0] sm:$0x3]
        %v4754 = vld [vmem:[#allocation2 + $0xa8] sm:$0x3]
        %v4755 = vld [vmem:[#allocation2 + $0xb0] sm:$0x3]
        %v4756 = vld [vmem:[#allocation2 + $0xb8] sm:$0x3]
        %v4757 = vld [vmem:[#allocation2 + $0xc0] sm:$0xf8]
        %v4758 = vld [vmem:[#allocation2 + $0xc8] sm:$0xf8]
        %v4759 = vld [vmem:[#allocation2 + $0xd0] sm:$0xf8]
        %v4760 = vld [vmem:[#allocation2 + $0xd8] sm:$0xf8]
        %v4761 = vld [vmem:[#allocation2 + $0xe0] sm:$0xf8]
        %v4762 = vld [vmem:[#allocation2 + $0xe8] sm:$0xf8]
        %v4763 = vld [vmem:[#allocation2 + $0xf0] sm:$0x3]
        %v4764 = vld [vmem:[#allocation2 + $0xf8] sm:$0x3]
        %v4765 = vld [vmem:[#allocation2 + $0x100] sm:$0x3]
        %v4766 = vld [vmem:[#allocation2 + $0x108] sm:$0x3]
        %v4767 = vld [vmem:[#allocation2 + $0x110] sm:$0x3]
        %v4768 = vld [vmem:[#allocation2 + $0x118] sm:$0x3]
        %v4769 = vld [vmem:[#allocation2 + $0x120] sm:$0xf8]
        %v4770 = vld [vmem:[#allocation2 + $0x128] sm:$0xf8]
        %v4771 = vld [vmem:[#allocation2 + $0x130] sm:$0xf8]
        %v4772 = vld [vmem:[#allocation2 + $0x138] sm:$0xf8]
        %v4773 = vld [vmem:[#allocation2 + $0x140] sm:$0xf8]
        %v4774 = vld [vmem:[#allocation2 + $0x148] sm:$0xf8]
        %v4775 = vld [vmem:[#allocation2 + $0x150] sm:$0x3]
        %v4776 = vld [vmem:[#allocation2 + $0x158] sm:$0x3]
        %v4777 = vld [vmem:[#allocation2 + $0x160] sm:$0x3]
        %v4778 = vld [vmem:[#allocation2 + $0x168] sm:$0x3]
        %v4779 = vld [vmem:[#allocation2 + $0x170] sm:$0x3]
        %v4780 = vld [vmem:[#allocation2 + $0x178] sm:$0x3]
        %v4781 = vld [vmem:[#allocation2 + $0x180] sm:$0xf8]
        %v4782 = vld [vmem:[#allocation2 + $0x188] sm:$0xf8]
        %v4783 = vld [vmem:[#allocation2 + $0x190] sm:$0xf8]
        %v4784 = vld [vmem:[#allocation2 + $0x198] sm:$0xf8]
        %v4785 = vld [vmem:[#allocation2 + $0x1a0] sm:$0xf8]
        %v4786 = vld [vmem:[#allocation2 + $0x1a8] sm:$0xf8]
        %v4787 = vld [vmem:[#allocation2 + $0x1b0] sm:$0x3]
        %v4788 = vld [vmem:[#allocation2 + $0x1b8] sm:$0x3]
        %v4789 = vld [vmem:[#allocation2 + $0x1c0] sm:$0x3]
        %v4790 = vld [vmem:[#allocation2 + $0x1c8] sm:$0x3]
        %v4791 = vld [vmem:[#allocation2 + $0x1d0] sm:$0x3]
        %v4792 = vld [vmem:[#allocation2 + $0x1d8] sm:$0x3]
        %v4793 = vld [vmem:[#allocation2 + $0x1e0] sm:$0xf8]
        %v4794 = vld [vmem:[#allocation2 + $0x1e8] sm:$0xf8]
        %v4795 = vld [vmem:[#allocation2 + $0x1f0] sm:$0xf8]
        %v4796 = vld [vmem:[#allocation2 + $0x1f8] sm:$0xf8]
        %v4797 = vld [vmem:[#allocation2 + $0x200] sm:$0xf8]
        %v4798 = vld [vmem:[#allocation2 + $0x208] sm:$0xf8]
        %v4799 = vld [vmem:[#allocation2 + $0x210] sm:$0x3]
        %v4800 = vld [vmem:[#allocation2 + $0x218] sm:$0x3]
        %v4801 = vld [vmem:[#allocation2 + $0x220] sm:$0x3]
        %v4802 = vld [vmem:[#allocation2 + $0x228] sm:$0x3]
        %v4803 = vld [vmem:[#allocation2 + $0x230] sm:$0x3]
        %v4804 = vld [vmem:[#allocation2 + $0x238] sm:$0x3]
        %v4805 = vld [vmem:[#allocation2 + $0x240] sm:$0xf8]
        %v4806 = vld [vmem:[#allocation2 + $0x248] sm:$0xf8]
        %v4807 = vld [vmem:[#allocation2 + $0x250] sm:$0xf8]
        %v4808 = vld [vmem:[#allocation2 + $0x258] sm:$0xf8]
        %v4809 = vld [vmem:[#allocation2 + $0x260] sm:$0xf8]
        %v4810 = vld [vmem:[#allocation2 + $0x268] sm:$0xf8]
        %v4811 = vld [vmem:[#allocation2 + $0x270] sm:$0x3]
        %v4812 = vld [vmem:[#allocation2 + $0x278] sm:$0x3]
        %v4813 = vld [vmem:[#allocation2 + $0x280] sm:$0x3]
        %v4814 = vld [vmem:[#allocation2 + $0x288] sm:$0x3]
        %v4815 = vld [vmem:[#allocation2 + $0x290] sm:$0x3]
        %v4816 = vld [vmem:[#allocation2 + $0x298] sm:$0x3]
        %v4817 = vld [vmem:[#allocation2 + $0x2a0] sm:$0xf8]
        %v4818 = vld [vmem:[#allocation2 + $0x2a8] sm:$0xf8]
        %v4819 = vld [vmem:[#allocation2 + $0x2b0] sm:$0xf8]
        %v4820 = vld [vmem:[#allocation2 + $0x2b8] sm:$0xf8]
        %v4821 = vld [vmem:[#allocation2 + $0x2c0] sm:$0xf8]
        %v4822 = vld [vmem:[#allocation2 + $0x2c8] sm:$0xf8]
        %v4823 = vld [vmem:[#allocation2 + $0x2d0] sm:$0x3]
        %v4824 = vld [vmem:[#allocation2 + $0x2d8] sm:$0x3]
        %v4825 = vld [vmem:[#allocation2 + $0x2e0] sm:$0x3]
        %v4826 = vld [vmem:[#allocation2 + $0x2e8] sm:$0x3]
        %v4827 = vld [vmem:[#allocation2 + $0x2f0] sm:$0x3]
        %v4828 = vld [vmem:[#allocation2 + $0x2f8] sm:$0x3]
        %v4829 = vld [vmem:[#allocation2 + $0x300] sm:$0xf8]
        %v4830 = vld [vmem:[#allocation2 + $0x308] sm:$0xf8]
        %v4831 = vld [vmem:[#allocation2 + $0x310] sm:$0xf8]
        %v4832 = vld [vmem:[#allocation2 + $0x318] sm:$0xf8]
        %v4833 = vld [vmem:[#allocation2 + $0x320] sm:$0xf8]
        %v4834 = vld [vmem:[#allocation2 + $0x328] sm:$0xf8]
        %v4835 = vld [vmem:[#allocation2 + $0x330] sm:$0x3]
        %v4836 = vld [vmem:[#allocation2 + $0x338] sm:$0x3]
        %v4837 = vld [vmem:[#allocation2 + $0x340] sm:$0x3]
        %v4838 = vld [vmem:[#allocation2 + $0x348] sm:$0x3]
        %v4839 = vld [vmem:[#allocation2 + $0x350] sm:$0x3]
        %v4840 = vld [vmem:[#allocation2 + $0x358] sm:$0x3]
        %v4841 = vld [vmem:[#allocation2 + $0x360] sm:$0xf8]
        %v4842 = vld [vmem:[#allocation2 + $0x368] sm:$0xf8]
        %v4843 = vld [vmem:[#allocation2 + $0x370] sm:$0xf8]
        %v4844 = vld [vmem:[#allocation2 + $0x378] sm:$0xf8]
        %v4845 = vld [vmem:[#allocation2 + $0x380] sm:$0xf8]
        %v4846 = vld [vmem:[#allocation2 + $0x388] sm:$0xf8]
        %v4847 = vld [vmem:[#allocation2 + $0x390] sm:$0x3]
        %v4848 = vld [vmem:[#allocation2 + $0x398] sm:$0x3]
        %v4849 = vld [vmem:[#allocation2 + $0x3a0] sm:$0x3]
        %v4850 = vld [vmem:[#allocation2 + $0x3a8] sm:$0x3]
        %v4851 = vld [vmem:[#allocation2 + $0x3b0] sm:$0x3]
        %v4852 = vld [vmem:[#allocation2 + $0x3b8] sm:$0x3]
        %v4853 = vld [vmem:[#allocation2 + $0x3c0] sm:$0xf8]
        %v4854 = vld [vmem:[#allocation2 + $0x3c8] sm:$0xf8]
        %v4855 = vld [vmem:[#allocation2 + $0x3d0] sm:$0xf8]
        %v4856 = vld [vmem:[#allocation2 + $0x3d8] sm:$0xf8]
        %v4857 = vld [vmem:[#allocation2 + $0x3e0] sm:$0xf8]
        %v4858 = vld [vmem:[#allocation2 + $0x3e8] sm:$0xf8]
        %v4859 = vld [vmem:[#allocation2 + $0x3f0] sm:$0x3]
        %v4860 = vld [vmem:[#allocation2 + $0x3f8] sm:$0x3]
        %v4861 = vld [vmem:[#allocation2 + $0x400] sm:$0x3]
        %v4862 = vld [vmem:[#allocation2 + $0x408] sm:$0x3]
        %v4863 = vld [vmem:[#allocation2 + $0x410] sm:$0x3]
        %v4864 = vld [vmem:[#allocation2 + $0x418] sm:$0x3]
        %vm4997 = vcmask 1044480
        %v4998 = vrot.slane %v4733, 3
        %v4999 = vrot.slane %v4739, 3
        %v5000 = vsel %vm4997, %v4998, %v4999
        %v5001 = vrot.slane %v4734, 3
        %v5002 = vrot.slane %v4740, 3
        %v5003 = vsel %vm4997, %v5001, %v5002
        %v5004 = vrot.slane %v4735, 3
        %v5005 = vrot.slane %v4741, 3
        %v5006 = vsel %vm4997, %v5004, %v5005
        %v5007 = vrot.slane %v4736, 3
        %v5008 = vrot.slane %v4742, 3
        %v5009 = vsel %vm4997, %v5007, %v5008
        %v5010 = vrot.slane %v4737, 3
        %v5011 = vrot.slane %v4743, 3
        %v5012 = vsel %vm4997, %v5010, %v5011
        %v5013 = vrot.slane %v4738, 3
        %v5014 = vrot.slane %v4744, 3
        %v5015 = vsel %vm4997, %v5013, %v5014
        %v5016 = vrot.slane %v4745, 3
        %v5017 = vrot.slane %v4751, 3
        %v5018 = vsel %vm4997, %v5016, %v5017
        %v5019 = vrot.slane %v4746, 3
        %v5020 = vrot.slane %v4752, 3
        %v5021 = vsel %vm4997, %v5019, %v5020
        %v5022 = vrot.slane %v4747, 3
        %v5023 = vrot.slane %v4753, 3
        %v5024 = vsel %vm4997, %v5022, %v5023
        %v5025 = vrot.slane %v4748, 3
        %v5026 = vrot.slane %v4754, 3
        %v5027 = vsel %vm4997, %v5025, %v5026
        %v5028 = vrot.slane %v4749, 3
        %v5029 = vrot.slane %v4755, 3
        %v5030 = vsel %vm4997, %v5028, %v5029
        %v5031 = vrot.slane %v4750, 3
        %v5032 = vrot.slane %v4756, 3
        %v5033 = vsel %vm4997, %v5031, %v5032
        %v5034 = vrot.slane %v4757, 3
        %v5035 = vrot.slane %v4763, 3
        %v5036 = vsel %vm4997, %v5034, %v5035
        %v5037 = vrot.slane %v4758, 3
        %v5038 = vrot.slane %v4764, 3
        %v5039 = vsel %vm4997, %v5037, %v5038
        %v5040 = vrot.slane %v4759, 3
        %v5041 = vrot.slane %v4765, 3
        %v5042 = vsel %vm4997, %v5040, %v5041
        %v5043 = vrot.slane %v4760, 3
        %v5044 = vrot.slane %v4766, 3
        %v5045 = vsel %vm4997, %v5043, %v5044
        %v5046 = vrot.slane %v4761, 3
        %v5047 = vrot.slane %v4767, 3
        %v5048 = vsel %vm4997, %v5046, %v5047
        %v5049 = vrot.slane %v4762, 3
        %v5050 = vrot.slane %v4768, 3
        %v5051 = vsel %vm4997, %v5049, %v5050
        %v5052 = vrot.slane %v4769, 3
        %v5053 = vrot.slane %v4775, 3
        %v5054 = vsel %vm4997, %v5052, %v5053
        %v5055 = vrot.slane %v4770, 3
        %v5056 = vrot.slane %v4776, 3
        %v5057 = vsel %vm4997, %v5055, %v5056
        %v5058 = vrot.slane %v4771, 3
        %v5059 = vrot.slane %v4777, 3
        %v5060 = vsel %vm4997, %v5058, %v5059
        %v5061 = vrot.slane %v4772, 3
        %v5062 = vrot.slane %v4778, 3
        %v5063 = vsel %vm4997, %v5061, %v5062
        %v5064 = vrot.slane %v4773, 3
        %v5065 = vrot.slane %v4779, 3
        %v5066 = vsel %vm4997, %v5064, %v5065
        %v5067 = vrot.slane %v4774, 3
        %v5068 = vrot.slane %v4780, 3
        %v5069 = vsel %vm4997, %v5067, %v5068
        %v5070 = vrot.slane %v4781, 3
        %v5071 = vrot.slane %v4787, 3
        %v5072 = vsel %vm4997, %v5070, %v5071
        %v5073 = vrot.slane %v4782, 3
        %v5074 = vrot.slane %v4788, 3
        %v5075 = vsel %vm4997, %v5073, %v5074
        %v5076 = vrot.slane %v4783, 3
        %v5077 = vrot.slane %v4789, 3
        %v5078 = vsel %vm4997, %v5076, %v5077
        %v5079 = vrot.slane %v4784, 3
        %v5080 = vrot.slane %v4790, 3
        %v5081 = vsel %vm4997, %v5079, %v5080
        %v5082 = vrot.slane %v4785, 3
        %v5083 = vrot.slane %v4791, 3
        %v5084 = vsel %vm4997, %v5082, %v5083
        %v5085 = vrot.slane %v4786, 3
        %v5086 = vrot.slane %v4792, 3
        %v5087 = vsel %vm4997, %v5085, %v5086
        %v5088 = vrot.slane %v4793, 3
        %v5089 = vrot.slane %v4799, 3
        %v5090 = vsel %vm4997, %v5088, %v5089
        %v5091 = vrot.slane %v4794, 3
        %v5092 = vrot.slane %v4800, 3
        %v5093 = vsel %vm4997, %v5091, %v5092
        %v5094 = vrot.slane %v4795, 3
        %v5095 = vrot.slane %v4801, 3
        %v5096 = vsel %vm4997, %v5094, %v5095
        %v5097 = vrot.slane %v4796, 3
        %v5098 = vrot.slane %v4802, 3
        %v5099 = vsel %vm4997, %v5097, %v5098
        %v5100 = vrot.slane %v4797, 3
        %v5101 = vrot.slane %v4803, 3
        %v5102 = vsel %vm4997, %v5100, %v5101
        %v5103 = vrot.slane %v4798, 3
        %v5104 = vrot.slane %v4804, 3
        %v5105 = vsel %vm4997, %v5103, %v5104
        %v5106 = vrot.slane %v4805, 3
        %v5107 = vrot.slane %v4811, 3
        %v5108 = vsel %vm4997, %v5106, %v5107
        %v5109 = vrot.slane %v4806, 3
        %v5110 = vrot.slane %v4812, 3
        %v5111 = vsel %vm4997, %v5109, %v5110
        %v5112 = vrot.slane %v4807, 3
        %v5113 = vrot.slane %v4813, 3
        %v5114 = vsel %vm4997, %v5112, %v5113
        %v5115 = vrot.slane %v4808, 3
        %v5116 = vrot.slane %v4814, 3
        %v5117 = vsel %vm4997, %v5115, %v5116
        %v5118 = vrot.slane %v4809, 3
        %v5119 = vrot.slane %v4815, 3
        %v5120 = vsel %vm4997, %v5118, %v5119
        %v5121 = vrot.slane %v4810, 3
        %v5122 = vrot.slane %v4816, 3
        %v5123 = vsel %vm4997, %v5121, %v5122
        %v5124 = vrot.slane %v4817, 3
        %v5125 = vrot.slane %v4823, 3
        %v5126 = vsel %vm4997, %v5124, %v5125
        %v5127 = vrot.slane %v4818, 3
        %v5128 = vrot.slane %v4824, 3
        %v5129 = vsel %vm4997, %v5127, %v5128
        %v5130 = vrot.slane %v4819, 3
        %v5131 = vrot.slane %v4825, 3
        %v5132 = vsel %vm4997, %v5130, %v5131
        %v5133 = vrot.slane %v4820, 3
        %v5134 = vrot.slane %v4826, 3
        %v5135 = vsel %vm4997, %v5133, %v5134
        %v5136 = vrot.slane %v4821, 3
        %v5137 = vrot.slane %v4827, 3
        %v5138 = vsel %vm4997, %v5136, %v5137
        %v5139 = vrot.slane %v4822, 3
        %v5140 = vrot.slane %v4828, 3
        %v5141 = vsel %vm4997, %v5139, %v5140
        %v5142 = vrot.slane %v4829, 3
        %v5143 = vrot.slane %v4835, 3
        %v5144 = vsel %vm4997, %v5142, %v5143
        %v5145 = vrot.slane %v4830, 3
        %v5146 = vrot.slane %v4836, 3
        %v5147 = vsel %vm4997, %v5145, %v5146
        %v5148 = vrot.slane %v4831, 3
        %v5149 = vrot.slane %v4837, 3
        %v5150 = vsel %vm4997, %v5148, %v5149
        %v5151 = vrot.slane %v4832, 3
        %v5152 = vrot.slane %v4838, 3
        %v5153 = vsel %vm4997, %v5151, %v5152
        %v5154 = vrot.slane %v4833, 3
        %v5155 = vrot.slane %v4839, 3
        %v5156 = vsel %vm4997, %v5154, %v5155
        %v5157 = vrot.slane %v4834, 3
        %v5158 = vrot.slane %v4840, 3
        %v5159 = vsel %vm4997, %v5157, %v5158
        %v5160 = vrot.slane %v4841, 3
        %v5161 = vrot.slane %v4847, 3
        %v5162 = vsel %vm4997, %v5160, %v5161
        %v5163 = vrot.slane %v4842, 3
        %v5164 = vrot.slane %v4848, 3
        %v5165 = vsel %vm4997, %v5163, %v5164
        %v5166 = vrot.slane %v4843, 3
        %v5167 = vrot.slane %v4849, 3
        %v5168 = vsel %vm4997, %v5166, %v5167
        %v5169 = vrot.slane %v4844, 3
        %v5170 = vrot.slane %v4850, 3
        %v5171 = vsel %vm4997, %v5169, %v5170
        %v5172 = vrot.slane %v4845, 3
        %v5173 = vrot.slane %v4851, 3
        %v5174 = vsel %vm4997, %v5172, %v5173
        %v5175 = vrot.slane %v4846, 3
        %v5176 = vrot.slane %v4852, 3
        %v5177 = vsel %vm4997, %v5175, %v5176
        %v5178 = vrot.slane %v4853, 3
        %v5179 = vrot.slane %v4859, 3
        %v5180 = vsel %vm4997, %v5178, %v5179
        %v5181 = vrot.slane %v4854, 3
        %v5182 = vrot.slane %v4860, 3
        %v5183 = vsel %vm4997, %v5181, %v5182
        %v5184 = vrot.slane %v4855, 3
        %v5185 = vrot.slane %v4861, 3
        %v5186 = vsel %vm4997, %v5184, %v5185
        %v5187 = vrot.slane %v4856, 3
        %v5188 = vrot.slane %v4862, 3
        %v5189 = vsel %vm4997, %v5187, %v5188
        %v5190 = vrot.slane %v4857, 3
        %v5191 = vrot.slane %v4863, 3
        %v5192 = vsel %vm4997, %v5190, %v5191
        %v5193 = vrot.slane %v4858, 3
        %v5194 = vrot.slane %v4864, 3
        %v5195 = vsel %vm4997, %v5193, %v5194
        %5262 = vst [vmem:[#allocation3] sm:$0x7f] %v5000
        %5263 = vst [vmem:[#allocation3 + $0x8] sm:$0x7f] %v5003
        %5264 = vst [vmem:[#allocation3 + $0x10] sm:$0x7f] %v5006
        %5265 = vst [vmem:[#allocation3 + $0x18] sm:$0x7f] %v5009
        %5266 = vst [vmem:[#allocation3 + $0x20] sm:$0x7f] %v5012
        %5267 = vst [vmem:[#allocation3 + $0x28] sm:$0x7f] %v5015
        %5268 = vst [vmem:[#allocation3 + $0x30] sm:$0x7f] %v5018
        %5269 = vst [vmem:[#allocation3 + $0x38] sm:$0x7f] %v5021
        %5270 = vst [vmem:[#allocation3 + $0x40] sm:$0x7f] %v5024
        %5271 = vst [vmem:[#allocation3 + $0x48] sm:$0x7f] %v5027
        %5272 = vst [vmem:[#allocation3 + $0x50] sm:$0x7f] %v5030
        %5273 = vst [vmem:[#allocation3 + $0x58] sm:$0x7f] %v5033
        %5274 = vst [vmem:[#allocation3 + $0x60] sm:$0x7f] %v5036
        %5275 = vst [vmem:[#allocation3 + $0x68] sm:$0x7f] %v5039
        %5276 = vst [vmem:[#allocation3 + $0x70] sm:$0x7f] %v5042
        %5277 = vst [vmem:[#allocation3 + $0x78] sm:$0x7f] %v5045
        %5278 = vst [vmem:[#allocation3 + $0x80] sm:$0x7f] %v5048
        %5279 = vst [vmem:[#allocation3 + $0x88] sm:$0x7f] %v5051
        %5280 = vst [vmem:[#allocation3 + $0x90] sm:$0x7f] %v5054
        %5281 = vst [vmem:[#allocation3 + $0x98] sm:$0x7f] %v5057
        %5282 = vst [vmem:[#allocation3 + $0xa0] sm:$0x7f] %v5060
        %5283 = vst [vmem:[#allocation3 + $0xa8] sm:$0x7f] %v5063
        %5284 = vst [vmem:[#allocation3 + $0xb0] sm:$0x7f] %v5066
        %5285 = vst [vmem:[#allocation3 + $0xb8] sm:$0x7f] %v5069
        %5286 = vst [vmem:[#allocation3 + $0xc0] sm:$0x7f] %v5072
        %5287 = vst [vmem:[#allocation3 + $0xc8] sm:$0x7f] %v5075
        %5288 = vst [vmem:[#allocation3 + $0xd0] sm:$0x7f] %v5078
        %5289 = vst [vmem:[#allocation3 + $0xd8] sm:$0x7f] %v5081
        %5290 = vst [vmem:[#allocation3 + $0xe0] sm:$0x7f] %v5084
        %5291 = vst [vmem:[#allocation3 + $0xe8] sm:$0x7f] %v5087
        %5292 = vst [vmem:[#allocation3 + $0xf0] sm:$0x7f] %v5090
        %5293 = vst [vmem:[#allocation3 + $0xf8] sm:$0x7f] %v5093
        %5294 = vst [vmem:[#allocation3 + $0x100] sm:$0x7f] %v5096
        %5295 = vst [vmem:[#allocation3 + $0x108] sm:$0x7f] %v5099
        %5296 = vst [vmem:[#allocation3 + $0x110] sm:$0x7f] %v5102
        %5297 = vst [vmem:[#allocation3 + $0x118] sm:$0x7f] %v5105
        %5298 = vst [vmem:[#allocation3 + $0x120] sm:$0x7f] %v5108
        %5299 = vst [vmem:[#allocation3 + $0x128] sm:$0x7f] %v5111
        %5300 = vst [vmem:[#allocation3 + $0x130] sm:$0x7f] %v5114
        %5301 = vst [vmem:[#allocation3 + $0x138] sm:$0x7f] %v5117
        %5302 = vst [vmem:[#allocation3 + $0x140] sm:$0x7f] %v5120
        %5303 = vst [vmem:[#allocation3 + $0x148] sm:$0x7f] %v5123
        %5304 = vst [vmem:[#allocation3 + $0x150] sm:$0x7f] %v5126
        %5305 = vst [vmem:[#allocation3 + $0x158] sm:$0x7f] %v5129
        %5306 = vst [vmem:[#allocation3 + $0x160] sm:$0x7f] %v5132
        %5307 = vst [vmem:[#allocation3 + $0x168] sm:$0x7f] %v5135
        %5308 = vst [vmem:[#allocation3 + $0x170] sm:$0x7f] %v5138
        %5309 = vst [vmem:[#allocation3 + $0x178] sm:$0x7f] %v5141
        %5310 = vst [vmem:[#allocation3 + $0x180] sm:$0x7f] %v5144
        %5311 = vst [vmem:[#allocation3 + $0x188] sm:$0x7f] %v5147
        %5312 = vst [vmem:[#allocation3 + $0x190] sm:$0x7f] %v5150
        %5313 = vst [vmem:[#allocation3 + $0x198] sm:$0x7f] %v5153
        %5314 = vst [vmem:[#allocation3 + $0x1a0] sm:$0x7f] %v5156
        %5315 = vst [vmem:[#allocation3 + $0x1a8] sm:$0x7f] %v5159
        %5316 = vst [vmem:[#allocation3 + $0x1b0] sm:$0x7f] %v5162
        %5317 = vst [vmem:[#allocation3 + $0x1b8] sm:$0x7f] %v5165
        %5318 = vst [vmem:[#allocation3 + $0x1c0] sm:$0x7f] %v5168
        %5319 = vst [vmem:[#allocation3 + $0x1c8] sm:$0x7f] %v5171
        %5320 = vst [vmem:[#allocation3 + $0x1d0] sm:$0x7f] %v5174
        %5321 = vst [vmem:[#allocation3 + $0x1d8] sm:$0x7f] %v5177
        %5322 = vst [vmem:[#allocation3 + $0x1e0] sm:$0x7f] %v5180
        %5323 = vst [vmem:[#allocation3 + $0x1e8] sm:$0x7f] %v5183
        %5324 = vst [vmem:[#allocation3 + $0x1f0] sm:$0x7f] %v5186
        %5325 = vst [vmem:[#allocation3 + $0x1f8] sm:$0x7f] %v5189
        %5326 = vst [vmem:[#allocation3 + $0x200] sm:$0x7f] %v5192
        %5327 = vst [vmem:[#allocation3 + $0x208] sm:$0x7f] %v5195
        %s5328 = scalar_lea.vmem %s514, 18 [#allocation9]
        %v5329 = vld [vmem:[%s5328] sm:$0x3f]
        %v5330 = vld [vmem:[#allocation3] sm:$0x7f]
        %v5331 = vld [vmem:[#allocation3 + $0x8] sm:$0x7f]
        %v5332 = vld [vmem:[#allocation3 + $0x10] sm:$0x7f]
        %v5333 = vld [vmem:[#allocation3 + $0x18] sm:$0x7f]
        %v5334 = vld [vmem:[#allocation3 + $0x20] sm:$0x7f]
        %v5335 = vld [vmem:[#allocation3 + $0x28] sm:$0x7f]
        %v5336 = vld [vmem:[#allocation3 + $0x30] sm:$0x7f]
        %v5337 = vld [vmem:[#allocation3 + $0x38] sm:$0x7f]
        %v5338 = vld [vmem:[#allocation3 + $0x40] sm:$0x7f]
        %v5339 = vld [vmem:[#allocation3 + $0x48] sm:$0x7f]
        %v5340 = vld [vmem:[#allocation3 + $0x50] sm:$0x7f]
        %v5341 = vld [vmem:[#allocation3 + $0x58] sm:$0x7f]
        %v5342 = vld [vmem:[#allocation3 + $0x60] sm:$0x7f]
        %v5343 = vld [vmem:[#allocation3 + $0x68] sm:$0x7f]
        %v5344 = vld [vmem:[#allocation3 + $0x70] sm:$0x7f]
        %v5345 = vld [vmem:[#allocation3 + $0x78] sm:$0x7f]
        %v5346 = vld [vmem:[#allocation3 + $0x80] sm:$0x7f]
        %v5347 = vld [vmem:[#allocation3 + $0x88] sm:$0x7f]
        %v5348 = vld [vmem:[#allocation3 + $0x90] sm:$0x7f]
        %v5349 = vld [vmem:[#allocation3 + $0x98] sm:$0x7f]
        %v5350 = vld [vmem:[#allocation3 + $0xa0] sm:$0x7f]
        %v5351 = vld [vmem:[#allocation3 + $0xa8] sm:$0x7f]
        %v5352 = vld [vmem:[#allocation3 + $0xb0] sm:$0x7f]
        %v5353 = vld [vmem:[#allocation3 + $0xb8] sm:$0x7f]
        %v5354 = vld [vmem:[#allocation3 + $0xc0] sm:$0x7f]
        %v5355 = vld [vmem:[#allocation3 + $0xc8] sm:$0x7f]
        %v5356 = vld [vmem:[#allocation3 + $0xd0] sm:$0x7f]
        %v5357 = vld [vmem:[#allocation3 + $0xd8] sm:$0x7f]
        %v5358 = vld [vmem:[#allocation3 + $0xe0] sm:$0x7f]
        %v5359 = vld [vmem:[#allocation3 + $0xe8] sm:$0x7f]
        %v5360 = vld [vmem:[#allocation3 + $0xf0] sm:$0x7f]
        %v5361 = vld [vmem:[#allocation3 + $0xf8] sm:$0x7f]
        %v5362 = vld [vmem:[#allocation3 + $0x100] sm:$0x7f]
        %v5363 = vld [vmem:[#allocation3 + $0x108] sm:$0x7f]
        %v5364 = vld [vmem:[#allocation3 + $0x110] sm:$0x7f]
        %v5365 = vld [vmem:[#allocation3 + $0x118] sm:$0x7f]
        %v5366 = vld [vmem:[#allocation3 + $0x120] sm:$0x7f]
        %v5367 = vld [vmem:[#allocation3 + $0x128] sm:$0x7f]
        %v5368 = vld [vmem:[#allocation3 + $0x130] sm:$0x7f]
        %v5369 = vld [vmem:[#allocation3 + $0x138] sm:$0x7f]
        %v5370 = vld [vmem:[#allocation3 + $0x140] sm:$0x7f]
        %v5371 = vld [vmem:[#allocation3 + $0x148] sm:$0x7f]
        %v5373 = vperm.slane %v5329, 0
        %v5374 = vperm.slane %v5329, 1
        %v5375 = vperm.slane %v5329, 2
        %v5376 = vperm.slane %v5329, 3
        %v5377 = vperm.slane %v5329, 4
        %v5378 = vperm.slane %v5329, 5
        %v5385 = vmul.f32 %v5330, %v5373
        %v5386 = vmul.f32 %v5331, %v5374
        %v5387 = vmul.f32 %v5332, %v5375
        %v5388 = vmul.f32 %v5333, %v5376
        %v5389 = vmul.f32 %v5334, %v5377
        %v5390 = vmul.f32 %v5335, %v5378
        %v5391 = vmul.f32 %v5336, %v5373
        %v5392 = vmul.f32 %v5337, %v5374
        %v5393 = vmul.f32 %v5338, %v5375
        %v5394 = vmul.f32 %v5339, %v5376
        %v5395 = vmul.f32 %v5340, %v5377
        %v5396 = vmul.f32 %v5341, %v5378
        %v5397 = vmul.f32 %v5342, %v5373
        %v5398 = vmul.f32 %v5343, %v5374
        %v5399 = vmul.f32 %v5344, %v5375
        %v5400 = vmul.f32 %v5345, %v5376
        %v5401 = vmul.f32 %v5346, %v5377
        %v5402 = vmul.f32 %v5347, %v5378
        %v5403 = vmul.f32 %v5348, %v5373
        %v5404 = vmul.f32 %v5349, %v5374
        %v5405 = vmul.f32 %v5350, %v5375
        %v5406 = vmul.f32 %v5351, %v5376
        %v5407 = vmul.f32 %v5352, %v5377
        %v5408 = vmul.f32 %v5353, %v5378
        %v5409 = vmul.f32 %v5354, %v5373
        %v5410 = vmul.f32 %v5355, %v5374
        %v5411 = vmul.f32 %v5356, %v5375
        %v5412 = vmul.f32 %v5357, %v5376
        %v5413 = vmul.f32 %v5358, %v5377
        %v5414 = vmul.f32 %v5359, %v5378
        %v5415 = vmul.f32 %v5360, %v5373
        %v5416 = vmul.f32 %v5361, %v5374
        %v5417 = vmul.f32 %v5362, %v5375
        %v5418 = vmul.f32 %v5363, %v5376
        %v5419 = vmul.f32 %v5364, %v5377
        %v5420 = vmul.f32 %v5365, %v5378
        %v5421 = vmul.f32 %v5366, %v5373
        %v5422 = vmul.f32 %v5367, %v5374
        %v5423 = vmul.f32 %v5368, %v5375
        %v5424 = vmul.f32 %v5369, %v5376
        %v5425 = vmul.f32 %v5370, %v5377
        %v5426 = vmul.f32 %v5371, %v5378
        %v5427 = vadd.f32 %v4691, %v5385
        %v5428 = vadd.f32 %v4692, %v5386
        %v5429 = vadd.f32 %v4693, %v5387
        %v5430 = vadd.f32 %v4694, %v5388
        %v5431 = vadd.f32 %v4695, %v5389
        %v5432 = vadd.f32 %v4696, %v5390
        %v5433 = vadd.f32 %v4697, %v5391
        %v5434 = vadd.f32 %v4698, %v5392
        %v5435 = vadd.f32 %v4699, %v5393
        %v5436 = vadd.f32 %v4700, %v5394
        %v5437 = vadd.f32 %v4701, %v5395
        %v5438 = vadd.f32 %v4702, %v5396
        %v5439 = vadd.f32 %v4703, %v5397
        %v5440 = vadd.f32 %v4704, %v5398
        %v5441 = vadd.f32 %v4705, %v5399
        %v5442 = vadd.f32 %v4706, %v5400
        %v5443 = vadd.f32 %v4707, %v5401
        %v5444 = vadd.f32 %v4708, %v5402
        %v5445 = vadd.f32 %v4709, %v5403
        %v5446 = vadd.f32 %v4710, %v5404
        %v5447 = vadd.f32 %v4711, %v5405
        %v5448 = vadd.f32 %v4712, %v5406
        %v5449 = vadd.f32 %v4713, %v5407
        %v5450 = vadd.f32 %v4714, %v5408
        %v5451 = vadd.f32 %v4715, %v5409
        %v5452 = vadd.f32 %v4716, %v5410
        %v5453 = vadd.f32 %v4717, %v5411
        %v5454 = vadd.f32 %v4718, %v5412
        %v5455 = vadd.f32 %v4719, %v5413
        %v5456 = vadd.f32 %v4720, %v5414
        %v5457 = vadd.f32 %v4721, %v5415
        %v5458 = vadd.f32 %v4722, %v5416
        %v5459 = vadd.f32 %v4723, %v5417
        %v5460 = vadd.f32 %v4724, %v5418
        %v5461 = vadd.f32 %v4725, %v5419
        %v5462 = vadd.f32 %v4726, %v5420
        %v5463 = vadd.f32 %v4727, %v5421
        %v5464 = vadd.f32 %v4728, %v5422
        %v5465 = vadd.f32 %v4729, %v5423
        %v5466 = vadd.f32 %v4730, %v5424
        %v5467 = vadd.f32 %v4731, %v5425
        %v5468 = vadd.f32 %v4732, %v5426
        %s5469 = scalar_lea.vmem %s514, 48 [#allocation9]
        %v5470 = vld [vmem:[%s5469] sm:$0x3f]
        %v5471 = vld [vmem:[%s1832] sm:$0x7f]
        %v5472 = vld [vmem:[%s1832 + $0x8] sm:$0x7f]
        %v5473 = vld [vmem:[%s1832 + $0x10] sm:$0x7f]
        %v5474 = vld [vmem:[%s1832 + $0x18] sm:$0x7f]
        %v5475 = vld [vmem:[%s1832 + $0x20] sm:$0x7f]
        %v5476 = vld [vmem:[%s1832 + $0x28] sm:$0x7f]
        %v5477 = vld [vmem:[%s1832 + $0x30] sm:$0x7f]
        %v5478 = vld [vmem:[%s1832 + $0x38] sm:$0x7f]
        %v5479 = vld [vmem:[%s1832 + $0x40] sm:$0x7f]
        %v5480 = vld [vmem:[%s1832 + $0x48] sm:$0x7f]
        %v5481 = vld [vmem:[%s1832 + $0x50] sm:$0x7f]
        %v5482 = vld [vmem:[%s1832 + $0x58] sm:$0x7f]
        %v5483 = vld [vmem:[%s1832 + $0x60] sm:$0x7f]
        %v5484 = vld [vmem:[%s1832 + $0x68] sm:$0x7f]
        %v5485 = vld [vmem:[%s1832 + $0x70] sm:$0x7f]
        %v5486 = vld [vmem:[%s1832 + $0x78] sm:$0x7f]
        %v5487 = vld [vmem:[%s1832 + $0x80] sm:$0x7f]
        %v5488 = vld [vmem:[%s1832 + $0x88] sm:$0x7f]
        %v5489 = vld [vmem:[%s1832 + $0x90] sm:$0x7f]
        %v5490 = vld [vmem:[%s1832 + $0x98] sm:$0x7f]
        %v5491 = vld [vmem:[%s1832 + $0xa0] sm:$0x7f]
        %v5492 = vld [vmem:[%s1832 + $0xa8] sm:$0x7f]
        %v5493 = vld [vmem:[%s1832 + $0xb0] sm:$0x7f]
        %v5494 = vld [vmem:[%s1832 + $0xb8] sm:$0x7f]
        %v5495 = vld [vmem:[%s1832 + $0xc0] sm:$0x7f]
        %v5496 = vld [vmem:[%s1832 + $0xc8] sm:$0x7f]
        %v5497 = vld [vmem:[%s1832 + $0xd0] sm:$0x7f]
        %v5498 = vld [vmem:[%s1832 + $0xd8] sm:$0x7f]
        %v5499 = vld [vmem:[%s1832 + $0xe0] sm:$0x7f]
        %v5500 = vld [vmem:[%s1832 + $0xe8] sm:$0x7f]
        %v5501 = vld [vmem:[%s1832 + $0xf0] sm:$0x7f]
        %v5502 = vld [vmem:[%s1832 + $0xf8] sm:$0x7f]
        %v5503 = vld [vmem:[%s1832 + $0x100] sm:$0x7f]
        %v5504 = vld [vmem:[%s1832 + $0x108] sm:$0x7f]
        %v5505 = vld [vmem:[%s1832 + $0x110] sm:$0x7f]
        %v5506 = vld [vmem:[%s1832 + $0x118] sm:$0x7f]
        %v5507 = vld [vmem:[%s1832 + $0x120] sm:$0x7f]
        %v5508 = vld [vmem:[%s1832 + $0x128] sm:$0x7f]
        %v5509 = vld [vmem:[%s1832 + $0x130] sm:$0x7f]
        %v5510 = vld [vmem:[%s1832 + $0x138] sm:$0x7f]
        %v5511 = vld [vmem:[%s1832 + $0x140] sm:$0x7f]
        %v5512 = vld [vmem:[%s1832 + $0x148] sm:$0x7f]
        %v5514 = vperm.slane %v5470, 0
        %v5515 = vperm.slane %v5470, 1
        %v5516 = vperm.slane %v5470, 2
        %v5517 = vperm.slane %v5470, 3
        %v5518 = vperm.slane %v5470, 4
        %v5519 = vperm.slane %v5470, 5
        %v5526 = vmul.f32 %v5471, %v5514
        %v5527 = vmul.f32 %v5472, %v5515
        %v5528 = vmul.f32 %v5473, %v5516
        %v5529 = vmul.f32 %v5474, %v5517
        %v5530 = vmul.f32 %v5475, %v5518
        %v5531 = vmul.f32 %v5476, %v5519
        %v5532 = vmul.f32 %v5477, %v5514
        %v5533 = vmul.f32 %v5478, %v5515
        %v5534 = vmul.f32 %v5479, %v5516
        %v5535 = vmul.f32 %v5480, %v5517
        %v5536 = vmul.f32 %v5481, %v5518
        %v5537 = vmul.f32 %v5482, %v5519
        %v5538 = vmul.f32 %v5483, %v5514
        %v5539 = vmul.f32 %v5484, %v5515
        %v5540 = vmul.f32 %v5485, %v5516
        %v5541 = vmul.f32 %v5486, %v5517
        %v5542 = vmul.f32 %v5487, %v5518
        %v5543 = vmul.f32 %v5488, %v5519
        %v5544 = vmul.f32 %v5489, %v5514
        %v5545 = vmul.f32 %v5490, %v5515
        %v5546 = vmul.f32 %v5491, %v5516
        %v5547 = vmul.f32 %v5492, %v5517
        %v5548 = vmul.f32 %v5493, %v5518
        %v5549 = vmul.f32 %v5494, %v5519
        %v5550 = vmul.f32 %v5495, %v5514
        %v5551 = vmul.f32 %v5496, %v5515
        %v5552 = vmul.f32 %v5497, %v5516
        %v5553 = vmul.f32 %v5498, %v5517
        %v5554 = vmul.f32 %v5499, %v5518
        %v5555 = vmul.f32 %v5500, %v5519
        %v5556 = vmul.f32 %v5501, %v5514
        %v5557 = vmul.f32 %v5502, %v5515
        %v5558 = vmul.f32 %v5503, %v5516
        %v5559 = vmul.f32 %v5504, %v5517
        %v5560 = vmul.f32 %v5505, %v5518
        %v5561 = vmul.f32 %v5506, %v5519
        %v5562 = vmul.f32 %v5507, %v5514
        %v5563 = vmul.f32 %v5508, %v5515
        %v5564 = vmul.f32 %v5509, %v5516
        %v5565 = vmul.f32 %v5510, %v5517
        %v5566 = vmul.f32 %v5511, %v5518
        %v5567 = vmul.f32 %v5512, %v5519
        %v5568 = vadd.f32 %v5427, %v5526
        %v5569 = vadd.f32 %v5428, %v5527
        %v5570 = vadd.f32 %v5429, %v5528
        %v5571 = vadd.f32 %v5430, %v5529
        %v5572 = vadd.f32 %v5431, %v5530
        %v5573 = vadd.f32 %v5432, %v5531
        %v5574 = vadd.f32 %v5433, %v5532
        %v5575 = vadd.f32 %v5434, %v5533
        %v5576 = vadd.f32 %v5435, %v5534
        %v5577 = vadd.f32 %v5436, %v5535
        %v5578 = vadd.f32 %v5437, %v5536
        %v5579 = vadd.f32 %v5438, %v5537
        %v5580 = vadd.f32 %v5439, %v5538
        %v5581 = vadd.f32 %v5440, %v5539
        %v5582 = vadd.f32 %v5441, %v5540
        %v5583 = vadd.f32 %v5442, %v5541
        %v5584 = vadd.f32 %v5443, %v5542
        %v5585 = vadd.f32 %v5444, %v5543
        %v5586 = vadd.f32 %v5445, %v5544
        %v5587 = vadd.f32 %v5446, %v5545
        %v5588 = vadd.f32 %v5447, %v5546
        %v5589 = vadd.f32 %v5448, %v5547
        %v5590 = vadd.f32 %v5449, %v5548
        %v5591 = vadd.f32 %v5450, %v5549
        %v5592 = vadd.f32 %v5451, %v5550
        %v5593 = vadd.f32 %v5452, %v5551
        %v5594 = vadd.f32 %v5453, %v5552
        %v5595 = vadd.f32 %v5454, %v5553
        %v5596 = vadd.f32 %v5455, %v5554
        %v5597 = vadd.f32 %v5456, %v5555
        %v5598 = vadd.f32 %v5457, %v5556
        %v5599 = vadd.f32 %v5458, %v5557
        %v5600 = vadd.f32 %v5459, %v5558
        %v5601 = vadd.f32 %v5460, %v5559
        %v5602 = vadd.f32 %v5461, %v5560
        %v5603 = vadd.f32 %v5462, %v5561
        %v5604 = vadd.f32 %v5463, %v5562
        %v5605 = vadd.f32 %v5464, %v5563
        %v5606 = vadd.f32 %v5465, %v5564
        %v5607 = vadd.f32 %v5466, %v5565
        %v5608 = vadd.f32 %v5467, %v5566
        %v5609 = vadd.f32 %v5468, %v5567
        %s5610 = scalar_lea.vmem %s514, 78 [#allocation9]
        %v5611 = vld [vmem:[%s5610] sm:$0x3f]
        %v5612 = vld [vmem:[%s1974] sm:$0x7f]
        %v5613 = vld [vmem:[%s1974 + $0x8] sm:$0x7f]
        %v5614 = vld [vmem:[%s1974 + $0x10] sm:$0x7f]
        %v5615 = vld [vmem:[%s1974 + $0x18] sm:$0x7f]
        %v5616 = vld [vmem:[%s1974 + $0x20] sm:$0x7f]
        %v5617 = vld [vmem:[%s1974 + $0x28] sm:$0x7f]
        %v5618 = vld [vmem:[%s1974 + $0x30] sm:$0x7f]
        %v5619 = vld [vmem:[%s1974 + $0x38] sm:$0x7f]
        %v5620 = vld [vmem:[%s1974 + $0x40] sm:$0x7f]
        %v5621 = vld [vmem:[%s1974 + $0x48] sm:$0x7f]
        %v5622 = vld [vmem:[%s1974 + $0x50] sm:$0x7f]
        %v5623 = vld [vmem:[%s1974 + $0x58] sm:$0x7f]
        %v5624 = vld [vmem:[%s1974 + $0x60] sm:$0x7f]
        %v5625 = vld [vmem:[%s1974 + $0x68] sm:$0x7f]
        %v5626 = vld [vmem:[%s1974 + $0x70] sm:$0x7f]
        %v5627 = vld [vmem:[%s1974 + $0x78] sm:$0x7f]
        %v5628 = vld [vmem:[%s1974 + $0x80] sm:$0x7f]
        %v5629 = vld [vmem:[%s1974 + $0x88] sm:$0x7f]
        %v5630 = vld [vmem:[%s1974 + $0x90] sm:$0x7f]
        %v5631 = vld [vmem:[%s1974 + $0x98] sm:$0x7f]
        %v5632 = vld [vmem:[%s1974 + $0xa0] sm:$0x7f]
        %v5633 = vld [vmem:[%s1974 + $0xa8] sm:$0x7f]
        %v5634 = vld [vmem:[%s1974 + $0xb0] sm:$0x7f]
        %v5635 = vld [vmem:[%s1974 + $0xb8] sm:$0x7f]
        %v5636 = vld [vmem:[%s1974 + $0xc0] sm:$0x7f]
        %v5637 = vld [vmem:[%s1974 + $0xc8] sm:$0x7f]
        %v5638 = vld [vmem:[%s1974 + $0xd0] sm:$0x7f]
        %v5639 = vld [vmem:[%s1974 + $0xd8] sm:$0x7f]
        %v5640 = vld [vmem:[%s1974 + $0xe0] sm:$0x7f]
        %v5641 = vld [vmem:[%s1974 + $0xe8] sm:$0x7f]
        %v5642 = vld [vmem:[%s1974 + $0xf0] sm:$0x7f]
        %v5643 = vld [vmem:[%s1974 + $0xf8] sm:$0x7f]
        %v5644 = vld [vmem:[%s1974 + $0x100] sm:$0x7f]
        %v5645 = vld [vmem:[%s1974 + $0x108] sm:$0x7f]
        %v5646 = vld [vmem:[%s1974 + $0x110] sm:$0x7f]
        %v5647 = vld [vmem:[%s1974 + $0x118] sm:$0x7f]
        %v5648 = vld [vmem:[%s1974 + $0x120] sm:$0x7f]
        %v5649 = vld [vmem:[%s1974 + $0x128] sm:$0x7f]
        %v5650 = vld [vmem:[%s1974 + $0x130] sm:$0x7f]
        %v5651 = vld [vmem:[%s1974 + $0x138] sm:$0x7f]
        %v5652 = vld [vmem:[%s1974 + $0x140] sm:$0x7f]
        %v5653 = vld [vmem:[%s1974 + $0x148] sm:$0x7f]
        %v5655 = vperm.slane %v5611, 0
        %v5656 = vperm.slane %v5611, 1
        %v5657 = vperm.slane %v5611, 2
        %v5658 = vperm.slane %v5611, 3
        %v5659 = vperm.slane %v5611, 4
        %v5660 = vperm.slane %v5611, 5
        %v5667 = vmul.f32 %v5612, %v5655
        %v5668 = vmul.f32 %v5613, %v5656
        %v5669 = vmul.f32 %v5614, %v5657
        %v5670 = vmul.f32 %v5615, %v5658
        %v5671 = vmul.f32 %v5616, %v5659
        %v5672 = vmul.f32 %v5617, %v5660
        %v5673 = vmul.f32 %v5618, %v5655
        %v5674 = vmul.f32 %v5619, %v5656
        %v5675 = vmul.f32 %v5620, %v5657
        %v5676 = vmul.f32 %v5621, %v5658
        %v5677 = vmul.f32 %v5622, %v5659
        %v5678 = vmul.f32 %v5623, %v5660
        %v5679 = vmul.f32 %v5624, %v5655
        %v5680 = vmul.f32 %v5625, %v5656
        %v5681 = vmul.f32 %v5626, %v5657
        %v5682 = vmul.f32 %v5627, %v5658
        %v5683 = vmul.f32 %v5628, %v5659
        %v5684 = vmul.f32 %v5629, %v5660
        %v5685 = vmul.f32 %v5630, %v5655
        %v5686 = vmul.f32 %v5631, %v5656
        %v5687 = vmul.f32 %v5632, %v5657
        %v5688 = vmul.f32 %v5633, %v5658
        %v5689 = vmul.f32 %v5634, %v5659
        %v5690 = vmul.f32 %v5635, %v5660
        %v5691 = vmul.f32 %v5636, %v5655
        %v5692 = vmul.f32 %v5637, %v5656
        %v5693 = vmul.f32 %v5638, %v5657
        %v5694 = vmul.f32 %v5639, %v5658
        %v5695 = vmul.f32 %v5640, %v5659
        %v5696 = vmul.f32 %v5641, %v5660
        %v5697 = vmul.f32 %v5642, %v5655
        %v5698 = vmul.f32 %v5643, %v5656
        %v5699 = vmul.f32 %v5644, %v5657
        %v5700 = vmul.f32 %v5645, %v5658
        %v5701 = vmul.f32 %v5646, %v5659
        %v5702 = vmul.f32 %v5647, %v5660
        %v5703 = vmul.f32 %v5648, %v5655
        %v5704 = vmul.f32 %v5649, %v5656
        %v5705 = vmul.f32 %v5650, %v5657
        %v5706 = vmul.f32 %v5651, %v5658
        %v5707 = vmul.f32 %v5652, %v5659
        %v5708 = vmul.f32 %v5653, %v5660
        %v5709 = vadd.f32 %v5568, %v5667
        %v5710 = vadd.f32 %v5569, %v5668
        %v5711 = vadd.f32 %v5570, %v5669
        %v5712 = vadd.f32 %v5571, %v5670
        %v5713 = vadd.f32 %v5572, %v5671
        %v5714 = vadd.f32 %v5573, %v5672
        %v5715 = vadd.f32 %v5574, %v5673
        %v5716 = vadd.f32 %v5575, %v5674
        %v5717 = vadd.f32 %v5576, %v5675
        %v5718 = vadd.f32 %v5577, %v5676
        %v5719 = vadd.f32 %v5578, %v5677
        %v5720 = vadd.f32 %v5579, %v5678
        %v5721 = vadd.f32 %v5580, %v5679
        %v5722 = vadd.f32 %v5581, %v5680
        %v5723 = vadd.f32 %v5582, %v5681
        %v5724 = vadd.f32 %v5583, %v5682
        %v5725 = vadd.f32 %v5584, %v5683
        %v5726 = vadd.f32 %v5585, %v5684
        %v5727 = vadd.f32 %v5586, %v5685
        %v5728 = vadd.f32 %v5587, %v5686
        %v5729 = vadd.f32 %v5588, %v5687
        %v5730 = vadd.f32 %v5589, %v5688
        %v5731 = vadd.f32 %v5590, %v5689
        %v5732 = vadd.f32 %v5591, %v5690
        %v5733 = vadd.f32 %v5592, %v5691
        %v5734 = vadd.f32 %v5593, %v5692
        %v5735 = vadd.f32 %v5594, %v5693
        %v5736 = vadd.f32 %v5595, %v5694
        %v5737 = vadd.f32 %v5596, %v5695
        %v5738 = vadd.f32 %v5597, %v5696
        %v5739 = vadd.f32 %v5598, %v5697
        %v5740 = vadd.f32 %v5599, %v5698
        %v5741 = vadd.f32 %v5600, %v5699
        %v5742 = vadd.f32 %v5601, %v5700
        %v5743 = vadd.f32 %v5602, %v5701
        %v5744 = vadd.f32 %v5603, %v5702
        %v5745 = vadd.f32 %v5604, %v5703
        %v5746 = vadd.f32 %v5605, %v5704
        %v5747 = vadd.f32 %v5606, %v5705
        %v5748 = vadd.f32 %v5607, %v5706
        %v5749 = vadd.f32 %v5608, %v5707
        %v5750 = vadd.f32 %v5609, %v5708
        %s5751 = scalar_lea.vmem %s514, 108 [#allocation9]
        %v5752 = vld [vmem:[%s5751] sm:$0x3f]
        %v5753 = vld [vmem:[%s2116] sm:$0x7f]
        %v5754 = vld [vmem:[%s2116 + $0x8] sm:$0x7f]
        %v5755 = vld [vmem:[%s2116 + $0x10] sm:$0x7f]
        %v5756 = vld [vmem:[%s2116 + $0x18] sm:$0x7f]
        %v5757 = vld [vmem:[%s2116 + $0x20] sm:$0x7f]
        %v5758 = vld [vmem:[%s2116 + $0x28] sm:$0x7f]
        %v5759 = vld [vmem:[%s2116 + $0x30] sm:$0x7f]
        %v5760 = vld [vmem:[%s2116 + $0x38] sm:$0x7f]
        %v5761 = vld [vmem:[%s2116 + $0x40] sm:$0x7f]
        %v5762 = vld [vmem:[%s2116 + $0x48] sm:$0x7f]
        %v5763 = vld [vmem:[%s2116 + $0x50] sm:$0x7f]
        %v5764 = vld [vmem:[%s2116 + $0x58] sm:$0x7f]
        %v5765 = vld [vmem:[%s2116 + $0x60] sm:$0x7f]
        %v5766 = vld [vmem:[%s2116 + $0x68] sm:$0x7f]
        %v5767 = vld [vmem:[%s2116 + $0x70] sm:$0x7f]
        %v5768 = vld [vmem:[%s2116 + $0x78] sm:$0x7f]
        %v5769 = vld [vmem:[%s2116 + $0x80] sm:$0x7f]
        %v5770 = vld [vmem:[%s2116 + $0x88] sm:$0x7f]
        %v5771 = vld [vmem:[%s2116 + $0x90] sm:$0x7f]
        %v5772 = vld [vmem:[%s2116 + $0x98] sm:$0x7f]
        %v5773 = vld [vmem:[%s2116 + $0xa0] sm:$0x7f]
        %v5774 = vld [vmem:[%s2116 + $0xa8] sm:$0x7f]
        %v5775 = vld [vmem:[%s2116 + $0xb0] sm:$0x7f]
        %v5776 = vld [vmem:[%s2116 + $0xb8] sm:$0x7f]
        %v5777 = vld [vmem:[%s2116 + $0xc0] sm:$0x7f]
        %v5778 = vld [vmem:[%s2116 + $0xc8] sm:$0x7f]
        %v5779 = vld [vmem:[%s2116 + $0xd0] sm:$0x7f]
        %v5780 = vld [vmem:[%s2116 + $0xd8] sm:$0x7f]
        %v5781 = vld [vmem:[%s2116 + $0xe0] sm:$0x7f]
        %v5782 = vld [vmem:[%s2116 + $0xe8] sm:$0x7f]
        %v5783 = vld [vmem:[%s2116 + $0xf0] sm:$0x7f]
        %v5784 = vld [vmem:[%s2116 + $0xf8] sm:$0x7f]
        %v5785 = vld [vmem:[%s2116 + $0x100] sm:$0x7f]
        %v5786 = vld [vmem:[%s2116 + $0x108] sm:$0x7f]
        %v5787 = vld [vmem:[%s2116 + $0x110] sm:$0x7f]
        %v5788 = vld [vmem:[%s2116 + $0x118] sm:$0x7f]
        %v5789 = vld [vmem:[%s2116 + $0x120] sm:$0x7f]
        %v5790 = vld [vmem:[%s2116 + $0x128] sm:$0x7f]
        %v5791 = vld [vmem:[%s2116 + $0x130] sm:$0x7f]
        %v5792 = vld [vmem:[%s2116 + $0x138] sm:$0x7f]
        %v5793 = vld [vmem:[%s2116 + $0x140] sm:$0x7f]
        %v5794 = vld [vmem:[%s2116 + $0x148] sm:$0x7f]
        %v5796 = vperm.slane %v5752, 0
        %v5797 = vperm.slane %v5752, 1
        %v5798 = vperm.slane %v5752, 2
        %v5799 = vperm.slane %v5752, 3
        %v5800 = vperm.slane %v5752, 4
        %v5801 = vperm.slane %v5752, 5
        %v5808 = vmul.f32 %v5753, %v5796
        %v5809 = vmul.f32 %v5754, %v5797
        %v5810 = vmul.f32 %v5755, %v5798
        %v5811 = vmul.f32 %v5756, %v5799
        %v5812 = vmul.f32 %v5757, %v5800
        %v5813 = vmul.f32 %v5758, %v5801
        %v5814 = vmul.f32 %v5759, %v5796
        %v5815 = vmul.f32 %v5760, %v5797
        %v5816 = vmul.f32 %v5761, %v5798
        %v5817 = vmul.f32 %v5762, %v5799
        %v5818 = vmul.f32 %v5763, %v5800
        %v5819 = vmul.f32 %v5764, %v5801
        %v5820 = vmul.f32 %v5765, %v5796
        %v5821 = vmul.f32 %v5766, %v5797
        %v5822 = vmul.f32 %v5767, %v5798
        %v5823 = vmul.f32 %v5768, %v5799
        %v5824 = vmul.f32 %v5769, %v5800
        %v5825 = vmul.f32 %v5770, %v5801
        %v5826 = vmul.f32 %v5771, %v5796
        %v5827 = vmul.f32 %v5772, %v5797
        %v5828 = vmul.f32 %v5773, %v5798
        %v5829 = vmul.f32 %v5774, %v5799
        %v5830 = vmul.f32 %v5775, %v5800
        %v5831 = vmul.f32 %v5776, %v5801
        %v5832 = vmul.f32 %v5777, %v5796
        %v5833 = vmul.f32 %v5778, %v5797
        %v5834 = vmul.f32 %v5779, %v5798
        %v5835 = vmul.f32 %v5780, %v5799
        %v5836 = vmul.f32 %v5781, %v5800
        %v5837 = vmul.f32 %v5782, %v5801
        %v5838 = vmul.f32 %v5783, %v5796
        %v5839 = vmul.f32 %v5784, %v5797
        %v5840 = vmul.f32 %v5785, %v5798
        %v5841 = vmul.f32 %v5786, %v5799
        %v5842 = vmul.f32 %v5787, %v5800
        %v5843 = vmul.f32 %v5788, %v5801
        %v5844 = vmul.f32 %v5789, %v5796
        %v5845 = vmul.f32 %v5790, %v5797
        %v5846 = vmul.f32 %v5791, %v5798
        %v5847 = vmul.f32 %v5792, %v5799
        %v5848 = vmul.f32 %v5793, %v5800
        %v5849 = vmul.f32 %v5794, %v5801
        %v5850 = vadd.f32 %v5709, %v5808
        %v5851 = vadd.f32 %v5710, %v5809
        %v5852 = vadd.f32 %v5711, %v5810
        %v5853 = vadd.f32 %v5712, %v5811
        %v5854 = vadd.f32 %v5713, %v5812
        %v5855 = vadd.f32 %v5714, %v5813
        %v5856 = vadd.f32 %v5715, %v5814
        %v5857 = vadd.f32 %v5716, %v5815
        %v5858 = vadd.f32 %v5717, %v5816
        %v5859 = vadd.f32 %v5718, %v5817
        %v5860 = vadd.f32 %v5719, %v5818
        %v5861 = vadd.f32 %v5720, %v5819
        %v5862 = vadd.f32 %v5721, %v5820
        %v5863 = vadd.f32 %v5722, %v5821
        %v5864 = vadd.f32 %v5723, %v5822
        %v5865 = vadd.f32 %v5724, %v5823
        %v5866 = vadd.f32 %v5725, %v5824
        %v5867 = vadd.f32 %v5726, %v5825
        %v5868 = vadd.f32 %v5727, %v5826
        %v5869 = vadd.f32 %v5728, %v5827
        %v5870 = vadd.f32 %v5729, %v5828
        %v5871 = vadd.f32 %v5730, %v5829
        %v5872 = vadd.f32 %v5731, %v5830
        %v5873 = vadd.f32 %v5732, %v5831
        %v5874 = vadd.f32 %v5733, %v5832
        %v5875 = vadd.f32 %v5734, %v5833
        %v5876 = vadd.f32 %v5735, %v5834
        %v5877 = vadd.f32 %v5736, %v5835
        %v5878 = vadd.f32 %v5737, %v5836
        %v5879 = vadd.f32 %v5738, %v5837
        %v5880 = vadd.f32 %v5739, %v5838
        %v5881 = vadd.f32 %v5740, %v5839
        %v5882 = vadd.f32 %v5741, %v5840
        %v5883 = vadd.f32 %v5742, %v5841
        %v5884 = vadd.f32 %v5743, %v5842
        %v5885 = vadd.f32 %v5744, %v5843
        %v5886 = vadd.f32 %v5745, %v5844
        %v5887 = vadd.f32 %v5746, %v5845
        %v5888 = vadd.f32 %v5747, %v5846
        %v5889 = vadd.f32 %v5748, %v5847
        %v5890 = vadd.f32 %v5749, %v5848
        %v5891 = vadd.f32 %v5750, %v5849
        %s5892 = scalar_lea.vmem %s514, 138 [#allocation9]
        %v5893 = vld [vmem:[%s5892] sm:$0x3f]
        %v5894 = vld [vmem:[%s2258] sm:$0x7f]
        %v5895 = vld [vmem:[%s2258 + $0x8] sm:$0x7f]
        %v5896 = vld [vmem:[%s2258 + $0x10] sm:$0x7f]
        %v5897 = vld [vmem:[%s2258 + $0x18] sm:$0x7f]
        %v5898 = vld [vmem:[%s2258 + $0x20] sm:$0x7f]
        %v5899 = vld [vmem:[%s2258 + $0x28] sm:$0x7f]
        %v5900 = vld [vmem:[%s2258 + $0x30] sm:$0x7f]
        %v5901 = vld [vmem:[%s2258 + $0x38] sm:$0x7f]
        %v5902 = vld [vmem:[%s2258 + $0x40] sm:$0x7f]
        %v5903 = vld [vmem:[%s2258 + $0x48] sm:$0x7f]
        %v5904 = vld [vmem:[%s2258 + $0x50] sm:$0x7f]
        %v5905 = vld [vmem:[%s2258 + $0x58] sm:$0x7f]
        %v5906 = vld [vmem:[%s2258 + $0x60] sm:$0x7f]
        %v5907 = vld [vmem:[%s2258 + $0x68] sm:$0x7f]
        %v5908 = vld [vmem:[%s2258 + $0x70] sm:$0x7f]
        %v5909 = vld [vmem:[%s2258 + $0x78] sm:$0x7f]
        %v5910 = vld [vmem:[%s2258 + $0x80] sm:$0x7f]
        %v5911 = vld [vmem:[%s2258 + $0x88] sm:$0x7f]
        %v5912 = vld [vmem:[%s2258 + $0x90] sm:$0x7f]
        %v5913 = vld [vmem:[%s2258 + $0x98] sm:$0x7f]
        %v5914 = vld [vmem:[%s2258 + $0xa0] sm:$0x7f]
        %v5915 = vld [vmem:[%s2258 + $0xa8] sm:$0x7f]
        %v5916 = vld [vmem:[%s2258 + $0xb0] sm:$0x7f]
        %v5917 = vld [vmem:[%s2258 + $0xb8] sm:$0x7f]
        %v5918 = vld [vmem:[%s2258 + $0xc0] sm:$0x7f]
        %v5919 = vld [vmem:[%s2258 + $0xc8] sm:$0x7f]
        %v5920 = vld [vmem:[%s2258 + $0xd0] sm:$0x7f]
        %v5921 = vld [vmem:[%s2258 + $0xd8] sm:$0x7f]
        %v5922 = vld [vmem:[%s2258 + $0xe0] sm:$0x7f]
        %v5923 = vld [vmem:[%s2258 + $0xe8] sm:$0x7f]
        %v5924 = vld [vmem:[%s2258 + $0xf0] sm:$0x7f]
        %v5925 = vld [vmem:[%s2258 + $0xf8] sm:$0x7f]
        %v5926 = vld [vmem:[%s2258 + $0x100] sm:$0x7f]
        %v5927 = vld [vmem:[%s2258 + $0x108] sm:$0x7f]
        %v5928 = vld [vmem:[%s2258 + $0x110] sm:$0x7f]
        %v5929 = vld [vmem:[%s2258 + $0x118] sm:$0x7f]
        %v5930 = vld [vmem:[%s2258 + $0x120] sm:$0x7f]
        %v5931 = vld [vmem:[%s2258 + $0x128] sm:$0x7f]
        %v5932 = vld [vmem:[%s2258 + $0x130] sm:$0x7f]
        %v5933 = vld [vmem:[%s2258 + $0x138] sm:$0x7f]
        %v5934 = vld [vmem:[%s2258 + $0x140] sm:$0x7f]
        %v5935 = vld [vmem:[%s2258 + $0x148] sm:$0x7f]
        %v5937 = vperm.slane %v5893, 0
        %v5938 = vperm.slane %v5893, 1
        %v5939 = vperm.slane %v5893, 2
        %v5940 = vperm.slane %v5893, 3
        %v5941 = vperm.slane %v5893, 4
        %v5942 = vperm.slane %v5893, 5
        %v5949 = vmul.f32 %v5894, %v5937
        %v5950 = vmul.f32 %v5895, %v5938
        %v5951 = vmul.f32 %v5896, %v5939
        %v5952 = vmul.f32 %v5897, %v5940
        %v5953 = vmul.f32 %v5898, %v5941
        %v5954 = vmul.f32 %v5899, %v5942
        %v5955 = vmul.f32 %v5900, %v5937
        %v5956 = vmul.f32 %v5901, %v5938
        %v5957 = vmul.f32 %v5902, %v5939
        %v5958 = vmul.f32 %v5903, %v5940
        %v5959 = vmul.f32 %v5904, %v5941
        %v5960 = vmul.f32 %v5905, %v5942
        %v5961 = vmul.f32 %v5906, %v5937
        %v5962 = vmul.f32 %v5907, %v5938
        %v5963 = vmul.f32 %v5908, %v5939
        %v5964 = vmul.f32 %v5909, %v5940
        %v5965 = vmul.f32 %v5910, %v5941
        %v5966 = vmul.f32 %v5911, %v5942
        %v5967 = vmul.f32 %v5912, %v5937
        %v5968 = vmul.f32 %v5913, %v5938
        %v5969 = vmul.f32 %v5914, %v5939
        %v5970 = vmul.f32 %v5915, %v5940
        %v5971 = vmul.f32 %v5916, %v5941
        %v5972 = vmul.f32 %v5917, %v5942
        %v5973 = vmul.f32 %v5918, %v5937
        %v5974 = vmul.f32 %v5919, %v5938
        %v5975 = vmul.f32 %v5920, %v5939
        %v5976 = vmul.f32 %v5921, %v5940
        %v5977 = vmul.f32 %v5922, %v5941
        %v5978 = vmul.f32 %v5923, %v5942
        %v5979 = vmul.f32 %v5924, %v5937
        %v5980 = vmul.f32 %v5925, %v5938
        %v5981 = vmul.f32 %v5926, %v5939
        %v5982 = vmul.f32 %v5927, %v5940
        %v5983 = vmul.f32 %v5928, %v5941
        %v5984 = vmul.f32 %v5929, %v5942
        %v5985 = vmul.f32 %v5930, %v5937
        %v5986 = vmul.f32 %v5931, %v5938
        %v5987 = vmul.f32 %v5932, %v5939
        %v5988 = vmul.f32 %v5933, %v5940
        %v5989 = vmul.f32 %v5934, %v5941
        %v5990 = vmul.f32 %v5935, %v5942
        %v5991 = vadd.f32 %v5850, %v5949
        %v5992 = vadd.f32 %v5851, %v5950
        %v5993 = vadd.f32 %v5852, %v5951
        %v5994 = vadd.f32 %v5853, %v5952
        %v5995 = vadd.f32 %v5854, %v5953
        %v5996 = vadd.f32 %v5855, %v5954
        %v5997 = vadd.f32 %v5856, %v5955
        %v5998 = vadd.f32 %v5857, %v5956
        %v5999 = vadd.f32 %v5858, %v5957
        %v6000 = vadd.f32 %v5859, %v5958
        %v6001 = vadd.f32 %v5860, %v5959
        %v6002 = vadd.f32 %v5861, %v5960
        %v6003 = vadd.f32 %v5862, %v5961
        %v6004 = vadd.f32 %v5863, %v5962
        %v6005 = vadd.f32 %v5864, %v5963
        %v6006 = vadd.f32 %v5865, %v5964
        %v6007 = vadd.f32 %v5866, %v5965
        %v6008 = vadd.f32 %v5867, %v5966
        %v6009 = vadd.f32 %v5868, %v5967
        %v6010 = vadd.f32 %v5869, %v5968
        %v6011 = vadd.f32 %v5870, %v5969
        %v6012 = vadd.f32 %v5871, %v5970
        %v6013 = vadd.f32 %v5872, %v5971
        %v6014 = vadd.f32 %v5873, %v5972
        %v6015 = vadd.f32 %v5874, %v5973
        %v6016 = vadd.f32 %v5875, %v5974
        %v6017 = vadd.f32 %v5876, %v5975
        %v6018 = vadd.f32 %v5877, %v5976
        %v6019 = vadd.f32 %v5878, %v5977
        %v6020 = vadd.f32 %v5879, %v5978
        %v6021 = vadd.f32 %v5880, %v5979
        %v6022 = vadd.f32 %v5881, %v5980
        %v6023 = vadd.f32 %v5882, %v5981
        %v6024 = vadd.f32 %v5883, %v5982
        %v6025 = vadd.f32 %v5884, %v5983
        %v6026 = vadd.f32 %v5885, %v5984
        %v6027 = vadd.f32 %v5886, %v5985
        %v6028 = vadd.f32 %v5887, %v5986
        %v6029 = vadd.f32 %v5888, %v5987
        %v6030 = vadd.f32 %v5889, %v5988
        %v6031 = vadd.f32 %v5890, %v5989
        %v6032 = vadd.f32 %v5891, %v5990
        %v6033 = vld [vmem:[#allocation2] sm:$0xf0]
        %v6034 = vld [vmem:[#allocation2 + $0x8] sm:$0xf0]
        %v6035 = vld [vmem:[#allocation2 + $0x10] sm:$0xf0]
        %v6036 = vld [vmem:[#allocation2 + $0x18] sm:$0xf0]
        %v6037 = vld [vmem:[#allocation2 + $0x20] sm:$0xf0]
        %v6038 = vld [vmem:[#allocation2 + $0x28] sm:$0xf0]
        %v6039 = vld [vmem:[#allocation2 + $0x30] sm:$0x7]
        %v6040 = vld [vmem:[#allocation2 + $0x38] sm:$0x7]
        %v6041 = vld [vmem:[#allocation2 + $0x40] sm:$0x7]
        %v6042 = vld [vmem:[#allocation2 + $0x48] sm:$0x7]
        %v6043 = vld [vmem:[#allocation2 + $0x50] sm:$0x7]
        %v6044 = vld [vmem:[#allocation2 + $0x58] sm:$0x7]
        %v6045 = vld [vmem:[#allocation2 + $0x60] sm:$0xf0]
        %v6046 = vld [vmem:[#allocation2 + $0x68] sm:$0xf0]
        %v6047 = vld [vmem:[#allocation2 + $0x70] sm:$0xf0]
        %v6048 = vld [vmem:[#allocation2 + $0x78] sm:$0xf0]
        %v6049 = vld [vmem:[#allocation2 + $0x80] sm:$0xf0]
        %v6050 = vld [vmem:[#allocation2 + $0x88] sm:$0xf0]
        %v6051 = vld [vmem:[#allocation2 + $0x90] sm:$0x7]
        %v6052 = vld [vmem:[#allocation2 + $0x98] sm:$0x7]
        %v6053 = vld [vmem:[#allocation2 + $0xa0] sm:$0x7]
        %v6054 = vld [vmem:[#allocation2 + $0xa8] sm:$0x7]
        %v6055 = vld [vmem:[#allocation2 + $0xb0] sm:$0x7]
        %v6056 = vld [vmem:[#allocation2 + $0xb8] sm:$0x7]
        %v6057 = vld [vmem:[#allocation2 + $0xc0] sm:$0xf0]
        %v6058 = vld [vmem:[#allocation2 + $0xc8] sm:$0xf0]
        %v6059 = vld [vmem:[#allocation2 + $0xd0] sm:$0xf0]
        %v6060 = vld [vmem:[#allocation2 + $0xd8] sm:$0xf0]
        %v6061 = vld [vmem:[#allocation2 + $0xe0] sm:$0xf0]
        %v6062 = vld [vmem:[#allocation2 + $0xe8] sm:$0xf0]
        %v6063 = vld [vmem:[#allocation2 + $0xf0] sm:$0x7]
        %v6064 = vld [vmem:[#allocation2 + $0xf8] sm:$0x7]
        %v6065 = vld [vmem:[#allocation2 + $0x100] sm:$0x7]
        %v6066 = vld [vmem:[#allocation2 + $0x108] sm:$0x7]
        %v6067 = vld [vmem:[#allocation2 + $0x110] sm:$0x7]
        %v6068 = vld [vmem:[#allocation2 + $0x118] sm:$0x7]
        %v6069 = vld [vmem:[#allocation2 + $0x120] sm:$0xf0]
        %v6070 = vld [vmem:[#allocation2 + $0x128] sm:$0xf0]
        %v6071 = vld [vmem:[#allocation2 + $0x130] sm:$0xf0]
        %v6072 = vld [vmem:[#allocation2 + $0x138] sm:$0xf0]
        %v6073 = vld [vmem:[#allocation2 + $0x140] sm:$0xf0]
        %v6074 = vld [vmem:[#allocation2 + $0x148] sm:$0xf0]
        %v6075 = vld [vmem:[#allocation2 + $0x150] sm:$0x7]
        %v6076 = vld [vmem:[#allocation2 + $0x158] sm:$0x7]
        %v6077 = vld [vmem:[#allocation2 + $0x160] sm:$0x7]
        %v6078 = vld [vmem:[#allocation2 + $0x168] sm:$0x7]
        %v6079 = vld [vmem:[#allocation2 + $0x170] sm:$0x7]
        %v6080 = vld [vmem:[#allocation2 + $0x178] sm:$0x7]
        %v6081 = vld [vmem:[#allocation2 + $0x180] sm:$0xf0]
        %v6082 = vld [vmem:[#allocation2 + $0x188] sm:$0xf0]
        %v6083 = vld [vmem:[#allocation2 + $0x190] sm:$0xf0]
        %v6084 = vld [vmem:[#allocation2 + $0x198] sm:$0xf0]
        %v6085 = vld [vmem:[#allocation2 + $0x1a0] sm:$0xf0]
        %v6086 = vld [vmem:[#allocation2 + $0x1a8] sm:$0xf0]
        %v6087 = vld [vmem:[#allocation2 + $0x1b0] sm:$0x7]
        %v6088 = vld [vmem:[#allocation2 + $0x1b8] sm:$0x7]
        %v6089 = vld [vmem:[#allocation2 + $0x1c0] sm:$0x7]
        %v6090 = vld [vmem:[#allocation2 + $0x1c8] sm:$0x7]
        %v6091 = vld [vmem:[#allocation2 + $0x1d0] sm:$0x7]
        %v6092 = vld [vmem:[#allocation2 + $0x1d8] sm:$0x7]
        %v6093 = vld [vmem:[#allocation2 + $0x1e0] sm:$0xf0]
        %v6094 = vld [vmem:[#allocation2 + $0x1e8] sm:$0xf0]
        %v6095 = vld [vmem:[#allocation2 + $0x1f0] sm:$0xf0]
        %v6096 = vld [vmem:[#allocation2 + $0x1f8] sm:$0xf0]
        %v6097 = vld [vmem:[#allocation2 + $0x200] sm:$0xf0]
        %v6098 = vld [vmem:[#allocation2 + $0x208] sm:$0xf0]
        %v6099 = vld [vmem:[#allocation2 + $0x210] sm:$0x7]
        %v6100 = vld [vmem:[#allocation2 + $0x218] sm:$0x7]
        %v6101 = vld [vmem:[#allocation2 + $0x220] sm:$0x7]
        %v6102 = vld [vmem:[#allocation2 + $0x228] sm:$0x7]
        %v6103 = vld [vmem:[#allocation2 + $0x230] sm:$0x7]
        %v6104 = vld [vmem:[#allocation2 + $0x238] sm:$0x7]
        %v6105 = vld [vmem:[#allocation2 + $0x240] sm:$0xf0]
        %v6106 = vld [vmem:[#allocation2 + $0x248] sm:$0xf0]
        %v6107 = vld [vmem:[#allocation2 + $0x250] sm:$0xf0]
        %v6108 = vld [vmem:[#allocation2 + $0x258] sm:$0xf0]
        %v6109 = vld [vmem:[#allocation2 + $0x260] sm:$0xf0]
        %v6110 = vld [vmem:[#allocation2 + $0x268] sm:$0xf0]
        %v6111 = vld [vmem:[#allocation2 + $0x270] sm:$0x7]
        %v6112 = vld [vmem:[#allocation2 + $0x278] sm:$0x7]
        %v6113 = vld [vmem:[#allocation2 + $0x280] sm:$0x7]
        %v6114 = vld [vmem:[#allocation2 + $0x288] sm:$0x7]
        %v6115 = vld [vmem:[#allocation2 + $0x290] sm:$0x7]
        %v6116 = vld [vmem:[#allocation2 + $0x298] sm:$0x7]
        %v6117 = vld [vmem:[#allocation2 + $0x2a0] sm:$0xf0]
        %v6118 = vld [vmem:[#allocation2 + $0x2a8] sm:$0xf0]
        %v6119 = vld [vmem:[#allocation2 + $0x2b0] sm:$0xf0]
        %v6120 = vld [vmem:[#allocation2 + $0x2b8] sm:$0xf0]
        %v6121 = vld [vmem:[#allocation2 + $0x2c0] sm:$0xf0]
        %v6122 = vld [vmem:[#allocation2 + $0x2c8] sm:$0xf0]
        %v6123 = vld [vmem:[#allocation2 + $0x2d0] sm:$0x7]
        %v6124 = vld [vmem:[#allocation2 + $0x2d8] sm:$0x7]
        %v6125 = vld [vmem:[#allocation2 + $0x2e0] sm:$0x7]
        %v6126 = vld [vmem:[#allocation2 + $0x2e8] sm:$0x7]
        %v6127 = vld [vmem:[#allocation2 + $0x2f0] sm:$0x7]
        %v6128 = vld [vmem:[#allocation2 + $0x2f8] sm:$0x7]
        %v6129 = vld [vmem:[#allocation2 + $0x300] sm:$0xf0]
        %v6130 = vld [vmem:[#allocation2 + $0x308] sm:$0xf0]
        %v6131 = vld [vmem:[#allocation2 + $0x310] sm:$0xf0]
        %v6132 = vld [vmem:[#allocation2 + $0x318] sm:$0xf0]
        %v6133 = vld [vmem:[#allocation2 + $0x320] sm:$0xf0]
        %v6134 = vld [vmem:[#allocation2 + $0x328] sm:$0xf0]
        %v6135 = vld [vmem:[#allocation2 + $0x330] sm:$0x7]
        %v6136 = vld [vmem:[#allocation2 + $0x338] sm:$0x7]
        %v6137 = vld [vmem:[#allocation2 + $0x340] sm:$0x7]
        %v6138 = vld [vmem:[#allocation2 + $0x348] sm:$0x7]
        %v6139 = vld [vmem:[#allocation2 + $0x350] sm:$0x7]
        %v6140 = vld [vmem:[#allocation2 + $0x358] sm:$0x7]
        %v6141 = vld [vmem:[#allocation2 + $0x360] sm:$0xf0]
        %v6142 = vld [vmem:[#allocation2 + $0x368] sm:$0xf0]
        %v6143 = vld [vmem:[#allocation2 + $0x370] sm:$0xf0]
        %v6144 = vld [vmem:[#allocation2 + $0x378] sm:$0xf0]
        %v6145 = vld [vmem:[#allocation2 + $0x380] sm:$0xf0]
        %v6146 = vld [vmem:[#allocation2 + $0x388] sm:$0xf0]
        %v6147 = vld [vmem:[#allocation2 + $0x390] sm:$0x7]
        %v6148 = vld [vmem:[#allocation2 + $0x398] sm:$0x7]
        %v6149 = vld [vmem:[#allocation2 + $0x3a0] sm:$0x7]
        %v6150 = vld [vmem:[#allocation2 + $0x3a8] sm:$0x7]
        %v6151 = vld [vmem:[#allocation2 + $0x3b0] sm:$0x7]
        %v6152 = vld [vmem:[#allocation2 + $0x3b8] sm:$0x7]
        %v6153 = vld [vmem:[#allocation2 + $0x3c0] sm:$0xf0]
        %v6154 = vld [vmem:[#allocation2 + $0x3c8] sm:$0xf0]
        %v6155 = vld [vmem:[#allocation2 + $0x3d0] sm:$0xf0]
        %v6156 = vld [vmem:[#allocation2 + $0x3d8] sm:$0xf0]
        %v6157 = vld [vmem:[#allocation2 + $0x3e0] sm:$0xf0]
        %v6158 = vld [vmem:[#allocation2 + $0x3e8] sm:$0xf0]
        %v6159 = vld [vmem:[#allocation2 + $0x3f0] sm:$0x7]
        %v6160 = vld [vmem:[#allocation2 + $0x3f8] sm:$0x7]
        %v6161 = vld [vmem:[#allocation2 + $0x400] sm:$0x7]
        %v6162 = vld [vmem:[#allocation2 + $0x408] sm:$0x7]
        %v6163 = vld [vmem:[#allocation2 + $0x410] sm:$0x7]
        %v6164 = vld [vmem:[#allocation2 + $0x418] sm:$0x7]
        %vm6297 = vcmask 1043456
        %v6298 = vrot.slane %v6033, 4
        %v6299 = vrot.slane %v6039, 4
        %v6300 = vsel %vm6297, %v6298, %v6299
        %v6301 = vrot.slane %v6034, 4
        %v6302 = vrot.slane %v6040, 4
        %v6303 = vsel %vm6297, %v6301, %v6302
        %v6304 = vrot.slane %v6035, 4
        %v6305 = vrot.slane %v6041, 4
        %v6306 = vsel %vm6297, %v6304, %v6305
        %v6307 = vrot.slane %v6036, 4
        %v6308 = vrot.slane %v6042, 4
        %v6309 = vsel %vm6297, %v6307, %v6308
        %v6310 = vrot.slane %v6037, 4
        %v6311 = vrot.slane %v6043, 4
        %v6312 = vsel %vm6297, %v6310, %v6311
        %v6313 = vrot.slane %v6038, 4
        %v6314 = vrot.slane %v6044, 4
        %v6315 = vsel %vm6297, %v6313, %v6314
        %v6316 = vrot.slane %v6045, 4
        %v6317 = vrot.slane %v6051, 4
        %v6318 = vsel %vm6297, %v6316, %v6317
        %v6319 = vrot.slane %v6046, 4
        %v6320 = vrot.slane %v6052, 4
        %v6321 = vsel %vm6297, %v6319, %v6320
        %v6322 = vrot.slane %v6047, 4
        %v6323 = vrot.slane %v6053, 4
        %v6324 = vsel %vm6297, %v6322, %v6323
        %v6325 = vrot.slane %v6048, 4
        %v6326 = vrot.slane %v6054, 4
        %v6327 = vsel %vm6297, %v6325, %v6326
        %v6328 = vrot.slane %v6049, 4
        %v6329 = vrot.slane %v6055, 4
        %v6330 = vsel %vm6297, %v6328, %v6329
        %v6331 = vrot.slane %v6050, 4
        %v6332 = vrot.slane %v6056, 4
        %v6333 = vsel %vm6297, %v6331, %v6332
        %v6334 = vrot.slane %v6057, 4
        %v6335 = vrot.slane %v6063, 4
        %v6336 = vsel %vm6297, %v6334, %v6335
        %v6337 = vrot.slane %v6058, 4
        %v6338 = vrot.slane %v6064, 4
        %v6339 = vsel %vm6297, %v6337, %v6338
        %v6340 = vrot.slane %v6059, 4
        %v6341 = vrot.slane %v6065, 4
        %v6342 = vsel %vm6297, %v6340, %v6341
        %v6343 = vrot.slane %v6060, 4
        %v6344 = vrot.slane %v6066, 4
        %v6345 = vsel %vm6297, %v6343, %v6344
        %v6346 = vrot.slane %v6061, 4
        %v6347 = vrot.slane %v6067, 4
        %v6348 = vsel %vm6297, %v6346, %v6347
        %v6349 = vrot.slane %v6062, 4
        %v6350 = vrot.slane %v6068, 4
        %v6351 = vsel %vm6297, %v6349, %v6350
        %v6352 = vrot.slane %v6069, 4
        %v6353 = vrot.slane %v6075, 4
        %v6354 = vsel %vm6297, %v6352, %v6353
        %v6355 = vrot.slane %v6070, 4
        %v6356 = vrot.slane %v6076, 4
        %v6357 = vsel %vm6297, %v6355, %v6356
        %v6358 = vrot.slane %v6071, 4
        %v6359 = vrot.slane %v6077, 4
        %v6360 = vsel %vm6297, %v6358, %v6359
        %v6361 = vrot.slane %v6072, 4
        %v6362 = vrot.slane %v6078, 4
        %v6363 = vsel %vm6297, %v6361, %v6362
        %v6364 = vrot.slane %v6073, 4
        %v6365 = vrot.slane %v6079, 4
        %v6366 = vsel %vm6297, %v6364, %v6365
        %v6367 = vrot.slane %v6074, 4
        %v6368 = vrot.slane %v6080, 4
        %v6369 = vsel %vm6297, %v6367, %v6368
        %v6370 = vrot.slane %v6081, 4
        %v6371 = vrot.slane %v6087, 4
        %v6372 = vsel %vm6297, %v6370, %v6371
        %v6373 = vrot.slane %v6082, 4
        %v6374 = vrot.slane %v6088, 4
        %v6375 = vsel %vm6297, %v6373, %v6374
        %v6376 = vrot.slane %v6083, 4
        %v6377 = vrot.slane %v6089, 4
        %v6378 = vsel %vm6297, %v6376, %v6377
        %v6379 = vrot.slane %v6084, 4
        %v6380 = vrot.slane %v6090, 4
        %v6381 = vsel %vm6297, %v6379, %v6380
        %v6382 = vrot.slane %v6085, 4
        %v6383 = vrot.slane %v6091, 4
        %v6384 = vsel %vm6297, %v6382, %v6383
        %v6385 = vrot.slane %v6086, 4
        %v6386 = vrot.slane %v6092, 4
        %v6387 = vsel %vm6297, %v6385, %v6386
        %v6388 = vrot.slane %v6093, 4
        %v6389 = vrot.slane %v6099, 4
        %v6390 = vsel %vm6297, %v6388, %v6389
        %v6391 = vrot.slane %v6094, 4
        %v6392 = vrot.slane %v6100, 4
        %v6393 = vsel %vm6297, %v6391, %v6392
        %v6394 = vrot.slane %v6095, 4
        %v6395 = vrot.slane %v6101, 4
        %v6396 = vsel %vm6297, %v6394, %v6395
        %v6397 = vrot.slane %v6096, 4
        %v6398 = vrot.slane %v6102, 4
        %v6399 = vsel %vm6297, %v6397, %v6398
        %v6400 = vrot.slane %v6097, 4
        %v6401 = vrot.slane %v6103, 4
        %v6402 = vsel %vm6297, %v6400, %v6401
        %v6403 = vrot.slane %v6098, 4
        %v6404 = vrot.slane %v6104, 4
        %v6405 = vsel %vm6297, %v6403, %v6404
        %v6406 = vrot.slane %v6105, 4
        %v6407 = vrot.slane %v6111, 4
        %v6408 = vsel %vm6297, %v6406, %v6407
        %v6409 = vrot.slane %v6106, 4
        %v6410 = vrot.slane %v6112, 4
        %v6411 = vsel %vm6297, %v6409, %v6410
        %v6412 = vrot.slane %v6107, 4
        %v6413 = vrot.slane %v6113, 4
        %v6414 = vsel %vm6297, %v6412, %v6413
        %v6415 = vrot.slane %v6108, 4
        %v6416 = vrot.slane %v6114, 4
        %v6417 = vsel %vm6297, %v6415, %v6416
        %v6418 = vrot.slane %v6109, 4
        %v6419 = vrot.slane %v6115, 4
        %v6420 = vsel %vm6297, %v6418, %v6419
        %v6421 = vrot.slane %v6110, 4
        %v6422 = vrot.slane %v6116, 4
        %v6423 = vsel %vm6297, %v6421, %v6422
        %v6424 = vrot.slane %v6117, 4
        %v6425 = vrot.slane %v6123, 4
        %v6426 = vsel %vm6297, %v6424, %v6425
        %v6427 = vrot.slane %v6118, 4
        %v6428 = vrot.slane %v6124, 4
        %v6429 = vsel %vm6297, %v6427, %v6428
        %v6430 = vrot.slane %v6119, 4
        %v6431 = vrot.slane %v6125, 4
        %v6432 = vsel %vm6297, %v6430, %v6431
        %v6433 = vrot.slane %v6120, 4
        %v6434 = vrot.slane %v6126, 4
        %v6435 = vsel %vm6297, %v6433, %v6434
        %v6436 = vrot.slane %v6121, 4
        %v6437 = vrot.slane %v6127, 4
        %v6438 = vsel %vm6297, %v6436, %v6437
        %v6439 = vrot.slane %v6122, 4
        %v6440 = vrot.slane %v6128, 4
        %v6441 = vsel %vm6297, %v6439, %v6440
        %v6442 = vrot.slane %v6129, 4
        %v6443 = vrot.slane %v6135, 4
        %v6444 = vsel %vm6297, %v6442, %v6443
        %v6445 = vrot.slane %v6130, 4
        %v6446 = vrot.slane %v6136, 4
        %v6447 = vsel %vm6297, %v6445, %v6446
        %v6448 = vrot.slane %v6131, 4
        %v6449 = vrot.slane %v6137, 4
        %v6450 = vsel %vm6297, %v6448, %v6449
        %v6451 = vrot.slane %v6132, 4
        %v6452 = vrot.slane %v6138, 4
        %v6453 = vsel %vm6297, %v6451, %v6452
        %v6454 = vrot.slane %v6133, 4
        %v6455 = vrot.slane %v6139, 4
        %v6456 = vsel %vm6297, %v6454, %v6455
        %v6457 = vrot.slane %v6134, 4
        %v6458 = vrot.slane %v6140, 4
        %v6459 = vsel %vm6297, %v6457, %v6458
        %v6460 = vrot.slane %v6141, 4
        %v6461 = vrot.slane %v6147, 4
        %v6462 = vsel %vm6297, %v6460, %v6461
        %v6463 = vrot.slane %v6142, 4
        %v6464 = vrot.slane %v6148, 4
        %v6465 = vsel %vm6297, %v6463, %v6464
        %v6466 = vrot.slane %v6143, 4
        %v6467 = vrot.slane %v6149, 4
        %v6468 = vsel %vm6297, %v6466, %v6467
        %v6469 = vrot.slane %v6144, 4
        %v6470 = vrot.slane %v6150, 4
        %v6471 = vsel %vm6297, %v6469, %v6470
        %v6472 = vrot.slane %v6145, 4
        %v6473 = vrot.slane %v6151, 4
        %v6474 = vsel %vm6297, %v6472, %v6473
        %v6475 = vrot.slane %v6146, 4
        %v6476 = vrot.slane %v6152, 4
        %v6477 = vsel %vm6297, %v6475, %v6476
        %v6478 = vrot.slane %v6153, 4
        %v6479 = vrot.slane %v6159, 4
        %v6480 = vsel %vm6297, %v6478, %v6479
        %v6481 = vrot.slane %v6154, 4
        %v6482 = vrot.slane %v6160, 4
        %v6483 = vsel %vm6297, %v6481, %v6482
        %v6484 = vrot.slane %v6155, 4
        %v6485 = vrot.slane %v6161, 4
        %v6486 = vsel %vm6297, %v6484, %v6485
        %v6487 = vrot.slane %v6156, 4
        %v6488 = vrot.slane %v6162, 4
        %v6489 = vsel %vm6297, %v6487, %v6488
        %v6490 = vrot.slane %v6157, 4
        %v6491 = vrot.slane %v6163, 4
        %v6492 = vsel %vm6297, %v6490, %v6491
        %v6493 = vrot.slane %v6158, 4
        %v6494 = vrot.slane %v6164, 4
        %v6495 = vsel %vm6297, %v6493, %v6494
        %6562 = vst [vmem:[#allocation3] sm:$0x7f] %v6300
        %6563 = vst [vmem:[#allocation3 + $0x8] sm:$0x7f] %v6303
        %6564 = vst [vmem:[#allocation3 + $0x10] sm:$0x7f] %v6306
        %6565 = vst [vmem:[#allocation3 + $0x18] sm:$0x7f] %v6309
        %6566 = vst [vmem:[#allocation3 + $0x20] sm:$0x7f] %v6312
        %6567 = vst [vmem:[#allocation3 + $0x28] sm:$0x7f] %v6315
        %6568 = vst [vmem:[#allocation3 + $0x30] sm:$0x7f] %v6318
        %6569 = vst [vmem:[#allocation3 + $0x38] sm:$0x7f] %v6321
        %6570 = vst [vmem:[#allocation3 + $0x40] sm:$0x7f] %v6324
        %6571 = vst [vmem:[#allocation3 + $0x48] sm:$0x7f] %v6327
        %6572 = vst [vmem:[#allocation3 + $0x50] sm:$0x7f] %v6330
        %6573 = vst [vmem:[#allocation3 + $0x58] sm:$0x7f] %v6333
        %6574 = vst [vmem:[#allocation3 + $0x60] sm:$0x7f] %v6336
        %6575 = vst [vmem:[#allocation3 + $0x68] sm:$0x7f] %v6339
        %6576 = vst [vmem:[#allocation3 + $0x70] sm:$0x7f] %v6342
        %6577 = vst [vmem:[#allocation3 + $0x78] sm:$0x7f] %v6345
        %6578 = vst [vmem:[#allocation3 + $0x80] sm:$0x7f] %v6348
        %6579 = vst [vmem:[#allocation3 + $0x88] sm:$0x7f] %v6351
        %6580 = vst [vmem:[#allocation3 + $0x90] sm:$0x7f] %v6354
        %6581 = vst [vmem:[#allocation3 + $0x98] sm:$0x7f] %v6357
        %6582 = vst [vmem:[#allocation3 + $0xa0] sm:$0x7f] %v6360
        %6583 = vst [vmem:[#allocation3 + $0xa8] sm:$0x7f] %v6363
        %6584 = vst [vmem:[#allocation3 + $0xb0] sm:$0x7f] %v6366
        %6585 = vst [vmem:[#allocation3 + $0xb8] sm:$0x7f] %v6369
        %6586 = vst [vmem:[#allocation3 + $0xc0] sm:$0x7f] %v6372
        %6587 = vst [vmem:[#allocation3 + $0xc8] sm:$0x7f] %v6375
        %6588 = vst [vmem:[#allocation3 + $0xd0] sm:$0x7f] %v6378
        %6589 = vst [vmem:[#allocation3 + $0xd8] sm:$0x7f] %v6381
        %6590 = vst [vmem:[#allocation3 + $0xe0] sm:$0x7f] %v6384
        %6591 = vst [vmem:[#allocation3 + $0xe8] sm:$0x7f] %v6387
        %6592 = vst [vmem:[#allocation3 + $0xf0] sm:$0x7f] %v6390
        %6593 = vst [vmem:[#allocation3 + $0xf8] sm:$0x7f] %v6393
        %6594 = vst [vmem:[#allocation3 + $0x100] sm:$0x7f] %v6396
        %6595 = vst [vmem:[#allocation3 + $0x108] sm:$0x7f] %v6399
        %6596 = vst [vmem:[#allocation3 + $0x110] sm:$0x7f] %v6402
        %6597 = vst [vmem:[#allocation3 + $0x118] sm:$0x7f] %v6405
        %6598 = vst [vmem:[#allocation3 + $0x120] sm:$0x7f] %v6408
        %6599 = vst [vmem:[#allocation3 + $0x128] sm:$0x7f] %v6411
        %6600 = vst [vmem:[#allocation3 + $0x130] sm:$0x7f] %v6414
        %6601 = vst [vmem:[#allocation3 + $0x138] sm:$0x7f] %v6417
        %6602 = vst [vmem:[#allocation3 + $0x140] sm:$0x7f] %v6420
        %6603 = vst [vmem:[#allocation3 + $0x148] sm:$0x7f] %v6423
        %6604 = vst [vmem:[#allocation3 + $0x150] sm:$0x7f] %v6426
        %6605 = vst [vmem:[#allocation3 + $0x158] sm:$0x7f] %v6429
        %6606 = vst [vmem:[#allocation3 + $0x160] sm:$0x7f] %v6432
        %6607 = vst [vmem:[#allocation3 + $0x168] sm:$0x7f] %v6435
        %6608 = vst [vmem:[#allocation3 + $0x170] sm:$0x7f] %v6438
        %6609 = vst [vmem:[#allocation3 + $0x178] sm:$0x7f] %v6441
        %6610 = vst [vmem:[#allocation3 + $0x180] sm:$0x7f] %v6444
        %6611 = vst [vmem:[#allocation3 + $0x188] sm:$0x7f] %v6447
        %6612 = vst [vmem:[#allocation3 + $0x190] sm:$0x7f] %v6450
        %6613 = vst [vmem:[#allocation3 + $0x198] sm:$0x7f] %v6453
        %6614 = vst [vmem:[#allocation3 + $0x1a0] sm:$0x7f] %v6456
        %6615 = vst [vmem:[#allocation3 + $0x1a8] sm:$0x7f] %v6459
        %6616 = vst [vmem:[#allocation3 + $0x1b0] sm:$0x7f] %v6462
        %6617 = vst [vmem:[#allocation3 + $0x1b8] sm:$0x7f] %v6465
        %6618 = vst [vmem:[#allocation3 + $0x1c0] sm:$0x7f] %v6468
        %6619 = vst [vmem:[#allocation3 + $0x1c8] sm:$0x7f] %v6471
        %6620 = vst [vmem:[#allocation3 + $0x1d0] sm:$0x7f] %v6474
        %6621 = vst [vmem:[#allocation3 + $0x1d8] sm:$0x7f] %v6477
        %6622 = vst [vmem:[#allocation3 + $0x1e0] sm:$0x7f] %v6480
        %6623 = vst [vmem:[#allocation3 + $0x1e8] sm:$0x7f] %v6483
        %6624 = vst [vmem:[#allocation3 + $0x1f0] sm:$0x7f] %v6486
        %6625 = vst [vmem:[#allocation3 + $0x1f8] sm:$0x7f] %v6489
        %6626 = vst [vmem:[#allocation3 + $0x200] sm:$0x7f] %v6492
        %6627 = vst [vmem:[#allocation3 + $0x208] sm:$0x7f] %v6495
        %s6628 = scalar_lea.vmem %s514, 24 [#allocation9]
        %v6629 = vld [vmem:[%s6628] sm:$0x3f]
        %v6630 = vld [vmem:[#allocation3] sm:$0x7f]
        %v6631 = vld [vmem:[#allocation3 + $0x8] sm:$0x7f]
        %v6632 = vld [vmem:[#allocation3 + $0x10] sm:$0x7f]
        %v6633 = vld [vmem:[#allocation3 + $0x18] sm:$0x7f]
        %v6634 = vld [vmem:[#allocation3 + $0x20] sm:$0x7f]
        %v6635 = vld [vmem:[#allocation3 + $0x28] sm:$0x7f]
        %v6636 = vld [vmem:[#allocation3 + $0x30] sm:$0x7f]
        %v6637 = vld [vmem:[#allocation3 + $0x38] sm:$0x7f]
        %v6638 = vld [vmem:[#allocation3 + $0x40] sm:$0x7f]
        %v6639 = vld [vmem:[#allocation3 + $0x48] sm:$0x7f]
        %v6640 = vld [vmem:[#allocation3 + $0x50] sm:$0x7f]
        %v6641 = vld [vmem:[#allocation3 + $0x58] sm:$0x7f]
        %v6642 = vld [vmem:[#allocation3 + $0x60] sm:$0x7f]
        %v6643 = vld [vmem:[#allocation3 + $0x68] sm:$0x7f]
        %v6644 = vld [vmem:[#allocation3 + $0x70] sm:$0x7f]
        %v6645 = vld [vmem:[#allocation3 + $0x78] sm:$0x7f]
        %v6646 = vld [vmem:[#allocation3 + $0x80] sm:$0x7f]
        %v6647 = vld [vmem:[#allocation3 + $0x88] sm:$0x7f]
        %v6648 = vld [vmem:[#allocation3 + $0x90] sm:$0x7f]
        %v6649 = vld [vmem:[#allocation3 + $0x98] sm:$0x7f]
        %v6650 = vld [vmem:[#allocation3 + $0xa0] sm:$0x7f]
        %v6651 = vld [vmem:[#allocation3 + $0xa8] sm:$0x7f]
        %v6652 = vld [vmem:[#allocation3 + $0xb0] sm:$0x7f]
        %v6653 = vld [vmem:[#allocation3 + $0xb8] sm:$0x7f]
        %v6654 = vld [vmem:[#allocation3 + $0xc0] sm:$0x7f]
        %v6655 = vld [vmem:[#allocation3 + $0xc8] sm:$0x7f]
        %v6656 = vld [vmem:[#allocation3 + $0xd0] sm:$0x7f]
        %v6657 = vld [vmem:[#allocation3 + $0xd8] sm:$0x7f]
        %v6658 = vld [vmem:[#allocation3 + $0xe0] sm:$0x7f]
        %v6659 = vld [vmem:[#allocation3 + $0xe8] sm:$0x7f]
        %v6660 = vld [vmem:[#allocation3 + $0xf0] sm:$0x7f]
        %v6661 = vld [vmem:[#allocation3 + $0xf8] sm:$0x7f]
        %v6662 = vld [vmem:[#allocation3 + $0x100] sm:$0x7f]
        %v6663 = vld [vmem:[#allocation3 + $0x108] sm:$0x7f]
        %v6664 = vld [vmem:[#allocation3 + $0x110] sm:$0x7f]
        %v6665 = vld [vmem:[#allocation3 + $0x118] sm:$0x7f]
        %v6666 = vld [vmem:[#allocation3 + $0x120] sm:$0x7f]
        %v6667 = vld [vmem:[#allocation3 + $0x128] sm:$0x7f]
        %v6668 = vld [vmem:[#allocation3 + $0x130] sm:$0x7f]
        %v6669 = vld [vmem:[#allocation3 + $0x138] sm:$0x7f]
        %v6670 = vld [vmem:[#allocation3 + $0x140] sm:$0x7f]
        %v6671 = vld [vmem:[#allocation3 + $0x148] sm:$0x7f]
        %v6673 = vperm.slane %v6629, 0
        %v6674 = vperm.slane %v6629, 1
        %v6675 = vperm.slane %v6629, 2
        %v6676 = vperm.slane %v6629, 3
        %v6677 = vperm.slane %v6629, 4
        %v6678 = vperm.slane %v6629, 5
        %v6685 = vmul.f32 %v6630, %v6673
        %v6686 = vmul.f32 %v6631, %v6674
        %v6687 = vmul.f32 %v6632, %v6675
        %v6688 = vmul.f32 %v6633, %v6676
        %v6689 = vmul.f32 %v6634, %v6677
        %v6690 = vmul.f32 %v6635, %v6678
        %v6691 = vmul.f32 %v6636, %v6673
        %v6692 = vmul.f32 %v6637, %v6674
        %v6693 = vmul.f32 %v6638, %v6675
        %v6694 = vmul.f32 %v6639, %v6676
        %v6695 = vmul.f32 %v6640, %v6677
        %v6696 = vmul.f32 %v6641, %v6678
        %v6697 = vmul.f32 %v6642, %v6673
        %v6698 = vmul.f32 %v6643, %v6674
        %v6699 = vmul.f32 %v6644, %v6675
        %v6700 = vmul.f32 %v6645, %v6676
        %v6701 = vmul.f32 %v6646, %v6677
        %v6702 = vmul.f32 %v6647, %v6678
        %v6703 = vmul.f32 %v6648, %v6673
        %v6704 = vmul.f32 %v6649, %v6674
        %v6705 = vmul.f32 %v6650, %v6675
        %v6706 = vmul.f32 %v6651, %v6676
        %v6707 = vmul.f32 %v6652, %v6677
        %v6708 = vmul.f32 %v6653, %v6678
        %v6709 = vmul.f32 %v6654, %v6673
        %v6710 = vmul.f32 %v6655, %v6674
        %v6711 = vmul.f32 %v6656, %v6675
        %v6712 = vmul.f32 %v6657, %v6676
        %v6713 = vmul.f32 %v6658, %v6677
        %v6714 = vmul.f32 %v6659, %v6678
        %v6715 = vmul.f32 %v6660, %v6673
        %v6716 = vmul.f32 %v6661, %v6674
        %v6717 = vmul.f32 %v6662, %v6675
        %v6718 = vmul.f32 %v6663, %v6676
        %v6719 = vmul.f32 %v6664, %v6677
        %v6720 = vmul.f32 %v6665, %v6678
        %v6721 = vmul.f32 %v6666, %v6673
        %v6722 = vmul.f32 %v6667, %v6674
        %v6723 = vmul.f32 %v6668, %v6675
        %v6724 = vmul.f32 %v6669, %v6676
        %v6725 = vmul.f32 %v6670, %v6677
        %v6726 = vmul.f32 %v6671, %v6678
        %v6727 = vadd.f32 %v5991, %v6685
        %v6728 = vadd.f32 %v5992, %v6686
        %v6729 = vadd.f32 %v5993, %v6687
        %v6730 = vadd.f32 %v5994, %v6688
        %v6731 = vadd.f32 %v5995, %v6689
        %v6732 = vadd.f32 %v5996, %v6690
        %v6733 = vadd.f32 %v5997, %v6691
        %v6734 = vadd.f32 %v5998, %v6692
        %v6735 = vadd.f32 %v5999, %v6693
        %v6736 = vadd.f32 %v6000, %v6694
        %v6737 = vadd.f32 %v6001, %v6695
        %v6738 = vadd.f32 %v6002, %v6696
        %v6739 = vadd.f32 %v6003, %v6697
        %v6740 = vadd.f32 %v6004, %v6698
        %v6741 = vadd.f32 %v6005, %v6699
        %v6742 = vadd.f32 %v6006, %v6700
        %v6743 = vadd.f32 %v6007, %v6701
        %v6744 = vadd.f32 %v6008, %v6702
        %v6745 = vadd.f32 %v6009, %v6703
        %v6746 = vadd.f32 %v6010, %v6704
        %v6747 = vadd.f32 %v6011, %v6705
        %v6748 = vadd.f32 %v6012, %v6706
        %v6749 = vadd.f32 %v6013, %v6707
        %v6750 = vadd.f32 %v6014, %v6708
        %v6751 = vadd.f32 %v6015, %v6709
        %v6752 = vadd.f32 %v6016, %v6710
        %v6753 = vadd.f32 %v6017, %v6711
        %v6754 = vadd.f32 %v6018, %v6712
        %v6755 = vadd.f32 %v6019, %v6713
        %v6756 = vadd.f32 %v6020, %v6714
        %v6757 = vadd.f32 %v6021, %v6715
        %v6758 = vadd.f32 %v6022, %v6716
        %v6759 = vadd.f32 %v6023, %v6717
        %v6760 = vadd.f32 %v6024, %v6718
        %v6761 = vadd.f32 %v6025, %v6719
        %v6762 = vadd.f32 %v6026, %v6720
        %v6763 = vadd.f32 %v6027, %v6721
        %v6764 = vadd.f32 %v6028, %v6722
        %v6765 = vadd.f32 %v6029, %v6723
        %v6766 = vadd.f32 %v6030, %v6724
        %v6767 = vadd.f32 %v6031, %v6725
        %v6768 = vadd.f32 %v6032, %v6726
        %s6769 = scalar_lea.vmem %s514, 54 [#allocation9]
        %v6770 = vld [vmem:[%s6769] sm:$0x3f]
        %v6771 = vld [vmem:[%s1832] sm:$0x7f]
        %v6772 = vld [vmem:[%s1832 + $0x8] sm:$0x7f]
        %v6773 = vld [vmem:[%s1832 + $0x10] sm:$0x7f]
        %v6774 = vld [vmem:[%s1832 + $0x18] sm:$0x7f]
        %v6775 = vld [vmem:[%s1832 + $0x20] sm:$0x7f]
        %v6776 = vld [vmem:[%s1832 + $0x28] sm:$0x7f]
        %v6777 = vld [vmem:[%s1832 + $0x30] sm:$0x7f]
        %v6778 = vld [vmem:[%s1832 + $0x38] sm:$0x7f]
        %v6779 = vld [vmem:[%s1832 + $0x40] sm:$0x7f]
        %v6780 = vld [vmem:[%s1832 + $0x48] sm:$0x7f]
        %v6781 = vld [vmem:[%s1832 + $0x50] sm:$0x7f]
        %v6782 = vld [vmem:[%s1832 + $0x58] sm:$0x7f]
        %v6783 = vld [vmem:[%s1832 + $0x60] sm:$0x7f]
        %v6784 = vld [vmem:[%s1832 + $0x68] sm:$0x7f]
        %v6785 = vld [vmem:[%s1832 + $0x70] sm:$0x7f]
        %v6786 = vld [vmem:[%s1832 + $0x78] sm:$0x7f]
        %v6787 = vld [vmem:[%s1832 + $0x80] sm:$0x7f]
        %v6788 = vld [vmem:[%s1832 + $0x88] sm:$0x7f]
        %v6789 = vld [vmem:[%s1832 + $0x90] sm:$0x7f]
        %v6790 = vld [vmem:[%s1832 + $0x98] sm:$0x7f]
        %v6791 = vld [vmem:[%s1832 + $0xa0] sm:$0x7f]
        %v6792 = vld [vmem:[%s1832 + $0xa8] sm:$0x7f]
        %v6793 = vld [vmem:[%s1832 + $0xb0] sm:$0x7f]
        %v6794 = vld [vmem:[%s1832 + $0xb8] sm:$0x7f]
        %v6795 = vld [vmem:[%s1832 + $0xc0] sm:$0x7f]
        %v6796 = vld [vmem:[%s1832 + $0xc8] sm:$0x7f]
        %v6797 = vld [vmem:[%s1832 + $0xd0] sm:$0x7f]
        %v6798 = vld [vmem:[%s1832 + $0xd8] sm:$0x7f]
        %v6799 = vld [vmem:[%s1832 + $0xe0] sm:$0x7f]
        %v6800 = vld [vmem:[%s1832 + $0xe8] sm:$0x7f]
        %v6801 = vld [vmem:[%s1832 + $0xf0] sm:$0x7f]
        %v6802 = vld [vmem:[%s1832 + $0xf8] sm:$0x7f]
        %v6803 = vld [vmem:[%s1832 + $0x100] sm:$0x7f]
        %v6804 = vld [vmem:[%s1832 + $0x108] sm:$0x7f]
        %v6805 = vld [vmem:[%s1832 + $0x110] sm:$0x7f]
        %v6806 = vld [vmem:[%s1832 + $0x118] sm:$0x7f]
        %v6807 = vld [vmem:[%s1832 + $0x120] sm:$0x7f]
        %v6808 = vld [vmem:[%s1832 + $0x128] sm:$0x7f]
        %v6809 = vld [vmem:[%s1832 + $0x130] sm:$0x7f]
        %v6810 = vld [vmem:[%s1832 + $0x138] sm:$0x7f]
        %v6811 = vld [vmem:[%s1832 + $0x140] sm:$0x7f]
        %v6812 = vld [vmem:[%s1832 + $0x148] sm:$0x7f]
        %v6814 = vperm.slane %v6770, 0
        %v6815 = vperm.slane %v6770, 1
        %v6816 = vperm.slane %v6770, 2
        %v6817 = vperm.slane %v6770, 3
        %v6818 = vperm.slane %v6770, 4
        %v6819 = vperm.slane %v6770, 5
        %v6826 = vmul.f32 %v6771, %v6814
        %v6827 = vmul.f32 %v6772, %v6815
        %v6828 = vmul.f32 %v6773, %v6816
        %v6829 = vmul.f32 %v6774, %v6817
        %v6830 = vmul.f32 %v6775, %v6818
        %v6831 = vmul.f32 %v6776, %v6819
        %v6832 = vmul.f32 %v6777, %v6814
        %v6833 = vmul.f32 %v6778, %v6815
        %v6834 = vmul.f32 %v6779, %v6816
        %v6835 = vmul.f32 %v6780, %v6817
        %v6836 = vmul.f32 %v6781, %v6818
        %v6837 = vmul.f32 %v6782, %v6819
        %v6838 = vmul.f32 %v6783, %v6814
        %v6839 = vmul.f32 %v6784, %v6815
        %v6840 = vmul.f32 %v6785, %v6816
        %v6841 = vmul.f32 %v6786, %v6817
        %v6842 = vmul.f32 %v6787, %v6818
        %v6843 = vmul.f32 %v6788, %v6819
        %v6844 = vmul.f32 %v6789, %v6814
        %v6845 = vmul.f32 %v6790, %v6815
        %v6846 = vmul.f32 %v6791, %v6816
        %v6847 = vmul.f32 %v6792, %v6817
        %v6848 = vmul.f32 %v6793, %v6818
        %v6849 = vmul.f32 %v6794, %v6819
        %v6850 = vmul.f32 %v6795, %v6814
        %v6851 = vmul.f32 %v6796, %v6815
        %v6852 = vmul.f32 %v6797, %v6816
        %v6853 = vmul.f32 %v6798, %v6817
        %v6854 = vmul.f32 %v6799, %v6818
        %v6855 = vmul.f32 %v6800, %v6819
        %v6856 = vmul.f32 %v6801, %v6814
        %v6857 = vmul.f32 %v6802, %v6815
        %v6858 = vmul.f32 %v6803, %v6816
        %v6859 = vmul.f32 %v6804, %v6817
        %v6860 = vmul.f32 %v6805, %v6818
        %v6861 = vmul.f32 %v6806, %v6819
        %v6862 = vmul.f32 %v6807, %v6814
        %v6863 = vmul.f32 %v6808, %v6815
        %v6864 = vmul.f32 %v6809, %v6816
        %v6865 = vmul.f32 %v6810, %v6817
        %v6866 = vmul.f32 %v6811, %v6818
        %v6867 = vmul.f32 %v6812, %v6819
        %v6868 = vadd.f32 %v6727, %v6826
        %v6869 = vadd.f32 %v6728, %v6827
        %v6870 = vadd.f32 %v6729, %v6828
        %v6871 = vadd.f32 %v6730, %v6829
        %v6872 = vadd.f32 %v6731, %v6830
        %v6873 = vadd.f32 %v6732, %v6831
        %v6874 = vadd.f32 %v6733, %v6832
        %v6875 = vadd.f32 %v6734, %v6833
        %v6876 = vadd.f32 %v6735, %v6834
        %v6877 = vadd.f32 %v6736, %v6835
        %v6878 = vadd.f32 %v6737, %v6836
        %v6879 = vadd.f32 %v6738, %v6837
        %v6880 = vadd.f32 %v6739, %v6838
        %v6881 = vadd.f32 %v6740, %v6839
        %v6882 = vadd.f32 %v6741, %v6840
        %v6883 = vadd.f32 %v6742, %v6841
        %v6884 = vadd.f32 %v6743, %v6842
        %v6885 = vadd.f32 %v6744, %v6843
        %v6886 = vadd.f32 %v6745, %v6844
        %v6887 = vadd.f32 %v6746, %v6845
        %v6888 = vadd.f32 %v6747, %v6846
        %v6889 = vadd.f32 %v6748, %v6847
        %v6890 = vadd.f32 %v6749, %v6848
        %v6891 = vadd.f32 %v6750, %v6849
        %v6892 = vadd.f32 %v6751, %v6850
        %v6893 = vadd.f32 %v6752, %v6851
        %v6894 = vadd.f32 %v6753, %v6852
        %v6895 = vadd.f32 %v6754, %v6853
        %v6896 = vadd.f32 %v6755, %v6854
        %v6897 = vadd.f32 %v6756, %v6855
        %v6898 = vadd.f32 %v6757, %v6856
        %v6899 = vadd.f32 %v6758, %v6857
        %v6900 = vadd.f32 %v6759, %v6858
        %v6901 = vadd.f32 %v6760, %v6859
        %v6902 = vadd.f32 %v6761, %v6860
        %v6903 = vadd.f32 %v6762, %v6861
        %v6904 = vadd.f32 %v6763, %v6862
        %v6905 = vadd.f32 %v6764, %v6863
        %v6906 = vadd.f32 %v6765, %v6864
        %v6907 = vadd.f32 %v6766, %v6865
        %v6908 = vadd.f32 %v6767, %v6866
        %v6909 = vadd.f32 %v6768, %v6867
        %s6910 = scalar_lea.vmem %s514, 84 [#allocation9]
        %v6911 = vld [vmem:[%s6910] sm:$0x3f]
        %v6912 = vld [vmem:[%s1974] sm:$0x7f]
        %v6913 = vld [vmem:[%s1974 + $0x8] sm:$0x7f]
        %v6914 = vld [vmem:[%s1974 + $0x10] sm:$0x7f]
        %v6915 = vld [vmem:[%s1974 + $0x18] sm:$0x7f]
        %v6916 = vld [vmem:[%s1974 + $0x20] sm:$0x7f]
        %v6917 = vld [vmem:[%s1974 + $0x28] sm:$0x7f]
        %v6918 = vld [vmem:[%s1974 + $0x30] sm:$0x7f]
        %v6919 = vld [vmem:[%s1974 + $0x38] sm:$0x7f]
        %v6920 = vld [vmem:[%s1974 + $0x40] sm:$0x7f]
        %v6921 = vld [vmem:[%s1974 + $0x48] sm:$0x7f]
        %v6922 = vld [vmem:[%s1974 + $0x50] sm:$0x7f]
        %v6923 = vld [vmem:[%s1974 + $0x58] sm:$0x7f]
        %v6924 = vld [vmem:[%s1974 + $0x60] sm:$0x7f]
        %v6925 = vld [vmem:[%s1974 + $0x68] sm:$0x7f]
        %v6926 = vld [vmem:[%s1974 + $0x70] sm:$0x7f]
        %v6927 = vld [vmem:[%s1974 + $0x78] sm:$0x7f]
        %v6928 = vld [vmem:[%s1974 + $0x80] sm:$0x7f]
        %v6929 = vld [vmem:[%s1974 + $0x88] sm:$0x7f]
        %v6930 = vld [vmem:[%s1974 + $0x90] sm:$0x7f]
        %v6931 = vld [vmem:[%s1974 + $0x98] sm:$0x7f]
        %v6932 = vld [vmem:[%s1974 + $0xa0] sm:$0x7f]
        %v6933 = vld [vmem:[%s1974 + $0xa8] sm:$0x7f]
        %v6934 = vld [vmem:[%s1974 + $0xb0] sm:$0x7f]
        %v6935 = vld [vmem:[%s1974 + $0xb8] sm:$0x7f]
        %v6936 = vld [vmem:[%s1974 + $0xc0] sm:$0x7f]
        %v6937 = vld [vmem:[%s1974 + $0xc8] sm:$0x7f]
        %v6938 = vld [vmem:[%s1974 + $0xd0] sm:$0x7f]
        %v6939 = vld [vmem:[%s1974 + $0xd8] sm:$0x7f]
        %v6940 = vld [vmem:[%s1974 + $0xe0] sm:$0x7f]
        %v6941 = vld [vmem:[%s1974 + $0xe8] sm:$0x7f]
        %v6942 = vld [vmem:[%s1974 + $0xf0] sm:$0x7f]
        %v6943 = vld [vmem:[%s1974 + $0xf8] sm:$0x7f]
        %v6944 = vld [vmem:[%s1974 + $0x100] sm:$0x7f]
        %v6945 = vld [vmem:[%s1974 + $0x108] sm:$0x7f]
        %v6946 = vld [vmem:[%s1974 + $0x110] sm:$0x7f]
        %v6947 = vld [vmem:[%s1974 + $0x118] sm:$0x7f]
        %v6948 = vld [vmem:[%s1974 + $0x120] sm:$0x7f]
        %v6949 = vld [vmem:[%s1974 + $0x128] sm:$0x7f]
        %v6950 = vld [vmem:[%s1974 + $0x130] sm:$0x7f]
        %v6951 = vld [vmem:[%s1974 + $0x138] sm:$0x7f]
        %v6952 = vld [vmem:[%s1974 + $0x140] sm:$0x7f]
        %v6953 = vld [vmem:[%s1974 + $0x148] sm:$0x7f]
        %v6955 = vperm.slane %v6911, 0
        %v6956 = vperm.slane %v6911, 1
        %v6957 = vperm.slane %v6911, 2
        %v6958 = vperm.slane %v6911, 3
        %v6959 = vperm.slane %v6911, 4
        %v6960 = vperm.slane %v6911, 5
        %v6967 = vmul.f32 %v6912, %v6955
        %v6968 = vmul.f32 %v6913, %v6956
        %v6969 = vmul.f32 %v6914, %v6957
        %v6970 = vmul.f32 %v6915, %v6958
        %v6971 = vmul.f32 %v6916, %v6959
        %v6972 = vmul.f32 %v6917, %v6960
        %v6973 = vmul.f32 %v6918, %v6955
        %v6974 = vmul.f32 %v6919, %v6956
        %v6975 = vmul.f32 %v6920, %v6957
        %v6976 = vmul.f32 %v6921, %v6958
        %v6977 = vmul.f32 %v6922, %v6959
        %v6978 = vmul.f32 %v6923, %v6960
        %v6979 = vmul.f32 %v6924, %v6955
        %v6980 = vmul.f32 %v6925, %v6956
        %v6981 = vmul.f32 %v6926, %v6957
        %v6982 = vmul.f32 %v6927, %v6958
        %v6983 = vmul.f32 %v6928, %v6959
        %v6984 = vmul.f32 %v6929, %v6960
        %v6985 = vmul.f32 %v6930, %v6955
        %v6986 = vmul.f32 %v6931, %v6956
        %v6987 = vmul.f32 %v6932, %v6957
        %v6988 = vmul.f32 %v6933, %v6958
        %v6989 = vmul.f32 %v6934, %v6959
        %v6990 = vmul.f32 %v6935, %v6960
        %v6991 = vmul.f32 %v6936, %v6955
        %v6992 = vmul.f32 %v6937, %v6956
        %v6993 = vmul.f32 %v6938, %v6957
        %v6994 = vmul.f32 %v6939, %v6958
        %v6995 = vmul.f32 %v6940, %v6959
        %v6996 = vmul.f32 %v6941, %v6960
        %v6997 = vmul.f32 %v6942, %v6955
        %v6998 = vmul.f32 %v6943, %v6956
        %v6999 = vmul.f32 %v6944, %v6957
        %v7000 = vmul.f32 %v6945, %v6958
        %v7001 = vmul.f32 %v6946, %v6959
        %v7002 = vmul.f32 %v6947, %v6960
        %v7003 = vmul.f32 %v6948, %v6955
        %v7004 = vmul.f32 %v6949, %v6956
        %v7005 = vmul.f32 %v6950, %v6957
        %v7006 = vmul.f32 %v6951, %v6958
        %v7007 = vmul.f32 %v6952, %v6959
        %v7008 = vmul.f32 %v6953, %v6960
        %v7009 = vadd.f32 %v6868, %v6967
        %v7010 = vadd.f32 %v6869, %v6968
        %v7011 = vadd.f32 %v6870, %v6969
        %v7012 = vadd.f32 %v6871, %v6970
        %v7013 = vadd.f32 %v6872, %v6971
        %v7014 = vadd.f32 %v6873, %v6972
        %v7015 = vadd.f32 %v6874, %v6973
        %v7016 = vadd.f32 %v6875, %v6974
        %v7017 = vadd.f32 %v6876, %v6975
        %v7018 = vadd.f32 %v6877, %v6976
        %v7019 = vadd.f32 %v6878, %v6977
        %v7020 = vadd.f32 %v6879, %v6978
        %v7021 = vadd.f32 %v6880, %v6979
        %v7022 = vadd.f32 %v6881, %v6980
        %v7023 = vadd.f32 %v6882, %v6981
        %v7024 = vadd.f32 %v6883, %v6982
        %v7025 = vadd.f32 %v6884, %v6983
        %v7026 = vadd.f32 %v6885, %v6984
        %v7027 = vadd.f32 %v6886, %v6985
        %v7028 = vadd.f32 %v6887, %v6986
        %v7029 = vadd.f32 %v6888, %v6987
        %v7030 = vadd.f32 %v6889, %v6988
        %v7031 = vadd.f32 %v6890, %v6989
        %v7032 = vadd.f32 %v6891, %v6990
        %v7033 = vadd.f32 %v6892, %v6991
        %v7034 = vadd.f32 %v6893, %v6992
        %v7035 = vadd.f32 %v6894, %v6993
        %v7036 = vadd.f32 %v6895, %v6994
        %v7037 = vadd.f32 %v6896, %v6995
        %v7038 = vadd.f32 %v6897, %v6996
        %v7039 = vadd.f32 %v6898, %v6997
        %v7040 = vadd.f32 %v6899, %v6998
        %v7041 = vadd.f32 %v6900, %v6999
        %v7042 = vadd.f32 %v6901, %v7000
        %v7043 = vadd.f32 %v6902, %v7001
        %v7044 = vadd.f32 %v6903, %v7002
        %v7045 = vadd.f32 %v6904, %v7003
        %v7046 = vadd.f32 %v6905, %v7004
        %v7047 = vadd.f32 %v6906, %v7005
        %v7048 = vadd.f32 %v6907, %v7006
        %v7049 = vadd.f32 %v6908, %v7007
        %v7050 = vadd.f32 %v6909, %v7008
        %s7051 = scalar_lea.vmem %s514, 114 [#allocation9]
        %v7052 = vld [vmem:[%s7051] sm:$0x3f]
        %v7053 = vld [vmem:[%s2116] sm:$0x7f]
        %v7054 = vld [vmem:[%s2116 + $0x8] sm:$0x7f]
        %v7055 = vld [vmem:[%s2116 + $0x10] sm:$0x7f]
        %v7056 = vld [vmem:[%s2116 + $0x18] sm:$0x7f]
        %v7057 = vld [vmem:[%s2116 + $0x20] sm:$0x7f]
        %v7058 = vld [vmem:[%s2116 + $0x28] sm:$0x7f]
        %v7059 = vld [vmem:[%s2116 + $0x30] sm:$0x7f]
        %v7060 = vld [vmem:[%s2116 + $0x38] sm:$0x7f]
        %v7061 = vld [vmem:[%s2116 + $0x40] sm:$0x7f]
        %v7062 = vld [vmem:[%s2116 + $0x48] sm:$0x7f]
        %v7063 = vld [vmem:[%s2116 + $0x50] sm:$0x7f]
        %v7064 = vld [vmem:[%s2116 + $0x58] sm:$0x7f]
        %v7065 = vld [vmem:[%s2116 + $0x60] sm:$0x7f]
        %v7066 = vld [vmem:[%s2116 + $0x68] sm:$0x7f]
        %v7067 = vld [vmem:[%s2116 + $0x70] sm:$0x7f]
        %v7068 = vld [vmem:[%s2116 + $0x78] sm:$0x7f]
        %v7069 = vld [vmem:[%s2116 + $0x80] sm:$0x7f]
        %v7070 = vld [vmem:[%s2116 + $0x88] sm:$0x7f]
        %v7071 = vld [vmem:[%s2116 + $0x90] sm:$0x7f]
        %v7072 = vld [vmem:[%s2116 + $0x98] sm:$0x7f]
        %v7073 = vld [vmem:[%s2116 + $0xa0] sm:$0x7f]
        %v7074 = vld [vmem:[%s2116 + $0xa8] sm:$0x7f]
        %v7075 = vld [vmem:[%s2116 + $0xb0] sm:$0x7f]
        %v7076 = vld [vmem:[%s2116 + $0xb8] sm:$0x7f]
        %v7077 = vld [vmem:[%s2116 + $0xc0] sm:$0x7f]
        %v7078 = vld [vmem:[%s2116 + $0xc8] sm:$0x7f]
        %v7079 = vld [vmem:[%s2116 + $0xd0] sm:$0x7f]
        %v7080 = vld [vmem:[%s2116 + $0xd8] sm:$0x7f]
        %v7081 = vld [vmem:[%s2116 + $0xe0] sm:$0x7f]
        %v7082 = vld [vmem:[%s2116 + $0xe8] sm:$0x7f]
        %v7083 = vld [vmem:[%s2116 + $0xf0] sm:$0x7f]
        %v7084 = vld [vmem:[%s2116 + $0xf8] sm:$0x7f]
        %v7085 = vld [vmem:[%s2116 + $0x100] sm:$0x7f]
        %v7086 = vld [vmem:[%s2116 + $0x108] sm:$0x7f]
        %v7087 = vld [vmem:[%s2116 + $0x110] sm:$0x7f]
        %v7088 = vld [vmem:[%s2116 + $0x118] sm:$0x7f]
        %v7089 = vld [vmem:[%s2116 + $0x120] sm:$0x7f]
        %v7090 = vld [vmem:[%s2116 + $0x128] sm:$0x7f]
        %v7091 = vld [vmem:[%s2116 + $0x130] sm:$0x7f]
        %v7092 = vld [vmem:[%s2116 + $0x138] sm:$0x7f]
        %v7093 = vld [vmem:[%s2116 + $0x140] sm:$0x7f]
        %v7094 = vld [vmem:[%s2116 + $0x148] sm:$0x7f]
        %v7096 = vperm.slane %v7052, 0
        %v7097 = vperm.slane %v7052, 1
        %v7098 = vperm.slane %v7052, 2
        %v7099 = vperm.slane %v7052, 3
        %v7100 = vperm.slane %v7052, 4
        %v7101 = vperm.slane %v7052, 5
        %v7108 = vmul.f32 %v7053, %v7096
        %v7109 = vmul.f32 %v7054, %v7097
        %v7110 = vmul.f32 %v7055, %v7098
        %v7111 = vmul.f32 %v7056, %v7099
        %v7112 = vmul.f32 %v7057, %v7100
        %v7113 = vmul.f32 %v7058, %v7101
        %v7114 = vmul.f32 %v7059, %v7096
        %v7115 = vmul.f32 %v7060, %v7097
        %v7116 = vmul.f32 %v7061, %v7098
        %v7117 = vmul.f32 %v7062, %v7099
        %v7118 = vmul.f32 %v7063, %v7100
        %v7119 = vmul.f32 %v7064, %v7101
        %v7120 = vmul.f32 %v7065, %v7096
        %v7121 = vmul.f32 %v7066, %v7097
        %v7122 = vmul.f32 %v7067, %v7098
        %v7123 = vmul.f32 %v7068, %v7099
        %v7124 = vmul.f32 %v7069, %v7100
        %v7125 = vmul.f32 %v7070, %v7101
        %v7126 = vmul.f32 %v7071, %v7096
        %v7127 = vmul.f32 %v7072, %v7097
        %v7128 = vmul.f32 %v7073, %v7098
        %v7129 = vmul.f32 %v7074, %v7099
        %v7130 = vmul.f32 %v7075, %v7100
        %v7131 = vmul.f32 %v7076, %v7101
        %v7132 = vmul.f32 %v7077, %v7096
        %v7133 = vmul.f32 %v7078, %v7097
        %v7134 = vmul.f32 %v7079, %v7098
        %v7135 = vmul.f32 %v7080, %v7099
        %v7136 = vmul.f32 %v7081, %v7100
        %v7137 = vmul.f32 %v7082, %v7101
        %v7138 = vmul.f32 %v7083, %v7096
        %v7139 = vmul.f32 %v7084, %v7097
        %v7140 = vmul.f32 %v7085, %v7098
        %v7141 = vmul.f32 %v7086, %v7099
        %v7142 = vmul.f32 %v7087, %v7100
        %v7143 = vmul.f32 %v7088, %v7101
        %v7144 = vmul.f32 %v7089, %v7096
        %v7145 = vmul.f32 %v7090, %v7097
        %v7146 = vmul.f32 %v7091, %v7098
        %v7147 = vmul.f32 %v7092, %v7099
        %v7148 = vmul.f32 %v7093, %v7100
        %v7149 = vmul.f32 %v7094, %v7101
        %v7150 = vadd.f32 %v7009, %v7108
        %v7151 = vadd.f32 %v7010, %v7109
        %v7152 = vadd.f32 %v7011, %v7110
        %v7153 = vadd.f32 %v7012, %v7111
        %v7154 = vadd.f32 %v7013, %v7112
        %v7155 = vadd.f32 %v7014, %v7113
        %v7156 = vadd.f32 %v7015, %v7114
        %v7157 = vadd.f32 %v7016, %v7115
        %v7158 = vadd.f32 %v7017, %v7116
        %v7159 = vadd.f32 %v7018, %v7117
        %v7160 = vadd.f32 %v7019, %v7118
        %v7161 = vadd.f32 %v7020, %v7119
        %v7162 = vadd.f32 %v7021, %v7120
        %v7163 = vadd.f32 %v7022, %v7121
        %v7164 = vadd.f32 %v7023, %v7122
        %v7165 = vadd.f32 %v7024, %v7123
        %v7166 = vadd.f32 %v7025, %v7124
        %v7167 = vadd.f32 %v7026, %v7125
        %v7168 = vadd.f32 %v7027, %v7126
        %v7169 = vadd.f32 %v7028, %v7127
        %v7170 = vadd.f32 %v7029, %v7128
        %v7171 = vadd.f32 %v7030, %v7129
        %v7172 = vadd.f32 %v7031, %v7130
        %v7173 = vadd.f32 %v7032, %v7131
        %v7174 = vadd.f32 %v7033, %v7132
        %v7175 = vadd.f32 %v7034, %v7133
        %v7176 = vadd.f32 %v7035, %v7134
        %v7177 = vadd.f32 %v7036, %v7135
        %v7178 = vadd.f32 %v7037, %v7136
        %v7179 = vadd.f32 %v7038, %v7137
        %v7180 = vadd.f32 %v7039, %v7138
        %v7181 = vadd.f32 %v7040, %v7139
        %v7182 = vadd.f32 %v7041, %v7140
        %v7183 = vadd.f32 %v7042, %v7141
        %v7184 = vadd.f32 %v7043, %v7142
        %v7185 = vadd.f32 %v7044, %v7143
        %v7186 = vadd.f32 %v7045, %v7144
        %v7187 = vadd.f32 %v7046, %v7145
        %v7188 = vadd.f32 %v7047, %v7146
        %v7189 = vadd.f32 %v7048, %v7147
        %v7190 = vadd.f32 %v7049, %v7148
        %v7191 = vadd.f32 %v7050, %v7149
        %s7192 = scalar_lea.vmem %s514, 144 [#allocation9]
        %v7193 = vld [vmem:[%s7192] sm:$0x3f]
        %v7194 = vld [vmem:[%s2258] sm:$0x7f]
        %v7195 = vld [vmem:[%s2258 + $0x8] sm:$0x7f]
        %v7196 = vld [vmem:[%s2258 + $0x10] sm:$0x7f]
        %v7197 = vld [vmem:[%s2258 + $0x18] sm:$0x7f]
        %v7198 = vld [vmem:[%s2258 + $0x20] sm:$0x7f]
        %v7199 = vld [vmem:[%s2258 + $0x28] sm:$0x7f]
        %v7200 = vld [vmem:[%s2258 + $0x30] sm:$0x7f]
        %v7201 = vld [vmem:[%s2258 + $0x38] sm:$0x7f]
        %v7202 = vld [vmem:[%s2258 + $0x40] sm:$0x7f]
        %v7203 = vld [vmem:[%s2258 + $0x48] sm:$0x7f]
        %v7204 = vld [vmem:[%s2258 + $0x50] sm:$0x7f]
        %v7205 = vld [vmem:[%s2258 + $0x58] sm:$0x7f]
        %v7206 = vld [vmem:[%s2258 + $0x60] sm:$0x7f]
        %v7207 = vld [vmem:[%s2258 + $0x68] sm:$0x7f]
        %v7208 = vld [vmem:[%s2258 + $0x70] sm:$0x7f]
        %v7209 = vld [vmem:[%s2258 + $0x78] sm:$0x7f]
        %v7210 = vld [vmem:[%s2258 + $0x80] sm:$0x7f]
        %v7211 = vld [vmem:[%s2258 + $0x88] sm:$0x7f]
        %v7212 = vld [vmem:[%s2258 + $0x90] sm:$0x7f]
        %v7213 = vld [vmem:[%s2258 + $0x98] sm:$0x7f]
        %v7214 = vld [vmem:[%s2258 + $0xa0] sm:$0x7f]
        %v7215 = vld [vmem:[%s2258 + $0xa8] sm:$0x7f]
        %v7216 = vld [vmem:[%s2258 + $0xb0] sm:$0x7f]
        %v7217 = vld [vmem:[%s2258 + $0xb8] sm:$0x7f]
        %v7218 = vld [vmem:[%s2258 + $0xc0] sm:$0x7f]
        %v7219 = vld [vmem:[%s2258 + $0xc8] sm:$0x7f]
        %v7220 = vld [vmem:[%s2258 + $0xd0] sm:$0x7f]
        %v7221 = vld [vmem:[%s2258 + $0xd8] sm:$0x7f]
        %v7222 = vld [vmem:[%s2258 + $0xe0] sm:$0x7f]
        %v7223 = vld [vmem:[%s2258 + $0xe8] sm:$0x7f]
        %v7224 = vld [vmem:[%s2258 + $0xf0] sm:$0x7f]
        %v7225 = vld [vmem:[%s2258 + $0xf8] sm:$0x7f]
        %v7226 = vld [vmem:[%s2258 + $0x100] sm:$0x7f]
        %v7227 = vld [vmem:[%s2258 + $0x108] sm:$0x7f]
        %v7228 = vld [vmem:[%s2258 + $0x110] sm:$0x7f]
        %v7229 = vld [vmem:[%s2258 + $0x118] sm:$0x7f]
        %v7230 = vld [vmem:[%s2258 + $0x120] sm:$0x7f]
        %v7231 = vld [vmem:[%s2258 + $0x128] sm:$0x7f]
        %v7232 = vld [vmem:[%s2258 + $0x130] sm:$0x7f]
        %v7233 = vld [vmem:[%s2258 + $0x138] sm:$0x7f]
        %v7234 = vld [vmem:[%s2258 + $0x140] sm:$0x7f]
        %v7235 = vld [vmem:[%s2258 + $0x148] sm:$0x7f]
        %v7237 = vperm.slane %v7193, 0
        %v7238 = vperm.slane %v7193, 1
        %v7239 = vperm.slane %v7193, 2
        %v7240 = vperm.slane %v7193, 3
        %v7241 = vperm.slane %v7193, 4
        %v7242 = vperm.slane %v7193, 5
        %v7249 = vmul.f32 %v7194, %v7237
        %v7250 = vmul.f32 %v7195, %v7238
        %v7251 = vmul.f32 %v7196, %v7239
        %v7252 = vmul.f32 %v7197, %v7240
        %v7253 = vmul.f32 %v7198, %v7241
        %v7254 = vmul.f32 %v7199, %v7242
        %v7255 = vmul.f32 %v7200, %v7237
        %v7256 = vmul.f32 %v7201, %v7238
        %v7257 = vmul.f32 %v7202, %v7239
        %v7258 = vmul.f32 %v7203, %v7240
        %v7259 = vmul.f32 %v7204, %v7241
        %v7260 = vmul.f32 %v7205, %v7242
        %v7261 = vmul.f32 %v7206, %v7237
        %v7262 = vmul.f32 %v7207, %v7238
        %v7263 = vmul.f32 %v7208, %v7239
        %v7264 = vmul.f32 %v7209, %v7240
        %v7265 = vmul.f32 %v7210, %v7241
        %v7266 = vmul.f32 %v7211, %v7242
        %v7267 = vmul.f32 %v7212, %v7237
        %v7268 = vmul.f32 %v7213, %v7238
        %v7269 = vmul.f32 %v7214, %v7239
        %v7270 = vmul.f32 %v7215, %v7240
        %v7271 = vmul.f32 %v7216, %v7241
        %v7272 = vmul.f32 %v7217, %v7242
        %v7273 = vmul.f32 %v7218, %v7237
        %v7274 = vmul.f32 %v7219, %v7238
        %v7275 = vmul.f32 %v7220, %v7239
        %v7276 = vmul.f32 %v7221, %v7240
        %v7277 = vmul.f32 %v7222, %v7241
        %v7278 = vmul.f32 %v7223, %v7242
        %v7279 = vmul.f32 %v7224, %v7237
        %v7280 = vmul.f32 %v7225, %v7238
        %v7281 = vmul.f32 %v7226, %v7239
        %v7282 = vmul.f32 %v7227, %v7240
        %v7283 = vmul.f32 %v7228, %v7241
        %v7284 = vmul.f32 %v7229, %v7242
        %v7285 = vmul.f32 %v7230, %v7237
        %v7286 = vmul.f32 %v7231, %v7238
        %v7287 = vmul.f32 %v7232, %v7239
        %v7288 = vmul.f32 %v7233, %v7240
        %v7289 = vmul.f32 %v7234, %v7241
        %v7290 = vmul.f32 %v7235, %v7242
        %v7291 = vadd.f32 %v7150, %v7249
        %v7292 = vadd.f32 %v7151, %v7250
        %v7293 = vadd.f32 %v7152, %v7251
        %v7294 = vadd.f32 %v7153, %v7252
        %v7295 = vadd.f32 %v7154, %v7253
        %v7296 = vadd.f32 %v7155, %v7254
        %v7297 = vadd.f32 %v7156, %v7255
        %v7298 = vadd.f32 %v7157, %v7256
        %v7299 = vadd.f32 %v7158, %v7257
        %v7300 = vadd.f32 %v7159, %v7258
        %v7301 = vadd.f32 %v7160, %v7259
        %v7302 = vadd.f32 %v7161, %v7260
        %v7303 = vadd.f32 %v7162, %v7261
        %v7304 = vadd.f32 %v7163, %v7262
        %v7305 = vadd.f32 %v7164, %v7263
        %v7306 = vadd.f32 %v7165, %v7264
        %v7307 = vadd.f32 %v7166, %v7265
        %v7308 = vadd.f32 %v7167, %v7266
        %v7309 = vadd.f32 %v7168, %v7267
        %v7310 = vadd.f32 %v7169, %v7268
        %v7311 = vadd.f32 %v7170, %v7269
        %v7312 = vadd.f32 %v7171, %v7270
        %v7313 = vadd.f32 %v7172, %v7271
        %v7314 = vadd.f32 %v7173, %v7272
        %v7315 = vadd.f32 %v7174, %v7273
        %v7316 = vadd.f32 %v7175, %v7274
        %v7317 = vadd.f32 %v7176, %v7275
        %v7318 = vadd.f32 %v7177, %v7276
        %v7319 = vadd.f32 %v7178, %v7277
        %v7320 = vadd.f32 %v7179, %v7278
        %v7321 = vadd.f32 %v7180, %v7279
        %v7322 = vadd.f32 %v7181, %v7280
        %v7323 = vadd.f32 %v7182, %v7281
        %v7324 = vadd.f32 %v7183, %v7282
        %v7325 = vadd.f32 %v7184, %v7283
        %v7326 = vadd.f32 %v7185, %v7284
        %v7327 = vadd.f32 %v7186, %v7285
        %v7328 = vadd.f32 %v7187, %v7286
        %v7329 = vadd.f32 %v7188, %v7287
        %v7330 = vadd.f32 %v7189, %v7288
        %v7331 = vadd.f32 %v7190, %v7289
        %v7332 = vadd.f32 %v7191, %v7290
        %v7333 = vsel %vm785, %v7291, 0.0
        %v7334 = vsel %vm785, %v7297, 0.0
        %v7335 = vadd.f32 %v7333, %v7334
        %v7336 = vsel %vm785, %v7303, 0.0
        %v7337 = vadd.f32 %v7335, %v7336
        %v7338 = vsel %vm785, %v7309, 0.0
        %v7339 = vadd.f32 %v7337, %v7338
        %v7340 = vsel %vm785, %v7315, 0.0
        %v7341 = vadd.f32 %v7339, %v7340
        %v7342 = vsel %vm785, %v7321, 0.0
        %v7343 = vadd.f32 %v7341, %v7342
        %v7344 = vsel %vm785, %v7327, 0.0
        %v7345 = vadd.f32 %v7343, %v7344
        %v7346 = vrot.slane %v7345, 4
        %v7347 = vadd.f32 %v7345, %v7346
        %v7348 = vrot.slane %v7347, 2
        %v7349 = vadd.f32 %v7347, %v7348
        %v7350 = vrot.slane %v7349, 1
        %v7351 = vadd.f32 %v7349, %v7350
        %v7352 = vsel %vm785, %v7292, 0.0
        %v7353 = vsel %vm785, %v7298, 0.0
        %v7354 = vadd.f32 %v7352, %v7353
        %v7355 = vsel %vm785, %v7304, 0.0
        %v7356 = vadd.f32 %v7354, %v7355
        %v7357 = vsel %vm785, %v7310, 0.0
        %v7358 = vadd.f32 %v7356, %v7357
        %v7359 = vsel %vm785, %v7316, 0.0
        %v7360 = vadd.f32 %v7358, %v7359
        %v7361 = vsel %vm785, %v7322, 0.0
        %v7362 = vadd.f32 %v7360, %v7361
        %v7363 = vsel %vm785, %v7328, 0.0
        %v7364 = vadd.f32 %v7362, %v7363
        %v7365 = vrot.slane %v7364, 4
        %v7366 = vadd.f32 %v7364, %v7365
        %v7367 = vrot.slane %v7366, 2
        %v7368 = vadd.f32 %v7366, %v7367
        %v7369 = vrot.slane %v7368, 1
        %v7370 = vadd.f32 %v7368, %v7369
        %v7371 = vsel %vm785, %v7293, 0.0
        %v7372 = vsel %vm785, %v7299, 0.0
        %v7373 = vadd.f32 %v7371, %v7372
        %v7374 = vsel %vm785, %v7305, 0.0
        %v7375 = vadd.f32 %v7373, %v7374
        %v7376 = vsel %vm785, %v7311, 0.0
        %v7377 = vadd.f32 %v7375, %v7376
        %v7378 = vsel %vm785, %v7317, 0.0
        %v7379 = vadd.f32 %v7377, %v7378
        %v7380 = vsel %vm785, %v7323, 0.0
        %v7381 = vadd.f32 %v7379, %v7380
        %v7382 = vsel %vm785, %v7329, 0.0
        %v7383 = vadd.f32 %v7381, %v7382
        %v7384 = vrot.slane %v7383, 4
        %v7385 = vadd.f32 %v7383, %v7384
        %v7386 = vrot.slane %v7385, 2
        %v7387 = vadd.f32 %v7385, %v7386
        %v7388 = vrot.slane %v7387, 1
        %v7389 = vadd.f32 %v7387, %v7388
        %v7390 = vsel %vm785, %v7294, 0.0
        %v7391 = vsel %vm785, %v7300, 0.0
        %v7392 = vadd.f32 %v7390, %v7391
        %v7393 = vsel %vm785, %v7306, 0.0
        %v7394 = vadd.f32 %v7392, %v7393
        %v7395 = vsel %vm785, %v7312, 0.0
        %v7396 = vadd.f32 %v7394, %v7395
        %v7397 = vsel %vm785, %v7318, 0.0
        %v7398 = vadd.f32 %v7396, %v7397
        %v7399 = vsel %vm785, %v7324, 0.0
        %v7400 = vadd.f32 %v7398, %v7399
        %v7401 = vsel %vm785, %v7330, 0.0
        %v7402 = vadd.f32 %v7400, %v7401
        %v7403 = vrot.slane %v7402, 4
        %v7404 = vadd.f32 %v7402, %v7403
        %v7405 = vrot.slane %v7404, 2
        %v7406 = vadd.f32 %v7404, %v7405
        %v7407 = vrot.slane %v7406, 1
        %v7408 = vadd.f32 %v7406, %v7407
        %v7409 = vsel %vm785, %v7295, 0.0
        %v7410 = vsel %vm785, %v7301, 0.0
        %v7411 = vadd.f32 %v7409, %v7410
        %v7412 = vsel %vm785, %v7307, 0.0
        %v7413 = vadd.f32 %v7411, %v7412
        %v7414 = vsel %vm785, %v7313, 0.0
        %v7415 = vadd.f32 %v7413, %v7414
        %v7416 = vsel %vm785, %v7319, 0.0
        %v7417 = vadd.f32 %v7415, %v7416
        %v7418 = vsel %vm785, %v7325, 0.0
        %v7419 = vadd.f32 %v7417, %v7418
        %v7420 = vsel %vm785, %v7331, 0.0
        %v7421 = vadd.f32 %v7419, %v7420
        %v7422 = vrot.slane %v7421, 4
        %v7423 = vadd.f32 %v7421, %v7422
        %v7424 = vrot.slane %v7423, 2
        %v7425 = vadd.f32 %v7423, %v7424
        %v7426 = vrot.slane %v7425, 1
        %v7427 = vadd.f32 %v7425, %v7426
        %v7428 = vsel %vm785, %v7296, 0.0
        %v7429 = vsel %vm785, %v7302, 0.0
        %v7430 = vadd.f32 %v7428, %v7429
        %v7431 = vsel %vm785, %v7308, 0.0
        %v7432 = vadd.f32 %v7430, %v7431
        %v7433 = vsel %vm785, %v7314, 0.0
        %v7434 = vadd.f32 %v7432, %v7433
        %v7435 = vsel %vm785, %v7320, 0.0
        %v7436 = vadd.f32 %v7434, %v7435
        %v7437 = vsel %vm785, %v7326, 0.0
        %v7438 = vadd.f32 %v7436, %v7437
        %v7439 = vsel %vm785, %v7332, 0.0
        %v7440 = vadd.f32 %v7438, %v7439
        %v7441 = vrot.slane %v7440, 4
        %v7442 = vadd.f32 %v7440, %v7441
        %v7443 = vrot.slane %v7442, 2
        %v7444 = vadd.f32 %v7442, %v7443
        %v7445 = vrot.slane %v7444, 1
        %v7446 = vadd.f32 %v7444, %v7445
        %v7447 = vmul.f32 %v7351, 0.020408163
        %v7448 = vmul.f32 %v7370, 0.020408163
        %v7449 = vmul.f32 %v7389, 0.020408163
        %v7450 = vmul.f32 %v7408, 0.020408163
        %v7451 = vmul.f32 %v7427, 0.020408163
        %v7452 = vmul.f32 %v7446, 0.020408163
        %v7453 = vmul.f32 %v7291, %v7291
        %v7454 = vmul.f32 %v7292, %v7292
        %v7455 = vmul.f32 %v7293, %v7293
        %v7456 = vmul.f32 %v7294, %v7294
        %v7457 = vmul.f32 %v7295, %v7295
        %v7458 = vmul.f32 %v7296, %v7296
        %v7459 = vmul.f32 %v7297, %v7297
        %v7460 = vmul.f32 %v7298, %v7298
        %v7461 = vmul.f32 %v7299, %v7299
        %v7462 = vmul.f32 %v7300, %v7300
        %v7463 = vmul.f32 %v7301, %v7301
        %v7464 = vmul.f32 %v7302, %v7302
        %v7465 = vmul.f32 %v7303, %v7303
        %v7466 = vmul.f32 %v7304, %v7304
        %v7467 = vmul.f32 %v7305, %v7305
        %v7468 = vmul.f32 %v7306, %v7306
        %v7469 = vmul.f32 %v7307, %v7307
        %v7470 = vmul.f32 %v7308, %v7308
        %v7471 = vmul.f32 %v7309, %v7309
        %v7472 = vmul.f32 %v7310, %v7310
        %v7473 = vmul.f32 %v7311, %v7311
        %v7474 = vmul.f32 %v7312, %v7312
        %v7475 = vmul.f32 %v7313, %v7313
        %v7476 = vmul.f32 %v7314, %v7314
        %v7477 = vmul.f32 %v7315, %v7315
        %v7478 = vmul.f32 %v7316, %v7316
        %v7479 = vmul.f32 %v7317, %v7317
        %v7480 = vmul.f32 %v7318, %v7318
        %v7481 = vmul.f32 %v7319, %v7319
        %v7482 = vmul.f32 %v7320, %v7320
        %v7483 = vmul.f32 %v7321, %v7321
        %v7484 = vmul.f32 %v7322, %v7322
        %v7485 = vmul.f32 %v7323, %v7323
        %v7486 = vmul.f32 %v7324, %v7324
        %v7487 = vmul.f32 %v7325, %v7325
        %v7488 = vmul.f32 %v7326, %v7326
        %v7489 = vmul.f32 %v7327, %v7327
        %v7490 = vmul.f32 %v7328, %v7328
        %v7491 = vmul.f32 %v7329, %v7329
        %v7492 = vmul.f32 %v7330, %v7330
        %v7493 = vmul.f32 %v7331, %v7331
        %v7494 = vmul.f32 %v7332, %v7332
        %v7495 = vsel %vm785, %v7453, 0.0
        %v7496 = vsel %vm785, %v7459, 0.0
        %v7497 = vadd.f32 %v7495, %v7496
        %v7498 = vsel %vm785, %v7465, 0.0
        %v7499 = vadd.f32 %v7497, %v7498
        %v7500 = vsel %vm785, %v7471, 0.0
        %v7501 = vadd.f32 %v7499, %v7500
        %v7502 = vsel %vm785, %v7477, 0.0
        %v7503 = vadd.f32 %v7501, %v7502
        %v7504 = vsel %vm785, %v7483, 0.0
        %v7505 = vadd.f32 %v7503, %v7504
        %v7506 = vsel %vm785, %v7489, 0.0
        %v7507 = vadd.f32 %v7505, %v7506
        %v7508 = vrot.slane %v7507, 4
        %v7509 = vadd.f32 %v7507, %v7508
        %v7510 = vrot.slane %v7509, 2
        %v7511 = vadd.f32 %v7509, %v7510
        %v7512 = vrot.slane %v7511, 1
        %v7513 = vadd.f32 %v7511, %v7512
        %v7514 = vsel %vm785, %v7454, 0.0
        %v7515 = vsel %vm785, %v7460, 0.0
        %v7516 = vadd.f32 %v7514, %v7515
        %v7517 = vsel %vm785, %v7466, 0.0
        %v7518 = vadd.f32 %v7516, %v7517
        %v7519 = vsel %vm785, %v7472, 0.0
        %v7520 = vadd.f32 %v7518, %v7519
        %v7521 = vsel %vm785, %v7478, 0.0
        %v7522 = vadd.f32 %v7520, %v7521
        %v7523 = vsel %vm785, %v7484, 0.0
        %v7524 = vadd.f32 %v7522, %v7523
        %v7525 = vsel %vm785, %v7490, 0.0
        %v7526 = vadd.f32 %v7524, %v7525
        %v7527 = vrot.slane %v7526, 4
        %v7528 = vadd.f32 %v7526, %v7527
        %v7529 = vrot.slane %v7528, 2
        %v7530 = vadd.f32 %v7528, %v7529
        %v7531 = vrot.slane %v7530, 1
        %v7532 = vadd.f32 %v7530, %v7531
        %v7533 = vsel %vm785, %v7455, 0.0
        %v7534 = vsel %vm785, %v7461, 0.0
        %v7535 = vadd.f32 %v7533, %v7534
        %v7536 = vsel %vm785, %v7467, 0.0
        %v7537 = vadd.f32 %v7535, %v7536
        %v7538 = vsel %vm785, %v7473, 0.0
        %v7539 = vadd.f32 %v7537, %v7538
        %v7540 = vsel %vm785, %v7479, 0.0
        %v7541 = vadd.f32 %v7539, %v7540
        %v7542 = vsel %vm785, %v7485, 0.0
        %v7543 = vadd.f32 %v7541, %v7542
        %v7544 = vsel %vm785, %v7491, 0.0
        %v7545 = vadd.f32 %v7543, %v7544
        %v7546 = vrot.slane %v7545, 4
        %v7547 = vadd.f32 %v7545, %v7546
        %v7548 = vrot.slane %v7547, 2
        %v7549 = vadd.f32 %v7547, %v7548
        %v7550 = vrot.slane %v7549, 1
        %v7551 = vadd.f32 %v7549, %v7550
        %v7552 = vsel %vm785, %v7456, 0.0
        %v7553 = vsel %vm785, %v7462, 0.0
        %v7554 = vadd.f32 %v7552, %v7553
        %v7555 = vsel %vm785, %v7468, 0.0
        %v7556 = vadd.f32 %v7554, %v7555
        %v7557 = vsel %vm785, %v7474, 0.0
        %v7558 = vadd.f32 %v7556, %v7557
        %v7559 = vsel %vm785, %v7480, 0.0
        %v7560 = vadd.f32 %v7558, %v7559
        %v7561 = vsel %vm785, %v7486, 0.0
        %v7562 = vadd.f32 %v7560, %v7561
        %v7563 = vsel %vm785, %v7492, 0.0
        %v7564 = vadd.f32 %v7562, %v7563
        %v7565 = vrot.slane %v7564, 4
        %v7566 = vadd.f32 %v7564, %v7565
        %v7567 = vrot.slane %v7566, 2
        %v7568 = vadd.f32 %v7566, %v7567
        %v7569 = vrot.slane %v7568, 1
        %v7570 = vadd.f32 %v7568, %v7569
        %v7571 = vsel %vm785, %v7457, 0.0
        %v7572 = vsel %vm785, %v7463, 0.0
        %v7573 = vadd.f32 %v7571, %v7572
        %v7574 = vsel %vm785, %v7469, 0.0
        %v7575 = vadd.f32 %v7573, %v7574
        %v7576 = vsel %vm785, %v7475, 0.0
        %v7577 = vadd.f32 %v7575, %v7576
        %v7578 = vsel %vm785, %v7481, 0.0
        %v7579 = vadd.f32 %v7577, %v7578
        %v7580 = vsel %vm785, %v7487, 0.0
        %v7581 = vadd.f32 %v7579, %v7580
        %v7582 = vsel %vm785, %v7493, 0.0
        %v7583 = vadd.f32 %v7581, %v7582
        %v7584 = vrot.slane %v7583, 4
        %v7585 = vadd.f32 %v7583, %v7584
        %v7586 = vrot.slane %v7585, 2
        %v7587 = vadd.f32 %v7585, %v7586
        %v7588 = vrot.slane %v7587, 1
        %v7589 = vadd.f32 %v7587, %v7588
        %v7590 = vsel %vm785, %v7458, 0.0
        %v7591 = vsel %vm785, %v7464, 0.0
        %v7592 = vadd.f32 %v7590, %v7591
        %v7593 = vsel %vm785, %v7470, 0.0
        %v7594 = vadd.f32 %v7592, %v7593
        %v7595 = vsel %vm785, %v7476, 0.0
        %v7596 = vadd.f32 %v7594, %v7595
        %v7597 = vsel %vm785, %v7482, 0.0
        %v7598 = vadd.f32 %v7596, %v7597
        %v7599 = vsel %vm785, %v7488, 0.0
        %v7600 = vadd.f32 %v7598, %v7599
        %v7601 = vsel %vm785, %v7494, 0.0
        %v7602 = vadd.f32 %v7600, %v7601
        %v7603 = vrot.slane %v7602, 4
        %v7604 = vadd.f32 %v7602, %v7603
        %v7605 = vrot.slane %v7604, 2
        %v7606 = vadd.f32 %v7604, %v7605
        %v7607 = vrot.slane %v7606, 1
        %v7608 = vadd.f32 %v7606, %v7607
        %v7609 = vmul.f32 %v7513, 0.020408163
        %v7610 = vmul.f32 %v7532, 0.020408163
        %v7611 = vmul.f32 %v7551, 0.020408163
        %v7612 = vmul.f32 %v7570, 0.020408163
        %v7613 = vmul.f32 %v7589, 0.020408163
        %v7614 = vmul.f32 %v7608, 0.020408163
        %v7615 = vmul.f32 %v7447, %v7447
        %v7616 = vmul.f32 %v7448, %v7448
        %v7617 = vmul.f32 %v7449, %v7449
        %v7618 = vmul.f32 %v7450, %v7450
        %v7619 = vmul.f32 %v7451, %v7451
        %v7620 = vmul.f32 %v7452, %v7452
        %v7621 = vsub.f32 %v7609, %v7615
        %v7622 = vsub.f32 %v7610, %v7616
        %v7623 = vsub.f32 %v7611, %v7617
        %v7624 = vsub.f32 %v7612, %v7618
        %v7625 = vsub.f32 %v7613, %v7619
        %v7626 = vsub.f32 %v7614, %v7620
        %v7627 = vld [vmem:[%s524] sm:$0x3f]
        %v7628 = vadd.f32 %v7621, 1e-05
        %v7629 = vadd.f32 %v7622, 1e-05
        %v7630 = vadd.f32 %v7623, 1e-05
        %v7631 = vadd.f32 %v7624, 1e-05
        %v7632 = vadd.f32 %v7625, 1e-05
        %v7633 = vadd.f32 %v7626, 1e-05
        %v7634 = vrsqrt.pop %v7628
        %v7635 = vmul.f32 %v7634, %v7628
        %v7636 = vmul.f32 %v7635, %v7634
        %v7637 = vmul.f32 0.5, %v7636
        %v7638 = vsub.f32 1.5, %v7637
        %v7639 = vmul.f32 %v7634, %v7638
        %vm7640 = vweird.f32 %v7628
        %vm7641 = vweird.f32 %v7634
        %vm7642 = vmor %vm7640, %vm7641
        %v7643 = vsel %vm7642, %v7634, %v7639
        %v7644 = vrsqrt.pop %v7629
        %v7645 = vmul.f32 %v7644, %v7629
        %v7646 = vmul.f32 %v7645, %v7644
        %v7647 = vmul.f32 0.5, %v7646
        %v7648 = vsub.f32 1.5, %v7647
        %v7649 = vmul.f32 %v7644, %v7648
        %vm7650 = vweird.f32 %v7629
        %vm7651 = vweird.f32 %v7644
        %vm7652 = vmor %vm7650, %vm7651
        %v7653 = vsel %vm7652, %v7644, %v7649
        %v7654 = vrsqrt.pop %v7630
        %v7655 = vmul.f32 %v7654, %v7630
        %v7656 = vmul.f32 %v7655, %v7654
        %v7657 = vmul.f32 0.5, %v7656
        %v7658 = vsub.f32 1.5, %v7657
        %v7659 = vmul.f32 %v7654, %v7658
        %vm7660 = vweird.f32 %v7630
        %vm7661 = vweird.f32 %v7654
        %vm7662 = vmor %vm7660, %vm7661
        %v7663 = vsel %vm7662, %v7654, %v7659
        %v7664 = vrsqrt.pop %v7631
        %v7665 = vmul.f32 %v7664, %v7631
        %v7666 = vmul.f32 %v7665, %v7664
        %v7667 = vmul.f32 0.5, %v7666
        %v7668 = vsub.f32 1.5, %v7667
        %v7669 = vmul.f32 %v7664, %v7668
        %vm7670 = vweird.f32 %v7631
        %vm7671 = vweird.f32 %v7664
        %vm7672 = vmor %vm7670, %vm7671
        %v7673 = vsel %vm7672, %v7664, %v7669
        %v7674 = vrsqrt.pop %v7632
        %v7675 = vmul.f32 %v7674, %v7632
        %v7676 = vmul.f32 %v7675, %v7674
        %v7677 = vmul.f32 0.5, %v7676
        %v7678 = vsub.f32 1.5, %v7677
        %v7679 = vmul.f32 %v7674, %v7678
        %vm7680 = vweird.f32 %v7632
        %vm7681 = vweird.f32 %v7674
        %vm7682 = vmor %vm7680, %vm7681
        %v7683 = vsel %vm7682, %v7674, %v7679
        %v7684 = vrsqrt.pop %v7633
        %v7685 = vmul.f32 %v7684, %v7633
        %v7686 = vmul.f32 %v7685, %v7684
        %v7687 = vmul.f32 0.5, %v7686
        %v7688 = vsub.f32 1.5, %v7687
        %v7689 = vmul.f32 %v7684, %v7688
        %vm7690 = vweird.f32 %v7633
        %vm7691 = vweird.f32 %v7684
        %vm7692 = vmor %vm7690, %vm7691
        %v7693 = vsel %vm7692, %v7684, %v7689
        %v7700 = vrot.slane %v7653, 7
        %v7701 = vrot.slane %v7663, 6
        %v7702 = vrot.slane %v7673, 5
        %v7703 = vrot.slane %v7683, 4
        %v7704 = vrot.slane %v7693, 3
        %v7705 = vsel %vm1158, %v7643, %v7700
        %v7706 = vsel %vm1160, %v7705, %v7701
        %v7707 = vsel %vm1162, %v7702, %v7703
        %v7708 = vsel %vm1164, %v7707, %v7704
        %v7709 = vsel %vm1166, %v7706, %v7708
        %v7711 = vmul.f32 %v7627, %v7709
        %v7712 = vld [vmem:[%s534] sm:$0x3f]
        %v7714 = vperm.slane %v7711, 0
        %v7715 = vperm.slane %v7711, 1
        %v7716 = vperm.slane %v7711, 2
        %v7717 = vperm.slane %v7711, 3
        %v7718 = vperm.slane %v7711, 4
        %v7719 = vperm.slane %v7711, 5
        %v7726 = vmul.f32 %v7447, %v7714
        %v7727 = vmul.f32 %v7448, %v7715
        %v7728 = vmul.f32 %v7449, %v7716
        %v7729 = vmul.f32 %v7450, %v7717
        %v7730 = vmul.f32 %v7451, %v7718
        %v7731 = vmul.f32 %v7452, %v7719
        %v7738 = vrot.slane %v7727, 7
        %v7739 = vrot.slane %v7728, 6
        %v7740 = vrot.slane %v7729, 5
        %v7741 = vrot.slane %v7730, 4
        %v7742 = vrot.slane %v7731, 3
        %v7743 = vsel %vm1158, %v7726, %v7738
        %v7744 = vsel %vm1160, %v7743, %v7739
        %v7745 = vsel %vm1162, %v7740, %v7741
        %v7746 = vsel %vm1164, %v7745, %v7742
        %v7747 = vsel %vm1166, %v7744, %v7746
        %v7749 = vsub.f32 %v7712, %v7747
        %v7750 = vmul.f32 %v7291, %v7714
        %v7751 = vmul.f32 %v7292, %v7715
        %v7752 = vmul.f32 %v7293, %v7716
        %v7753 = vmul.f32 %v7294, %v7717
        %v7754 = vmul.f32 %v7295, %v7718
        %v7755 = vmul.f32 %v7296, %v7719
        %v7756 = vmul.f32 %v7297, %v7714
        %v7757 = vmul.f32 %v7298, %v7715
        %v7758 = vmul.f32 %v7299, %v7716
        %v7759 = vmul.f32 %v7300, %v7717
        %v7760 = vmul.f32 %v7301, %v7718
        %v7761 = vmul.f32 %v7302, %v7719
        %v7762 = vmul.f32 %v7303, %v7714
        %v7763 = vmul.f32 %v7304, %v7715
        %v7764 = vmul.f32 %v7305, %v7716
        %v7765 = vmul.f32 %v7306, %v7717
        %v7766 = vmul.f32 %v7307, %v7718
        %v7767 = vmul.f32 %v7308, %v7719
        %v7768 = vmul.f32 %v7309, %v7714
        %v7769 = vmul.f32 %v7310, %v7715
        %v7770 = vmul.f32 %v7311, %v7716
        %v7771 = vmul.f32 %v7312, %v7717
        %v7772 = vmul.f32 %v7313, %v7718
        %v7773 = vmul.f32 %v7314, %v7719
        %v7774 = vmul.f32 %v7315, %v7714
        %v7775 = vmul.f32 %v7316, %v7715
        %v7776 = vmul.f32 %v7317, %v7716
        %v7777 = vmul.f32 %v7318, %v7717
        %v7778 = vmul.f32 %v7319, %v7718
        %v7779 = vmul.f32 %v7320, %v7719
        %v7780 = vmul.f32 %v7321, %v7714
        %v7781 = vmul.f32 %v7322, %v7715
        %v7782 = vmul.f32 %v7323, %v7716
        %v7783 = vmul.f32 %v7324, %v7717
        %v7784 = vmul.f32 %v7325, %v7718
        %v7785 = vmul.f32 %v7326, %v7719
        %v7786 = vmul.f32 %v7327, %v7714
        %v7787 = vmul.f32 %v7328, %v7715
        %v7788 = vmul.f32 %v7329, %v7716
        %v7789 = vmul.f32 %v7330, %v7717
        %v7790 = vmul.f32 %v7331, %v7718
        %v7791 = vmul.f32 %v7332, %v7719
        %v7793 = vperm.slane %v7749, 0
        %v7794 = vperm.slane %v7749, 1
        %v7795 = vperm.slane %v7749, 2
        %v7796 = vperm.slane %v7749, 3
        %v7797 = vperm.slane %v7749, 4
        %v7798 = vperm.slane %v7749, 5
        %v7805 = vadd.f32 %v7750, %v7793
        %v7806 = vadd.f32 %v7751, %v7794
        %v7807 = vadd.f32 %v7752, %v7795
        %v7808 = vadd.f32 %v7753, %v7796
        %v7809 = vadd.f32 %v7754, %v7797
        %v7810 = vadd.f32 %v7755, %v7798
        %v7811 = vadd.f32 %v7756, %v7793
        %v7812 = vadd.f32 %v7757, %v7794
        %v7813 = vadd.f32 %v7758, %v7795
        %v7814 = vadd.f32 %v7759, %v7796
        %v7815 = vadd.f32 %v7760, %v7797
        %v7816 = vadd.f32 %v7761, %v7798
        %v7817 = vadd.f32 %v7762, %v7793
        %v7818 = vadd.f32 %v7763, %v7794
        %v7819 = vadd.f32 %v7764, %v7795
        %v7820 = vadd.f32 %v7765, %v7796
        %v7821 = vadd.f32 %v7766, %v7797
        %v7822 = vadd.f32 %v7767, %v7798
        %v7823 = vadd.f32 %v7768, %v7793
        %v7824 = vadd.f32 %v7769, %v7794
        %v7825 = vadd.f32 %v7770, %v7795
        %v7826 = vadd.f32 %v7771, %v7796
        %v7827 = vadd.f32 %v7772, %v7797
        %v7828 = vadd.f32 %v7773, %v7798
        %v7829 = vadd.f32 %v7774, %v7793
        %v7830 = vadd.f32 %v7775, %v7794
        %v7831 = vadd.f32 %v7776, %v7795
        %v7832 = vadd.f32 %v7777, %v7796
        %v7833 = vadd.f32 %v7778, %v7797
        %v7834 = vadd.f32 %v7779, %v7798
        %v7835 = vadd.f32 %v7780, %v7793
        %v7836 = vadd.f32 %v7781, %v7794
        %v7837 = vadd.f32 %v7782, %v7795
        %v7838 = vadd.f32 %v7783, %v7796
        %v7839 = vadd.f32 %v7784, %v7797
        %v7840 = vadd.f32 %v7785, %v7798
        %v7841 = vadd.f32 %v7786, %v7793
        %v7842 = vadd.f32 %v7787, %v7794
        %v7843 = vadd.f32 %v7788, %v7795
        %v7844 = vadd.f32 %v7789, %v7796
        %v7845 = vadd.f32 %v7790, %v7797
        %v7846 = vadd.f32 %v7791, %v7798
        %v7847 = vmax.f32 %v7805, 0.0
        %v7848 = vmax.f32 %v7806, 0.0
        %v7849 = vmax.f32 %v7807, 0.0
        %v7850 = vmax.f32 %v7808, 0.0
        %v7851 = vmax.f32 %v7809, 0.0
        %v7852 = vmax.f32 %v7810, 0.0
        %v7853 = vmax.f32 %v7811, 0.0
        %v7854 = vmax.f32 %v7812, 0.0
        %v7855 = vmax.f32 %v7813, 0.0
        %v7856 = vmax.f32 %v7814, 0.0
        %v7857 = vmax.f32 %v7815, 0.0
        %v7858 = vmax.f32 %v7816, 0.0
        %v7859 = vmax.f32 %v7817, 0.0
        %v7860 = vmax.f32 %v7818, 0.0
        %v7861 = vmax.f32 %v7819, 0.0
        %v7862 = vmax.f32 %v7820, 0.0
        %v7863 = vmax.f32 %v7821, 0.0
        %v7864 = vmax.f32 %v7822, 0.0
        %v7865 = vmax.f32 %v7823, 0.0
        %v7866 = vmax.f32 %v7824, 0.0
        %v7867 = vmax.f32 %v7825, 0.0
        %v7868 = vmax.f32 %v7826, 0.0
        %v7869 = vmax.f32 %v7827, 0.0
        %v7870 = vmax.f32 %v7828, 0.0
        %v7871 = vmax.f32 %v7829, 0.0
        %v7872 = vmax.f32 %v7830, 0.0
        %v7873 = vmax.f32 %v7831, 0.0
        %v7874 = vmax.f32 %v7832, 0.0
        %v7875 = vmax.f32 %v7833, 0.0
        %v7876 = vmax.f32 %v7834, 0.0
        %v7877 = vmax.f32 %v7835, 0.0
        %v7878 = vmax.f32 %v7836, 0.0
        %v7879 = vmax.f32 %v7837, 0.0
        %v7880 = vmax.f32 %v7838, 0.0
        %v7881 = vmax.f32 %v7839, 0.0
        %v7882 = vmax.f32 %v7840, 0.0
        %v7883 = vmax.f32 %v7841, 0.0
        %v7884 = vmax.f32 %v7842, 0.0
        %v7885 = vmax.f32 %v7843, 0.0
        %v7886 = vmax.f32 %v7844, 0.0
        %v7887 = vmax.f32 %v7845, 0.0
        %v7888 = vmax.f32 %v7846, 0.0
        %v7931 = vrot.slane %v7848, 7
        %v7932 = vrot.slane %v7849, 6
        %v7933 = vrot.slane %v7850, 5
        %v7934 = vrot.slane %v7851, 4
        %v7935 = vrot.slane %v7852, 3
        %v7936 = vrot.slane %v7854, 7
        %v7937 = vrot.slane %v7855, 6
        %v7938 = vrot.slane %v7856, 5
        %v7939 = vrot.slane %v7857, 4
        %v7940 = vrot.slane %v7858, 3
        %v7941 = vrot.slane %v7860, 7
        %v7942 = vrot.slane %v7861, 6
        %v7943 = vrot.slane %v7862, 5
        %v7944 = vrot.slane %v7863, 4
        %v7945 = vrot.slane %v7864, 3
        %v7946 = vrot.slane %v7866, 7
        %v7947 = vrot.slane %v7867, 6
        %v7948 = vrot.slane %v7868, 5
        %v7949 = vrot.slane %v7869, 4
        %v7950 = vrot.slane %v7870, 3
        %v7951 = vrot.slane %v7872, 7
        %v7952 = vrot.slane %v7873, 6
        %v7953 = vrot.slane %v7874, 5
        %v7954 = vrot.slane %v7875, 4
        %v7955 = vrot.slane %v7876, 3
        %v7956 = vrot.slane %v7878, 7
        %v7957 = vrot.slane %v7879, 6
        %v7958 = vrot.slane %v7880, 5
        %v7959 = vrot.slane %v7881, 4
        %v7960 = vrot.slane %v7882, 3
        %v7961 = vrot.slane %v7884, 7
        %v7962 = vrot.slane %v7885, 6
        %v7963 = vrot.slane %v7886, 5
        %v7964 = vrot.slane %v7887, 4
        %v7965 = vrot.slane %v7888, 3
        %v7966 = vsel %vm1158, %v7847, %v7931
        %v7967 = vsel %vm1160, %v7966, %v7932
        %v7968 = vsel %vm1162, %v7933, %v7934
        %v7969 = vsel %vm1164, %v7968, %v7935
        %v7970 = vsel %vm1166, %v7967, %v7969
        %vm7971 = vcmask 1041409
        %v7972 = vsel %vm7971, %v7847, %v7931
        %vm7973 = vcmask 1042433
        %v7974 = vsel %vm7973, %v7972, %v7932
        %vm7975 = vcmask 1044484
        %v7976 = vsel %vm7975, %v7933, %v7934
        %vm7977 = vcmask 1045508
        %v7978 = vsel %vm7977, %v7976, %v7935
        %vm7979 = vcmask 1043457
        %v7980 = vsel %vm7979, %v7974, %v7978
        %v7981 = vrot.slane %v7980, 1
        %vm7982 = vcmask 1042434
        %v7983 = vsel %vm7982, %v7847, %v7931
        %vm7984 = vcmask 1043458
        %v7985 = vsel %vm7984, %v7983, %v7932
        %vm7986 = vcmask 1045509
        %v7987 = vsel %vm7986, %v7933, %v7934
        %vm7988 = vcmask 1046533
        %v7989 = vsel %vm7988, %v7987, %v7935
        %vm7990 = vcmask 1044482
        %v7991 = vsel %vm7990, %v7985, %v7989
        %v7992 = vrot.slane %v7991, 2
        %v7993 = vsel %vm1162, %v7847, %v7931
        %v7994 = vsel %vm1164, %v7993, %v7932
        %vm7995 = vcmask 1046534
        %v7996 = vsel %vm7995, %v7933, %v7934
        %v7997 = vsel %vm3697, %v7935, %v7996
        %vm7998 = vcmask 1045507
        %v7999 = vsel %vm7998, %v7994, %v7997
        %v8000 = vrot.slane %v7999, 3
        %v8001 = vsel %vm7975, %v7847, %v7931
        %v8002 = vsel %vm7977, %v8001, %v7932
        %v8003 = vsel %vm785, %v7934, %v7933
        %vm8004 = vcmask 1046529
        %v8005 = vsel %vm8004, %v7935, %v8003
        %vm8006 = vcmask 1046532
        %v8007 = vsel %vm8006, %v8002, %v8005
        %v8008 = vrot.slane %v8007, 4
        %v8009 = vsel %vm7986, %v7847, %v7931
        %v8010 = vsel %vm7988, %v8009, %v7932
        %v8011 = vsel %vm1158, %v7933, %v7934
        %v8012 = vsel %vm1160, %v8011, %v7935
        %v8013 = vsel %vm4997, %v8012, %v8010
        %v8014 = vrot.slane %v8013, 5
        %v8015 = vsel %vm7995, %v7847, %v7931
        %v8016 = vsel %vm3697, %v7932, %v8015
        %v8017 = vsel %vm7971, %v7933, %v7934
        %v8018 = vsel %vm7973, %v8017, %v7935
        %vm8019 = vcmask 1045505
        %v8020 = vsel %vm8019, %v8018, %v8016
        %v8021 = vrot.slane %v8020, 6
        %v8022 = vsel %vm1158, %v7853, %v7936
        %v8023 = vsel %vm1160, %v8022, %v7937
        %v8024 = vsel %vm1162, %v7938, %v7939
        %v8025 = vsel %vm1164, %v8024, %v7940
        %v8026 = vsel %vm1166, %v8023, %v8025
        %v8027 = vsel %vm7971, %v7853, %v7936
        %v8028 = vsel %vm7973, %v8027, %v7937
        %v8029 = vsel %vm7975, %v7938, %v7939
        %v8030 = vsel %vm7977, %v8029, %v7940
        %v8031 = vsel %vm7979, %v8028, %v8030
        %v8032 = vrot.slane %v8031, 1
        %v8033 = vsel %vm7982, %v7853, %v7936
        %v8034 = vsel %vm7984, %v8033, %v7937
        %v8035 = vsel %vm7986, %v7938, %v7939
        %v8036 = vsel %vm7988, %v8035, %v7940
        %v8037 = vsel %vm7990, %v8034, %v8036
        %v8038 = vrot.slane %v8037, 2
        %v8039 = vsel %vm1162, %v7853, %v7936
        %v8040 = vsel %vm1164, %v8039, %v7937
        %v8041 = vsel %vm7995, %v7938, %v7939
        %v8042 = vsel %vm3697, %v7940, %v8041
        %v8043 = vsel %vm7998, %v8040, %v8042
        %v8044 = vrot.slane %v8043, 3
        %v8045 = vsel %vm7975, %v7853, %v7936
        %v8046 = vsel %vm7977, %v8045, %v7937
        %v8047 = vsel %vm785, %v7939, %v7938
        %v8048 = vsel %vm8004, %v7940, %v8047
        %v8049 = vsel %vm8006, %v8046, %v8048
        %v8050 = vrot.slane %v8049, 4
        %v8051 = vsel %vm7986, %v7853, %v7936
        %v8052 = vsel %vm7988, %v8051, %v7937
        %v8053 = vsel %vm1158, %v7938, %v7939
        %v8054 = vsel %vm1160, %v8053, %v7940
        %v8055 = vsel %vm4997, %v8054, %v8052
        %v8056 = vrot.slane %v8055, 5
        %v8057 = vsel %vm7995, %v7853, %v7936
        %v8058 = vsel %vm3697, %v7937, %v8057
        %v8059 = vsel %vm7971, %v7938, %v7939
        %v8060 = vsel %vm7973, %v8059, %v7940
        %v8061 = vsel %vm8019, %v8060, %v8058
        %v8062 = vrot.slane %v8061, 6
        %v8063 = vsel %vm1158, %v7859, %v7941
        %v8064 = vsel %vm1160, %v8063, %v7942
        %v8065 = vsel %vm1162, %v7943, %v7944
        %v8066 = vsel %vm1164, %v8065, %v7945
        %v8067 = vsel %vm1166, %v8064, %v8066
        %v8068 = vsel %vm7971, %v7859, %v7941
        %v8069 = vsel %vm7973, %v8068, %v7942
        %v8070 = vsel %vm7975, %v7943, %v7944
        %v8071 = vsel %vm7977, %v8070, %v7945
        %v8072 = vsel %vm7979, %v8069, %v8071
        %v8073 = vrot.slane %v8072, 1
        %v8074 = vsel %vm7982, %v7859, %v7941
        %v8075 = vsel %vm7984, %v8074, %v7942
        %v8076 = vsel %vm7986, %v7943, %v7944
        %v8077 = vsel %vm7988, %v8076, %v7945
        %v8078 = vsel %vm7990, %v8075, %v8077
        %v8079 = vrot.slane %v8078, 2
        %v8080 = vsel %vm1162, %v7859, %v7941
        %v8081 = vsel %vm1164, %v8080, %v7942
        %v8082 = vsel %vm7995, %v7943, %v7944
        %v8083 = vsel %vm3697, %v7945, %v8082
        %v8084 = vsel %vm7998, %v8081, %v8083
        %v8085 = vrot.slane %v8084, 3
        %v8086 = vsel %vm7975, %v7859, %v7941
        %v8087 = vsel %vm7977, %v8086, %v7942
        %v8088 = vsel %vm785, %v7944, %v7943
        %v8089 = vsel %vm8004, %v7945, %v8088
        %v8090 = vsel %vm8006, %v8087, %v8089
        %v8091 = vrot.slane %v8090, 4
        %v8092 = vsel %vm7986, %v7859, %v7941
        %v8093 = vsel %vm7988, %v8092, %v7942
        %v8094 = vsel %vm1158, %v7943, %v7944
        %v8095 = vsel %vm1160, %v8094, %v7945
        %v8096 = vsel %vm4997, %v8095, %v8093
        %v8097 = vrot.slane %v8096, 5
        %v8098 = vsel %vm7995, %v7859, %v7941
        %v8099 = vsel %vm3697, %v7942, %v8098
        %v8100 = vsel %vm7971, %v7943, %v7944
        %v8101 = vsel %vm7973, %v8100, %v7945
        %v8102 = vsel %vm8019, %v8101, %v8099
        %v8103 = vrot.slane %v8102, 6
        %v8104 = vsel %vm1158, %v7865, %v7946
        %v8105 = vsel %vm1160, %v8104, %v7947
        %v8106 = vsel %vm1162, %v7948, %v7949
        %v8107 = vsel %vm1164, %v8106, %v7950
        %v8108 = vsel %vm1166, %v8105, %v8107
        %v8109 = vsel %vm7971, %v7865, %v7946
        %v8110 = vsel %vm7973, %v8109, %v7947
        %v8111 = vsel %vm7975, %v7948, %v7949
        %v8112 = vsel %vm7977, %v8111, %v7950
        %v8113 = vsel %vm7979, %v8110, %v8112
        %v8114 = vrot.slane %v8113, 1
        %v8115 = vsel %vm7982, %v7865, %v7946
        %v8116 = vsel %vm7984, %v8115, %v7947
        %v8117 = vsel %vm7986, %v7948, %v7949
        %v8118 = vsel %vm7988, %v8117, %v7950
        %v8119 = vsel %vm7990, %v8116, %v8118
        %v8120 = vrot.slane %v8119, 2
        %v8121 = vsel %vm1162, %v7865, %v7946
        %v8122 = vsel %vm1164, %v8121, %v7947
        %v8123 = vsel %vm7995, %v7948, %v7949
        %v8124 = vsel %vm3697, %v7950, %v8123
        %v8125 = vsel %vm7998, %v8122, %v8124
        %v8126 = vrot.slane %v8125, 3
        %v8127 = vsel %vm7975, %v7865, %v7946
        %v8128 = vsel %vm7977, %v8127, %v7947
        %v8129 = vsel %vm785, %v7949, %v7948
        %v8130 = vsel %vm8004, %v7950, %v8129
        %v8131 = vsel %vm8006, %v8128, %v8130
        %v8132 = vrot.slane %v8131, 4
        %v8133 = vsel %vm7986, %v7865, %v7946
        %v8134 = vsel %vm7988, %v8133, %v7947
        %v8135 = vsel %vm1158, %v7948, %v7949
        %v8136 = vsel %vm1160, %v8135, %v7950
        %v8137 = vsel %vm4997, %v8136, %v8134
        %v8138 = vrot.slane %v8137, 5
        %v8139 = vsel %vm7995, %v7865, %v7946
        %v8140 = vsel %vm3697, %v7947, %v8139
        %v8141 = vsel %vm7971, %v7948, %v7949
        %v8142 = vsel %vm7973, %v8141, %v7950
        %v8143 = vsel %vm8019, %v8142, %v8140
        %v8144 = vrot.slane %v8143, 6
        %v8145 = vsel %vm1158, %v7871, %v7951
        %v8146 = vsel %vm1160, %v8145, %v7952
        %v8147 = vsel %vm1162, %v7953, %v7954
        %v8148 = vsel %vm1164, %v8147, %v7955
        %v8149 = vsel %vm1166, %v8146, %v8148
        %v8150 = vsel %vm7971, %v7871, %v7951
        %v8151 = vsel %vm7973, %v8150, %v7952
        %v8152 = vsel %vm7975, %v7953, %v7954
        %v8153 = vsel %vm7977, %v8152, %v7955
        %v8154 = vsel %vm7979, %v8151, %v8153
        %v8155 = vrot.slane %v8154, 1
        %v8156 = vsel %vm7982, %v7871, %v7951
        %v8157 = vsel %vm7984, %v8156, %v7952
        %v8158 = vsel %vm7986, %v7953, %v7954
        %v8159 = vsel %vm7988, %v8158, %v7955
        %v8160 = vsel %vm7990, %v8157, %v8159
        %v8161 = vrot.slane %v8160, 2
        %v8162 = vsel %vm1162, %v7871, %v7951
        %v8163 = vsel %vm1164, %v8162, %v7952
        %v8164 = vsel %vm7995, %v7953, %v7954
        %v8165 = vsel %vm3697, %v7955, %v8164
        %v8166 = vsel %vm7998, %v8163, %v8165
        %v8167 = vrot.slane %v8166, 3
        %v8168 = vsel %vm7975, %v7871, %v7951
        %v8169 = vsel %vm7977, %v8168, %v7952
        %v8170 = vsel %vm785, %v7954, %v7953
        %v8171 = vsel %vm8004, %v7955, %v8170
        %v8172 = vsel %vm8006, %v8169, %v8171
        %v8173 = vrot.slane %v8172, 4
        %v8174 = vsel %vm7986, %v7871, %v7951
        %v8175 = vsel %vm7988, %v8174, %v7952
        %v8176 = vsel %vm1158, %v7953, %v7954
        %v8177 = vsel %vm1160, %v8176, %v7955
        %v8178 = vsel %vm4997, %v8177, %v8175
        %v8179 = vrot.slane %v8178, 5
        %v8180 = vsel %vm7995, %v7871, %v7951
        %v8181 = vsel %vm3697, %v7952, %v8180
        %v8182 = vsel %vm7971, %v7953, %v7954
        %v8183 = vsel %vm7973, %v8182, %v7955
        %v8184 = vsel %vm8019, %v8183, %v8181
        %v8185 = vrot.slane %v8184, 6
        %v8186 = vsel %vm1158, %v7877, %v7956
        %v8187 = vsel %vm1160, %v8186, %v7957
        %v8188 = vsel %vm1162, %v7958, %v7959
        %v8189 = vsel %vm1164, %v8188, %v7960
        %v8190 = vsel %vm1166, %v8187, %v8189
        %v8191 = vsel %vm7971, %v7877, %v7956
        %v8192 = vsel %vm7973, %v8191, %v7957
        %v8193 = vsel %vm7975, %v7958, %v7959
        %v8194 = vsel %vm7977, %v8193, %v7960
        %v8195 = vsel %vm7979, %v8192, %v8194
        %v8196 = vrot.slane %v8195, 1
        %v8197 = vsel %vm7982, %v7877, %v7956
        %v8198 = vsel %vm7984, %v8197, %v7957
        %v8199 = vsel %vm7986, %v7958, %v7959
        %v8200 = vsel %vm7988, %v8199, %v7960
        %v8201 = vsel %vm7990, %v8198, %v8200
        %v8202 = vrot.slane %v8201, 2
        %v8203 = vsel %vm1162, %v7877, %v7956
        %v8204 = vsel %vm1164, %v8203, %v7957
        %v8205 = vsel %vm7995, %v7958, %v7959
        %v8206 = vsel %vm3697, %v7960, %v8205
        %v8207 = vsel %vm7998, %v8204, %v8206
        %v8208 = vrot.slane %v8207, 3
        %v8209 = vsel %vm7975, %v7877, %v7956
        %v8210 = vsel %vm7977, %v8209, %v7957
        %v8211 = vsel %vm785, %v7959, %v7958
        %v8212 = vsel %vm8004, %v7960, %v8211
        %v8213 = vsel %vm8006, %v8210, %v8212
        %v8214 = vrot.slane %v8213, 4
        %v8215 = vsel %vm7986, %v7877, %v7956
        %v8216 = vsel %vm7988, %v8215, %v7957
        %v8217 = vsel %vm1158, %v7958, %v7959
        %v8218 = vsel %vm1160, %v8217, %v7960
        %v8219 = vsel %vm4997, %v8218, %v8216
        %v8220 = vrot.slane %v8219, 5
        %v8221 = vsel %vm7995, %v7877, %v7956
        %v8222 = vsel %vm3697, %v7957, %v8221
        %v8223 = vsel %vm7971, %v7958, %v7959
        %v8224 = vsel %vm7973, %v8223, %v7960
        %v8225 = vsel %vm8019, %v8224, %v8222
        %v8226 = vrot.slane %v8225, 6
        %v8227 = vsel %vm1158, %v7883, %v7961
        %v8228 = vsel %vm1160, %v8227, %v7962
        %v8229 = vsel %vm1162, %v7963, %v7964
        %v8230 = vsel %vm1164, %v8229, %v7965
        %v8231 = vsel %vm1166, %v8228, %v8230
        %v8232 = vsel %vm7971, %v7883, %v7961
        %v8233 = vsel %vm7973, %v8232, %v7962
        %v8234 = vsel %vm7975, %v7963, %v7964
        %v8235 = vsel %vm7977, %v8234, %v7965
        %v8236 = vsel %vm7979, %v8233, %v8235
        %v8237 = vrot.slane %v8236, 1
        %v8238 = vsel %vm7982, %v7883, %v7961
        %v8239 = vsel %vm7984, %v8238, %v7962
        %v8240 = vsel %vm7986, %v7963, %v7964
        %v8241 = vsel %vm7988, %v8240, %v7965
        %v8242 = vsel %vm7990, %v8239, %v8241
        %v8243 = vrot.slane %v8242, 2
        %v8244 = vsel %vm1162, %v7883, %v7961
        %v8245 = vsel %vm1164, %v8244, %v7962
        %v8246 = vsel %vm7995, %v7963, %v7964
        %v8247 = vsel %vm3697, %v7965, %v8246
        %v8248 = vsel %vm7998, %v8245, %v8247
        %v8249 = vrot.slane %v8248, 3
        %v8250 = vsel %vm7975, %v7883, %v7961
        %v8251 = vsel %vm7977, %v8250, %v7962
        %v8252 = vsel %vm785, %v7964, %v7963
        %v8253 = vsel %vm8004, %v7965, %v8252
        %v8254 = vsel %vm8006, %v8251, %v8253
        %v8255 = vrot.slane %v8254, 4
        %v8256 = vsel %vm7986, %v7883, %v7961
        %v8257 = vsel %vm7988, %v8256, %v7962
        %v8258 = vsel %vm1158, %v7963, %v7964
        %v8259 = vsel %vm1160, %v8258, %v7965
        %v8260 = vsel %vm4997, %v8259, %v8257
        %v8261 = vrot.slane %v8260, 5
        %v8262 = vsel %vm7995, %v7883, %v7961
        %v8263 = vsel %vm3697, %v7962, %v8262
        %v8264 = vsel %vm7971, %v7963, %v7964
        %v8265 = vsel %vm7973, %v8264, %v7965
        %v8266 = vsel %vm8019, %v8265, %v8263
        %v8267 = vrot.slane %v8266, 6
        %v8268 = vld [vmem:[%s544] sm:$0xff]
        %v8269 = vld [vmem:[%s544 + $0x8] sm:$0xff]
        %v8270 = vld [vmem:[%s544 + $0x10] sm:$0xff]
        %v8271 = vld [vmem:[%s544 + $0x18] sm:$0xff]
        %v8272 = vld [vmem:[%s544 + $0x20] sm:$0xff]
        %v8273 = vld [vmem:[%s544 + $0x28] sm:$0xff]
        %v8274 = vld [vmem:[%s544 + $0x30] sm:$0xff]
        %v8275 = vld [vmem:[%s544 + $0x38] sm:$0xff]
        %v8276 = vld [vmem:[%s544 + $0x40] sm:$0xff]
        %v8277 = vld [vmem:[%s544 + $0x48] sm:$0xff]
        %v8278 = vld [vmem:[%s544 + $0x50] sm:$0xff]
        %v8279 = vld [vmem:[%s544 + $0x58] sm:$0xff]
        %v8280 = vld [vmem:[%s544 + $0x60] sm:$0xff]
        %v8281 = vld [vmem:[%s544 + $0x68] sm:$0xff]
        %v8282 = vld [vmem:[%s544 + $0x70] sm:$0xff]
        %v8283 = vld [vmem:[%s544 + $0x78] sm:$0xff]
        %v8284 = vld [vmem:[%s544 + $0x80] sm:$0xff]
        %v8285 = vld [vmem:[%s544 + $0x88] sm:$0xff]
        %v8286 = vld [vmem:[%s544 + $0x90] sm:$0xff]
        %v8287 = vld [vmem:[%s544 + $0x98] sm:$0xff]
        %v8288 = vld [vmem:[%s544 + $0xa0] sm:$0xff]
        %v8289 = vld [vmem:[%s544 + $0xa8] sm:$0xff]
        %v8290 = vld [vmem:[%s544 + $0xb0] sm:$0xff]
        %v8291 = vld [vmem:[%s544 + $0xb8] sm:$0xff]
        %v8292 = vld [vmem:[%s544 + $0xc0] sm:$0xff]
        %v8293 = vld [vmem:[%s544 + $0xc8] sm:$0xff]
        %v8294 = vld [vmem:[%s544 + $0xd0] sm:$0xff]
        %v8295 = vld [vmem:[%s544 + $0xd8] sm:$0xff]
        %v8296 = vld [vmem:[%s544 + $0xe0] sm:$0xff]
        %v8297 = vld [vmem:[%s544 + $0xe8] sm:$0xff]
        %v8298 = vld [vmem:[%s544 + $0xf0] sm:$0xff]
        %v8299 = vld [vmem:[%s544 + $0xf8] sm:$0xff]
        %v8300 = vld [vmem:[%s544 + $0x100] sm:$0xff]
        %v8301 = vld [vmem:[%s544 + $0x108] sm:$0xff]
        %v8302 = vld [vmem:[%s544 + $0x110] sm:$0xff]
        %v8303 = vld [vmem:[%s544 + $0x118] sm:$0xff]
        %v8304 = vld [vmem:[%s544 + $0x120] sm:$0xff]
        %v8305 = vld [vmem:[%s544 + $0x128] sm:$0xff]
        %v8306 = vld [vmem:[%s544 + $0x130] sm:$0xff]
        %v8307 = vld [vmem:[%s544 + $0x138] sm:$0xff]
        %v8308 = vld [vmem:[%s544 + $0x140] sm:$0xff]
        %v8309 = vld [vmem:[%s544 + $0x148] sm:$0xff]
        %v8310 = vld [vmem:[%s544 + $0x150] sm:$0xff]
        %v8311 = vld [vmem:[%s544 + $0x158] sm:$0xff]
        %v8312 = vld [vmem:[%s544 + $0x160] sm:$0xff]
        %v8313 = vld [vmem:[%s544 + $0x168] sm:$0xff]
        %v8314 = vld [vmem:[%s544 + $0x170] sm:$0xff]
        %v8315 = vld [vmem:[%s544 + $0x178] sm:$0xff]
        %v8316 = vld [vmem:[%s544 + $0x180] sm:$0xff]
        %v8317 = vld [vmem:[%s544 + $0x188] sm:$0xff]
        %v8318 = vld [vmem:[%s544 + $0x190] sm:$0xff]
        %v8319 = vld [vmem:[%s544 + $0x198] sm:$0xff]
        %v8320 = vld [vmem:[%s544 + $0x1a0] sm:$0xff]
        %v8321 = vld [vmem:[%s544 + $0x1a8] sm:$0xff]
        %v8322 = vld [vmem:[%s544 + $0x1b0] sm:$0xff]
        %v8323 = vld [vmem:[%s544 + $0x1b8] sm:$0xff]
        %v8324 = vld [vmem:[%s544 + $0x1c0] sm:$0xff]
        %v8325 = vld [vmem:[%s544 + $0x1c8] sm:$0xff]
        %v8326 = vld [vmem:[%s544 + $0x1d0] sm:$0xff]
        %v8327 = vld [vmem:[%s544 + $0x1d8] sm:$0xff]
        %v8328 = vld [vmem:[%s544 + $0x1e0] sm:$0xff]
        %v8329 = vld [vmem:[%s544 + $0x1e8] sm:$0xff]
        %v8330 = vld [vmem:[%s544 + $0x1f0] sm:$0xff]
        %v8331 = vld [vmem:[%s544 + $0x1f8] sm:$0xff]
        %v8332 = vld [vmem:[%s544 + $0x200] sm:$0xff]
        %v8333 = vld [vmem:[%s544 + $0x208] sm:$0xff]
        %v8334 = vld [vmem:[%s544 + $0x210] sm:$0xff]
        %v8335 = vld [vmem:[%s544 + $0x218] sm:$0xff]
        %v8336 = vld [vmem:[%s544 + $0x220] sm:$0xff]
        %v8337 = vld [vmem:[%s544 + $0x228] sm:$0xff]
        %v8338 = vld [vmem:[%s544 + $0x230] sm:$0xff]
        %v8339 = vld [vmem:[%s544 + $0x238] sm:$0xff]
        %v8340 = vld [vmem:[%s544 + $0x240] sm:$0xff]
        %v8341 = vld [vmem:[%s544 + $0x248] sm:$0xff]
        %v8342 = vld [vmem:[%s544 + $0x250] sm:$0xff]
        %v8343 = vld [vmem:[%s544 + $0x258] sm:$0xff]
        %v8344 = vld [vmem:[%s544 + $0x260] sm:$0xff]
        %v8345 = vld [vmem:[%s544 + $0x268] sm:$0xff]
        %v8346 = vld [vmem:[%s544 + $0x270] sm:$0xff]
        %v8347 = vld [vmem:[%s544 + $0x278] sm:$0xff]
        %v8348 = vld [vmem:[%s544 + $0x280] sm:$0xff]
        %v8349 = vld [vmem:[%s544 + $0x288] sm:$0xff]
        %v8350 = vld [vmem:[%s544 + $0x290] sm:$0xff]
        %v8351 = vld [vmem:[%s544 + $0x298] sm:$0xff]
        %v8352 = vld [vmem:[%s544 + $0x2a0] sm:$0xff]
        %v8353 = vld [vmem:[%s544 + $0x2a8] sm:$0xff]
        %v8354 = vld [vmem:[%s544 + $0x2b0] sm:$0xff]
        %v8355 = vld [vmem:[%s544 + $0x2b8] sm:$0xff]
        %v8356 = vld [vmem:[%s544 + $0x2c0] sm:$0xff]
        %v8357 = vld [vmem:[%s544 + $0x2c8] sm:$0xff]
        %v8358 = vld [vmem:[%s544 + $0x2d0] sm:$0xff]
        %v8359 = vld [vmem:[%s544 + $0x2d8] sm:$0xff]
        %v8360 = vld [vmem:[%s544 + $0x2e0] sm:$0xff]
        %v8361 = vld [vmem:[%s544 + $0x2e8] sm:$0xff]
        %v8362 = vld [vmem:[%s544 + $0x2f0] sm:$0xff]
        %v8363 = vld [vmem:[%s544 + $0x2f8] sm:$0xff]
        %v8364 = vld [vmem:[%s544 + $0x300] sm:$0xff]
        %v8365 = vld [vmem:[%s544 + $0x308] sm:$0xff]
        %v8366 = vld [vmem:[%s544 + $0x310] sm:$0xff]
        %v8367 = vld [vmem:[%s544 + $0x318] sm:$0xff]
        %v8368 = vld [vmem:[%s544 + $0x320] sm:$0xff]
        %v8369 = vld [vmem:[%s544 + $0x328] sm:$0xff]
        %v8370 = vld [vmem:[%s544 + $0x330] sm:$0xff]
        %v8371 = vld [vmem:[%s544 + $0x338] sm:$0xff]
        %v8372 = vld [vmem:[%s544 + $0x340] sm:$0xff]
        %v8373 = vld [vmem:[%s544 + $0x348] sm:$0xff]
        %v8374 = vld [vmem:[%s544 + $0x350] sm:$0xff]
        %v8375 = vld [vmem:[%s544 + $0x358] sm:$0xff]
        %v8376 = vld [vmem:[%s544 + $0x360] sm:$0xff]
        %v8377 = vld [vmem:[%s544 + $0x368] sm:$0xff]
        %v8378 = vld [vmem:[%s544 + $0x370] sm:$0xff]
        %v8379 = vld [vmem:[%s544 + $0x378] sm:$0xff]
        %v8380 = vld [vmem:[%s544 + $0x380] sm:$0xff]
        %v8381 = vld [vmem:[%s544 + $0x388] sm:$0xff]
        %v8382 = vld [vmem:[%s544 + $0x390] sm:$0xff]
        %v8383 = vld [vmem:[%s544 + $0x398] sm:$0xff]
        %v8384 = vld [vmem:[%s544 + $0x3a0] sm:$0xff]
        %v8385 = vld [vmem:[%s544 + $0x3a8] sm:$0xff]
        %v8386 = vld [vmem:[%s544 + $0x3b0] sm:$0xff]
        %v8387 = vld [vmem:[%s544 + $0x3b8] sm:$0xff]
        %v8388 = vld [vmem:[%s544 + $0x3c0] sm:$0xff]
        %v8389 = vld [vmem:[%s544 + $0x3c8] sm:$0xff]
        %v8390 = vld [vmem:[%s544 + $0x3d0] sm:$0xff]
        %v8391 = vld [vmem:[%s544 + $0x3d8] sm:$0xff]
        %v8392 = vld [vmem:[%s544 + $0x3e0] sm:$0xff]
        %v8393 = vld [vmem:[%s544 + $0x3e8] sm:$0xff]
        %v8394 = vld [vmem:[%s544 + $0x3f0] sm:$0xff]
        %v8395 = vld [vmem:[%s544 + $0x3f8] sm:$0xff]
        %v8396 = vld [vmem:[%s544 + $0x400] sm:$0xff]
        %v8397 = vld [vmem:[%s544 + $0x408] sm:$0xff]
        %v8398 = vld [vmem:[%s544 + $0x410] sm:$0xff]
        %v8399 = vld [vmem:[%s544 + $0x418] sm:$0xff]
        %v8400 = vld [vmem:[%s544 + $0x420] sm:$0xff]
        %v8401 = vld [vmem:[%s544 + $0x428] sm:$0xff]
        %v8402 = vld [vmem:[%s544 + $0x430] sm:$0xff]
        %v8403 = vld [vmem:[%s544 + $0x438] sm:$0xff]
        %v8404 = vld [vmem:[%s544 + $0x440] sm:$0xff]
        %v8405 = vld [vmem:[%s544 + $0x448] sm:$0xff]
        %v8406 = vld [vmem:[%s544 + $0x450] sm:$0xff]
        %v8407 = vld [vmem:[%s544 + $0x458] sm:$0xff]
        %v8408 = vld [vmem:[%s544 + $0x460] sm:$0xff]
        %v8409 = vld [vmem:[%s544 + $0x468] sm:$0xff]
        %v8410 = vld [vmem:[%s544 + $0x470] sm:$0xff]
        %v8411 = vld [vmem:[%s544 + $0x478] sm:$0xff]
        %v8412 = vld [vmem:[%s544 + $0x480] sm:$0xff]
        %v8413 = vld [vmem:[%s544 + $0x488] sm:$0xff]
        %v8414 = vld [vmem:[%s544 + $0x490] sm:$0xff]
        %v8415 = vld [vmem:[%s544 + $0x498] sm:$0xff]
        %v8416 = vld [vmem:[%s544 + $0x4a0] sm:$0xff]
        %v8417 = vld [vmem:[%s544 + $0x4a8] sm:$0xff]
        %v8418 = vld [vmem:[%s544 + $0x4b0] sm:$0xff]
        %v8419 = vld [vmem:[%s544 + $0x4b8] sm:$0xff]
        %v8420 = vld [vmem:[%s544 + $0x4c0] sm:$0xff]
        %v8421 = vld [vmem:[%s544 + $0x4c8] sm:$0xff]
        %v8422 = vld [vmem:[%s544 + $0x4d0] sm:$0xff]
        %v8423 = vld [vmem:[%s544 + $0x4d8] sm:$0xff]
        %v8424 = vld [vmem:[%s544 + $0x4e0] sm:$0xff]
        %v8425 = vld [vmem:[%s544 + $0x4e8] sm:$0xff]
        %v8426 = vld [vmem:[%s544 + $0x4f0] sm:$0xff]
        %v8427 = vld [vmem:[%s544 + $0x4f8] sm:$0xff]
        %v8428 = vld [vmem:[%s544 + $0x500] sm:$0xff]
        %v8429 = vld [vmem:[%s544 + $0x508] sm:$0xff]
        %v8430 = vld [vmem:[%s544 + $0x510] sm:$0xff]
        %v8431 = vld [vmem:[%s544 + $0x518] sm:$0xff]
        %v8432 = vld [vmem:[%s544 + $0x520] sm:$0xff]
        %v8433 = vld [vmem:[%s544 + $0x528] sm:$0xff]
        %v8434 = vld [vmem:[%s544 + $0x530] sm:$0xff]
        %v8435 = vld [vmem:[%s544 + $0x538] sm:$0xff]
        %v8436 = vld [vmem:[%s544 + $0x540] sm:$0xff]
        %v8437 = vld [vmem:[%s544 + $0x548] sm:$0xff]
        %v8438 = vld [vmem:[%s544 + $0x550] sm:$0xff]
        %v8439 = vld [vmem:[%s544 + $0x558] sm:$0xff]
        %v8440 = vld [vmem:[%s544 + $0x560] sm:$0xff]
        %v8441 = vld [vmem:[%s544 + $0x568] sm:$0xff]
        %v8442 = vld [vmem:[%s544 + $0x570] sm:$0xff]
        %v8443 = vld [vmem:[%s544 + $0x578] sm:$0xff]
        %v8444 = vld [vmem:[%s544 + $0x580] sm:$0xff]
        %v8445 = vld [vmem:[%s544 + $0x588] sm:$0xff]
        %v8446 = vld [vmem:[%s544 + $0x590] sm:$0xff]
        %v8447 = vld [vmem:[%s544 + $0x598] sm:$0xff]
        %v8448 = vld [vmem:[%s544 + $0x5a0] sm:$0xff]
        %v8449 = vld [vmem:[%s544 + $0x5a8] sm:$0xff]
        %v8450 = vld [vmem:[%s544 + $0x5b0] sm:$0xff]
        %v8451 = vld [vmem:[%s544 + $0x5b8] sm:$0xff]
        %v8452 = vld [vmem:[%s544 + $0x5c0] sm:$0xff]
        %v8453 = vld [vmem:[%s544 + $0x5c8] sm:$0xff]
        %v8454 = vld [vmem:[%s544 + $0x5d0] sm:$0xff]
        %v8455 = vld [vmem:[%s544 + $0x5d8] sm:$0xff]
        %v8456 = vld [vmem:[%s544 + $0x5e0] sm:$0xff]
        %v8457 = vld [vmem:[%s544 + $0x5e8] sm:$0xff]
        %v8458 = vld [vmem:[%s544 + $0x5f0] sm:$0xff]
        %v8459 = vld [vmem:[%s544 + $0x5f8] sm:$0xff]
        %8460 = vst [vmem:[#allocation1] ss:$9 sm:$0xff] %v7970
        %s8461 = scalar_lea.vmem [#allocation1], 1
        %8462 = vst [vmem:[%s8461] ss:$9 sm:$0xff] %v7981
        %s8463 = scalar_lea.vmem [#allocation1], 2
        %8464 = vst [vmem:[%s8463] ss:$9 sm:$0xff] %v7992
        %s8465 = scalar_lea.vmem [#allocation1], 3
        %8466 = vst [vmem:[%s8465] ss:$9 sm:$0xff] %v8000
        %s8467 = scalar_lea.vmem [#allocation1], 4
        %8468 = vst [vmem:[%s8467] ss:$9 sm:$0xff] %v8008
        %s8469 = scalar_lea.vmem [#allocation1], 5
        %8470 = vst [vmem:[%s8469] ss:$9 sm:$0xff] %v8014
        %s8471 = scalar_lea.vmem [#allocation1], 6
        %8472 = vst [vmem:[%s8471] ss:$9 sm:$0xff] %v8021
        %s8473 = scalar_lea.vmem [#allocation1], 7
        %8474 = vst [vmem:[%s8473] ss:$9 sm:$0xff] %v8026
        %v8475 = vld [vmem:[#allocation1] sm:$0xff]
        %v8476 = vld [vmem:[#allocation1 + $0x9] sm:$0xff]
        %v8477 = vld [vmem:[#allocation1 + $0x12] sm:$0xff]
        %v8478 = vld [vmem:[#allocation1 + $0x1b] sm:$0xff]
        %v8479 = vld [vmem:[#allocation1 + $0x24] sm:$0xff]
        %v8480 = vld [vmem:[#allocation1 + $0x2d] sm:$0xff]
        %8481 = vst [vmem:[#allocation1] ss:$9 sm:$0xff] %v8032
        %8482 = vst [vmem:[%s8461] ss:$9 sm:$0xff] %v8038
        %8483 = vst [vmem:[%s8463] ss:$9 sm:$0xff] %v8044
        %8484 = vst [vmem:[%s8465] ss:$9 sm:$0xff] %v8050
        %8485 = vst [vmem:[%s8467] ss:$9 sm:$0xff] %v8056
        %8486 = vst [vmem:[%s8469] ss:$9 sm:$0xff] %v8062
        %8487 = vst [vmem:[%s8471] ss:$9 sm:$0xff] %v8067
        %8488 = vst [vmem:[%s8473] ss:$9 sm:$0xff] %v8073
        %v8489 = vld [vmem:[#allocation1] sm:$0xff]
        %v8490 = vld [vmem:[#allocation1 + $0x9] sm:$0xff]
        %v8491 = vld [vmem:[#allocation1 + $0x12] sm:$0xff]
        %v8492 = vld [vmem:[#allocation1 + $0x1b] sm:$0xff]
        %v8493 = vld [vmem:[#allocation1 + $0x24] sm:$0xff]
        %v8494 = vld [vmem:[#allocation1 + $0x2d] sm:$0xff]
        %8495 = vst [vmem:[#allocation1] ss:$9 sm:$0xff] %v8079
        %8496 = vst [vmem:[%s8461] ss:$9 sm:$0xff] %v8085
        %8497 = vst [vmem:[%s8463] ss:$9 sm:$0xff] %v8091
        %8498 = vst [vmem:[%s8465] ss:$9 sm:$0xff] %v8097
        %8499 = vst [vmem:[%s8467] ss:$9 sm:$0xff] %v8103
        %8500 = vst [vmem:[%s8469] ss:$9 sm:$0xff] %v8108
        %8501 = vst [vmem:[%s8471] ss:$9 sm:$0xff] %v8114
        %8502 = vst [vmem:[%s8473] ss:$9 sm:$0xff] %v8120
        %v8503 = vld [vmem:[#allocation1] sm:$0xff]
        %v8504 = vld [vmem:[#allocation1 + $0x9] sm:$0xff]
        %v8505 = vld [vmem:[#allocation1 + $0x12] sm:$0xff]
        %v8506 = vld [vmem:[#allocation1 + $0x1b] sm:$0xff]
        %v8507 = vld [vmem:[#allocation1 + $0x24] sm:$0xff]
        %v8508 = vld [vmem:[#allocation1 + $0x2d] sm:$0xff]
        %8509 = vst [vmem:[#allocation1] ss:$9 sm:$0xff] %v8126
        %8510 = vst [vmem:[%s8461] ss:$9 sm:$0xff] %v8132
        %8511 = vst [vmem:[%s8463] ss:$9 sm:$0xff] %v8138
        %8512 = vst [vmem:[%s8465] ss:$9 sm:$0xff] %v8144
        %8513 = vst [vmem:[%s8467] ss:$9 sm:$0xff] %v8149
        %8514 = vst [vmem:[%s8469] ss:$9 sm:$0xff] %v8155
        %8515 = vst [vmem:[%s8471] ss:$9 sm:$0xff] %v8161
        %8516 = vst [vmem:[%s8473] ss:$9 sm:$0xff] %v8167
        %v8517 = vld [vmem:[#allocation1] sm:$0xff]
        %v8518 = vld [vmem:[#allocation1 + $0x9] sm:$0xff]
        %v8519 = vld [vmem:[#allocation1 + $0x12] sm:$0xff]
        %v8520 = vld [vmem:[#allocation1 + $0x1b] sm:$0xff]
        %v8521 = vld [vmem:[#allocation1 + $0x24] sm:$0xff]
        %v8522 = vld [vmem:[#allocation1 + $0x2d] sm:$0xff]
        %8523 = vst [vmem:[#allocation1] ss:$9 sm:$0xff] %v8173
        %8524 = vst [vmem:[%s8461] ss:$9 sm:$0xff] %v8179
        %8525 = vst [vmem:[%s8463] ss:$9 sm:$0xff] %v8185
        %8526 = vst [vmem:[%s8465] ss:$9 sm:$0xff] %v8190
        %8527 = vst [vmem:[%s8467] ss:$9 sm:$0xff] %v8196
        %8528 = vst [vmem:[%s8469] ss:$9 sm:$0xff] %v8202
        %8529 = vst [vmem:[%s8471] ss:$9 sm:$0xff] %v8208
        %8530 = vst [vmem:[%s8473] ss:$9 sm:$0xff] %v8214
        %v8531 = vld [vmem:[#allocation1] sm:$0xff]
        %v8532 = vld [vmem:[#allocation1 + $0x9] sm:$0xff]
        %v8533 = vld [vmem:[#allocation1 + $0x12] sm:$0xff]
        %v8534 = vld [vmem:[#allocation1 + $0x1b] sm:$0xff]
        %v8535 = vld [vmem:[#allocation1 + $0x24] sm:$0xff]
        %v8536 = vld [vmem:[#allocation1 + $0x2d] sm:$0xff]
        %8537 = vst [vmem:[#allocation1] ss:$9 sm:$0xff] %v8220
        %8538 = vst [vmem:[%s8461] ss:$9 sm:$0xff] %v8226
        %8539 = vst [vmem:[%s8463] ss:$9 sm:$0xff] %v8231
        %8540 = vst [vmem:[%s8465] ss:$9 sm:$0xff] %v8237
        %8541 = vst [vmem:[%s8467] ss:$9 sm:$0xff] %v8243
        %8542 = vst [vmem:[%s8469] ss:$9 sm:$0xff] %v8249
        %8543 = vst [vmem:[%s8471] ss:$9 sm:$0xff] %v8255
        %8544 = vst [vmem:[%s8473] ss:$9 sm:$0xff] %v8261
        %v8545 = vld [vmem:[#allocation1] sm:$0xff]
        %v8546 = vld [vmem:[#allocation1 + $0x9] sm:$0xff]
        %v8547 = vld [vmem:[#allocation1 + $0x12] sm:$0xff]
        %v8548 = vld [vmem:[#allocation1 + $0x1b] sm:$0xff]
        %v8549 = vld [vmem:[#allocation1 + $0x24] sm:$0xff]
        %v8550 = vld [vmem:[#allocation1 + $0x2d] sm:$0xff]
        %8551 = vst [vmem:[#allocation1] ss:$9 sm:$0xff] %v8267
        %v8552 = vld [vmem:[#allocation1] sm:$0xff]
        %v8553 = vld [vmem:[#allocation1 + $0x9] sm:$0xff]
        %v8554 = vld [vmem:[#allocation1 + $0x12] sm:$0xff]
        %v8555 = vld [vmem:[#allocation1 + $0x1b] sm:$0xff]
        %v8556 = vld [vmem:[#allocation1 + $0x24] sm:$0xff]
        %v8557 = vld [vmem:[#allocation1 + $0x2d] sm:$0xff]
        %8600 = vmatpush.msra.mxu0 %v8298
        %8601 = vmatpush.msra.mxu0 %v8296
        %8602 = vmatpush.msra.mxu0 %v8294
        %8603 = vmatpush.msra.mxu0 %v8292
        %8604 = vmatpush.msra.mxu0 %v8290
        %8605 = vmatpush.msra.mxu0 %v8288
        %8606 = vmatpush.msra.mxu0 %v8286
        %8607 = vmatpush.msra.mxu0 %v8284
        %8608 = vmatpush.msra.mxu0 %v8282
        %8609 = vmatpush.msra.mxu0 %v8280
        %8610 = vmatpush.msra.mxu0 %v8278
        %8611 = vmatpush.msra.mxu0 %v8276
        %8612 = vmatpush.msra.mxu0 %v8274
        %8613 = vmatpush.msra.mxu0 %v8272
        %8614 = vmatpush.msra.mxu0 %v8270
        %8615 = vmatpush.msra.mxu0 %v8268
        %8616 = vmatmul.f32.gmra.mxu0 %v8475
        %v8617 = vpop.f32.mrf.mxu0
        %v8618 = vadd.f32 0.0, %v8617
        %8619 = vmatmul.f32.gmra.mxu0 %v8489
        %v8620 = vpop.f32.mrf.mxu0
        %v8621 = vadd.f32 0.0, %v8620
        %8622 = vmatmul.f32.gmra.mxu0 %v8503
        %v8623 = vpop.f32.mrf.mxu0
        %v8624 = vadd.f32 0.0, %v8623
        %8625 = vmatmul.f32.gmra.mxu0 %v8517
        %v8626 = vpop.f32.mrf.mxu0
        %v8627 = vadd.f32 0.0, %v8626
        %8628 = vmatmul.f32.gmra.mxu0 %v8531
        %v8629 = vpop.f32.mrf.mxu0
        %v8630 = vadd.f32 0.0, %v8629
        %8631 = vmatmul.f32.gmra.mxu0 %v8545
        %v8632 = vpop.f32.mrf.mxu0
        %v8633 = vadd.f32 0.0, %v8632
        %8634 = vmatmul.f32.gmra.mxu0 %v8552
        %v8635 = vpop.f32.mrf.mxu0
        %v8636 = vadd.f32 0.0, %v8635
        %8637 = vdwg.mxu0
        %8638 = vmatpush.msra.mxu0 %v8330
        %8639 = vmatpush.msra.mxu0 %v8328
        %8640 = vmatpush.msra.mxu0 %v8326
        %8641 = vmatpush.msra.mxu0 %v8324
        %8642 = vmatpush.msra.mxu0 %v8322
        %8643 = vmatpush.msra.mxu0 %v8320
        %8644 = vmatpush.msra.mxu0 %v8318
        %8645 = vmatpush.msra.mxu0 %v8316
        %8646 = vmatpush.msra.mxu0 %v8314
        %8647 = vmatpush.msra.mxu0 %v8312
        %8648 = vmatpush.msra.mxu0 %v8310
        %8649 = vmatpush.msra.mxu0 %v8308
        %8650 = vmatpush.msra.mxu0 %v8306
        %8651 = vmatpush.msra.mxu0 %v8304
        %8652 = vmatpush.msra.mxu0 %v8302
        %8653 = vmatpush.msra.mxu0 %v8300
        %8654 = vmatmul.f32.gmra.mxu0 %v8476
        %v8655 = vpop.f32.mrf.mxu0
        %v8656 = vadd.f32 %v8618, %v8655
        %8657 = vmatmul.f32.gmra.mxu0 %v8490
        %v8658 = vpop.f32.mrf.mxu0
        %v8659 = vadd.f32 %v8621, %v8658
        %8660 = vmatmul.f32.gmra.mxu0 %v8504
        %v8661 = vpop.f32.mrf.mxu0
        %v8662 = vadd.f32 %v8624, %v8661
        %8663 = vmatmul.f32.gmra.mxu0 %v8518
        %v8664 = vpop.f32.mrf.mxu0
        %v8665 = vadd.f32 %v8627, %v8664
        %8666 = vmatmul.f32.gmra.mxu0 %v8532
        %v8667 = vpop.f32.mrf.mxu0
        %v8668 = vadd.f32 %v8630, %v8667
        %8669 = vmatmul.f32.gmra.mxu0 %v8546
        %v8670 = vpop.f32.mrf.mxu0
        %v8671 = vadd.f32 %v8633, %v8670
        %8672 = vmatmul.f32.gmra.mxu0 %v8553
        %v8673 = vpop.f32.mrf.mxu0
        %v8674 = vadd.f32 %v8636, %v8673
        %8675 = vdwg.mxu0
        %8676 = vmatpush.msra.mxu0 %v8362
        %8677 = vmatpush.msra.mxu0 %v8360
        %8678 = vmatpush.msra.mxu0 %v8358
        %8679 = vmatpush.msra.mxu0 %v8356
        %8680 = vmatpush.msra.mxu0 %v8354
        %8681 = vmatpush.msra.mxu0 %v8352
        %8682 = vmatpush.msra.mxu0 %v8350
        %8683 = vmatpush.msra.mxu0 %v8348
        %8684 = vmatpush.msra.mxu0 %v8346
        %8685 = vmatpush.msra.mxu0 %v8344
        %8686 = vmatpush.msra.mxu0 %v8342
        %8687 = vmatpush.msra.mxu0 %v8340
        %8688 = vmatpush.msra.mxu0 %v8338
        %8689 = vmatpush.msra.mxu0 %v8336
        %8690 = vmatpush.msra.mxu0 %v8334
        %8691 = vmatpush.msra.mxu0 %v8332
        %8692 = vmatmul.f32.gmra.mxu0 %v8477
        %v8693 = vpop.f32.mrf.mxu0
        %v8694 = vadd.f32 %v8656, %v8693
        %8695 = vmatmul.f32.gmra.mxu0 %v8491
        %v8696 = vpop.f32.mrf.mxu0
        %v8697 = vadd.f32 %v8659, %v8696
        %8698 = vmatmul.f32.gmra.mxu0 %v8505
        %v8699 = vpop.f32.mrf.mxu0
        %v8700 = vadd.f32 %v8662, %v8699
        %8701 = vmatmul.f32.gmra.mxu0 %v8519
        %v8702 = vpop.f32.mrf.mxu0
        %v8703 = vadd.f32 %v8665, %v8702
        %8704 = vmatmul.f32.gmra.mxu0 %v8533
        %v8705 = vpop.f32.mrf.mxu0
        %v8706 = vadd.f32 %v8668, %v8705
        %8707 = vmatmul.f32.gmra.mxu0 %v8547
        %v8708 = vpop.f32.mrf.mxu0
        %v8709 = vadd.f32 %v8671, %v8708
        %8710 = vmatmul.f32.gmra.mxu0 %v8554
        %v8711 = vpop.f32.mrf.mxu0
        %v8712 = vadd.f32 %v8674, %v8711
        %8713 = vdwg.mxu0
        %8714 = vmatpush.msra.mxu0 %v8394
        %8715 = vmatpush.msra.mxu0 %v8392
        %8716 = vmatpush.msra.mxu0 %v8390
        %8717 = vmatpush.msra.mxu0 %v8388
        %8718 = vmatpush.msra.mxu0 %v8386
        %8719 = vmatpush.msra.mxu0 %v8384
        %8720 = vmatpush.msra.mxu0 %v8382
        %8721 = vmatpush.msra.mxu0 %v8380
        %8722 = vmatpush.msra.mxu0 %v8378
        %8723 = vmatpush.msra.mxu0 %v8376
        %8724 = vmatpush.msra.mxu0 %v8374
        %8725 = vmatpush.msra.mxu0 %v8372
        %8726 = vmatpush.msra.mxu0 %v8370
        %8727 = vmatpush.msra.mxu0 %v8368
        %8728 = vmatpush.msra.mxu0 %v8366
        %8729 = vmatpush.msra.mxu0 %v8364
        %8730 = vmatmul.f32.gmra.mxu0 %v8478
        %v8731 = vpop.f32.mrf.mxu0
        %v8732 = vadd.f32 %v8694, %v8731
        %8733 = vmatmul.f32.gmra.mxu0 %v8492
        %v8734 = vpop.f32.mrf.mxu0
        %v8735 = vadd.f32 %v8697, %v8734
        %8736 = vmatmul.f32.gmra.mxu0 %v8506
        %v8737 = vpop.f32.mrf.mxu0
        %v8738 = vadd.f32 %v8700, %v8737
        %8739 = vmatmul.f32.gmra.mxu0 %v8520
        %v8740 = vpop.f32.mrf.mxu0
        %v8741 = vadd.f32 %v8703, %v8740
        %8742 = vmatmul.f32.gmra.mxu0 %v8534
        %v8743 = vpop.f32.mrf.mxu0
        %v8744 = vadd.f32 %v8706, %v8743
        %8745 = vmatmul.f32.gmra.mxu0 %v8548
        %v8746 = vpop.f32.mrf.mxu0
        %v8747 = vadd.f32 %v8709, %v8746
        %8748 = vmatmul.f32.gmra.mxu0 %v8555
        %v8749 = vpop.f32.mrf.mxu0
        %v8750 = vadd.f32 %v8712, %v8749
        %8751 = vdwg.mxu0
        %8752 = vmatpush.msra.mxu0 %v8426
        %8753 = vmatpush.msra.mxu0 %v8424
        %8754 = vmatpush.msra.mxu0 %v8422
        %8755 = vmatpush.msra.mxu0 %v8420
        %8756 = vmatpush.msra.mxu0 %v8418
        %8757 = vmatpush.msra.mxu0 %v8416
        %8758 = vmatpush.msra.mxu0 %v8414
        %8759 = vmatpush.msra.mxu0 %v8412
        %8760 = vmatpush.msra.mxu0 %v8410
        %8761 = vmatpush.msra.mxu0 %v8408
        %8762 = vmatpush.msra.mxu0 %v8406
        %8763 = vmatpush.msra.mxu0 %v8404
        %8764 = vmatpush.msra.mxu0 %v8402
        %8765 = vmatpush.msra.mxu0 %v8400
        %8766 = vmatpush.msra.mxu0 %v8398
        %8767 = vmatpush.msra.mxu0 %v8396
        %8768 = vmatmul.f32.gmra.mxu0 %v8479
        %v8769 = vpop.f32.mrf.mxu0
        %v8770 = vadd.f32 %v8732, %v8769
        %8771 = vmatmul.f32.gmra.mxu0 %v8493
        %v8772 = vpop.f32.mrf.mxu0
        %v8773 = vadd.f32 %v8735, %v8772
        %8774 = vmatmul.f32.gmra.mxu0 %v8507
        %v8775 = vpop.f32.mrf.mxu0
        %v8776 = vadd.f32 %v8738, %v8775
        %8777 = vmatmul.f32.gmra.mxu0 %v8521
        %v8778 = vpop.f32.mrf.mxu0
        %v8779 = vadd.f32 %v8741, %v8778
        %8780 = vmatmul.f32.gmra.mxu0 %v8535
        %v8781 = vpop.f32.mrf.mxu0
        %v8782 = vadd.f32 %v8744, %v8781
        %8783 = vmatmul.f32.gmra.mxu0 %v8549
        %v8784 = vpop.f32.mrf.mxu0
        %v8785 = vadd.f32 %v8747, %v8784
        %8786 = vmatmul.f32.gmra.mxu0 %v8556
        %v8787 = vpop.f32.mrf.mxu0
        %v8788 = vadd.f32 %v8750, %v8787
        %8789 = vdwg.mxu0
        %8790 = vmatpush.msra.mxu0 %v8458
        %8791 = vmatpush.msra.mxu0 %v8456
        %8792 = vmatpush.msra.mxu0 %v8454
        %8793 = vmatpush.msra.mxu0 %v8452
        %8794 = vmatpush.msra.mxu0 %v8450
        %8795 = vmatpush.msra.mxu0 %v8448
        %8796 = vmatpush.msra.mxu0 %v8446
        %8797 = vmatpush.msra.mxu0 %v8444
        %8798 = vmatpush.msra.mxu0 %v8442
        %8799 = vmatpush.msra.mxu0 %v8440
        %8800 = vmatpush.msra.mxu0 %v8438
        %8801 = vmatpush.msra.mxu0 %v8436
        %8802 = vmatpush.msra.mxu0 %v8434
        %8803 = vmatpush.msra.mxu0 %v8432
        %8804 = vmatpush.msra.mxu0 %v8430
        %8805 = vmatpush.msra.mxu0 %v8428
        %8806 = vmatmul.f32.gmra.mxu0 %v8480
        %v8807 = vpop.f32.mrf.mxu0
        %v8808 = vadd.f32 %v8770, %v8807
        %8809 = vmatmul.f32.gmra.mxu0 %v8494
        %v8810 = vpop.f32.mrf.mxu0
        %v8811 = vadd.f32 %v8773, %v8810
        %8812 = vmatmul.f32.gmra.mxu0 %v8508
        %v8813 = vpop.f32.mrf.mxu0
        %v8814 = vadd.f32 %v8776, %v8813
        %8815 = vmatmul.f32.gmra.mxu0 %v8522
        %v8816 = vpop.f32.mrf.mxu0
        %v8817 = vadd.f32 %v8779, %v8816
        %8818 = vmatmul.f32.gmra.mxu0 %v8536
        %v8819 = vpop.f32.mrf.mxu0
        %v8820 = vadd.f32 %v8782, %v8819
        %8821 = vmatmul.f32.gmra.mxu0 %v8550
        %v8822 = vpop.f32.mrf.mxu0
        %v8823 = vadd.f32 %v8785, %v8822
        %8824 = vmatmul.f32.gmra.mxu0 %v8557
        %v8825 = vpop.f32.mrf.mxu0
        %v8826 = vadd.f32 %v8788, %v8825
        %8827 = vdwg.mxu0
        %8828 = vmatpush.msra.mxu0 %v8299
        %8829 = vmatpush.msra.mxu0 %v8297
        %8830 = vmatpush.msra.mxu0 %v8295
        %8831 = vmatpush.msra.mxu0 %v8293
        %8832 = vmatpush.msra.mxu0 %v8291
        %8833 = vmatpush.msra.mxu0 %v8289
        %8834 = vmatpush.msra.mxu0 %v8287
        %8835 = vmatpush.msra.mxu0 %v8285
        %8836 = vmatpush.msra.mxu0 %v8283
        %8837 = vmatpush.msra.mxu0 %v8281
        %8838 = vmatpush.msra.mxu0 %v8279
        %8839 = vmatpush.msra.mxu0 %v8277
        %8840 = vmatpush.msra.mxu0 %v8275
        %8841 = vmatpush.msra.mxu0 %v8273
        %8842 = vmatpush.msra.mxu0 %v8271
        %8843 = vmatpush.msra.mxu0 %v8269
        %8844 = vmatmul.f32.gmra.mxu0 %v8475
        %v8845 = vpop.f32.mrf.mxu0
        %v8846 = vadd.f32 0.0, %v8845
        %8847 = vmatmul.f32.gmra.mxu0 %v8489
        %v8848 = vpop.f32.mrf.mxu0
        %v8849 = vadd.f32 0.0, %v8848
        %8850 = vmatmul.f32.gmra.mxu0 %v8503
        %v8851 = vpop.f32.mrf.mxu0
        %v8852 = vadd.f32 0.0, %v8851
        %8853 = vmatmul.f32.gmra.mxu0 %v8517
        %v8854 = vpop.f32.mrf.mxu0
        %v8855 = vadd.f32 0.0, %v8854
        %8856 = vmatmul.f32.gmra.mxu0 %v8531
        %v8857 = vpop.f32.mrf.mxu0
        %v8858 = vadd.f32 0.0, %v8857
        %8859 = vmatmul.f32.gmra.mxu0 %v8545
        %v8860 = vpop.f32.mrf.mxu0
        %v8861 = vadd.f32 0.0, %v8860
        %8862 = vmatmul.f32.gmra.mxu0 %v8552
        %v8863 = vpop.f32.mrf.mxu0
        %v8864 = vadd.f32 0.0, %v8863
        %8865 = vdwg.mxu0
        %8866 = vmatpush.msra.mxu0 %v8331
        %8867 = vmatpush.msra.mxu0 %v8329
        %8868 = vmatpush.msra.mxu0 %v8327
        %8869 = vmatpush.msra.mxu0 %v8325
        %8870 = vmatpush.msra.mxu0 %v8323
        %8871 = vmatpush.msra.mxu0 %v8321
        %8872 = vmatpush.msra.mxu0 %v8319
        %8873 = vmatpush.msra.mxu0 %v8317
        %8874 = vmatpush.msra.mxu0 %v8315
        %8875 = vmatpush.msra.mxu0 %v8313
        %8876 = vmatpush.msra.mxu0 %v8311
        %8877 = vmatpush.msra.mxu0 %v8309
        %8878 = vmatpush.msra.mxu0 %v8307
        %8879 = vmatpush.msra.mxu0 %v8305
        %8880 = vmatpush.msra.mxu0 %v8303
        %8881 = vmatpush.msra.mxu0 %v8301
        %8882 = vmatmul.f32.gmra.mxu0 %v8476
        %v8883 = vpop.f32.mrf.mxu0
        %v8884 = vadd.f32 %v8846, %v8883
        %8885 = vmatmul.f32.gmra.mxu0 %v8490
        %v8886 = vpop.f32.mrf.mxu0
        %v8887 = vadd.f32 %v8849, %v8886
        %8888 = vmatmul.f32.gmra.mxu0 %v8504
        %v8889 = vpop.f32.mrf.mxu0
        %v8890 = vadd.f32 %v8852, %v8889
        %8891 = vmatmul.f32.gmra.mxu0 %v8518
        %v8892 = vpop.f32.mrf.mxu0
        %v8893 = vadd.f32 %v8855, %v8892
        %8894 = vmatmul.f32.gmra.mxu0 %v8532
        %v8895 = vpop.f32.mrf.mxu0
        %v8896 = vadd.f32 %v8858, %v8895
        %8897 = vmatmul.f32.gmra.mxu0 %v8546
        %v8898 = vpop.f32.mrf.mxu0
        %v8899 = vadd.f32 %v8861, %v8898
        %8900 = vmatmul.f32.gmra.mxu0 %v8553
        %v8901 = vpop.f32.mrf.mxu0
        %v8902 = vadd.f32 %v8864, %v8901
        %8903 = vdwg.mxu0
        %8904 = vmatpush.msra.mxu0 %v8363
        %8905 = vmatpush.msra.mxu0 %v8361
        %8906 = vmatpush.msra.mxu0 %v8359
        %8907 = vmatpush.msra.mxu0 %v8357
        %8908 = vmatpush.msra.mxu0 %v8355
        %8909 = vmatpush.msra.mxu0 %v8353
        %8910 = vmatpush.msra.mxu0 %v8351
        %8911 = vmatpush.msra.mxu0 %v8349
        %8912 = vmatpush.msra.mxu0 %v8347
        %8913 = vmatpush.msra.mxu0 %v8345
        %8914 = vmatpush.msra.mxu0 %v8343
        %8915 = vmatpush.msra.mxu0 %v8341
        %8916 = vmatpush.msra.mxu0 %v8339
        %8917 = vmatpush.msra.mxu0 %v8337
        %8918 = vmatpush.msra.mxu0 %v8335
        %8919 = vmatpush.msra.mxu0 %v8333
        %8920 = vmatmul.f32.gmra.mxu0 %v8477
        %v8921 = vpop.f32.mrf.mxu0
        %v8922 = vadd.f32 %v8884, %v8921
        %8923 = vmatmul.f32.gmra.mxu0 %v8491
        %v8924 = vpop.f32.mrf.mxu0
        %v8925 = vadd.f32 %v8887, %v8924
        %8926 = vmatmul.f32.gmra.mxu0 %v8505
        %v8927 = vpop.f32.mrf.mxu0
        %v8928 = vadd.f32 %v8890, %v8927
        %8929 = vmatmul.f32.gmra.mxu0 %v8519
        %v8930 = vpop.f32.mrf.mxu0
        %v8931 = vadd.f32 %v8893, %v8930
        %8932 = vmatmul.f32.gmra.mxu0 %v8533
        %v8933 = vpop.f32.mrf.mxu0
        %v8934 = vadd.f32 %v8896, %v8933
        %8935 = vmatmul.f32.gmra.mxu0 %v8547
        %v8936 = vpop.f32.mrf.mxu0
        %v8937 = vadd.f32 %v8899, %v8936
        %8938 = vmatmul.f32.gmra.mxu0 %v8554
        %v8939 = vpop.f32.mrf.mxu0
        %v8940 = vadd.f32 %v8902, %v8939
        %8941 = vdwg.mxu0
        %8942 = vmatpush.msra.mxu0 %v8395
        %8943 = vmatpush.msra.mxu0 %v8393
        %8944 = vmatpush.msra.mxu0 %v8391
        %8945 = vmatpush.msra.mxu0 %v8389
        %8946 = vmatpush.msra.mxu0 %v8387
        %8947 = vmatpush.msra.mxu0 %v8385
        %8948 = vmatpush.msra.mxu0 %v8383
        %8949 = vmatpush.msra.mxu0 %v8381
        %8950 = vmatpush.msra.mxu0 %v8379
        %8951 = vmatpush.msra.mxu0 %v8377
        %8952 = vmatpush.msra.mxu0 %v8375
        %8953 = vmatpush.msra.mxu0 %v8373
        %8954 = vmatpush.msra.mxu0 %v8371
        %8955 = vmatpush.msra.mxu0 %v8369
        %8956 = vmatpush.msra.mxu0 %v8367
        %8957 = vmatpush.msra.mxu0 %v8365
        %8958 = vmatmul.f32.gmra.mxu0 %v8478
        %v8959 = vpop.f32.mrf.mxu0
        %v8960 = vadd.f32 %v8922, %v8959
        %8961 = vmatmul.f32.gmra.mxu0 %v8492
        %v8962 = vpop.f32.mrf.mxu0
        %v8963 = vadd.f32 %v8925, %v8962
        %8964 = vmatmul.f32.gmra.mxu0 %v8506
        %v8965 = vpop.f32.mrf.mxu0
        %v8966 = vadd.f32 %v8928, %v8965
        %8967 = vmatmul.f32.gmra.mxu0 %v8520
        %v8968 = vpop.f32.mrf.mxu0
        %v8969 = vadd.f32 %v8931, %v8968
        %8970 = vmatmul.f32.gmra.mxu0 %v8534
        %v8971 = vpop.f32.mrf.mxu0
        %v8972 = vadd.f32 %v8934, %v8971
        %8973 = vmatmul.f32.gmra.mxu0 %v8548
        %v8974 = vpop.f32.mrf.mxu0
        %v8975 = vadd.f32 %v8937, %v8974
        %8976 = vmatmul.f32.gmra.mxu0 %v8555
        %v8977 = vpop.f32.mrf.mxu0
        %v8978 = vadd.f32 %v8940, %v8977
        %8979 = vdwg.mxu0
        %8980 = vmatpush.msra.mxu0 %v8427
        %8981 = vmatpush.msra.mxu0 %v8425
        %8982 = vmatpush.msra.mxu0 %v8423
        %8983 = vmatpush.msra.mxu0 %v8421
        %8984 = vmatpush.msra.mxu0 %v8419
        %8985 = vmatpush.msra.mxu0 %v8417
        %8986 = vmatpush.msra.mxu0 %v8415
        %8987 = vmatpush.msra.mxu0 %v8413
        %8988 = vmatpush.msra.mxu0 %v8411
        %8989 = vmatpush.msra.mxu0 %v8409
        %8990 = vmatpush.msra.mxu0 %v8407
        %8991 = vmatpush.msra.mxu0 %v8405
        %8992 = vmatpush.msra.mxu0 %v8403
        %8993 = vmatpush.msra.mxu0 %v8401
        %8994 = vmatpush.msra.mxu0 %v8399
        %8995 = vmatpush.msra.mxu0 %v8397
        %8996 = vmatmul.f32.gmra.mxu0 %v8479
        %v8997 = vpop.f32.mrf.mxu0
        %v8998 = vadd.f32 %v8960, %v8997
        %8999 = vmatmul.f32.gmra.mxu0 %v8493
        %v9000 = vpop.f32.mrf.mxu0
        %v9001 = vadd.f32 %v8963, %v9000
        %9002 = vmatmul.f32.gmra.mxu0 %v8507
        %v9003 = vpop.f32.mrf.mxu0
        %v9004 = vadd.f32 %v8966, %v9003
        %9005 = vmatmul.f32.gmra.mxu0 %v8521
        %v9006 = vpop.f32.mrf.mxu0
        %v9007 = vadd.f32 %v8969, %v9006
        %9008 = vmatmul.f32.gmra.mxu0 %v8535
        %v9009 = vpop.f32.mrf.mxu0
        %v9010 = vadd.f32 %v8972, %v9009
        %9011 = vmatmul.f32.gmra.mxu0 %v8549
        %v9012 = vpop.f32.mrf.mxu0
        %v9013 = vadd.f32 %v8975, %v9012
        %9014 = vmatmul.f32.gmra.mxu0 %v8556
        %v9015 = vpop.f32.mrf.mxu0
        %v9016 = vadd.f32 %v8978, %v9015
        %9017 = vdwg.mxu0
        %9018 = vmatpush.msra.mxu0 %v8459
        %9019 = vmatpush.msra.mxu0 %v8457
        %9020 = vmatpush.msra.mxu0 %v8455
        %9021 = vmatpush.msra.mxu0 %v8453
        %9022 = vmatpush.msra.mxu0 %v8451
        %9023 = vmatpush.msra.mxu0 %v8449
        %9024 = vmatpush.msra.mxu0 %v8447
        %9025 = vmatpush.msra.mxu0 %v8445
        %9026 = vmatpush.msra.mxu0 %v8443
        %9027 = vmatpush.msra.mxu0 %v8441
        %9028 = vmatpush.msra.mxu0 %v8439
        %9029 = vmatpush.msra.mxu0 %v8437
        %9030 = vmatpush.msra.mxu0 %v8435
        %9031 = vmatpush.msra.mxu0 %v8433
        %9032 = vmatpush.msra.mxu0 %v8431
        %9033 = vmatpush.msra.mxu0 %v8429
        %9034 = vmatmul.f32.gmra.mxu0 %v8480
        %v9035 = vpop.f32.mrf.mxu0
        %v9036 = vadd.f32 %v8998, %v9035
        %9037 = vmatmul.f32.gmra.mxu0 %v8494
        %v9038 = vpop.f32.mrf.mxu0
        %v9039 = vadd.f32 %v9001, %v9038
        %9040 = vmatmul.f32.gmra.mxu0 %v8508
        %v9041 = vpop.f32.mrf.mxu0
        %v9042 = vadd.f32 %v9004, %v9041
        %9043 = vmatmul.f32.gmra.mxu0 %v8522
        %v9044 = vpop.f32.mrf.mxu0
        %v9045 = vadd.f32 %v9007, %v9044
        %9046 = vmatmul.f32.gmra.mxu0 %v8536
        %v9047 = vpop.f32.mrf.mxu0
        %v9048 = vadd.f32 %v9010, %v9047
        %9049 = vmatmul.f32.gmra.mxu0 %v8550
        %v9050 = vpop.f32.mrf.mxu0
        %v9051 = vadd.f32 %v9013, %v9050
        %9052 = vmatmul.f32.gmra.mxu0 %v8557
        %v9053 = vpop.f32.mrf.mxu0
        %v9054 = vadd.f32 %v9016, %v9053
        %9055 = vdwg.mxu0
        // Predicated region
        $region100: #{m_forward.1} parent=66 // pred_check
          %p9056 = pneg %p607
        $region101: #{m_forward.1} parent=66 // pred_check_branch
          %9058 = sbr.rel (%p9056) target = $region103
        $region102: #{m_forward.1} parent=66 // pred_region
          %9059 = vst [vmem:[%s7] sm:$0xff] %v8808
          %9060 = vst [vmem:[%s7 + $0x8] sm:$0xff] %v9036
          %9061 = vst [vmem:[%s7 + $0x10] sm:$0xff] %v8811
          %9062 = vst [vmem:[%s7 + $0x18] sm:$0xff] %v9039
          %9063 = vst [vmem:[%s7 + $0x20] sm:$0xff] %v8814
          %9064 = vst [vmem:[%s7 + $0x28] sm:$0xff] %v9042
          %9065 = vst [vmem:[%s7 + $0x30] sm:$0xff] %v8817
          %9066 = vst [vmem:[%s7 + $0x38] sm:$0xff] %v9045
          %9067 = vst [vmem:[%s7 + $0x40] sm:$0xff] %v8820
          %9068 = vst [vmem:[%s7 + $0x48] sm:$0xff] %v9048
          %9069 = vst [vmem:[%s7 + $0x50] sm:$0xff] %v8823
          %9070 = vst [vmem:[%s7 + $0x58] sm:$0xff] %v9051
          %9071 = vst [vmem:[%s7 + $0x60] sm:$0x1] %v8826
          %9072 = vst [vmem:[%s7 + $0x68] sm:$0x1] %v9054
        $region103: #{m_forward.1} parent=66 // pred_fallthru
          _
        %p9073 = scmp.ne.s32.totalorder %s30, 0
        // Predicated region
        $region104: #{m_forward.1} parent=66 // pred_check
          %p9074 = pneg %p9073
        $region105: #{m_forward.1} parent=66 // pred_check_branch
          %9076 = sbr.rel (%p9074) target = $region107
        $region106: #{m_forward.1} parent=66 // pred_region
          %v9077 = vld [vmem:[%s7] sm:$0xff]
          %v9078 = vld [vmem:[%s7 + $0x8] sm:$0xff]
          %v9079 = vld [vmem:[%s7 + $0x10] sm:$0xff]
          %v9080 = vld [vmem:[%s7 + $0x18] sm:$0xff]
          %v9081 = vld [vmem:[%s7 + $0x20] sm:$0xff]
          %v9082 = vld [vmem:[%s7 + $0x28] sm:$0xff]
          %v9083 = vld [vmem:[%s7 + $0x30] sm:$0xff]
          %v9084 = vld [vmem:[%s7 + $0x38] sm:$0xff]
          %v9085 = vld [vmem:[%s7 + $0x40] sm:$0xff]
          %v9086 = vld [vmem:[%s7 + $0x48] sm:$0xff]
          %v9087 = vld [vmem:[%s7 + $0x50] sm:$0xff]
          %v9088 = vld [vmem:[%s7 + $0x58] sm:$0xff]
          %v9089 = vld [vmem:[%s7 + $0x60] sm:$0x1]
          %v9090 = vld [vmem:[%s7 + $0x68] sm:$0x1]
          %v9091 = vadd.f32 %v9077, %v8808
          %v9092 = vadd.f32 %v9078, %v9036
          %v9093 = vadd.f32 %v9079, %v8811
          %v9094 = vadd.f32 %v9080, %v9039
          %v9095 = vadd.f32 %v9081, %v8814
          %v9096 = vadd.f32 %v9082, %v9042
          %v9097 = vadd.f32 %v9083, %v8817
          %v9098 = vadd.f32 %v9084, %v9045
          %v9099 = vadd.f32 %v9085, %v8820
          %v9100 = vadd.f32 %v9086, %v9048
          %v9101 = vadd.f32 %v9087, %v8823
          %v9102 = vadd.f32 %v9088, %v9051
          %v9103 = vadd.f32 %v9089, %v8826
          %v9104 = vadd.f32 %v9090, %v9054
          %9105 = vst [vmem:[%s7] sm:$0xff] %v9091
          %9106 = vst [vmem:[%s7 + $0x8] sm:$0xff] %v9092
          %9107 = vst [vmem:[%s7 + $0x10] sm:$0xff] %v9093
          %9108 = vst [vmem:[%s7 + $0x18] sm:$0xff] %v9094
          %9109 = vst [vmem:[%s7 + $0x20] sm:$0xff] %v9095
          %9110 = vst [vmem:[%s7 + $0x28] sm:$0xff] %v9096
          %9111 = vst [vmem:[%s7 + $0x30] sm:$0xff] %v9097
          %9112 = vst [vmem:[%s7 + $0x38] sm:$0xff] %v9098
          %9113 = vst [vmem:[%s7 + $0x40] sm:$0xff] %v9099
          %9114 = vst [vmem:[%s7 + $0x48] sm:$0xff] %v9100
          %9115 = vst [vmem:[%s7 + $0x50] sm:$0xff] %v9101
          %9116 = vst [vmem:[%s7 + $0x58] sm:$0xff] %v9102
          %9117 = vst [vmem:[%s7 + $0x60] sm:$0x1] %v9103
          %9118 = vst [vmem:[%s7 + $0x68] sm:$0x1] %v9104
        $region107: #{m_forward.1} parent=66 // pred_fallthru
          _
        // Predicated region
        $region108: #{m_forward.1} parent=66 // pred_check
          %p9119 = pneg %p225
        $region109: #{m_forward.1} parent=66 // pred_check_branch
          %9121 = sbr.rel (%p9119) target = $region111
        $region110: #{m_forward.1} parent=66 // pred_region
          _
        $region111: #{m_forward.1} parent=66 // pred_fallthru
          _
        // Predicated region
        $region112: #{m_forward.1} parent=66 // pred_check
          %p9122 = pneg %p225
        $region113: #{m_forward.1} parent=66 // pred_check_branch
          %9124 = sbr.rel (%p9122) target = $region115
        $region114: #{m_forward.1} parent=66 // pred_region
          _
        $region115: #{m_forward.1} parent=66 // pred_fallthru
          _
      $region67: #{m_forward.1} parent=5 // pred_fallthru
        _
      %p9125 = scmp.le.s32.totalorder 2, %s25
      // Predicated region
      $region116: #{m_forward.1} parent=5 // pred_check
        %p9126 = pneg %p9125
      $region117: #{m_forward.1} parent=5 // pred_check_branch
        %9128 = sbr.rel (%p9126) target = $region119
      $region118: #{m_forward.1} parent=5 // pred_region
        %s9129 = ssub.s32 %s25, 2
      $region119: #{m_forward.1} parent=5 // pred_fallthru
        _
    $region6: #{m_forward.1} parent=1 // loop_footer
      %s29 = sadd.s32 1, %s25
    $region7: #{m_forward.1} parent=1 // loop_footer_branch
      %24 = sbr.rel target = $region3
    $region8: #{m_forward.1} parent=1 // loop_exit
      _
    %9130 = vsyncpa [#allocation6], 1
    %s9131 = scalar_lea.sflag [#allocation6], 1
    %9132 = vsyncpa %s9131, 1
    %9133 = vsyncpa [#allocation8], 1
    %s9134 = scalar_lea.sflag [#allocation8], 1
    %9135 = vsyncpa %s9134, 1
    %9136 = vsyncpa [#allocation11], 1
    %s9137 = scalar_lea.sflag [#allocation11], 1
    %9138 = vsyncpa %s9137, 1
    %9139 = vsyncpa [#allocation14], 1
    %s9140 = scalar_lea.sflag [#allocation14], 1
    %9141 = vsyncpa %s9140, 1

</llo_original>
